<compile_context>
chip_gen: v6e
topology: v6e:2x2x1
jax: 0.10.0
libtpu: 0.0.40
codegen_flags: <defaults>
</compile_context>

<pallas_src>
import functools
import jax
import jax.numpy as jnp
from jax.experimental import pallas as pl
from jax.experimental.pallas import tpu as pltpu

SQ = 3  # square_kernel_size of the RCA depthwise conv


# ----------------------------- in-kernel math helpers -----------------------------
def _erf(x):
    # Abramowitz & Stegun 7.1.26 rational approximation (max abs err ~1.5e-7).
    p = 0.3275911
    a1, a2, a3, a4, a5 = 0.254829592, -0.284496736, 1.421413741, -1.453152027, 1.061405429
    s = jnp.where(x >= 0.0, 1.0, -1.0)
    z = jnp.abs(x)
    t = 1.0 / (1.0 + p * z)
    poly = ((((a5 * t + a4) * t + a3) * t + a2) * t + a1) * t
    return s * (1.0 - poly * jnp.exp(-z * z))


def _gelu_exact(x):
    # PyTorch nn.GELU() (erf form), erf via polynomial approx.
    return 0.5 * x * (1.0 + _erf(x * 0.7071067811865476))


# ----------------------------- fused Pallas kernel: all RCM blocks -----------------------------
def _next_layer_kernel(block_num, K, H, W,
                       x_ref, pcv_ref, fc1wt_ref, fc1b_ref, fc2wt_ref, fc2b_ref,
                       m3_ref, mw_ref, mh_ref, ph1_ref, ph2_ref,
                       out_ref):
    HW = H * W
    pad = K // 2
    spad = SQ // 2
    # row indices inside the stacked per-channel parameter array pcv: (B, NV, C, 1)
    i_w1 = SQ * SQ            # K rows: (1,K) excite conv weights (excite-BN folded)
    i_w2 = i_w1 + K           # K rows: (K,1) excite conv weights
    i_b3 = i_w2 + K           # dw3x3 bias
    i_b1 = i_b3 + 1           # excite conv1 bias (BN folded)
    i_b2 = i_b3 + 2           # excite conv2 bias
    i_gm = i_b3 + 3           # layer-scale gamma

    def rollx(v, d):
        # out[:, j] = v[:, (j + d) % HW]  (circular; boundaries handled by the f32 masks)
        sh = (-d) % HW
        if sh == 0:
            return v
        return pltpu.roll(v, shift=sh, axis=1)

    a = x_ref[0]                                     # (C, H*W) activation, f32

    for b in range(block_num):
        shortcut = a

        # ---------- token mixer RCA: depthwise SQxSQ conv (loc) ----------
        loc = None
        t = 0
        for dy in range(-spad, spad + 1):
            for dx in range(-spad, spad + 1):
                tap = rollx(a, dy * W + dx) * m3_ref[t] * pcv_ref[b, t]
                loc = tap if loc is None else loc + tap
                t += 1
        loc = loc + pcv_ref[b, i_b3]

        # ---------- rectangular gather: x_h (mean over W), x_w (mean over H) ----------
        # mean over W via two tiny MXU matmuls; result already broadcast back over W.
        xh = jnp.dot(jnp.dot(a, ph1_ref[...], preferred_element_type=jnp.float32),
                     ph2_ref[...], preferred_element_type=jnp.float32)          # (C, HW)
        # mean over H via circular lane rolls of stride W (each row contributes exactly once).
        if H & (H - 1) == 0:
            s = a
            m = 1
            while m < H:
                s = s + pltpu.roll(s, shift=m * W, axis=1)
                m *= 2
        else:
            s = a
            for i in range(1, H):
                s = s + pltpu.roll(a, shift=(i * W) % HW, axis=1)
        xw = s * (1.0 / H)                                                       # (C, HW)

        # ---------- excite: (1,K) dw conv along W on gather = x_h + x_w (BN+ReLU folded) ----------
        e = None
        for k in range(K):
            term = (xh + rollx(xw, k - pad)) * mw_ref[k] * pcv_ref[b, i_w1 + k]
            e = term if e is None else e + term
        e = jnp.maximum(e + pcv_ref[b, i_b1], 0.0)

        # ---------- excite: (K,1) dw conv along H -> sigmoid gate ----------
        g = None
        for k in range(K):
            term = rollx(e, (k - pad) * W) * mh_ref[k] * pcv_ref[b, i_w2 + k]
            g = term if g is None else g + term
        g = g + pcv_ref[b, i_b2]
        att = 1.0 / (1.0 + jnp.exp(-g))
        tm = att * loc

        # ---------- ConvMlp (post-RCA BatchNorm folded into fc1) ----------
        h = jnp.dot(fc1wt_ref[b], tm, preferred_element_type=jnp.float32) + fc1b_ref[b]
        h = _gelu_exact(h)
        o = jnp.dot(fc2wt_ref[b], h, preferred_element_type=jnp.float32) + fc2b_ref[b]

        # ---------- layer scale + residual (DropPath == identity) ----------
        a = o * pcv_ref[b, i_gm] + shortcut

    out_ref[0] = a


# ----------------------------- host-side parameter preparation -----------------------------
def _prepare_kernel_params(block_params, H, W, K):
    pad = K // 2
    spad = SQ // 2
    HW = H * W

    pcv_rows, fc1wt, fc1b, fc2wt, fc2b = [], [], [], [], []
    for p in block_params:
        w1f = p["w1"] * p["bn1s"]                              # fold excite-BN scale
        b1f = p["b1"][0] * p["bn1s"][0] + p["bn1b"][0]         # fold excite-BN shift
        rows = [p["w3"][t] for t in range(SQ * SQ)]
        rows += [w1f[k] for k in range(K)]
        rows += [p["w2"][k] for k in range(K)]
        rows += [p["b3"][0], b1f, p["b2"][0], p["gamma"][0]]
        pcv_rows.append(jnp.stack(rows, axis=0))               # (NV, C)
        fc1wt.append((p["fc1w"] * p["ns"][0][:, None]).T)      # (Ch, C)  (norm-BN scale folded)
        fc1b.append(p["fc1b"][0] + p["nb"][0] @ p["fc1w"])     # (Ch,)    (norm-BN shift folded)
        fc2wt.append(p["fc2w"].T)                              # (C, Ch)
        fc2b.append(p["fc2b"][0])                              # (C,)

    pcv = jnp.stack(pcv_rows, 0)[..., None]                    # (B, NV, C, 1)
    fc1wt = jnp.stack(fc1wt, 0)                                # (B, Ch, C)
    fc1b = jnp.stack(fc1b, 0)[..., None]                       # (B, Ch, 1)
    fc2wt = jnp.stack(fc2wt, 0)                                # (B, C, Ch)
    fc2b = jnp.stack(fc2b, 0)[..., None]                       # (B, C, 1)

    hh = jnp.arange(HW, dtype=jnp.int32) // W
    ww = jnp.arange(HW, dtype=jnp.int32) % W

    def wvalid(d):
        return ((ww + d >= 0) & (ww + d < W)).astype(jnp.float32)

    def hvalid(d):
        return ((hh + d >= 0) & (hh + d < H)).astype(jnp.float32)

    m3 = jnp.stack([hvalid(dy) * wvalid(dx)
                    for dy in range(-spad, spad + 1)
                    for dx in range(-spad, spad + 1)], 0)[:, None, :]      # (SQ*SQ, 1, HW)
    mw = jnp.stack([wvalid(k - pad) for k in range(K)], 0)[:, None, :]      # (K, 1, HW)
    mh = jnp.stack([hvalid(k - pad) for k in range(K)], 0)[:, None, :]      # (K, 1, HW)
    ph1 = (hh[:, None] == jnp.arange(H)[None, :]).astype(jnp.float32) / W   # (HW, H) pool over W
    ph2 = (jnp.arange(H)[:, None] == hh[None, :]).astype(jnp.float32)       # (H, HW) broadcast back

    return dict(pcv=pcv, fc1wt=fc1wt, fc1b=fc1b, fc2wt=fc2wt, fc2b=fc2b,
                m3=m3, mw=mw, mh=mh, ph1=ph1, ph2=ph2)


def _full_spec(shape):
    zeros = (0,) * len(shape)
    return pl.BlockSpec(tuple(shape), lambda n: zeros)


def next_layer_pallas(x_nchw, block_params, K):
    """x_nchw: (N, C, H, W) float32. Applies all RCM blocks in one fused pallas_call."""
    N, C, H, W = x_nchw.shape
    HW = H * W
    B = len(block_params)
    prm = _prepare_kernel_params(block_params, H, W, K)

    weight_args = [prm["pcv"], prm["fc1wt"], prm["fc1b"], prm["fc2wt"], prm["fc2b"],
                   prm["m3"], prm["mw"], prm["mh"], prm["ph1"], prm["ph2"]]
    in_specs = [pl.BlockSpec((1, C, HW), lambda n: (n, 0, 0))] \
        + [_full_spec(w.shape) for w in weight_args]

    kern = functools.partial(_next_layer_kernel, B, K, H, W)
    out = pl.pallas_call(
        kern,
        out_shape=jax.ShapeDtypeStruct((N, C, HW), jnp.float32),
        grid_spec=pltpu.PrefetchScalarGridSpec(
            num_scalar_prefetch=0,
            grid=(N,),
            in_specs=in_specs,
            out_specs=pl.BlockSpec((1, C, HW), lambda n: (n, 0, 0)),
        ),
        compiler_params=pltpu.CompilerParams(
            dimension_semantics=("parallel",),
            vmem_limit_bytes=32 * 1024 * 1024,
        ),
    )(x_nchw.reshape(N, C, HW), *weight_args)
    return out.reshape(N, C, H, W)


# ----------------------------- pure-JAX reference (NHWC) -----------------------------
def _rcm_block_ref(x, p, K):
    N, H, W, C = x.shape
    pad = K // 2
    w3 = p["w3"].reshape(SQ, SQ, C)
    xp = jnp.pad(x, ((0, 0), (1, 1), (1, 1), (0, 0)))
    loc = jnp.zeros_like(x)
    for ky in range(SQ):
        for kx in range(SQ):
            loc = loc + xp[:, ky:ky + H, kx:kx + W, :] * w3[ky, kx]
    loc = loc + p["b3"][0]
    gather = x.mean(axis=2, keepdims=True) + x.mean(axis=1, keepdims=True)
    gp = jnp.pad(gather, ((0, 0), (0, 0), (pad, pad), (0, 0)))
    e = jnp.zeros_like(x)
    for k in range(K):
        e = e + gp[:, :, k:k + W, :] * p["w1"][k]
    e = jax.nn.relu((e + p["b1"][0]) * p["bn1s"][0] + p["bn1b"][0])
    ep = jnp.pad(e, ((0, 0), (pad, pad), (0, 0), (0, 0)))
    g = jnp.zeros_like(x)
    for k in range(K):
        g = g + ep[:, k:k + H, :, :] * p["w2"][k]
    att = jax.nn.sigmoid(g + p["b2"][0])
    tm = att * loc
    y = tm * p["ns"][0] + p["nb"][0]
    yf = y.reshape(-1, C)
    h = jnp.dot(yf, p["fc1w"], precision=jax.lax.Precision.HIGHEST) + p["fc1b"][0]
    h = 0.5 * h * (1.0 + jax.scipy.special.erf(h / jnp.sqrt(2.0)))
    o = jnp.dot(h, p["fc2w"], precision=jax.lax.Precision.HIGHEST) + p["fc2b"][0]
    o = o.reshape(N, H, W, C)
    return o * p["gamma"][0] + x


def next_layer_ref(x_nhwc, block_params, K):
    for p in block_params:
        x_nhwc = _rcm_block_ref(x_nhwc, p, K)
    return x_nhwc


# ----------------------------- deterministic synthetic parameters -----------------------------
def init_block_params(key, C, Ch, K):
    ks = jax.random.split(key, 15)
    nrm = lambda k, shape, s: s * jax.random.normal(k, shape, jnp.float32)
    return dict(
        w3=nrm(ks[0], (SQ * SQ, C), 0.2),   b3=nrm(ks[1], (1, C), 0.1),
        w1=nrm(ks[2], (K, C), 0.2),         b1=nrm(ks[3], (1, C), 0.1),
        bn1s=1.0 + nrm(ks[4], (1, C), 0.1), bn1b=nrm(ks[5], (1, C), 0.1),
        w2=nrm(ks[6], (K, C), 0.2),         b2=nrm(ks[7], (1, C), 0.1),
        ns=1.0 + nrm(ks[8], (1, C), 0.1),   nb=nrm(ks[9], (1, C), 0.1),
        fc1w=nrm(ks[10], (C, Ch), 1.0 / (C ** 0.5)),  fc1b=nrm(ks[11], (1, Ch), 0.1),
        fc2w=nrm(ks[12], (Ch, C), 1.0 / (Ch ** 0.5)), fc2b=nrm(ks[13], (1, C), 0.1),
        # module init is ls_init_value*ones (1e-6); random here so the MLP branch is exercised.
        gamma=nrm(ks[14], (1, C), 0.5),
    )


if __name__ == "__main__":
    # NextLayer(block_num=2, embedding_dim=32, dw_size=7, mlp_ratio=2, square_kernel_size=3)
    N, C, H, W = 2, 32, 16, 16
    block_num, dw_size, mlp_ratio = 2, 7, 2
    Ch = int(mlp_ratio * C)

    key = jax.random.PRNGKey(0)
    kx, kp = jax.random.split(key)
    x_nchw = jax.random.normal(kx, (N, C, H, W), jnp.float32)   # PyTorch-style input
    x_nhwc = jnp.transpose(x_nchw, (0, 2, 3, 1))                # reference layout

    block_keys = jax.random.split(kp, block_num)
    block_params = [init_block_params(block_keys[i], C, Ch, dw_size) for i in range(block_num)]

    out = next_layer_pallas(x_nchw, block_params, dw_size)
    out = jax.block_until_ready(out)
    assert out.shape == (N, C, H, W)

    ref = jax.block_until_ready(next_layer_ref(x_nhwc, block_params, dw_size))
    out_nhwc = jnp.transpose(out, (0, 2, 3, 1))
    err = float(jnp.max(jnp.abs(out_nhwc - ref)))
    assert jnp.allclose(out_nhwc, ref, atol=5e-3, rtol=5e-3), err

    print("KERNEL_OK")
</pallas_src>

<mosaic_0001>
module attributes {stable_mosaic.version = 11 : i64} {
  func.func @_next_layer_kernel(%arg0: i32, %arg1: memref<1x32x256xf32, #tpu.memory_space<vmem>>, %arg2: memref<2x27x32x1xf32, #tpu.memory_space<vmem>>, %arg3: memref<2x64x32xf32, #tpu.memory_space<vmem>>, %arg4: memref<2x64x1xf32, #tpu.memory_space<vmem>>, %arg5: memref<2x32x64xf32, #tpu.memory_space<vmem>>, %arg6: memref<2x32x1xf32, #tpu.memory_space<vmem>>, %arg7: memref<9x1x256xf32, #tpu.memory_space<vmem>>, %arg8: memref<7x1x256xf32, #tpu.memory_space<vmem>>, %arg9: memref<7x1x256xf32, #tpu.memory_space<vmem>>, %arg10: memref<256x16xf32, #tpu.memory_space<vmem>>, %arg11: memref<16x256xf32, #tpu.memory_space<vmem>>, %arg12: memref<1x32x256xf32, #tpu.memory_space<vmem>>) attributes {dimension_semantics = [#tpu.dimension_semantics<parallel>], iteration_bounds = array<i64: 2>, scalar_prefetch = 0 : i64, scratch_operands = 0 : i64, tpu.core_type = #tpu.core_type<tc>, window_params = [{transform_indices = @transform_0, window_bounds = array<i64: 1, 32, 256>}, {pipeline_mode = #tpu.pipeline_mode<synchronous>, transform_indices = @transform_1, window_bounds = array<i64: 2, 27, 32, 1>}, {pipeline_mode = #tpu.pipeline_mode<synchronous>, transform_indices = @transform_2, window_bounds = array<i64: 2, 64, 32>}, {pipeline_mode = #tpu.pipeline_mode<synchronous>, transform_indices = @transform_3, window_bounds = array<i64: 2, 64, 1>}, {pipeline_mode = #tpu.pipeline_mode<synchronous>, transform_indices = @transform_4, window_bounds = array<i64: 2, 32, 64>}, {pipeline_mode = #tpu.pipeline_mode<synchronous>, transform_indices = @transform_5, window_bounds = array<i64: 2, 32, 1>}, {pipeline_mode = #tpu.pipeline_mode<synchronous>, transform_indices = @transform_6, window_bounds = array<i64: 9, 1, 256>}, {pipeline_mode = #tpu.pipeline_mode<synchronous>, transform_indices = @transform_7, window_bounds = array<i64: 7, 1, 256>}, {pipeline_mode = #tpu.pipeline_mode<synchronous>, transform_indices = @transform_8, window_bounds = array<i64: 7, 1, 256>}, {pipeline_mode = #tpu.pipeline_mode<synchronous>, transform_indices = @transform_9, window_bounds = array<i64: 256, 16>}, {pipeline_mode = #tpu.pipeline_mode<synchronous>, transform_indices = @transform_10, window_bounds = array<i64: 16, 256>}, {transform_indices = @transform_11, window_bounds = array<i64: 1, 32, 256>}]} {
    %c0 = arith.constant 0 : index
    %c0_0 = arith.constant 0 : index
    %c0_1 = arith.constant 0 : index
    %0 = vector.load %arg1[%c0, %c0_0, %c0_1] : memref<1x32x256xf32, #tpu.memory_space<vmem>>, vector<1x32x256xf32>
    %1 = vector.shape_cast %0 : vector<1x32x256xf32> to vector<32x256xf32>
    %c17_i32 = arith.constant 17 : i32
    %2 = tpu.dynamic_rotate %1 by %c17_i32 dim 1 : vector<32x256xf32>, i32 -> vector<32x256xf32>
    %c0_2 = arith.constant 0 : index
    %c0_3 = arith.constant 0 : index
    %c0_4 = arith.constant 0 : index
    %3 = vector.load %arg7[%c0_2, %c0_3, %c0_4] : memref<9x1x256xf32, #tpu.memory_space<vmem>>, vector<1x1x256xf32>
    %4 = vector.shape_cast %3 : vector<1x1x256xf32> to vector<1x256xf32>
    %5 = vector.broadcast %4 : vector<1x256xf32> to vector<32x256xf32>
    %6 = arith.mulf %2, %5 : vector<32x256xf32>
    %c0_5 = arith.constant 0 : index
    %c0_6 = arith.constant 0 : index
    %c0_7 = arith.constant 0 : index
    %c0_8 = arith.constant 0 : index
    %7 = vector.load %arg2[%c0_5, %c0_6, %c0_7, %c0_8] : memref<2x27x32x1xf32, #tpu.memory_space<vmem>>, vector<1x1x32x1xf32>
    %8 = vector.shape_cast %7 : vector<1x1x32x1xf32> to vector<32x1xf32>
    %9 = vector.broadcast %8 : vector<32x1xf32> to vector<32x256xf32>
    %10 = arith.mulf %6, %9 : vector<32x256xf32>
    %c16_i32 = arith.constant 16 : i32
    %11 = tpu.dynamic_rotate %1 by %c16_i32 dim 1 : vector<32x256xf32>, i32 -> vector<32x256xf32>
    %c1 = arith.constant 1 : index
    %c0_9 = arith.constant 0 : index
    %c0_10 = arith.constant 0 : index
    %12 = vector.load %arg7[%c1, %c0_9, %c0_10] : memref<9x1x256xf32, #tpu.memory_space<vmem>>, vector<1x1x256xf32>
    %13 = vector.shape_cast %12 : vector<1x1x256xf32> to vector<1x256xf32>
    %14 = vector.broadcast %13 : vector<1x256xf32> to vector<32x256xf32>
    %15 = arith.mulf %11, %14 : vector<32x256xf32>
    %c0_11 = arith.constant 0 : index
    %c1_12 = arith.constant 1 : index
    %c0_13 = arith.constant 0 : index
    %c0_14 = arith.constant 0 : index
    %16 = vector.load %arg2[%c0_11, %c1_12, %c0_13, %c0_14] : memref<2x27x32x1xf32, #tpu.memory_space<vmem>>, vector<1x1x32x1xf32>
    %17 = vector.shape_cast %16 : vector<1x1x32x1xf32> to vector<32x1xf32>
    %18 = vector.broadcast %17 : vector<32x1xf32> to vector<32x256xf32>
    %19 = arith.mulf %15, %18 : vector<32x256xf32>
    %20 = arith.addf %10, %19 : vector<32x256xf32>
    %c15_i32 = arith.constant 15 : i32
    %21 = tpu.dynamic_rotate %1 by %c15_i32 dim 1 : vector<32x256xf32>, i32 -> vector<32x256xf32>
    %c2 = arith.constant 2 : index
    %c0_15 = arith.constant 0 : index
    %c0_16 = arith.constant 0 : index
    %22 = vector.load %arg7[%c2, %c0_15, %c0_16] : memref<9x1x256xf32, #tpu.memory_space<vmem>>, vector<1x1x256xf32>
    %23 = vector.shape_cast %22 : vector<1x1x256xf32> to vector<1x256xf32>
    %24 = vector.broadcast %23 : vector<1x256xf32> to vector<32x256xf32>
    %25 = arith.mulf %21, %24 : vector<32x256xf32>
    %c0_17 = arith.constant 0 : index
    %c2_18 = arith.constant 2 : index
    %c0_19 = arith.constant 0 : index
    %c0_20 = arith.constant 0 : index
    %26 = vector.load %arg2[%c0_17, %c2_18, %c0_19, %c0_20] : memref<2x27x32x1xf32, #tpu.memory_space<vmem>>, vector<1x1x32x1xf32>
    %27 = vector.shape_cast %26 : vector<1x1x32x1xf32> to vector<32x1xf32>
    %28 = vector.broadcast %27 : vector<32x1xf32> to vector<32x256xf32>
    %29 = arith.mulf %25, %28 : vector<32x256xf32>
    %30 = arith.addf %20, %29 : vector<32x256xf32>
    %c1_i32 = arith.constant 1 : i32
    %31 = tpu.dynamic_rotate %1 by %c1_i32 dim 1 : vector<32x256xf32>, i32 -> vector<32x256xf32>
    %c3 = arith.constant 3 : index
    %c0_21 = arith.constant 0 : index
    %c0_22 = arith.constant 0 : index
    %32 = vector.load %arg7[%c3, %c0_21, %c0_22] : memref<9x1x256xf32, #tpu.memory_space<vmem>>, vector<1x1x256xf32>
    %33 = vector.shape_cast %32 : vector<1x1x256xf32> to vector<1x256xf32>
    %34 = vector.broadcast %33 : vector<1x256xf32> to vector<32x256xf32>
    %35 = arith.mulf %31, %34 : vector<32x256xf32>
    %c0_23 = arith.constant 0 : index
    %c3_24 = arith.constant 3 : index
    %c0_25 = arith.constant 0 : index
    %c0_26 = arith.constant 0 : index
    %36 = vector.load %arg2[%c0_23, %c3_24, %c0_25, %c0_26] : memref<2x27x32x1xf32, #tpu.memory_space<vmem>>, vector<1x1x32x1xf32>
    %37 = vector.shape_cast %36 : vector<1x1x32x1xf32> to vector<32x1xf32>
    %38 = vector.broadcast %37 : vector<32x1xf32> to vector<32x256xf32>
    %39 = arith.mulf %35, %38 : vector<32x256xf32>
    %40 = arith.addf %30, %39 : vector<32x256xf32>
    %c4 = arith.constant 4 : index
    %c0_27 = arith.constant 0 : index
    %c0_28 = arith.constant 0 : index
    %41 = vector.load %arg7[%c4, %c0_27, %c0_28] : memref<9x1x256xf32, #tpu.memory_space<vmem>>, vector<1x1x256xf32>
    %42 = vector.shape_cast %41 : vector<1x1x256xf32> to vector<1x256xf32>
    %43 = vector.broadcast %42 : vector<1x256xf32> to vector<32x256xf32>
    %44 = arith.mulf %1, %43 : vector<32x256xf32>
    %c0_29 = arith.constant 0 : index
    %c4_30 = arith.constant 4 : index
    %c0_31 = arith.constant 0 : index
    %c0_32 = arith.constant 0 : index
    %45 = vector.load %arg2[%c0_29, %c4_30, %c0_31, %c0_32] : memref<2x27x32x1xf32, #tpu.memory_space<vmem>>, vector<1x1x32x1xf32>
    %46 = vector.shape_cast %45 : vector<1x1x32x1xf32> to vector<32x1xf32>
    %47 = vector.broadcast %46 : vector<32x1xf32> to vector<32x256xf32>
    %48 = arith.mulf %44, %47 : vector<32x256xf32>
    %49 = arith.addf %40, %48 : vector<32x256xf32>
    %c255_i32 = arith.constant 255 : i32
    %50 = tpu.dynamic_rotate %1 by %c255_i32 dim 1 : vector<32x256xf32>, i32 -> vector<32x256xf32>
    %c5 = arith.constant 5 : index
    %c0_33 = arith.constant 0 : index
    %c0_34 = arith.constant 0 : index
    %51 = vector.load %arg7[%c5, %c0_33, %c0_34] : memref<9x1x256xf32, #tpu.memory_space<vmem>>, vector<1x1x256xf32>
    %52 = vector.shape_cast %51 : vector<1x1x256xf32> to vector<1x256xf32>
    %53 = vector.broadcast %52 : vector<1x256xf32> to vector<32x256xf32>
    %54 = arith.mulf %50, %53 : vector<32x256xf32>
    %c0_35 = arith.constant 0 : index
    %c5_36 = arith.constant 5 : index
    %c0_37 = arith.constant 0 : index
    %c0_38 = arith.constant 0 : index
    %55 = vector.load %arg2[%c0_35, %c5_36, %c0_37, %c0_38] : memref<2x27x32x1xf32, #tpu.memory_space<vmem>>, vector<1x1x32x1xf32>
    %56 = vector.shape_cast %55 : vector<1x1x32x1xf32> to vector<32x1xf32>
    %57 = vector.broadcast %56 : vector<32x1xf32> to vector<32x256xf32>
    %58 = arith.mulf %54, %57 : vector<32x256xf32>
    %59 = arith.addf %49, %58 : vector<32x256xf32>
    %c241_i32 = arith.constant 241 : i32
    %60 = tpu.dynamic_rotate %1 by %c241_i32 dim 1 : vector<32x256xf32>, i32 -> vector<32x256xf32>
    %c6 = arith.constant 6 : index
    %c0_39 = arith.constant 0 : index
    %c0_40 = arith.constant 0 : index
    %61 = vector.load %arg7[%c6, %c0_39, %c0_40] : memref<9x1x256xf32, #tpu.memory_space<vmem>>, vector<1x1x256xf32>
    %62 = vector.shape_cast %61 : vector<1x1x256xf32> to vector<1x256xf32>
    %63 = vector.broadcast %62 : vector<1x256xf32> to vector<32x256xf32>
    %64 = arith.mulf %60, %63 : vector<32x256xf32>
    %c0_41 = arith.constant 0 : index
    %c6_42 = arith.constant 6 : index
    %c0_43 = arith.constant 0 : index
    %c0_44 = arith.constant 0 : index
    %65 = vector.load %arg2[%c0_41, %c6_42, %c0_43, %c0_44] : memref<2x27x32x1xf32, #tpu.memory_space<vmem>>, vector<1x1x32x1xf32>
    %66 = vector.shape_cast %65 : vector<1x1x32x1xf32> to vector<32x1xf32>
    %67 = vector.broadcast %66 : vector<32x1xf32> to vector<32x256xf32>
    %68 = arith.mulf %64, %67 : vector<32x256xf32>
    %69 = arith.addf %59, %68 : vector<32x256xf32>
    %c240_i32 = arith.constant 240 : i32
    %70 = tpu.dynamic_rotate %1 by %c240_i32 dim 1 : vector<32x256xf32>, i32 -> vector<32x256xf32>
    %c7 = arith.constant 7 : index
    %c0_45 = arith.constant 0 : index
    %c0_46 = arith.constant 0 : index
    %71 = vector.load %arg7[%c7, %c0_45, %c0_46] : memref<9x1x256xf32, #tpu.memory_space<vmem>>, vector<1x1x256xf32>
    %72 = vector.shape_cast %71 : vector<1x1x256xf32> to vector<1x256xf32>
    %73 = vector.broadcast %72 : vector<1x256xf32> to vector<32x256xf32>
    %74 = arith.mulf %70, %73 : vector<32x256xf32>
    %c0_47 = arith.constant 0 : index
    %c7_48 = arith.constant 7 : index
    %c0_49 = arith.constant 0 : index
    %c0_50 = arith.constant 0 : index
    %75 = vector.load %arg2[%c0_47, %c7_48, %c0_49, %c0_50] : memref<2x27x32x1xf32, #tpu.memory_space<vmem>>, vector<1x1x32x1xf32>
    %76 = vector.shape_cast %75 : vector<1x1x32x1xf32> to vector<32x1xf32>
    %77 = vector.broadcast %76 : vector<32x1xf32> to vector<32x256xf32>
    %78 = arith.mulf %74, %77 : vector<32x256xf32>
    %79 = arith.addf %69, %78 : vector<32x256xf32>
    %c239_i32 = arith.constant 239 : i32
    %80 = tpu.dynamic_rotate %1 by %c239_i32 dim 1 : vector<32x256xf32>, i32 -> vector<32x256xf32>
    %c8 = arith.constant 8 : index
    %c0_51 = arith.constant 0 : index
    %c0_52 = arith.constant 0 : index
    %81 = vector.load %arg7[%c8, %c0_51, %c0_52] : memref<9x1x256xf32, #tpu.memory_space<vmem>>, vector<1x1x256xf32>
    %82 = vector.shape_cast %81 : vector<1x1x256xf32> to vector<1x256xf32>
    %83 = vector.broadcast %82 : vector<1x256xf32> to vector<32x256xf32>
    %84 = arith.mulf %80, %83 : vector<32x256xf32>
    %c0_53 = arith.constant 0 : index
    %c8_54 = arith.constant 8 : index
    %c0_55 = arith.constant 0 : index
    %c0_56 = arith.constant 0 : index
    %85 = vector.load %arg2[%c0_53, %c8_54, %c0_55, %c0_56] : memref<2x27x32x1xf32, #tpu.memory_space<vmem>>, vector<1x1x32x1xf32>
    %86 = vector.shape_cast %85 : vector<1x1x32x1xf32> to vector<32x1xf32>
    %87 = vector.broadcast %86 : vector<32x1xf32> to vector<32x256xf32>
    %88 = arith.mulf %84, %87 : vector<32x256xf32>
    %89 = arith.addf %79, %88 : vector<32x256xf32>
    %c0_57 = arith.constant 0 : index
    %c23 = arith.constant 23 : index
    %c0_58 = arith.constant 0 : index
    %c0_59 = arith.constant 0 : index
    %90 = vector.load %arg2[%c0_57, %c23, %c0_58, %c0_59] : memref<2x27x32x1xf32, #tpu.memory_space<vmem>>, vector<1x1x32x1xf32>
    %91 = vector.shape_cast %90 : vector<1x1x32x1xf32> to vector<32x1xf32>
    %92 = vector.broadcast %91 : vector<32x1xf32> to vector<32x256xf32>
    %93 = arith.addf %89, %92 : vector<32x256xf32>
    %c0_60 = arith.constant 0 : index
    %c0_61 = arith.constant 0 : index
    %94 = vector.load %arg10[%c0_60, %c0_61] : memref<256x16xf32, #tpu.memory_space<vmem>>, vector<256x16xf32>
    %cst = arith.constant dense<0.000000e+00> : vector<32x16xf32>
    %95 = tpu.matmul %1, %94, %cst {dimension_numbers = #tpu.dot_dimension_numbers<[1], [0], [0], [1], [0, 0, 1, 1], [], []>} : vector<32x256xf32>, vector<256x16xf32>, vector<32x16xf32> -> vector<32x16xf32>
    %c0_62 = arith.constant 0 : index
    %c0_63 = arith.constant 0 : index
    %96 = vector.load %arg11[%c0_62, %c0_63] : memref<16x256xf32, #tpu.memory_space<vmem>>, vector<16x256xf32>
    %cst_64 = arith.constant dense<0.000000e+00> : vector<32x256xf32>
    %97 = tpu.matmul %95, %96, %cst_64 {dimension_numbers = #tpu.dot_dimension_numbers<[1], [0], [0], [1], [0, 0, 1, 1], [], []>} : vector<32x16xf32>, vector<16x256xf32>, vector<32x256xf32> -> vector<32x256xf32>
    %c16_i32_65 = arith.constant 16 : i32
    %98 = tpu.dynamic_rotate %1 by %c16_i32_65 dim 1 : vector<32x256xf32>, i32 -> vector<32x256xf32>
    %99 = arith.addf %1, %98 : vector<32x256xf32>
    %c32_i32 = arith.constant 32 : i32
    %100 = tpu.dynamic_rotate %99 by %c32_i32 dim 1 : vector<32x256xf32>, i32 -> vector<32x256xf32>
    %101 = arith.addf %99, %100 : vector<32x256xf32>
    %c64_i32 = arith.constant 64 : i32
    %102 = tpu.dynamic_rotate %101 by %c64_i32 dim 1 : vector<32x256xf32>, i32 -> vector<32x256xf32>
    %103 = arith.addf %101, %102 : vector<32x256xf32>
    %c128_i32 = arith.constant 128 : i32
    %104 = tpu.dynamic_rotate %103 by %c128_i32 dim 1 : vector<32x256xf32>, i32 -> vector<32x256xf32>
    %105 = arith.addf %103, %104 : vector<32x256xf32>
    %cst_66 = arith.constant 6.250000e-02 : f32
    %106 = vector.broadcast %cst_66 : f32 to vector<32x256xf32>
    %107 = arith.mulf %105, %106 : vector<32x256xf32>
    %c3_i32 = arith.constant 3 : i32
    %108 = tpu.dynamic_rotate %107 by %c3_i32 dim 1 : vector<32x256xf32>, i32 -> vector<32x256xf32>
    %109 = arith.addf %97, %108 : vector<32x256xf32>
    %c0_67 = arith.constant 0 : index
    %c0_68 = arith.constant 0 : index
    %c0_69 = arith.constant 0 : index
    %110 = vector.load %arg8[%c0_67, %c0_68, %c0_69] : memref<7x1x256xf32, #tpu.memory_space<vmem>>, vector<1x1x256xf32>
    %111 = vector.shape_cast %110 : vector<1x1x256xf32> to vector<1x256xf32>
    %112 = vector.broadcast %111 : vector<1x256xf32> to vector<32x256xf32>
    %113 = arith.mulf %109, %112 : vector<32x256xf32>
    %c0_70 = arith.constant 0 : index
    %c9 = arith.constant 9 : index
    %c0_71 = arith.constant 0 : index
    %c0_72 = arith.constant 0 : index
    %114 = vector.load %arg2[%c0_70, %c9, %c0_71, %c0_72] : memref<2x27x32x1xf32, #tpu.memory_space<vmem>>, vector<1x1x32x1xf32>
    %115 = vector.shape_cast %114 : vector<1x1x32x1xf32> to vector<32x1xf32>
    %116 = vector.broadcast %115 : vector<32x1xf32> to vector<32x256xf32>
    %117 = arith.mulf %113, %116 : vector<32x256xf32>
    %c2_i32 = arith.constant 2 : i32
    %118 = tpu.dynamic_rotate %107 by %c2_i32 dim 1 : vector<32x256xf32>, i32 -> vector<32x256xf32>
    %119 = arith.addf %97, %118 : vector<32x256xf32>
    %c1_73 = arith.constant 1 : index
    %c0_74 = arith.constant 0 : index
    %c0_75 = arith.constant 0 : index
    %120 = vector.load %arg8[%c1_73, %c0_74, %c0_75] : memref<7x1x256xf32, #tpu.memory_space<vmem>>, vector<1x1x256xf32>
    %121 = vector.shape_cast %120 : vector<1x1x256xf32> to vector<1x256xf32>
    %122 = vector.broadcast %121 : vector<1x256xf32> to vector<32x256xf32>
    %123 = arith.mulf %119, %122 : vector<32x256xf32>
    %c0_76 = arith.constant 0 : index
    %c10 = arith.constant 10 : index
    %c0_77 = arith.constant 0 : index
    %c0_78 = arith.constant 0 : index
    %124 = vector.load %arg2[%c0_76, %c10, %c0_77, %c0_78] : memref<2x27x32x1xf32, #tpu.memory_space<vmem>>, vector<1x1x32x1xf32>
    %125 = vector.shape_cast %124 : vector<1x1x32x1xf32> to vector<32x1xf32>
    %126 = vector.broadcast %125 : vector<32x1xf32> to vector<32x256xf32>
    %127 = arith.mulf %123, %126 : vector<32x256xf32>
    %128 = arith.addf %117, %127 : vector<32x256xf32>
    %c1_i32_79 = arith.constant 1 : i32
    %129 = tpu.dynamic_rotate %107 by %c1_i32_79 dim 1 : vector<32x256xf32>, i32 -> vector<32x256xf32>
    %130 = arith.addf %97, %129 : vector<32x256xf32>
    %c2_80 = arith.constant 2 : index
    %c0_81 = arith.constant 0 : index
    %c0_82 = arith.constant 0 : index
    %131 = vector.load %arg8[%c2_80, %c0_81, %c0_82] : memref<7x1x256xf32, #tpu.memory_space<vmem>>, vector<1x1x256xf32>
    %132 = vector.shape_cast %131 : vector<1x1x256xf32> to vector<1x256xf32>
    %133 = vector.broadcast %132 : vector<1x256xf32> to vector<32x256xf32>
    %134 = arith.mulf %130, %133 : vector<32x256xf32>
    %c0_83 = arith.constant 0 : index
    %c11 = arith.constant 11 : index
    %c0_84 = arith.constant 0 : index
    %c0_85 = arith.constant 0 : index
    %135 = vector.load %arg2[%c0_83, %c11, %c0_84, %c0_85] : memref<2x27x32x1xf32, #tpu.memory_space<vmem>>, vector<1x1x32x1xf32>
    %136 = vector.shape_cast %135 : vector<1x1x32x1xf32> to vector<32x1xf32>
    %137 = vector.broadcast %136 : vector<32x1xf32> to vector<32x256xf32>
    %138 = arith.mulf %134, %137 : vector<32x256xf32>
    %139 = arith.addf %128, %138 : vector<32x256xf32>
    %140 = arith.addf %97, %107 : vector<32x256xf32>
    %c3_86 = arith.constant 3 : index
    %c0_87 = arith.constant 0 : index
    %c0_88 = arith.constant 0 : index
    %141 = vector.load %arg8[%c3_86, %c0_87, %c0_88] : memref<7x1x256xf32, #tpu.memory_space<vmem>>, vector<1x1x256xf32>
    %142 = vector.shape_cast %141 : vector<1x1x256xf32> to vector<1x256xf32>
    %143 = vector.broadcast %142 : vector<1x256xf32> to vector<32x256xf32>
    %144 = arith.mulf %140, %143 : vector<32x256xf32>
    %c0_89 = arith.constant 0 : index
    %c12 = arith.constant 12 : index
    %c0_90 = arith.constant 0 : index
    %c0_91 = arith.constant 0 : index
    %145 = vector.load %arg2[%c0_89, %c12, %c0_90, %c0_91] : memref<2x27x32x1xf32, #tpu.memory_space<vmem>>, vector<1x1x32x1xf32>
    %146 = vector.shape_cast %145 : vector<1x1x32x1xf32> to vector<32x1xf32>
    %147 = vector.broadcast %146 : vector<32x1xf32> to vector<32x256xf32>
    %148 = arith.mulf %144, %147 : vector<32x256xf32>
    %149 = arith.addf %139, %148 : vector<32x256xf32>
    %c255_i32_92 = arith.constant 255 : i32
    %150 = tpu.dynamic_rotate %107 by %c255_i32_92 dim 1 : vector<32x256xf32>, i32 -> vector<32x256xf32>
    %151 = arith.addf %97, %150 : vector<32x256xf32>
    %c4_93 = arith.constant 4 : index
    %c0_94 = arith.constant 0 : index
    %c0_95 = arith.constant 0 : index
    %152 = vector.load %arg8[%c4_93, %c0_94, %c0_95] : memref<7x1x256xf32, #tpu.memory_space<vmem>>, vector<1x1x256xf32>
    %153 = vector.shape_cast %152 : vector<1x1x256xf32> to vector<1x256xf32>
    %154 = vector.broadcast %153 : vector<1x256xf32> to vector<32x256xf32>
    %155 = arith.mulf %151, %154 : vector<32x256xf32>
    %c0_96 = arith.constant 0 : index
    %c13 = arith.constant 13 : index
    %c0_97 = arith.constant 0 : index
    %c0_98 = arith.constant 0 : index
    %156 = vector.load %arg2[%c0_96, %c13, %c0_97, %c0_98] : memref<2x27x32x1xf32, #tpu.memory_space<vmem>>, vector<1x1x32x1xf32>
    %157 = vector.shape_cast %156 : vector<1x1x32x1xf32> to vector<32x1xf32>
    %158 = vector.broadcast %157 : vector<32x1xf32> to vector<32x256xf32>
    %159 = arith.mulf %155, %158 : vector<32x256xf32>
    %160 = arith.addf %149, %159 : vector<32x256xf32>
    %c254_i32 = arith.constant 254 : i32
    %161 = tpu.dynamic_rotate %107 by %c254_i32 dim 1 : vector<32x256xf32>, i32 -> vector<32x256xf32>
    %162 = arith.addf %97, %161 : vector<32x256xf32>
    %c5_99 = arith.constant 5 : index
    %c0_100 = arith.constant 0 : index
    %c0_101 = arith.constant 0 : index
    %163 = vector.load %arg8[%c5_99, %c0_100, %c0_101] : memref<7x1x256xf32, #tpu.memory_space<vmem>>, vector<1x1x256xf32>
    %164 = vector.shape_cast %163 : vector<1x1x256xf32> to vector<1x256xf32>
    %165 = vector.broadcast %164 : vector<1x256xf32> to vector<32x256xf32>
    %166 = arith.mulf %162, %165 : vector<32x256xf32>
    %c0_102 = arith.constant 0 : index
    %c14 = arith.constant 14 : index
    %c0_103 = arith.constant 0 : index
    %c0_104 = arith.constant 0 : index
    %167 = vector.load %arg2[%c0_102, %c14, %c0_103, %c0_104] : memref<2x27x32x1xf32, #tpu.memory_space<vmem>>, vector<1x1x32x1xf32>
    %168 = vector.shape_cast %167 : vector<1x1x32x1xf32> to vector<32x1xf32>
    %169 = vector.broadcast %168 : vector<32x1xf32> to vector<32x256xf32>
    %170 = arith.mulf %166, %169 : vector<32x256xf32>
    %171 = arith.addf %160, %170 : vector<32x256xf32>
    %c253_i32 = arith.constant 253 : i32
    %172 = tpu.dynamic_rotate %107 by %c253_i32 dim 1 : vector<32x256xf32>, i32 -> vector<32x256xf32>
    %173 = arith.addf %97, %172 : vector<32x256xf32>
    %c6_105 = arith.constant 6 : index
    %c0_106 = arith.constant 0 : index
    %c0_107 = arith.constant 0 : index
    %174 = vector.load %arg8[%c6_105, %c0_106, %c0_107] : memref<7x1x256xf32, #tpu.memory_space<vmem>>, vector<1x1x256xf32>
    %175 = vector.shape_cast %174 : vector<1x1x256xf32> to vector<1x256xf32>
    %176 = vector.broadcast %175 : vector<1x256xf32> to vector<32x256xf32>
    %177 = arith.mulf %173, %176 : vector<32x256xf32>
    %c0_108 = arith.constant 0 : index
    %c15 = arith.constant 15 : index
    %c0_109 = arith.constant 0 : index
    %c0_110 = arith.constant 0 : index
    %178 = vector.load %arg2[%c0_108, %c15, %c0_109, %c0_110] : memref<2x27x32x1xf32, #tpu.memory_space<vmem>>, vector<1x1x32x1xf32>
    %179 = vector.shape_cast %178 : vector<1x1x32x1xf32> to vector<32x1xf32>
    %180 = vector.broadcast %179 : vector<32x1xf32> to vector<32x256xf32>
    %181 = arith.mulf %177, %180 : vector<32x256xf32>
    %182 = arith.addf %171, %181 : vector<32x256xf32>
    %c0_111 = arith.constant 0 : index
    %c24 = arith.constant 24 : index
    %c0_112 = arith.constant 0 : index
    %c0_113 = arith.constant 0 : index
    %183 = vector.load %arg2[%c0_111, %c24, %c0_112, %c0_113] : memref<2x27x32x1xf32, #tpu.memory_space<vmem>>, vector<1x1x32x1xf32>
    %184 = vector.shape_cast %183 : vector<1x1x32x1xf32> to vector<32x1xf32>
    %185 = vector.broadcast %184 : vector<32x1xf32> to vector<32x256xf32>
    %186 = arith.addf %182, %185 : vector<32x256xf32>
    %cst_114 = arith.constant 0.000000e+00 : f32
    %187 = vector.broadcast %cst_114 : f32 to vector<32x256xf32>
    %188 = arith.maximumf %186, %187 : vector<32x256xf32>
    %c48_i32 = arith.constant 48 : i32
    %189 = tpu.dynamic_rotate %188 by %c48_i32 dim 1 : vector<32x256xf32>, i32 -> vector<32x256xf32>
    %c0_115 = arith.constant 0 : index
    %c0_116 = arith.constant 0 : index
    %c0_117 = arith.constant 0 : index
    %190 = vector.load %arg9[%c0_115, %c0_116, %c0_117] : memref<7x1x256xf32, #tpu.memory_space<vmem>>, vector<1x1x256xf32>
    %191 = vector.shape_cast %190 : vector<1x1x256xf32> to vector<1x256xf32>
    %192 = vector.broadcast %191 : vector<1x256xf32> to vector<32x256xf32>
    %193 = arith.mulf %189, %192 : vector<32x256xf32>
    %c0_118 = arith.constant 0 : index
    %c16 = arith.constant 16 : index
    %c0_119 = arith.constant 0 : index
    %c0_120 = arith.constant 0 : index
    %194 = vector.load %arg2[%c0_118, %c16, %c0_119, %c0_120] : memref<2x27x32x1xf32, #tpu.memory_space<vmem>>, vector<1x1x32x1xf32>
    %195 = vector.shape_cast %194 : vector<1x1x32x1xf32> to vector<32x1xf32>
    %196 = vector.broadcast %195 : vector<32x1xf32> to vector<32x256xf32>
    %197 = arith.mulf %193, %196 : vector<32x256xf32>
    %c32_i32_121 = arith.constant 32 : i32
    %198 = tpu.dynamic_rotate %188 by %c32_i32_121 dim 1 : vector<32x256xf32>, i32 -> vector<32x256xf32>
    %c1_122 = arith.constant 1 : index
    %c0_123 = arith.constant 0 : index
    %c0_124 = arith.constant 0 : index
    %199 = vector.load %arg9[%c1_122, %c0_123, %c0_124] : memref<7x1x256xf32, #tpu.memory_space<vmem>>, vector<1x1x256xf32>
    %200 = vector.shape_cast %199 : vector<1x1x256xf32> to vector<1x256xf32>
    %201 = vector.broadcast %200 : vector<1x256xf32> to vector<32x256xf32>
    %202 = arith.mulf %198, %201 : vector<32x256xf32>
    %c0_125 = arith.constant 0 : index
    %c17 = arith.constant 17 : index
    %c0_126 = arith.constant 0 : index
    %c0_127 = arith.constant 0 : index
    %203 = vector.load %arg2[%c0_125, %c17, %c0_126, %c0_127] : memref<2x27x32x1xf32, #tpu.memory_space<vmem>>, vector<1x1x32x1xf32>
    %204 = vector.shape_cast %203 : vector<1x1x32x1xf32> to vector<32x1xf32>
    %205 = vector.broadcast %204 : vector<32x1xf32> to vector<32x256xf32>
    %206 = arith.mulf %202, %205 : vector<32x256xf32>
    %207 = arith.addf %197, %206 : vector<32x256xf32>
    %c16_i32_128 = arith.constant 16 : i32
    %208 = tpu.dynamic_rotate %188 by %c16_i32_128 dim 1 : vector<32x256xf32>, i32 -> vector<32x256xf32>
    %c2_129 = arith.constant 2 : index
    %c0_130 = arith.constant 0 : index
    %c0_131 = arith.constant 0 : index
    %209 = vector.load %arg9[%c2_129, %c0_130, %c0_131] : memref<7x1x256xf32, #tpu.memory_space<vmem>>, vector<1x1x256xf32>
    %210 = vector.shape_cast %209 : vector<1x1x256xf32> to vector<1x256xf32>
    %211 = vector.broadcast %210 : vector<1x256xf32> to vector<32x256xf32>
    %212 = arith.mulf %208, %211 : vector<32x256xf32>
    %c0_132 = arith.constant 0 : index
    %c18 = arith.constant 18 : index
    %c0_133 = arith.constant 0 : index
    %c0_134 = arith.constant 0 : index
    %213 = vector.load %arg2[%c0_132, %c18, %c0_133, %c0_134] : memref<2x27x32x1xf32, #tpu.memory_space<vmem>>, vector<1x1x32x1xf32>
    %214 = vector.shape_cast %213 : vector<1x1x32x1xf32> to vector<32x1xf32>
    %215 = vector.broadcast %214 : vector<32x1xf32> to vector<32x256xf32>
    %216 = arith.mulf %212, %215 : vector<32x256xf32>
    %217 = arith.addf %207, %216 : vector<32x256xf32>
    %c3_135 = arith.constant 3 : index
    %c0_136 = arith.constant 0 : index
    %c0_137 = arith.constant 0 : index
    %218 = vector.load %arg9[%c3_135, %c0_136, %c0_137] : memref<7x1x256xf32, #tpu.memory_space<vmem>>, vector<1x1x256xf32>
    %219 = vector.shape_cast %218 : vector<1x1x256xf32> to vector<1x256xf32>
    %220 = vector.broadcast %219 : vector<1x256xf32> to vector<32x256xf32>
    %221 = arith.mulf %188, %220 : vector<32x256xf32>
    %c0_138 = arith.constant 0 : index
    %c19 = arith.constant 19 : index
    %c0_139 = arith.constant 0 : index
    %c0_140 = arith.constant 0 : index
    %222 = vector.load %arg2[%c0_138, %c19, %c0_139, %c0_140] : memref<2x27x32x1xf32, #tpu.memory_space<vmem>>, vector<1x1x32x1xf32>
    %223 = vector.shape_cast %222 : vector<1x1x32x1xf32> to vector<32x1xf32>
    %224 = vector.broadcast %223 : vector<32x1xf32> to vector<32x256xf32>
    %225 = arith.mulf %221, %224 : vector<32x256xf32>
    %226 = arith.addf %217, %225 : vector<32x256xf32>
    %c240_i32_141 = arith.constant 240 : i32
    %227 = tpu.dynamic_rotate %188 by %c240_i32_141 dim 1 : vector<32x256xf32>, i32 -> vector<32x256xf32>
    %c4_142 = arith.constant 4 : index
    %c0_143 = arith.constant 0 : index
    %c0_144 = arith.constant 0 : index
    %228 = vector.load %arg9[%c4_142, %c0_143, %c0_144] : memref<7x1x256xf32, #tpu.memory_space<vmem>>, vector<1x1x256xf32>
    %229 = vector.shape_cast %228 : vector<1x1x256xf32> to vector<1x256xf32>
    %230 = vector.broadcast %229 : vector<1x256xf32> to vector<32x256xf32>
    %231 = arith.mulf %227, %230 : vector<32x256xf32>
    %c0_145 = arith.constant 0 : index
    %c20 = arith.constant 20 : index
    %c0_146 = arith.constant 0 : index
    %c0_147 = arith.constant 0 : index
    %232 = vector.load %arg2[%c0_145, %c20, %c0_146, %c0_147] : memref<2x27x32x1xf32, #tpu.memory_space<vmem>>, vector<1x1x32x1xf32>
    %233 = vector.shape_cast %232 : vector<1x1x32x1xf32> to vector<32x1xf32>
    %234 = vector.broadcast %233 : vector<32x1xf32> to vector<32x256xf32>
    %235 = arith.mulf %231, %234 : vector<32x256xf32>
    %236 = arith.addf %226, %235 : vector<32x256xf32>
    %c224_i32 = arith.constant 224 : i32
    %237 = tpu.dynamic_rotate %188 by %c224_i32 dim 1 : vector<32x256xf32>, i32 -> vector<32x256xf32>
    %c5_148 = arith.constant 5 : index
    %c0_149 = arith.constant 0 : index
    %c0_150 = arith.constant 0 : index
    %238 = vector.load %arg9[%c5_148, %c0_149, %c0_150] : memref<7x1x256xf32, #tpu.memory_space<vmem>>, vector<1x1x256xf32>
    %239 = vector.shape_cast %238 : vector<1x1x256xf32> to vector<1x256xf32>
    %240 = vector.broadcast %239 : vector<1x256xf32> to vector<32x256xf32>
    %241 = arith.mulf %237, %240 : vector<32x256xf32>
    %c0_151 = arith.constant 0 : index
    %c21 = arith.constant 21 : index
    %c0_152 = arith.constant 0 : index
    %c0_153 = arith.constant 0 : index
    %242 = vector.load %arg2[%c0_151, %c21, %c0_152, %c0_153] : memref<2x27x32x1xf32, #tpu.memory_space<vmem>>, vector<1x1x32x1xf32>
    %243 = vector.shape_cast %242 : vector<1x1x32x1xf32> to vector<32x1xf32>
    %244 = vector.broadcast %243 : vector<32x1xf32> to vector<32x256xf32>
    %245 = arith.mulf %241, %244 : vector<32x256xf32>
    %246 = arith.addf %236, %245 : vector<32x256xf32>
    %c208_i32 = arith.constant 208 : i32
    %247 = tpu.dynamic_rotate %188 by %c208_i32 dim 1 : vector<32x256xf32>, i32 -> vector<32x256xf32>
    %c6_154 = arith.constant 6 : index
    %c0_155 = arith.constant 0 : index
    %c0_156 = arith.constant 0 : index
    %248 = vector.load %arg9[%c6_154, %c0_155, %c0_156] : memref<7x1x256xf32, #tpu.memory_space<vmem>>, vector<1x1x256xf32>
    %249 = vector.shape_cast %248 : vector<1x1x256xf32> to vector<1x256xf32>
    %250 = vector.broadcast %249 : vector<1x256xf32> to vector<32x256xf32>
    %251 = arith.mulf %247, %250 : vector<32x256xf32>
    %c0_157 = arith.constant 0 : index
    %c22 = arith.constant 22 : index
    %c0_158 = arith.constant 0 : index
    %c0_159 = arith.constant 0 : index
    %252 = vector.load %arg2[%c0_157, %c22, %c0_158, %c0_159] : memref<2x27x32x1xf32, #tpu.memory_space<vmem>>, vector<1x1x32x1xf32>
    %253 = vector.shape_cast %252 : vector<1x1x32x1xf32> to vector<32x1xf32>
    %254 = vector.broadcast %253 : vector<32x1xf32> to vector<32x256xf32>
    %255 = arith.mulf %251, %254 : vector<32x256xf32>
    %256 = arith.addf %246, %255 : vector<32x256xf32>
    %c0_160 = arith.constant 0 : index
    %c25 = arith.constant 25 : index
    %c0_161 = arith.constant 0 : index
    %c0_162 = arith.constant 0 : index
    %257 = vector.load %arg2[%c0_160, %c25, %c0_161, %c0_162] : memref<2x27x32x1xf32, #tpu.memory_space<vmem>>, vector<1x1x32x1xf32>
    %258 = vector.shape_cast %257 : vector<1x1x32x1xf32> to vector<32x1xf32>
    %259 = vector.broadcast %258 : vector<32x1xf32> to vector<32x256xf32>
    %260 = arith.addf %256, %259 : vector<32x256xf32>
    %cst_163 = arith.constant 0.000000e+00 : f32
    %261 = vector.broadcast %cst_163 : f32 to vector<32x256xf32>
    %262 = arith.subf %261, %260 : vector<32x256xf32>
    %263 = math.exp %262 : vector<32x256xf32>
    %cst_164 = arith.constant 1.000000e+00 : f32
    %264 = vector.broadcast %cst_164 : f32 to vector<32x256xf32>
    %265 = arith.addf %264, %263 : vector<32x256xf32>
    %cst_165 = arith.constant 1.000000e+00 : f32
    %266 = vector.broadcast %cst_165 : f32 to vector<32x256xf32>
    %267 = arith.divf %266, %265 : vector<32x256xf32>
    %268 = arith.mulf %267, %93 : vector<32x256xf32>
    %c0_166 = arith.constant 0 : index
    %c0_167 = arith.constant 0 : index
    %c0_168 = arith.constant 0 : index
    %269 = vector.load %arg3[%c0_166, %c0_167, %c0_168] : memref<2x64x32xf32, #tpu.memory_space<vmem>>, vector<1x64x32xf32>
    %270 = vector.shape_cast %269 : vector<1x64x32xf32> to vector<64x32xf32>
    %cst_169 = arith.constant dense<0.000000e+00> : vector<64x256xf32>
    %271 = tpu.matmul %270, %268, %cst_169 {dimension_numbers = #tpu.dot_dimension_numbers<[1], [0], [0], [1], [0, 0, 1, 1], [], []>} : vector<64x32xf32>, vector<32x256xf32>, vector<64x256xf32> -> vector<64x256xf32>
    %c0_170 = arith.constant 0 : index
    %c0_171 = arith.constant 0 : index
    %c0_172 = arith.constant 0 : index
    %272 = vector.load %arg4[%c0_170, %c0_171, %c0_172] : memref<2x64x1xf32, #tpu.memory_space<vmem>>, vector<1x64x1xf32>
    %273 = vector.shape_cast %272 : vector<1x64x1xf32> to vector<64x1xf32>
    %274 = vector.broadcast %273 : vector<64x1xf32> to vector<64x256xf32>
    %275 = arith.addf %271, %274 : vector<64x256xf32>
    %cst_173 = arith.constant 5.000000e-01 : f32
    %276 = vector.broadcast %cst_173 : f32 to vector<64x256xf32>
    %277 = arith.mulf %276, %275 : vector<64x256xf32>
    %cst_174 = arith.constant 0.707106769 : f32
    %278 = vector.broadcast %cst_174 : f32 to vector<64x256xf32>
    %279 = arith.mulf %275, %278 : vector<64x256xf32>
    %cst_175 = arith.constant 0.000000e+00 : f32
    %280 = vector.broadcast %cst_175 : f32 to vector<64x256xf32>
    %281 = arith.cmpf oge, %279, %280 : vector<64x256xf32>
    %cst_176 = arith.constant 1.000000e+00 : f32
    %cst_177 = arith.constant -1.000000e+00 : f32
    %282 = vector.broadcast %cst_176 : f32 to vector<64x256xf32>
    %283 = vector.broadcast %cst_177 : f32 to vector<64x256xf32>
    %284 = arith.select %281, %282, %283 : vector<64x256xi1>, vector<64x256xf32>
    %285 = math.absf %279 : vector<64x256xf32>
    %cst_178 = arith.constant 0.327591091 : f32
    %286 = vector.broadcast %cst_178 : f32 to vector<64x256xf32>
    %287 = arith.mulf %286, %285 : vector<64x256xf32>
    %cst_179 = arith.constant 1.000000e+00 : f32
    %288 = vector.broadcast %cst_179 : f32 to vector<64x256xf32>
    %289 = arith.addf %288, %287 : vector<64x256xf32>
    %cst_180 = arith.constant 1.000000e+00 : f32
    %290 = vector.broadcast %cst_180 : f32 to vector<64x256xf32>
    %291 = arith.divf %290, %289 : vector<64x256xf32>
    %cst_181 = arith.constant 1.06140542 : f32
    %292 = vector.broadcast %cst_181 : f32 to vector<64x256xf32>
    %293 = arith.mulf %292, %291 : vector<64x256xf32>
    %cst_182 = arith.constant -1.45315206 : f32
    %294 = vector.broadcast %cst_182 : f32 to vector<64x256xf32>
    %295 = arith.addf %293, %294 : vector<64x256xf32>
    %296 = arith.mulf %295, %291 : vector<64x256xf32>
    %cst_183 = arith.constant 1.42141378 : f32
    %297 = vector.broadcast %cst_183 : f32 to vector<64x256xf32>
    %298 = arith.addf %296, %297 : vector<64x256xf32>
    %299 = arith.mulf %298, %291 : vector<64x256xf32>
    %cst_184 = arith.constant -0.284496725 : f32
    %300 = vector.broadcast %cst_184 : f32 to vector<64x256xf32>
    %301 = arith.addf %299, %300 : vector<64x256xf32>
    %302 = arith.mulf %301, %291 : vector<64x256xf32>
    %cst_185 = arith.constant 0.254829586 : f32
    %303 = vector.broadcast %cst_185 : f32 to vector<64x256xf32>
    %304 = arith.addf %302, %303 : vector<64x256xf32>
    %305 = arith.mulf %304, %291 : vector<64x256xf32>
    %cst_186 = arith.constant 0.000000e+00 : f32
    %306 = vector.broadcast %cst_186 : f32 to vector<64x256xf32>
    %307 = arith.subf %306, %285 : vector<64x256xf32>
    %308 = arith.mulf %307, %285 : vector<64x256xf32>
    %309 = math.exp %308 : vector<64x256xf32>
    %310 = arith.mulf %305, %309 : vector<64x256xf32>
    %cst_187 = arith.constant 1.000000e+00 : f32
    %311 = vector.broadcast %cst_187 : f32 to vector<64x256xf32>
    %312 = arith.subf %311, %310 : vector<64x256xf32>
    %313 = arith.mulf %284, %312 : vector<64x256xf32>
    %cst_188 = arith.constant 1.000000e+00 : f32
    %314 = vector.broadcast %cst_188 : f32 to vector<64x256xf32>
    %315 = arith.addf %314, %313 : vector<64x256xf32>
    %316 = arith.mulf %277, %315 : vector<64x256xf32>
    %c0_189 = arith.constant 0 : index
    %c0_190 = arith.constant 0 : index
    %c0_191 = arith.constant 0 : index
    %317 = vector.load %arg5[%c0_189, %c0_190, %c0_191] : memref<2x32x64xf32, #tpu.memory_space<vmem>>, vector<1x32x64xf32>
    %318 = vector.shape_cast %317 : vector<1x32x64xf32> to vector<32x64xf32>
    %cst_192 = arith.constant dense<0.000000e+00> : vector<32x256xf32>
    %319 = tpu.matmul %318, %316, %cst_192 {dimension_numbers = #tpu.dot_dimension_numbers<[1], [0], [0], [1], [0, 0, 1, 1], [], []>} : vector<32x64xf32>, vector<64x256xf32>, vector<32x256xf32> -> vector<32x256xf32>
    %c0_193 = arith.constant 0 : index
    %c0_194 = arith.constant 0 : index
    %c0_195 = arith.constant 0 : index
    %320 = vector.load %arg6[%c0_193, %c0_194, %c0_195] : memref<2x32x1xf32, #tpu.memory_space<vmem>>, vector<1x32x1xf32>
    %321 = vector.shape_cast %320 : vector<1x32x1xf32> to vector<32x1xf32>
    %322 = vector.broadcast %321 : vector<32x1xf32> to vector<32x256xf32>
    %323 = arith.addf %319, %322 : vector<32x256xf32>
    %c0_196 = arith.constant 0 : index
    %c26 = arith.constant 26 : index
    %c0_197 = arith.constant 0 : index
    %c0_198 = arith.constant 0 : index
    %324 = vector.load %arg2[%c0_196, %c26, %c0_197, %c0_198] : memref<2x27x32x1xf32, #tpu.memory_space<vmem>>, vector<1x1x32x1xf32>
    %325 = vector.shape_cast %324 : vector<1x1x32x1xf32> to vector<32x1xf32>
    %326 = vector.broadcast %325 : vector<32x1xf32> to vector<32x256xf32>
    %327 = arith.mulf %323, %326 : vector<32x256xf32>
    %328 = arith.addf %327, %1 : vector<32x256xf32>
    %c17_i32_199 = arith.constant 17 : i32
    %329 = tpu.dynamic_rotate %328 by %c17_i32_199 dim 1 : vector<32x256xf32>, i32 -> vector<32x256xf32>
    %c0_200 = arith.constant 0 : index
    %c0_201 = arith.constant 0 : index
    %c0_202 = arith.constant 0 : index
    %330 = vector.load %arg7[%c0_200, %c0_201, %c0_202] : memref<9x1x256xf32, #tpu.memory_space<vmem>>, vector<1x1x256xf32>
    %331 = vector.shape_cast %330 : vector<1x1x256xf32> to vector<1x256xf32>
    %332 = vector.broadcast %331 : vector<1x256xf32> to vector<32x256xf32>
    %333 = arith.mulf %329, %332 : vector<32x256xf32>
    %c1_203 = arith.constant 1 : index
    %c0_204 = arith.constant 0 : index
    %c0_205 = arith.constant 0 : index
    %c0_206 = arith.constant 0 : index
    %334 = vector.load %arg2[%c1_203, %c0_204, %c0_205, %c0_206] : memref<2x27x32x1xf32, #tpu.memory_space<vmem>>, vector<1x1x32x1xf32>
    %335 = vector.shape_cast %334 : vector<1x1x32x1xf32> to vector<32x1xf32>
    %336 = vector.broadcast %335 : vector<32x1xf32> to vector<32x256xf32>
    %337 = arith.mulf %333, %336 : vector<32x256xf32>
    %c16_i32_207 = arith.constant 16 : i32
    %338 = tpu.dynamic_rotate %328 by %c16_i32_207 dim 1 : vector<32x256xf32>, i32 -> vector<32x256xf32>
    %c1_208 = arith.constant 1 : index
    %c0_209 = arith.constant 0 : index
    %c0_210 = arith.constant 0 : index
    %339 = vector.load %arg7[%c1_208, %c0_209, %c0_210] : memref<9x1x256xf32, #tpu.memory_space<vmem>>, vector<1x1x256xf32>
    %340 = vector.shape_cast %339 : vector<1x1x256xf32> to vector<1x256xf32>
    %341 = vector.broadcast %340 : vector<1x256xf32> to vector<32x256xf32>
    %342 = arith.mulf %338, %341 : vector<32x256xf32>
    %c1_211 = arith.constant 1 : index
    %c1_212 = arith.constant 1 : index
    %c0_213 = arith.constant 0 : index
    %c0_214 = arith.constant 0 : index
    %343 = vector.load %arg2[%c1_211, %c1_212, %c0_213, %c0_214] : memref<2x27x32x1xf32, #tpu.memory_space<vmem>>, vector<1x1x32x1xf32>
    %344 = vector.shape_cast %343 : vector<1x1x32x1xf32> to vector<32x1xf32>
    %345 = vector.broadcast %344 : vector<32x1xf32> to vector<32x256xf32>
    %346 = arith.mulf %342, %345 : vector<32x256xf32>
    %347 = arith.addf %337, %346 : vector<32x256xf32>
    %c15_i32_215 = arith.constant 15 : i32
    %348 = tpu.dynamic_rotate %328 by %c15_i32_215 dim 1 : vector<32x256xf32>, i32 -> vector<32x256xf32>
    %c2_216 = arith.constant 2 : index
    %c0_217 = arith.constant 0 : index
    %c0_218 = arith.constant 0 : index
    %349 = vector.load %arg7[%c2_216, %c0_217, %c0_218] : memref<9x1x256xf32, #tpu.memory_space<vmem>>, vector<1x1x256xf32>
    %350 = vector.shape_cast %349 : vector<1x1x256xf32> to vector<1x256xf32>
    %351 = vector.broadcast %350 : vector<1x256xf32> to vector<32x256xf32>
    %352 = arith.mulf %348, %351 : vector<32x256xf32>
    %c1_219 = arith.constant 1 : index
    %c2_220 = arith.constant 2 : index
    %c0_221 = arith.constant 0 : index
    %c0_222 = arith.constant 0 : index
    %353 = vector.load %arg2[%c1_219, %c2_220, %c0_221, %c0_222] : memref<2x27x32x1xf32, #tpu.memory_space<vmem>>, vector<1x1x32x1xf32>
    %354 = vector.shape_cast %353 : vector<1x1x32x1xf32> to vector<32x1xf32>
    %355 = vector.broadcast %354 : vector<32x1xf32> to vector<32x256xf32>
    %356 = arith.mulf %352, %355 : vector<32x256xf32>
    %357 = arith.addf %347, %356 : vector<32x256xf32>
    %c1_i32_223 = arith.constant 1 : i32
    %358 = tpu.dynamic_rotate %328 by %c1_i32_223 dim 1 : vector<32x256xf32>, i32 -> vector<32x256xf32>
    %c3_224 = arith.constant 3 : index
    %c0_225 = arith.constant 0 : index
    %c0_226 = arith.constant 0 : index
    %359 = vector.load %arg7[%c3_224, %c0_225, %c0_226] : memref<9x1x256xf32, #tpu.memory_space<vmem>>, vector<1x1x256xf32>
    %360 = vector.shape_cast %359 : vector<1x1x256xf32> to vector<1x256xf32>
    %361 = vector.broadcast %360 : vector<1x256xf32> to vector<32x256xf32>
    %362 = arith.mulf %358, %361 : vector<32x256xf32>
    %c1_227 = arith.constant 1 : index
    %c3_228 = arith.constant 3 : index
    %c0_229 = arith.constant 0 : index
    %c0_230 = arith.constant 0 : index
    %363 = vector.load %arg2[%c1_227, %c3_228, %c0_229, %c0_230] : memref<2x27x32x1xf32, #tpu.memory_space<vmem>>, vector<1x1x32x1xf32>
    %364 = vector.shape_cast %363 : vector<1x1x32x1xf32> to vector<32x1xf32>
    %365 = vector.broadcast %364 : vector<32x1xf32> to vector<32x256xf32>
    %366 = arith.mulf %362, %365 : vector<32x256xf32>
    %367 = arith.addf %357, %366 : vector<32x256xf32>
    %c4_231 = arith.constant 4 : index
    %c0_232 = arith.constant 0 : index
    %c0_233 = arith.constant 0 : index
    %368 = vector.load %arg7[%c4_231, %c0_232, %c0_233] : memref<9x1x256xf32, #tpu.memory_space<vmem>>, vector<1x1x256xf32>
    %369 = vector.shape_cast %368 : vector<1x1x256xf32> to vector<1x256xf32>
    %370 = vector.broadcast %369 : vector<1x256xf32> to vector<32x256xf32>
    %371 = arith.mulf %328, %370 : vector<32x256xf32>
    %c1_234 = arith.constant 1 : index
    %c4_235 = arith.constant 4 : index
    %c0_236 = arith.constant 0 : index
    %c0_237 = arith.constant 0 : index
    %372 = vector.load %arg2[%c1_234, %c4_235, %c0_236, %c0_237] : memref<2x27x32x1xf32, #tpu.memory_space<vmem>>, vector<1x1x32x1xf32>
    %373 = vector.shape_cast %372 : vector<1x1x32x1xf32> to vector<32x1xf32>
    %374 = vector.broadcast %373 : vector<32x1xf32> to vector<32x256xf32>
    %375 = arith.mulf %371, %374 : vector<32x256xf32>
    %376 = arith.addf %367, %375 : vector<32x256xf32>
    %c255_i32_238 = arith.constant 255 : i32
    %377 = tpu.dynamic_rotate %328 by %c255_i32_238 dim 1 : vector<32x256xf32>, i32 -> vector<32x256xf32>
    %c5_239 = arith.constant 5 : index
    %c0_240 = arith.constant 0 : index
    %c0_241 = arith.constant 0 : index
    %378 = vector.load %arg7[%c5_239, %c0_240, %c0_241] : memref<9x1x256xf32, #tpu.memory_space<vmem>>, vector<1x1x256xf32>
    %379 = vector.shape_cast %378 : vector<1x1x256xf32> to vector<1x256xf32>
    %380 = vector.broadcast %379 : vector<1x256xf32> to vector<32x256xf32>
    %381 = arith.mulf %377, %380 : vector<32x256xf32>
    %c1_242 = arith.constant 1 : index
    %c5_243 = arith.constant 5 : index
    %c0_244 = arith.constant 0 : index
    %c0_245 = arith.constant 0 : index
    %382 = vector.load %arg2[%c1_242, %c5_243, %c0_244, %c0_245] : memref<2x27x32x1xf32, #tpu.memory_space<vmem>>, vector<1x1x32x1xf32>
    %383 = vector.shape_cast %382 : vector<1x1x32x1xf32> to vector<32x1xf32>
    %384 = vector.broadcast %383 : vector<32x1xf32> to vector<32x256xf32>
    %385 = arith.mulf %381, %384 : vector<32x256xf32>
    %386 = arith.addf %376, %385 : vector<32x256xf32>
    %c241_i32_246 = arith.constant 241 : i32
    %387 = tpu.dynamic_rotate %328 by %c241_i32_246 dim 1 : vector<32x256xf32>, i32 -> vector<32x256xf32>
    %c6_247 = arith.constant 6 : index
    %c0_248 = arith.constant 0 : index
    %c0_249 = arith.constant 0 : index
    %388 = vector.load %arg7[%c6_247, %c0_248, %c0_249] : memref<9x1x256xf32, #tpu.memory_space<vmem>>, vector<1x1x256xf32>
    %389 = vector.shape_cast %388 : vector<1x1x256xf32> to vector<1x256xf32>
    %390 = vector.broadcast %389 : vector<1x256xf32> to vector<32x256xf32>
    %391 = arith.mulf %387, %390 : vector<32x256xf32>
    %c1_250 = arith.constant 1 : index
    %c6_251 = arith.constant 6 : index
    %c0_252 = arith.constant 0 : index
    %c0_253 = arith.constant 0 : index
    %392 = vector.load %arg2[%c1_250, %c6_251, %c0_252, %c0_253] : memref<2x27x32x1xf32, #tpu.memory_space<vmem>>, vector<1x1x32x1xf32>
    %393 = vector.shape_cast %392 : vector<1x1x32x1xf32> to vector<32x1xf32>
    %394 = vector.broadcast %393 : vector<32x1xf32> to vector<32x256xf32>
    %395 = arith.mulf %391, %394 : vector<32x256xf32>
    %396 = arith.addf %386, %395 : vector<32x256xf32>
    %c240_i32_254 = arith.constant 240 : i32
    %397 = tpu.dynamic_rotate %328 by %c240_i32_254 dim 1 : vector<32x256xf32>, i32 -> vector<32x256xf32>
    %c7_255 = arith.constant 7 : index
    %c0_256 = arith.constant 0 : index
    %c0_257 = arith.constant 0 : index
    %398 = vector.load %arg7[%c7_255, %c0_256, %c0_257] : memref<9x1x256xf32, #tpu.memory_space<vmem>>, vector<1x1x256xf32>
    %399 = vector.shape_cast %398 : vector<1x1x256xf32> to vector<1x256xf32>
    %400 = vector.broadcast %399 : vector<1x256xf32> to vector<32x256xf32>
    %401 = arith.mulf %397, %400 : vector<32x256xf32>
    %c1_258 = arith.constant 1 : index
    %c7_259 = arith.constant 7 : index
    %c0_260 = arith.constant 0 : index
    %c0_261 = arith.constant 0 : index
    %402 = vector.load %arg2[%c1_258, %c7_259, %c0_260, %c0_261] : memref<2x27x32x1xf32, #tpu.memory_space<vmem>>, vector<1x1x32x1xf32>
    %403 = vector.shape_cast %402 : vector<1x1x32x1xf32> to vector<32x1xf32>
    %404 = vector.broadcast %403 : vector<32x1xf32> to vector<32x256xf32>
    %405 = arith.mulf %401, %404 : vector<32x256xf32>
    %406 = arith.addf %396, %405 : vector<32x256xf32>
    %c239_i32_262 = arith.constant 239 : i32
    %407 = tpu.dynamic_rotate %328 by %c239_i32_262 dim 1 : vector<32x256xf32>, i32 -> vector<32x256xf32>
    %c8_263 = arith.constant 8 : index
    %c0_264 = arith.constant 0 : index
    %c0_265 = arith.constant 0 : index
    %408 = vector.load %arg7[%c8_263, %c0_264, %c0_265] : memref<9x1x256xf32, #tpu.memory_space<vmem>>, vector<1x1x256xf32>
    %409 = vector.shape_cast %408 : vector<1x1x256xf32> to vector<1x256xf32>
    %410 = vector.broadcast %409 : vector<1x256xf32> to vector<32x256xf32>
    %411 = arith.mulf %407, %410 : vector<32x256xf32>
    %c1_266 = arith.constant 1 : index
    %c8_267 = arith.constant 8 : index
    %c0_268 = arith.constant 0 : index
    %c0_269 = arith.constant 0 : index
    %412 = vector.load %arg2[%c1_266, %c8_267, %c0_268, %c0_269] : memref<2x27x32x1xf32, #tpu.memory_space<vmem>>, vector<1x1x32x1xf32>
    %413 = vector.shape_cast %412 : vector<1x1x32x1xf32> to vector<32x1xf32>
    %414 = vector.broadcast %413 : vector<32x1xf32> to vector<32x256xf32>
    %415 = arith.mulf %411, %414 : vector<32x256xf32>
    %416 = arith.addf %406, %415 : vector<32x256xf32>
    %c1_270 = arith.constant 1 : index
    %c23_271 = arith.constant 23 : index
    %c0_272 = arith.constant 0 : index
    %c0_273 = arith.constant 0 : index
    %417 = vector.load %arg2[%c1_270, %c23_271, %c0_272, %c0_273] : memref<2x27x32x1xf32, #tpu.memory_space<vmem>>, vector<1x1x32x1xf32>
    %418 = vector.shape_cast %417 : vector<1x1x32x1xf32> to vector<32x1xf32>
    %419 = vector.broadcast %418 : vector<32x1xf32> to vector<32x256xf32>
    %420 = arith.addf %416, %419 : vector<32x256xf32>
    %c0_274 = arith.constant 0 : index
    %c0_275 = arith.constant 0 : index
    %421 = vector.load %arg10[%c0_274, %c0_275] : memref<256x16xf32, #tpu.memory_space<vmem>>, vector<256x16xf32>
    %cst_276 = arith.constant dense<0.000000e+00> : vector<32x16xf32>
    %422 = tpu.matmul %328, %421, %cst_276 {dimension_numbers = #tpu.dot_dimension_numbers<[1], [0], [0], [1], [0, 0, 1, 1], [], []>} : vector<32x256xf32>, vector<256x16xf32>, vector<32x16xf32> -> vector<32x16xf32>
    %c0_277 = arith.constant 0 : index
    %c0_278 = arith.constant 0 : index
    %423 = vector.load %arg11[%c0_277, %c0_278] : memref<16x256xf32, #tpu.memory_space<vmem>>, vector<16x256xf32>
    %cst_279 = arith.constant dense<0.000000e+00> : vector<32x256xf32>
    %424 = tpu.matmul %422, %423, %cst_279 {dimension_numbers = #tpu.dot_dimension_numbers<[1], [0], [0], [1], [0, 0, 1, 1], [], []>} : vector<32x16xf32>, vector<16x256xf32>, vector<32x256xf32> -> vector<32x256xf32>
    %c16_i32_280 = arith.constant 16 : i32
    %425 = tpu.dynamic_rotate %328 by %c16_i32_280 dim 1 : vector<32x256xf32>, i32 -> vector<32x256xf32>
    %426 = arith.addf %328, %425 : vector<32x256xf32>
    %c32_i32_281 = arith.constant 32 : i32
    %427 = tpu.dynamic_rotate %426 by %c32_i32_281 dim 1 : vector<32x256xf32>, i32 -> vector<32x256xf32>
    %428 = arith.addf %426, %427 : vector<32x256xf32>
    %c64_i32_282 = arith.constant 64 : i32
    %429 = tpu.dynamic_rotate %428 by %c64_i32_282 dim 1 : vector<32x256xf32>, i32 -> vector<32x256xf32>
    %430 = arith.addf %428, %429 : vector<32x256xf32>
    %c128_i32_283 = arith.constant 128 : i32
    %431 = tpu.dynamic_rotate %430 by %c128_i32_283 dim 1 : vector<32x256xf32>, i32 -> vector<32x256xf32>
    %432 = arith.addf %430, %431 : vector<32x256xf32>
    %cst_284 = arith.constant 6.250000e-02 : f32
    %433 = vector.broadcast %cst_284 : f32 to vector<32x256xf32>
    %434 = arith.mulf %432, %433 : vector<32x256xf32>
    %c3_i32_285 = arith.constant 3 : i32
    %435 = tpu.dynamic_rotate %434 by %c3_i32_285 dim 1 : vector<32x256xf32>, i32 -> vector<32x256xf32>
    %436 = arith.addf %424, %435 : vector<32x256xf32>
    %c0_286 = arith.constant 0 : index
    %c0_287 = arith.constant 0 : index
    %c0_288 = arith.constant 0 : index
    %437 = vector.load %arg8[%c0_286, %c0_287, %c0_288] : memref<7x1x256xf32, #tpu.memory_space<vmem>>, vector<1x1x256xf32>
    %438 = vector.shape_cast %437 : vector<1x1x256xf32> to vector<1x256xf32>
    %439 = vector.broadcast %438 : vector<1x256xf32> to vector<32x256xf32>
    %440 = arith.mulf %436, %439 : vector<32x256xf32>
    %c1_289 = arith.constant 1 : index
    %c9_290 = arith.constant 9 : index
    %c0_291 = arith.constant 0 : index
    %c0_292 = arith.constant 0 : index
    %441 = vector.load %arg2[%c1_289, %c9_290, %c0_291, %c0_292] : memref<2x27x32x1xf32, #tpu.memory_space<vmem>>, vector<1x1x32x1xf32>
    %442 = vector.shape_cast %441 : vector<1x1x32x1xf32> to vector<32x1xf32>
    %443 = vector.broadcast %442 : vector<32x1xf32> to vector<32x256xf32>
    %444 = arith.mulf %440, %443 : vector<32x256xf32>
    %c2_i32_293 = arith.constant 2 : i32
    %445 = tpu.dynamic_rotate %434 by %c2_i32_293 dim 1 : vector<32x256xf32>, i32 -> vector<32x256xf32>
    %446 = arith.addf %424, %445 : vector<32x256xf32>
    %c1_294 = arith.constant 1 : index
    %c0_295 = arith.constant 0 : index
    %c0_296 = arith.constant 0 : index
    %447 = vector.load %arg8[%c1_294, %c0_295, %c0_296] : memref<7x1x256xf32, #tpu.memory_space<vmem>>, vector<1x1x256xf32>
    %448 = vector.shape_cast %447 : vector<1x1x256xf32> to vector<1x256xf32>
    %449 = vector.broadcast %448 : vector<1x256xf32> to vector<32x256xf32>
    %450 = arith.mulf %446, %449 : vector<32x256xf32>
    %c1_297 = arith.constant 1 : index
    %c10_298 = arith.constant 10 : index
    %c0_299 = arith.constant 0 : index
    %c0_300 = arith.constant 0 : index
    %451 = vector.load %arg2[%c1_297, %c10_298, %c0_299, %c0_300] : memref<2x27x32x1xf32, #tpu.memory_space<vmem>>, vector<1x1x32x1xf32>
    %452 = vector.shape_cast %451 : vector<1x1x32x1xf32> to vector<32x1xf32>
    %453 = vector.broadcast %452 : vector<32x1xf32> to vector<32x256xf32>
    %454 = arith.mulf %450, %453 : vector<32x256xf32>
    %455 = arith.addf %444, %454 : vector<32x256xf32>
    %c1_i32_301 = arith.constant 1 : i32
    %456 = tpu.dynamic_rotate %434 by %c1_i32_301 dim 1 : vector<32x256xf32>, i32 -> vector<32x256xf32>
    %457 = arith.addf %424, %456 : vector<32x256xf32>
    %c2_302 = arith.constant 2 : index
    %c0_303 = arith.constant 0 : index
    %c0_304 = arith.constant 0 : index
    %458 = vector.load %arg8[%c2_302, %c0_303, %c0_304] : memref<7x1x256xf32, #tpu.memory_space<vmem>>, vector<1x1x256xf32>
    %459 = vector.shape_cast %458 : vector<1x1x256xf32> to vector<1x256xf32>
    %460 = vector.broadcast %459 : vector<1x256xf32> to vector<32x256xf32>
    %461 = arith.mulf %457, %460 : vector<32x256xf32>
    %c1_305 = arith.constant 1 : index
    %c11_306 = arith.constant 11 : index
    %c0_307 = arith.constant 0 : index
    %c0_308 = arith.constant 0 : index
    %462 = vector.load %arg2[%c1_305, %c11_306, %c0_307, %c0_308] : memref<2x27x32x1xf32, #tpu.memory_space<vmem>>, vector<1x1x32x1xf32>
    %463 = vector.shape_cast %462 : vector<1x1x32x1xf32> to vector<32x1xf32>
    %464 = vector.broadcast %463 : vector<32x1xf32> to vector<32x256xf32>
    %465 = arith.mulf %461, %464 : vector<32x256xf32>
    %466 = arith.addf %455, %465 : vector<32x256xf32>
    %467 = arith.addf %424, %434 : vector<32x256xf32>
    %c3_309 = arith.constant 3 : index
    %c0_310 = arith.constant 0 : index
    %c0_311 = arith.constant 0 : index
    %468 = vector.load %arg8[%c3_309, %c0_310, %c0_311] : memref<7x1x256xf32, #tpu.memory_space<vmem>>, vector<1x1x256xf32>
    %469 = vector.shape_cast %468 : vector<1x1x256xf32> to vector<1x256xf32>
    %470 = vector.broadcast %469 : vector<1x256xf32> to vector<32x256xf32>
    %471 = arith.mulf %467, %470 : vector<32x256xf32>
    %c1_312 = arith.constant 1 : index
    %c12_313 = arith.constant 12 : index
    %c0_314 = arith.constant 0 : index
    %c0_315 = arith.constant 0 : index
    %472 = vector.load %arg2[%c1_312, %c12_313, %c0_314, %c0_315] : memref<2x27x32x1xf32, #tpu.memory_space<vmem>>, vector<1x1x32x1xf32>
    %473 = vector.shape_cast %472 : vector<1x1x32x1xf32> to vector<32x1xf32>
    %474 = vector.broadcast %473 : vector<32x1xf32> to vector<32x256xf32>
    %475 = arith.mulf %471, %474 : vector<32x256xf32>
    %476 = arith.addf %466, %475 : vector<32x256xf32>
    %c255_i32_316 = arith.constant 255 : i32
    %477 = tpu.dynamic_rotate %434 by %c255_i32_316 dim 1 : vector<32x256xf32>, i32 -> vector<32x256xf32>
    %478 = arith.addf %424, %477 : vector<32x256xf32>
    %c4_317 = arith.constant 4 : index
    %c0_318 = arith.constant 0 : index
    %c0_319 = arith.constant 0 : index
    %479 = vector.load %arg8[%c4_317, %c0_318, %c0_319] : memref<7x1x256xf32, #tpu.memory_space<vmem>>, vector<1x1x256xf32>
    %480 = vector.shape_cast %479 : vector<1x1x256xf32> to vector<1x256xf32>
    %481 = vector.broadcast %480 : vector<1x256xf32> to vector<32x256xf32>
    %482 = arith.mulf %478, %481 : vector<32x256xf32>
    %c1_320 = arith.constant 1 : index
    %c13_321 = arith.constant 13 : index
    %c0_322 = arith.constant 0 : index
    %c0_323 = arith.constant 0 : index
    %483 = vector.load %arg2[%c1_320, %c13_321, %c0_322, %c0_323] : memref<2x27x32x1xf32, #tpu.memory_space<vmem>>, vector<1x1x32x1xf32>
    %484 = vector.shape_cast %483 : vector<1x1x32x1xf32> to vector<32x1xf32>
    %485 = vector.broadcast %484 : vector<32x1xf32> to vector<32x256xf32>
    %486 = arith.mulf %482, %485 : vector<32x256xf32>
    %487 = arith.addf %476, %486 : vector<32x256xf32>
    %c254_i32_324 = arith.constant 254 : i32
    %488 = tpu.dynamic_rotate %434 by %c254_i32_324 dim 1 : vector<32x256xf32>, i32 -> vector<32x256xf32>
    %489 = arith.addf %424, %488 : vector<32x256xf32>
    %c5_325 = arith.constant 5 : index
    %c0_326 = arith.constant 0 : index
    %c0_327 = arith.constant 0 : index
    %490 = vector.load %arg8[%c5_325, %c0_326, %c0_327] : memref<7x1x256xf32, #tpu.memory_space<vmem>>, vector<1x1x256xf32>
    %491 = vector.shape_cast %490 : vector<1x1x256xf32> to vector<1x256xf32>
    %492 = vector.broadcast %491 : vector<1x256xf32> to vector<32x256xf32>
    %493 = arith.mulf %489, %492 : vector<32x256xf32>
    %c1_328 = arith.constant 1 : index
    %c14_329 = arith.constant 14 : index
    %c0_330 = arith.constant 0 : index
    %c0_331 = arith.constant 0 : index
    %494 = vector.load %arg2[%c1_328, %c14_329, %c0_330, %c0_331] : memref<2x27x32x1xf32, #tpu.memory_space<vmem>>, vector<1x1x32x1xf32>
    %495 = vector.shape_cast %494 : vector<1x1x32x1xf32> to vector<32x1xf32>
    %496 = vector.broadcast %495 : vector<32x1xf32> to vector<32x256xf32>
    %497 = arith.mulf %493, %496 : vector<32x256xf32>
    %498 = arith.addf %487, %497 : vector<32x256xf32>
    %c253_i32_332 = arith.constant 253 : i32
    %499 = tpu.dynamic_rotate %434 by %c253_i32_332 dim 1 : vector<32x256xf32>, i32 -> vector<32x256xf32>
    %500 = arith.addf %424, %499 : vector<32x256xf32>
    %c6_333 = arith.constant 6 : index
    %c0_334 = arith.constant 0 : index
    %c0_335 = arith.constant 0 : index
    %501 = vector.load %arg8[%c6_333, %c0_334, %c0_335] : memref<7x1x256xf32, #tpu.memory_space<vmem>>, vector<1x1x256xf32>
    %502 = vector.shape_cast %501 : vector<1x1x256xf32> to vector<1x256xf32>
    %503 = vector.broadcast %502 : vector<1x256xf32> to vector<32x256xf32>
    %504 = arith.mulf %500, %503 : vector<32x256xf32>
    %c1_336 = arith.constant 1 : index
    %c15_337 = arith.constant 15 : index
    %c0_338 = arith.constant 0 : index
    %c0_339 = arith.constant 0 : index
    %505 = vector.load %arg2[%c1_336, %c15_337, %c0_338, %c0_339] : memref<2x27x32x1xf32, #tpu.memory_space<vmem>>, vector<1x1x32x1xf32>
    %506 = vector.shape_cast %505 : vector<1x1x32x1xf32> to vector<32x1xf32>
    %507 = vector.broadcast %506 : vector<32x1xf32> to vector<32x256xf32>
    %508 = arith.mulf %504, %507 : vector<32x256xf32>
    %509 = arith.addf %498, %508 : vector<32x256xf32>
    %c1_340 = arith.constant 1 : index
    %c24_341 = arith.constant 24 : index
    %c0_342 = arith.constant 0 : index
    %c0_343 = arith.constant 0 : index
    %510 = vector.load %arg2[%c1_340, %c24_341, %c0_342, %c0_343] : memref<2x27x32x1xf32, #tpu.memory_space<vmem>>, vector<1x1x32x1xf32>
    %511 = vector.shape_cast %510 : vector<1x1x32x1xf32> to vector<32x1xf32>
    %512 = vector.broadcast %511 : vector<32x1xf32> to vector<32x256xf32>
    %513 = arith.addf %509, %512 : vector<32x256xf32>
    %cst_344 = arith.constant 0.000000e+00 : f32
    %514 = vector.broadcast %cst_344 : f32 to vector<32x256xf32>
    %515 = arith.maximumf %513, %514 : vector<32x256xf32>
    %c48_i32_345 = arith.constant 48 : i32
    %516 = tpu.dynamic_rotate %515 by %c48_i32_345 dim 1 : vector<32x256xf32>, i32 -> vector<32x256xf32>
    %c0_346 = arith.constant 0 : index
    %c0_347 = arith.constant 0 : index
    %c0_348 = arith.constant 0 : index
    %517 = vector.load %arg9[%c0_346, %c0_347, %c0_348] : memref<7x1x256xf32, #tpu.memory_space<vmem>>, vector<1x1x256xf32>
    %518 = vector.shape_cast %517 : vector<1x1x256xf32> to vector<1x256xf32>
    %519 = vector.broadcast %518 : vector<1x256xf32> to vector<32x256xf32>
    %520 = arith.mulf %516, %519 : vector<32x256xf32>
    %c1_349 = arith.constant 1 : index
    %c16_350 = arith.constant 16 : index
    %c0_351 = arith.constant 0 : index
    %c0_352 = arith.constant 0 : index
    %521 = vector.load %arg2[%c1_349, %c16_350, %c0_351, %c0_352] : memref<2x27x32x1xf32, #tpu.memory_space<vmem>>, vector<1x1x32x1xf32>
    %522 = vector.shape_cast %521 : vector<1x1x32x1xf32> to vector<32x1xf32>
    %523 = vector.broadcast %522 : vector<32x1xf32> to vector<32x256xf32>
    %524 = arith.mulf %520, %523 : vector<32x256xf32>
    %c32_i32_353 = arith.constant 32 : i32
    %525 = tpu.dynamic_rotate %515 by %c32_i32_353 dim 1 : vector<32x256xf32>, i32 -> vector<32x256xf32>
    %c1_354 = arith.constant 1 : index
    %c0_355 = arith.constant 0 : index
    %c0_356 = arith.constant 0 : index
    %526 = vector.load %arg9[%c1_354, %c0_355, %c0_356] : memref<7x1x256xf32, #tpu.memory_space<vmem>>, vector<1x1x256xf32>
    %527 = vector.shape_cast %526 : vector<1x1x256xf32> to vector<1x256xf32>
    %528 = vector.broadcast %527 : vector<1x256xf32> to vector<32x256xf32>
    %529 = arith.mulf %525, %528 : vector<32x256xf32>
    %c1_357 = arith.constant 1 : index
    %c17_358 = arith.constant 17 : index
    %c0_359 = arith.constant 0 : index
    %c0_360 = arith.constant 0 : index
    %530 = vector.load %arg2[%c1_357, %c17_358, %c0_359, %c0_360] : memref<2x27x32x1xf32, #tpu.memory_space<vmem>>, vector<1x1x32x1xf32>
    %531 = vector.shape_cast %530 : vector<1x1x32x1xf32> to vector<32x1xf32>
    %532 = vector.broadcast %531 : vector<32x1xf32> to vector<32x256xf32>
    %533 = arith.mulf %529, %532 : vector<32x256xf32>
    %534 = arith.addf %524, %533 : vector<32x256xf32>
    %c16_i32_361 = arith.constant 16 : i32
    %535 = tpu.dynamic_rotate %515 by %c16_i32_361 dim 1 : vector<32x256xf32>, i32 -> vector<32x256xf32>
    %c2_362 = arith.constant 2 : index
    %c0_363 = arith.constant 0 : index
    %c0_364 = arith.constant 0 : index
    %536 = vector.load %arg9[%c2_362, %c0_363, %c0_364] : memref<7x1x256xf32, #tpu.memory_space<vmem>>, vector<1x1x256xf32>
    %537 = vector.shape_cast %536 : vector<1x1x256xf32> to vector<1x256xf32>
    %538 = vector.broadcast %537 : vector<1x256xf32> to vector<32x256xf32>
    %539 = arith.mulf %535, %538 : vector<32x256xf32>
    %c1_365 = arith.constant 1 : index
    %c18_366 = arith.constant 18 : index
    %c0_367 = arith.constant 0 : index
    %c0_368 = arith.constant 0 : index
    %540 = vector.load %arg2[%c1_365, %c18_366, %c0_367, %c0_368] : memref<2x27x32x1xf32, #tpu.memory_space<vmem>>, vector<1x1x32x1xf32>
    %541 = vector.shape_cast %540 : vector<1x1x32x1xf32> to vector<32x1xf32>
    %542 = vector.broadcast %541 : vector<32x1xf32> to vector<32x256xf32>
    %543 = arith.mulf %539, %542 : vector<32x256xf32>
    %544 = arith.addf %534, %543 : vector<32x256xf32>
    %c3_369 = arith.constant 3 : index
    %c0_370 = arith.constant 0 : index
    %c0_371 = arith.constant 0 : index
    %545 = vector.load %arg9[%c3_369, %c0_370, %c0_371] : memref<7x1x256xf32, #tpu.memory_space<vmem>>, vector<1x1x256xf32>
    %546 = vector.shape_cast %545 : vector<1x1x256xf32> to vector<1x256xf32>
    %547 = vector.broadcast %546 : vector<1x256xf32> to vector<32x256xf32>
    %548 = arith.mulf %515, %547 : vector<32x256xf32>
    %c1_372 = arith.constant 1 : index
    %c19_373 = arith.constant 19 : index
    %c0_374 = arith.constant 0 : index
    %c0_375 = arith.constant 0 : index
    %549 = vector.load %arg2[%c1_372, %c19_373, %c0_374, %c0_375] : memref<2x27x32x1xf32, #tpu.memory_space<vmem>>, vector<1x1x32x1xf32>
    %550 = vector.shape_cast %549 : vector<1x1x32x1xf32> to vector<32x1xf32>
    %551 = vector.broadcast %550 : vector<32x1xf32> to vector<32x256xf32>
    %552 = arith.mulf %548, %551 : vector<32x256xf32>
    %553 = arith.addf %544, %552 : vector<32x256xf32>
    %c240_i32_376 = arith.constant 240 : i32
    %554 = tpu.dynamic_rotate %515 by %c240_i32_376 dim 1 : vector<32x256xf32>, i32 -> vector<32x256xf32>
    %c4_377 = arith.constant 4 : index
    %c0_378 = arith.constant 0 : index
    %c0_379 = arith.constant 0 : index
    %555 = vector.load %arg9[%c4_377, %c0_378, %c0_379] : memref<7x1x256xf32, #tpu.memory_space<vmem>>, vector<1x1x256xf32>
    %556 = vector.shape_cast %555 : vector<1x1x256xf32> to vector<1x256xf32>
    %557 = vector.broadcast %556 : vector<1x256xf32> to vector<32x256xf32>
    %558 = arith.mulf %554, %557 : vector<32x256xf32>
    %c1_380 = arith.constant 1 : index
    %c20_381 = arith.constant 20 : index
    %c0_382 = arith.constant 0 : index
    %c0_383 = arith.constant 0 : index
    %559 = vector.load %arg2[%c1_380, %c20_381, %c0_382, %c0_383] : memref<2x27x32x1xf32, #tpu.memory_space<vmem>>, vector<1x1x32x1xf32>
    %560 = vector.shape_cast %559 : vector<1x1x32x1xf32> to vector<32x1xf32>
    %561 = vector.broadcast %560 : vector<32x1xf32> to vector<32x256xf32>
    %562 = arith.mulf %558, %561 : vector<32x256xf32>
    %563 = arith.addf %553, %562 : vector<32x256xf32>
    %c224_i32_384 = arith.constant 224 : i32
    %564 = tpu.dynamic_rotate %515 by %c224_i32_384 dim 1 : vector<32x256xf32>, i32 -> vector<32x256xf32>
    %c5_385 = arith.constant 5 : index
    %c0_386 = arith.constant 0 : index
    %c0_387 = arith.constant 0 : index
    %565 = vector.load %arg9[%c5_385, %c0_386, %c0_387] : memref<7x1x256xf32, #tpu.memory_space<vmem>>, vector<1x1x256xf32>
    %566 = vector.shape_cast %565 : vector<1x1x256xf32> to vector<1x256xf32>
    %567 = vector.broadcast %566 : vector<1x256xf32> to vector<32x256xf32>
    %568 = arith.mulf %564, %567 : vector<32x256xf32>
    %c1_388 = arith.constant 1 : index
    %c21_389 = arith.constant 21 : index
    %c0_390 = arith.constant 0 : index
    %c0_391 = arith.constant 0 : index
    %569 = vector.load %arg2[%c1_388, %c21_389, %c0_390, %c0_391] : memref<2x27x32x1xf32, #tpu.memory_space<vmem>>, vector<1x1x32x1xf32>
    %570 = vector.shape_cast %569 : vector<1x1x32x1xf32> to vector<32x1xf32>
    %571 = vector.broadcast %570 : vector<32x1xf32> to vector<32x256xf32>
    %572 = arith.mulf %568, %571 : vector<32x256xf32>
    %573 = arith.addf %563, %572 : vector<32x256xf32>
    %c208_i32_392 = arith.constant 208 : i32
    %574 = tpu.dynamic_rotate %515 by %c208_i32_392 dim 1 : vector<32x256xf32>, i32 -> vector<32x256xf32>
    %c6_393 = arith.constant 6 : index
    %c0_394 = arith.constant 0 : index
    %c0_395 = arith.constant 0 : index
    %575 = vector.load %arg9[%c6_393, %c0_394, %c0_395] : memref<7x1x256xf32, #tpu.memory_space<vmem>>, vector<1x1x256xf32>
    %576 = vector.shape_cast %575 : vector<1x1x256xf32> to vector<1x256xf32>
    %577 = vector.broadcast %576 : vector<1x256xf32> to vector<32x256xf32>
    %578 = arith.mulf %574, %577 : vector<32x256xf32>
    %c1_396 = arith.constant 1 : index
    %c22_397 = arith.constant 22 : index
    %c0_398 = arith.constant 0 : index
    %c0_399 = arith.constant 0 : index
    %579 = vector.load %arg2[%c1_396, %c22_397, %c0_398, %c0_399] : memref<2x27x32x1xf32, #tpu.memory_space<vmem>>, vector<1x1x32x1xf32>
    %580 = vector.shape_cast %579 : vector<1x1x32x1xf32> to vector<32x1xf32>
    %581 = vector.broadcast %580 : vector<32x1xf32> to vector<32x256xf32>
    %582 = arith.mulf %578, %581 : vector<32x256xf32>
    %583 = arith.addf %573, %582 : vector<32x256xf32>
    %c1_400 = arith.constant 1 : index
    %c25_401 = arith.constant 25 : index
    %c0_402 = arith.constant 0 : index
    %c0_403 = arith.constant 0 : index
    %584 = vector.load %arg2[%c1_400, %c25_401, %c0_402, %c0_403] : memref<2x27x32x1xf32, #tpu.memory_space<vmem>>, vector<1x1x32x1xf32>
    %585 = vector.shape_cast %584 : vector<1x1x32x1xf32> to vector<32x1xf32>
    %586 = vector.broadcast %585 : vector<32x1xf32> to vector<32x256xf32>
    %587 = arith.addf %583, %586 : vector<32x256xf32>
    %cst_404 = arith.constant 0.000000e+00 : f32
    %588 = vector.broadcast %cst_404 : f32 to vector<32x256xf32>
    %589 = arith.subf %588, %587 : vector<32x256xf32>
    %590 = math.exp %589 : vector<32x256xf32>
    %cst_405 = arith.constant 1.000000e+00 : f32
    %591 = vector.broadcast %cst_405 : f32 to vector<32x256xf32>
    %592 = arith.addf %591, %590 : vector<32x256xf32>
    %cst_406 = arith.constant 1.000000e+00 : f32
    %593 = vector.broadcast %cst_406 : f32 to vector<32x256xf32>
    %594 = arith.divf %593, %592 : vector<32x256xf32>
    %595 = arith.mulf %594, %420 : vector<32x256xf32>
    %c1_407 = arith.constant 1 : index
    %c0_408 = arith.constant 0 : index
    %c0_409 = arith.constant 0 : index
    %596 = vector.load %arg3[%c1_407, %c0_408, %c0_409] : memref<2x64x32xf32, #tpu.memory_space<vmem>>, vector<1x64x32xf32>
    %597 = vector.shape_cast %596 : vector<1x64x32xf32> to vector<64x32xf32>
    %cst_410 = arith.constant dense<0.000000e+00> : vector<64x256xf32>
    %598 = tpu.matmul %597, %595, %cst_410 {dimension_numbers = #tpu.dot_dimension_numbers<[1], [0], [0], [1], [0, 0, 1, 1], [], []>} : vector<64x32xf32>, vector<32x256xf32>, vector<64x256xf32> -> vector<64x256xf32>
    %c1_411 = arith.constant 1 : index
    %c0_412 = arith.constant 0 : index
    %c0_413 = arith.constant 0 : index
    %599 = vector.load %arg4[%c1_411, %c0_412, %c0_413] : memref<2x64x1xf32, #tpu.memory_space<vmem>>, vector<1x64x1xf32>
    %600 = vector.shape_cast %599 : vector<1x64x1xf32> to vector<64x1xf32>
    %601 = vector.broadcast %600 : vector<64x1xf32> to vector<64x256xf32>
    %602 = arith.addf %598, %601 : vector<64x256xf32>
    %cst_414 = arith.constant 5.000000e-01 : f32
    %603 = vector.broadcast %cst_414 : f32 to vector<64x256xf32>
    %604 = arith.mulf %603, %602 : vector<64x256xf32>
    %cst_415 = arith.constant 0.707106769 : f32
    %605 = vector.broadcast %cst_415 : f32 to vector<64x256xf32>
    %606 = arith.mulf %602, %605 : vector<64x256xf32>
    %cst_416 = arith.constant 0.000000e+00 : f32
    %607 = vector.broadcast %cst_416 : f32 to vector<64x256xf32>
    %608 = arith.cmpf oge, %606, %607 : vector<64x256xf32>
    %cst_417 = arith.constant 1.000000e+00 : f32
    %cst_418 = arith.constant -1.000000e+00 : f32
    %609 = vector.broadcast %cst_417 : f32 to vector<64x256xf32>
    %610 = vector.broadcast %cst_418 : f32 to vector<64x256xf32>
    %611 = arith.select %608, %609, %610 : vector<64x256xi1>, vector<64x256xf32>
    %612 = math.absf %606 : vector<64x256xf32>
    %cst_419 = arith.constant 0.327591091 : f32
    %613 = vector.broadcast %cst_419 : f32 to vector<64x256xf32>
    %614 = arith.mulf %613, %612 : vector<64x256xf32>
    %cst_420 = arith.constant 1.000000e+00 : f32
    %615 = vector.broadcast %cst_420 : f32 to vector<64x256xf32>
    %616 = arith.addf %615, %614 : vector<64x256xf32>
    %cst_421 = arith.constant 1.000000e+00 : f32
    %617 = vector.broadcast %cst_421 : f32 to vector<64x256xf32>
    %618 = arith.divf %617, %616 : vector<64x256xf32>
    %cst_422 = arith.constant 1.06140542 : f32
    %619 = vector.broadcast %cst_422 : f32 to vector<64x256xf32>
    %620 = arith.mulf %619, %618 : vector<64x256xf32>
    %cst_423 = arith.constant -1.45315206 : f32
    %621 = vector.broadcast %cst_423 : f32 to vector<64x256xf32>
    %622 = arith.addf %620, %621 : vector<64x256xf32>
    %623 = arith.mulf %622, %618 : vector<64x256xf32>
    %cst_424 = arith.constant 1.42141378 : f32
    %624 = vector.broadcast %cst_424 : f32 to vector<64x256xf32>
    %625 = arith.addf %623, %624 : vector<64x256xf32>
    %626 = arith.mulf %625, %618 : vector<64x256xf32>
    %cst_425 = arith.constant -0.284496725 : f32
    %627 = vector.broadcast %cst_425 : f32 to vector<64x256xf32>
    %628 = arith.addf %626, %627 : vector<64x256xf32>
    %629 = arith.mulf %628, %618 : vector<64x256xf32>
    %cst_426 = arith.constant 0.254829586 : f32
    %630 = vector.broadcast %cst_426 : f32 to vector<64x256xf32>
    %631 = arith.addf %629, %630 : vector<64x256xf32>
    %632 = arith.mulf %631, %618 : vector<64x256xf32>
    %cst_427 = arith.constant 0.000000e+00 : f32
    %633 = vector.broadcast %cst_427 : f32 to vector<64x256xf32>
    %634 = arith.subf %633, %612 : vector<64x256xf32>
    %635 = arith.mulf %634, %612 : vector<64x256xf32>
    %636 = math.exp %635 : vector<64x256xf32>
    %637 = arith.mulf %632, %636 : vector<64x256xf32>
    %cst_428 = arith.constant 1.000000e+00 : f32
    %638 = vector.broadcast %cst_428 : f32 to vector<64x256xf32>
    %639 = arith.subf %638, %637 : vector<64x256xf32>
    %640 = arith.mulf %611, %639 : vector<64x256xf32>
    %cst_429 = arith.constant 1.000000e+00 : f32
    %641 = vector.broadcast %cst_429 : f32 to vector<64x256xf32>
    %642 = arith.addf %641, %640 : vector<64x256xf32>
    %643 = arith.mulf %604, %642 : vector<64x256xf32>
    %c1_430 = arith.constant 1 : index
    %c0_431 = arith.constant 0 : index
    %c0_432 = arith.constant 0 : index
    %644 = vector.load %arg5[%c1_430, %c0_431, %c0_432] : memref<2x32x64xf32, #tpu.memory_space<vmem>>, vector<1x32x64xf32>
    %645 = vector.shape_cast %644 : vector<1x32x64xf32> to vector<32x64xf32>
    %cst_433 = arith.constant dense<0.000000e+00> : vector<32x256xf32>
    %646 = tpu.matmul %645, %643, %cst_433 {dimension_numbers = #tpu.dot_dimension_numbers<[1], [0], [0], [1], [0, 0, 1, 1], [], []>} : vector<32x64xf32>, vector<64x256xf32>, vector<32x256xf32> -> vector<32x256xf32>
    %c1_434 = arith.constant 1 : index
    %c0_435 = arith.constant 0 : index
    %c0_436 = arith.constant 0 : index
    %647 = vector.load %arg6[%c1_434, %c0_435, %c0_436] : memref<2x32x1xf32, #tpu.memory_space<vmem>>, vector<1x32x1xf32>
    %648 = vector.shape_cast %647 : vector<1x32x1xf32> to vector<32x1xf32>
    %649 = vector.broadcast %648 : vector<32x1xf32> to vector<32x256xf32>
    %650 = arith.addf %646, %649 : vector<32x256xf32>
    %c1_437 = arith.constant 1 : index
    %c26_438 = arith.constant 26 : index
    %c0_439 = arith.constant 0 : index
    %c0_440 = arith.constant 0 : index
    %651 = vector.load %arg2[%c1_437, %c26_438, %c0_439, %c0_440] : memref<2x27x32x1xf32, #tpu.memory_space<vmem>>, vector<1x1x32x1xf32>
    %652 = vector.shape_cast %651 : vector<1x1x32x1xf32> to vector<32x1xf32>
    %653 = vector.broadcast %652 : vector<32x1xf32> to vector<32x256xf32>
    %654 = arith.mulf %650, %653 : vector<32x256xf32>
    %655 = arith.addf %654, %328 : vector<32x256xf32>
    %c0_441 = arith.constant 0 : index
    %c0_442 = arith.constant 0 : index
    %c0_443 = arith.constant 0 : index
    %656 = vector.load %arg12[%c0_441, %c0_442, %c0_443] : memref<1x32x256xf32, #tpu.memory_space<vmem>>, vector<1x32x256xf32>
    %657 = vector.shape_cast %656 : vector<1x32x256xf32> to vector<32x256xf32>
    %658 = vector.shape_cast %655 : vector<32x256xf32> to vector<1x32x256xf32>
    tpu.vector_store %arg12[%c0_441, %c0_442, %c0_443], %658 {strides = array<i32>} : memref<1x32x256xf32, #tpu.memory_space<vmem>>, vector<1x32x256xf32>,
    return
  }
  func.func @transform_0(%arg0: i32) -> (i32, i32, i32) {
    %c0_i32 = arith.constant 0 : i32
    %c0_i32_0 = arith.constant 0 : i32
    %c0_i32_1 = arith.constant 0 : i32
    return %arg0, %c0_i32, %c0_i32_0 : i32, i32, i32
  }
  func.func @transform_1(%arg0: i32) -> (i32, i32, i32, i32) {
    %c0_i32 = arith.constant 0 : i32
    %c0_i32_0 = arith.constant 0 : i32
    %c0_i32_1 = arith.constant 0 : i32
    %c0_i32_2 = arith.constant 0 : i32
    %c0_i32_3 = arith.constant 0 : i32
    return %c0_i32, %c0_i32_0, %c0_i32_1, %c0_i32_2 : i32, i32, i32, i32
  }
  func.func @transform_2(%arg0: i32) -> (i32, i32, i32) {
    %c0_i32 = arith.constant 0 : i32
    %c0_i32_0 = arith.constant 0 : i32
    %c0_i32_1 = arith.constant 0 : i32
    %c0_i32_2 = arith.constant 0 : i32
    return %c0_i32, %c0_i32_0, %c0_i32_1 : i32, i32, i32
  }
  func.func @transform_3(%arg0: i32) -> (i32, i32, i32) {
    %c0_i32 = arith.constant 0 : i32
    %c0_i32_0 = arith.constant 0 : i32
    %c0_i32_1 = arith.constant 0 : i32
    %c0_i32_2 = arith.constant 0 : i32
    return %c0_i32, %c0_i32_0, %c0_i32_1 : i32, i32, i32
  }
  func.func @transform_4(%arg0: i32) -> (i32, i32, i32) {
    %c0_i32 = arith.constant 0 : i32
    %c0_i32_0 = arith.constant 0 : i32
    %c0_i32_1 = arith.constant 0 : i32
    %c0_i32_2 = arith.constant 0 : i32
    return %c0_i32, %c0_i32_0, %c0_i32_1 : i32, i32, i32
  }
  func.func @transform_5(%arg0: i32) -> (i32, i32, i32) {
    %c0_i32 = arith.constant 0 : i32
    %c0_i32_0 = arith.constant 0 : i32
    %c0_i32_1 = arith.constant 0 : i32
    %c0_i32_2 = arith.constant 0 : i32
    return %c0_i32, %c0_i32_0, %c0_i32_1 : i32, i32, i32
  }
  func.func @transform_6(%arg0: i32) -> (i32, i32, i32) {
    %c0_i32 = arith.constant 0 : i32
    %c0_i32_0 = arith.constant 0 : i32
    %c0_i32_1 = arith.constant 0 : i32
    %c0_i32_2 = arith.constant 0 : i32
    return %c0_i32, %c0_i32_0, %c0_i32_1 : i32, i32, i32
  }
  func.func @transform_7(%arg0: i32) -> (i32, i32, i32) {
    %c0_i32 = arith.constant 0 : i32
    %c0_i32_0 = arith.constant 0 : i32
    %c0_i32_1 = arith.constant 0 : i32
    %c0_i32_2 = arith.constant 0 : i32
    return %c0_i32, %c0_i32_0, %c0_i32_1 : i32, i32, i32
  }
  func.func @transform_8(%arg0: i32) -> (i32, i32, i32) {
    %c0_i32 = arith.constant 0 : i32
    %c0_i32_0 = arith.constant 0 : i32
    %c0_i32_1 = arith.constant 0 : i32
    %c0_i32_2 = arith.constant 0 : i32
    return %c0_i32, %c0_i32_0, %c0_i32_1 : i32, i32, i32
  }
  func.func @transform_9(%arg0: i32) -> (i32, i32) {
    %c0_i32 = arith.constant 0 : i32
    %c0_i32_0 = arith.constant 0 : i32
    %c0_i32_1 = arith.constant 0 : i32
    return %c0_i32, %c0_i32_0 : i32, i32
  }
  func.func @transform_10(%arg0: i32) -> (i32, i32) {
    %c0_i32 = arith.constant 0 : i32
    %c0_i32_0 = arith.constant 0 : i32
    %c0_i32_1 = arith.constant 0 : i32
    return %c0_i32, %c0_i32_0 : i32, i32
  }
  func.func @transform_11(%arg0: i32) -> (i32, i32, i32) {
    %c0_i32 = arith.constant 0 : i32
    %c0_i32_0 = arith.constant 0 : i32
    %c0_i32_1 = arith.constant 0 : i32
    return %arg0, %c0_i32, %c0_i32_0 : i32, i32, i32
  }
}

</mosaic_0001>

<llo_original>
// kernel: tpu_custom_call.1
$region0: #{tpu_custom_call.1}
  #allocation0 [shape = 'u32[]', space=smem, size = 0x4, offset = 0x4, fixed_abs, tag = 'smem constant byte address 0x4 - core index']
  #allocation1 [shape = 'u32[144,128]{1,0:T(1,128)}', space=vmem, size = 0x12000, scoped, tag = 'internal scratch']
  %s0 = inlined_call_operand.vmem [shape: f32[2,32,256], index: 0, kind: input, shape index: {}]
  %s1 = inlined_call_operand.vmem [shape: f32[2,27,32,1], index: 1, kind: input, shape index: {}]
  %s2 = inlined_call_operand.vmem [shape: f32[2,64,32], index: 2, kind: input, shape index: {}]
  %s3 = inlined_call_operand.vmem [shape: f32[2,64,1], index: 3, kind: input, shape index: {}]
  %s4 = inlined_call_operand.vmem [shape: f32[2,32,64], index: 4, kind: input, shape index: {}]
  %s5 = inlined_call_operand.vmem [shape: f32[2,32,1], index: 5, kind: input, shape index: {}]
  %s6 = inlined_call_operand.vmem [shape: f32[9,1,256], index: 6, kind: input, shape index: {}]
  %s7 = inlined_call_operand.vmem [shape: f32[7,1,256], index: 7, kind: input, shape index: {}]
  %s8 = inlined_call_operand.vmem [shape: f32[7,1,256], index: 8, kind: input, shape index: {}]
  %s9 = inlined_call_operand.vmem [shape: f32[256,16], index: 9, kind: input, shape index: {}]
  %s10 = inlined_call_operand.vmem [shape: f32[16,256], index: 10, kind: input, shape index: {}]
  %s11 = inlined_call_operand.hbm [shape: f32[2,32,256], index: 11, kind: output, shape index: {}]
  %s12 = sld [smem:[#allocation0]]
  $region77: #{tpu_custom_call.1} parent=0
    _
  %s14 = ssub.s32 1, %s12
  %s15 = scalar_select 0, %s14, %s12
  $region1: #{tpu_custom_call.1} parent=0
    #allocation2 [shape = 'u8[65536]{0}', space=vmem, size = 0x10000, scoped, tag = 'output window, operand 0']
    #allocation3 [shape = 's32[2]{0}', space=sflag, size = 0x8, scoped, tag = 'scoped memory for tpu_custom_call.1']
    %16 = vsyncpa [#allocation3], 0
    %s17 = scalar_lea.sflag [#allocation3], 1
    %18 = vsyncpa %s17, 0
    loop: start=0, step=1, limit=4
    $region2: #{tpu_custom_call.1} parent=1 // loop_pre_header
      _
    $region3: #{tpu_custom_call.1} parent=1 // loop_header
      %s20 = sphi 0, %s24
      %p21 = scmp.ge.s32.totalorder %s20, 4
      %s30 = sphi 0, %s32
      %s33 = sphi 0, %s30
      %s34 = sphi 0, %s33
      %s50 = sphi 0, %s34
      %s54 = sphi 0, %s54
      %s56 = sphi 0, %s54
      %s57 = sphi 0, %s56
      %s71 = sphi 0, %s57
      %s75 = sphi 0, %s75
      %s77 = sphi 0, %s75
      %s78 = sphi 0, %s77
      %s92 = sphi 0, %s78
      %s96 = sphi 0, %s96
      %s98 = sphi 0, %s96
      %s99 = sphi 0, %s98
      %s113 = sphi 0, %s99
      %s117 = sphi 0, %s117
      %s119 = sphi 0, %s117
      %s120 = sphi 0, %s119
      %s134 = sphi 0, %s120
      %s138 = sphi 0, %s138
      %s140 = sphi 0, %s138
      %s141 = sphi 0, %s140
      %s155 = sphi 0, %s141
      %s159 = sphi 0, %s159
      %s161 = sphi 0, %s159
      %s162 = sphi 0, %s161
      %s176 = sphi 0, %s162
      %s180 = sphi 0, %s180
      %s182 = sphi 0, %s180
      %s183 = sphi 0, %s182
      %s197 = sphi 0, %s183
      %s201 = sphi 0, %s201
      %s203 = sphi 0, %s201
      %s204 = sphi 0, %s203
      %s218 = sphi 0, %s204
      %s222 = sphi 0, %s222
      %s224 = sphi 0, %s222
      %s225 = sphi 0, %s224
      %s239 = sphi 0, %s225
      %s243 = sphi 0, %s243
      %s245 = sphi 0, %s243
      %s246 = sphi 0, %s245
      %s260 = sphi 0, %s246
      %s266 = sphi 0, %s268
      %s269 = sphi 0, %s266
      %s270 = sphi 0, %s269
      %s286 = sphi 0, %s270
    $region4: #{tpu_custom_call.1} parent=1 // loop_header_branch
      %23 = sbr.rel (%p21) target = $region8
    $region5: #{tpu_custom_call.1} parent=1 // loop_body
      %s25 = ssub.s32 %s20, 1
      %s26 = ssub.s32 %s20, 2
      %s27 = sadd.s32 %s20, 1
      %s28 = ssub.s32 %s20, %s27
      %p29 = scmp.eq.s32.totalorder %s28, 0
      %s31 = sadd.s32 %s30, 1
      %s32 = scalar_select %p29, %s30, %s31
      %p35 = pneg %p29
      %p36 = scmp.eq.s32.totalorder %s20, 1
      %p37 = por %p35, %p36
      %p38 = scmp.ne.s32.totalorder %s30, %s33
      %p39 = scmp.eq.s32.totalorder %s20, 0
      %p40 = por %p38, %p39
      %p41 = scmp.ne.s32.totalorder %s30, %s33
      %p42 = scmp.eq.s32.totalorder %s25, 1
      %p43 = por %p41, %p42
      %p44 = scmp.ne.s32.totalorder %s33, %s34
      %p45 = scmp.eq.s32.totalorder %s25, 0
      %p46 = por %p44, %p45
      %p47 = scmp.ne.s32.totalorder %s33, %s34
      %p48 = scmp.eq.s32.totalorder %s26, 1
      %p49 = por %p47, %p48
      %p51 = scmp.ne.s32.totalorder %s34, %s50
      %p52 = scmp.eq.s32.totalorder %s26, 0
      %p53 = por %p51, %p52
      %s55 = sadd.s32 %s54, 1
      %p58 = scmp.eq.s32.totalorder %s20, 1
      %p59 = scmp.ne.s32.totalorder %s54, %s56
      %p60 = scmp.eq.s32.totalorder %s20, 0
      %p61 = por %p59, %p60
      %p62 = scmp.ne.s32.totalorder %s54, %s56
      %p63 = scmp.eq.s32.totalorder %s25, 1
      %p64 = por %p62, %p63
      %p65 = scmp.ne.s32.totalorder %s56, %s57
      %p66 = scmp.eq.s32.totalorder %s25, 0
      %p67 = por %p65, %p66
      %p68 = scmp.ne.s32.totalorder %s56, %s57
      %p69 = scmp.eq.s32.totalorder %s26, 1
      %p70 = por %p68, %p69
      %p72 = scmp.ne.s32.totalorder %s57, %s71
      %p73 = scmp.eq.s32.totalorder %s26, 0
      %p74 = por %p72, %p73
      %s76 = sadd.s32 %s75, 1
      %p79 = scmp.eq.s32.totalorder %s20, 1
      %p80 = scmp.ne.s32.totalorder %s75, %s77
      %p81 = scmp.eq.s32.totalorder %s20, 0
      %p82 = por %p80, %p81
      %p83 = scmp.ne.s32.totalorder %s75, %s77
      %p84 = scmp.eq.s32.totalorder %s25, 1
      %p85 = por %p83, %p84
      %p86 = scmp.ne.s32.totalorder %s77, %s78
      %p87 = scmp.eq.s32.totalorder %s25, 0
      %p88 = por %p86, %p87
      %p89 = scmp.ne.s32.totalorder %s77, %s78
      %p90 = scmp.eq.s32.totalorder %s26, 1
      %p91 = por %p89, %p90
      %p93 = scmp.ne.s32.totalorder %s78, %s92
      %p94 = scmp.eq.s32.totalorder %s26, 0
      %p95 = por %p93, %p94
      %s97 = sadd.s32 %s96, 1
      %p100 = scmp.eq.s32.totalorder %s20, 1
      %p101 = scmp.ne.s32.totalorder %s96, %s98
      %p102 = scmp.eq.s32.totalorder %s20, 0
      %p103 = por %p101, %p102
      %p104 = scmp.ne.s32.totalorder %s96, %s98
      %p105 = scmp.eq.s32.totalorder %s25, 1
      %p106 = por %p104, %p105
      %p107 = scmp.ne.s32.totalorder %s98, %s99
      %p108 = scmp.eq.s32.totalorder %s25, 0
      %p109 = por %p107, %p108
      %p110 = scmp.ne.s32.totalorder %s98, %s99
      %p111 = scmp.eq.s32.totalorder %s26, 1
      %p112 = por %p110, %p111
      %p114 = scmp.ne.s32.totalorder %s99, %s113
      %p115 = scmp.eq.s32.totalorder %s26, 0
      %p116 = por %p114, %p115
      %s118 = sadd.s32 %s117, 1
      %p121 = scmp.eq.s32.totalorder %s20, 1
      %p122 = scmp.ne.s32.totalorder %s117, %s119
      %p123 = scmp.eq.s32.totalorder %s20, 0
      %p124 = por %p122, %p123
      %p125 = scmp.ne.s32.totalorder %s117, %s119
      %p126 = scmp.eq.s32.totalorder %s25, 1
      %p127 = por %p125, %p126
      %p128 = scmp.ne.s32.totalorder %s119, %s120
      %p129 = scmp.eq.s32.totalorder %s25, 0
      %p130 = por %p128, %p129
      %p131 = scmp.ne.s32.totalorder %s119, %s120
      %p132 = scmp.eq.s32.totalorder %s26, 1
      %p133 = por %p131, %p132
      %p135 = scmp.ne.s32.totalorder %s120, %s134
      %p136 = scmp.eq.s32.totalorder %s26, 0
      %p137 = por %p135, %p136
      %s139 = sadd.s32 %s138, 1
      %p142 = scmp.eq.s32.totalorder %s20, 1
      %p143 = scmp.ne.s32.totalorder %s138, %s140
      %p144 = scmp.eq.s32.totalorder %s20, 0
      %p145 = por %p143, %p144
      %p146 = scmp.ne.s32.totalorder %s138, %s140
      %p147 = scmp.eq.s32.totalorder %s25, 1
      %p148 = por %p146, %p147
      %p149 = scmp.ne.s32.totalorder %s140, %s141
      %p150 = scmp.eq.s32.totalorder %s25, 0
      %p151 = por %p149, %p150
      %p152 = scmp.ne.s32.totalorder %s140, %s141
      %p153 = scmp.eq.s32.totalorder %s26, 1
      %p154 = por %p152, %p153
      %p156 = scmp.ne.s32.totalorder %s141, %s155
      %p157 = scmp.eq.s32.totalorder %s26, 0
      %p158 = por %p156, %p157
      %s160 = sadd.s32 %s159, 1
      %p163 = scmp.eq.s32.totalorder %s20, 1
      %p164 = scmp.ne.s32.totalorder %s159, %s161
      %p165 = scmp.eq.s32.totalorder %s20, 0
      %p166 = por %p164, %p165
      %p167 = scmp.ne.s32.totalorder %s159, %s161
      %p168 = scmp.eq.s32.totalorder %s25, 1
      %p169 = por %p167, %p168
      %p170 = scmp.ne.s32.totalorder %s161, %s162
      %p171 = scmp.eq.s32.totalorder %s25, 0
      %p172 = por %p170, %p171
      %p173 = scmp.ne.s32.totalorder %s161, %s162
      %p174 = scmp.eq.s32.totalorder %s26, 1
      %p175 = por %p173, %p174
      %p177 = scmp.ne.s32.totalorder %s162, %s176
      %p178 = scmp.eq.s32.totalorder %s26, 0
      %p179 = por %p177, %p178
      %s181 = sadd.s32 %s180, 1
      %p184 = scmp.eq.s32.totalorder %s20, 1
      %p185 = scmp.ne.s32.totalorder %s180, %s182
      %p186 = scmp.eq.s32.totalorder %s20, 0
      %p187 = por %p185, %p186
      %p188 = scmp.ne.s32.totalorder %s180, %s182
      %p189 = scmp.eq.s32.totalorder %s25, 1
      %p190 = por %p188, %p189
      %p191 = scmp.ne.s32.totalorder %s182, %s183
      %p192 = scmp.eq.s32.totalorder %s25, 0
      %p193 = por %p191, %p192
      %p194 = scmp.ne.s32.totalorder %s182, %s183
      %p195 = scmp.eq.s32.totalorder %s26, 1
      %p196 = por %p194, %p195
      %p198 = scmp.ne.s32.totalorder %s183, %s197
      %p199 = scmp.eq.s32.totalorder %s26, 0
      %p200 = por %p198, %p199
      %s202 = sadd.s32 %s201, 1
      %p205 = scmp.eq.s32.totalorder %s20, 1
      %p206 = scmp.ne.s32.totalorder %s201, %s203
      %p207 = scmp.eq.s32.totalorder %s20, 0
      %p208 = por %p206, %p207
      %p209 = scmp.ne.s32.totalorder %s201, %s203
      %p210 = scmp.eq.s32.totalorder %s25, 1
      %p211 = por %p209, %p210
      %p212 = scmp.ne.s32.totalorder %s203, %s204
      %p213 = scmp.eq.s32.totalorder %s25, 0
      %p214 = por %p212, %p213
      %p215 = scmp.ne.s32.totalorder %s203, %s204
      %p216 = scmp.eq.s32.totalorder %s26, 1
      %p217 = por %p215, %p216
      %p219 = scmp.ne.s32.totalorder %s204, %s218
      %p220 = scmp.eq.s32.totalorder %s26, 0
      %p221 = por %p219, %p220
      %s223 = sadd.s32 %s222, 1
      %p226 = scmp.eq.s32.totalorder %s20, 1
      %p227 = scmp.ne.s32.totalorder %s222, %s224
      %p228 = scmp.eq.s32.totalorder %s20, 0
      %p229 = por %p227, %p228
      %p230 = scmp.ne.s32.totalorder %s222, %s224
      %p231 = scmp.eq.s32.totalorder %s25, 1
      %p232 = por %p230, %p231
      %p233 = scmp.ne.s32.totalorder %s224, %s225
      %p234 = scmp.eq.s32.totalorder %s25, 0
      %p235 = por %p233, %p234
      %p236 = scmp.ne.s32.totalorder %s224, %s225
      %p237 = scmp.eq.s32.totalorder %s26, 1
      %p238 = por %p236, %p237
      %p240 = scmp.ne.s32.totalorder %s225, %s239
      %p241 = scmp.eq.s32.totalorder %s26, 0
      %p242 = por %p240, %p241
      %s244 = sadd.s32 %s243, 1
      %p247 = scmp.eq.s32.totalorder %s20, 1
      %p248 = scmp.ne.s32.totalorder %s243, %s245
      %p249 = scmp.eq.s32.totalorder %s20, 0
      %p250 = por %p248, %p249
      %p251 = scmp.ne.s32.totalorder %s243, %s245
      %p252 = scmp.eq.s32.totalorder %s25, 1
      %p253 = por %p251, %p252
      %p254 = scmp.ne.s32.totalorder %s245, %s246
      %p255 = scmp.eq.s32.totalorder %s25, 0
      %p256 = por %p254, %p255
      %p257 = scmp.ne.s32.totalorder %s245, %s246
      %p258 = scmp.eq.s32.totalorder %s26, 1
      %p259 = por %p257, %p258
      %p261 = scmp.ne.s32.totalorder %s246, %s260
      %p262 = scmp.eq.s32.totalorder %s26, 0
      %p263 = por %p261, %p262
      %s264 = ssub.s32 %s20, %s27
      %p265 = scmp.eq.s32.totalorder %s264, 0
      %s267 = sadd.s32 %s266, 1
      %s268 = scalar_select %p265, %s266, %s267
      %p271 = pneg %p265
      %p272 = scmp.eq.s32.totalorder %s20, 1
      %p273 = por %p271, %p272
      %p274 = scmp.ne.s32.totalorder %s266, %s269
      %p275 = scmp.eq.s32.totalorder %s20, 0
      %p276 = por %p274, %p275
      %p277 = scmp.ne.s32.totalorder %s266, %s269
      %p278 = scmp.eq.s32.totalorder %s25, 1
      %p279 = por %p277, %p278
      %p280 = scmp.ne.s32.totalorder %s269, %s270
      %p281 = scmp.eq.s32.totalorder %s25, 0
      %p282 = por %p280, %p281
      %p283 = scmp.ne.s32.totalorder %s269, %s270
      %p284 = scmp.eq.s32.totalorder %s26, 1
      %p285 = por %p283, %p284
      %p287 = scmp.ne.s32.totalorder %s270, %s286
      %p288 = scmp.eq.s32.totalorder %s26, 0
      %p289 = por %p287, %p288
      %p290 = scmp.le.s32.totalorder 1, %s20
      %p291 = scmp.lt.s32.totalorder %s20, 3
      %p292 = pnand %p290, %p291
      %p293 = pneg %p292
      // Predicated region
      $region9: #{tpu_custom_call.1} parent=5 // pred_check
        _
      $region10: #{tpu_custom_call.1} parent=5 // pred_check_branch
        %295 = sbr.rel (%p292) target = $region12
      $region11: #{tpu_custom_call.1} parent=5 // pred_region
        %s296 = ssub.s32 %s20, 1
        // Predicated region
        $region13: #{tpu_custom_call.1} parent=11 // pred_check
          %p297 = pneg %p67
        $region14: #{tpu_custom_call.1} parent=11 // pred_check_branch
          %299 = sbr.rel (%p297) target = $region16
        $region15: #{tpu_custom_call.1} parent=11 // pred_region
          _
        $region16: #{tpu_custom_call.1} parent=11 // pred_fallthru
          _
        // Predicated region
        $region17: #{tpu_custom_call.1} parent=11 // pred_check
          %p300 = pneg %p88
        $region18: #{tpu_custom_call.1} parent=11 // pred_check_branch
          %302 = sbr.rel (%p300) target = $region20
        $region19: #{tpu_custom_call.1} parent=11 // pred_region
          _
        $region20: #{tpu_custom_call.1} parent=11 // pred_fallthru
          _
        // Predicated region
        $region21: #{tpu_custom_call.1} parent=11 // pred_check
          %p303 = pneg %p109
        $region22: #{tpu_custom_call.1} parent=11 // pred_check_branch
          %305 = sbr.rel (%p303) target = $region24
        $region23: #{tpu_custom_call.1} parent=11 // pred_region
          _
        $region24: #{tpu_custom_call.1} parent=11 // pred_fallthru
          _
        // Predicated region
        $region25: #{tpu_custom_call.1} parent=11 // pred_check
          %p306 = pneg %p130
        $region26: #{tpu_custom_call.1} parent=11 // pred_check_branch
          %308 = sbr.rel (%p306) target = $region28
        $region27: #{tpu_custom_call.1} parent=11 // pred_region
          _
        $region28: #{tpu_custom_call.1} parent=11 // pred_fallthru
          _
        // Predicated region
        $region29: #{tpu_custom_call.1} parent=11 // pred_check
          %p309 = pneg %p151
        $region30: #{tpu_custom_call.1} parent=11 // pred_check_branch
          %311 = sbr.rel (%p309) target = $region32
        $region31: #{tpu_custom_call.1} parent=11 // pred_region
          _
        $region32: #{tpu_custom_call.1} parent=11 // pred_fallthru
          _
        // Predicated region
        $region33: #{tpu_custom_call.1} parent=11 // pred_check
          %p312 = pneg %p172
        $region34: #{tpu_custom_call.1} parent=11 // pred_check_branch
          %314 = sbr.rel (%p312) target = $region36
        $region35: #{tpu_custom_call.1} parent=11 // pred_region
          _
        $region36: #{tpu_custom_call.1} parent=11 // pred_fallthru
          _
        // Predicated region
        $region37: #{tpu_custom_call.1} parent=11 // pred_check
          %p315 = pneg %p193
        $region38: #{tpu_custom_call.1} parent=11 // pred_check_branch
          %317 = sbr.rel (%p315) target = $region40
        $region39: #{tpu_custom_call.1} parent=11 // pred_region
          _
        $region40: #{tpu_custom_call.1} parent=11 // pred_fallthru
          _
        // Predicated region
        $region41: #{tpu_custom_call.1} parent=11 // pred_check
          %p318 = pneg %p214
        $region42: #{tpu_custom_call.1} parent=11 // pred_check_branch
          %320 = sbr.rel (%p318) target = $region44
        $region43: #{tpu_custom_call.1} parent=11 // pred_region
          _
        $region44: #{tpu_custom_call.1} parent=11 // pred_fallthru
          _
        // Predicated region
        $region45: #{tpu_custom_call.1} parent=11 // pred_check
          %p321 = pneg %p235
        $region46: #{tpu_custom_call.1} parent=11 // pred_check_branch
          %323 = sbr.rel (%p321) target = $region48
        $region47: #{tpu_custom_call.1} parent=11 // pred_region
          _
        $region48: #{tpu_custom_call.1} parent=11 // pred_fallthru
          _
        // Predicated region
        $region49: #{tpu_custom_call.1} parent=11 // pred_check
          %p324 = pneg %p256
        $region50: #{tpu_custom_call.1} parent=11 // pred_check_branch
          %326 = sbr.rel (%p324) target = $region52
        $region51: #{tpu_custom_call.1} parent=11 // pred_region
          _
        $region52: #{tpu_custom_call.1} parent=11 // pred_fallthru
          _
      $region12: #{tpu_custom_call.1} parent=5 // pred_fallthru
        _
      %p327 = scmp.lt.s32.totalorder %s20, 2
      // Predicated region
      $region53: #{tpu_custom_call.1} parent=5 // pred_check
        %p328 = pneg %p327
      $region54: #{tpu_custom_call.1} parent=5 // pred_check_branch
        %330 = sbr.rel (%p328) target = $region56
      $region55: #{tpu_custom_call.1} parent=5 // pred_region
        // Predicated region
        $region57: #{tpu_custom_call.1} parent=55 // pred_check
          %p331 = pneg %p40
        $region58: #{tpu_custom_call.1} parent=55 // pred_check_branch
          %333 = sbr.rel (%p331) target = $region60
        $region59: #{tpu_custom_call.1} parent=55 // pred_region
          %p334 = scmp.lt.s32.totalorder %s20, 1
          %s335 = scalar_select %p334, %s20, 1
          %s336 = smul.addr %s335, 8
          %s337 = smul.addr %s336, 8
          %s338 = scalar_lea.vmem %s0, %s337
        $region60: #{tpu_custom_call.1} parent=55 // pred_fallthru
          _
      $region56: #{tpu_custom_call.1} parent=5 // pred_fallthru
        _
      %p339 = scmp.le.s32.totalorder 1, %s20
      %p340 = scmp.lt.s32.totalorder %s20, 3
      %p341 = pnand %p339, %p340
      %p342 = pneg %p341
      // Predicated region
      $region61: #{tpu_custom_call.1} parent=5 // pred_check
        _
      $region62: #{tpu_custom_call.1} parent=5 // pred_check_branch
        %344 = sbr.rel (%p341) target = $region64
      $region63: #{tpu_custom_call.1} parent=5 // pred_region
        %s345 = ssub.s32 %s20, 1
        %p346 = scmp.lt.s32.totalorder %s25, 1
        %s347 = scalar_select %p346, %s25, 1
        %s348 = smul.addr %s347, 8
        %s349 = smul.addr %s348, 8
        %s350 = scalar_lea.vmem %s0, %s349
        %p351 = pneg %p46
        %p352 = pneg %p43
        %p353 = pneg %p67
        %p354 = pneg %p64
        %p355 = pneg %p88
        %p356 = pneg %p85
        %p357 = pneg %p109
        %p358 = pneg %p106
        %p359 = pneg %p130
        %p360 = pneg %p127
        %p361 = pneg %p151
        %p362 = pneg %p148
        %p363 = pneg %p172
        %p364 = pneg %p169
        %p365 = pneg %p193
        %p366 = pneg %p190
        %p367 = pneg %p214
        %p368 = pneg %p211
        %p369 = pneg %p235
        %p370 = pneg %p232
        %p371 = pneg %p256
        %p372 = pneg %p253
        %p373 = pneg %p282
        %p374 = pneg %p279
        %s375 = sand.u32 %s269, 1
        %s376 = scalar_lea.sflag [#allocation3], %s375
        %s377 = sand.u32 %s269, 1
        %s378 = smul.addr %s377, 64
        %s379 = scalar_lea.vmem [#allocation2], %s378
        %p380 = scmp.lt.s32.totalorder %s25, 1
        %s381 = scalar_select %p380, %s25, 1
        %s382 = smul.addr %s381, 8
        %s383 = smul.addr %s382, 8
        %s384 = scalar_lea.vmem %s0, %s383
        %v385 = vld [vmem:[%s384] sm:$0xff]
        %v386 = vld [vmem:[%s384 + $0x8] sm:$0xff]
        %v387 = vld [vmem:[%s384 + $0x10] sm:$0xff]
        %v388 = vld [vmem:[%s384 + $0x18] sm:$0xff]
        %v389 = vld [vmem:[%s384 + $0x20] sm:$0xff]
        %v390 = vld [vmem:[%s384 + $0x28] sm:$0xff]
        %v391 = vld [vmem:[%s384 + $0x30] sm:$0xff]
        %v392 = vld [vmem:[%s384 + $0x38] sm:$0xff]
        %393 = vrot.lane.b32.xlu0 %v385, 17
        %v394 = vpop.permute.xlu0 %393
        %395 = vrot.lane.b32.xlu0 %v387, 17
        %v396 = vpop.permute.xlu0 %395
        %397 = vrot.lane.b32.xlu0 %v389, 17
        %v398 = vpop.permute.xlu0 %397
        %399 = vrot.lane.b32.xlu0 %v391, 17
        %v400 = vpop.permute.xlu0 %399
        %401 = vrot.lane.b32.xlu0 %v386, 17
        %v402 = vpop.permute.xlu0 %401
        %403 = vrot.lane.b32.xlu0 %v388, 17
        %v404 = vpop.permute.xlu0 %403
        %405 = vrot.lane.b32.xlu0 %v390, 17
        %v406 = vpop.permute.xlu0 %405
        %407 = vrot.lane.b32.xlu0 %v392, 17
        %v408 = vpop.permute.xlu0 %407
        %v409 = vlaneseq
        %v410 = vand.u32 %v409, 127
        %vm411 = vcmp.lt.s32.totalorder %v410, 17
        %v412 = vsel %vm411, %v394, %v402
        %v413 = vsel %vm411, %v396, %v404
        %v414 = vsel %vm411, %v398, %v406
        %v415 = vsel %vm411, %v400, %v408
        %v416 = vsel %vm411, %v402, %v394
        %v417 = vsel %vm411, %v404, %v396
        %v418 = vsel %vm411, %v406, %v398
        %v419 = vsel %vm411, %v408, %v400
        %v420 = vld [vmem:[%s6] sm:$0x3]
        %v422 = vlaneseq
        %v423 = vshrl.u32 %v422, 7
        %v424 = vsub.s32 0, %v423
        %v425 = vrot.slane %v420, %v424
        %v426 = vlaneseq
        %v427 = vshrl.u32 %v426, 7
        %v428 = vsub.s32 1, %v427
        %v429 = vrot.slane %v420, %v428
        %v432 = vmul.f32 %v416, %v425
        %v433 = vmul.f32 %v412, %v429
        %v434 = vmul.f32 %v417, %v425
        %v435 = vmul.f32 %v413, %v429
        %v436 = vmul.f32 %v418, %v425
        %v437 = vmul.f32 %v414, %v429
        %v438 = vmul.f32 %v419, %v425
        %v439 = vmul.f32 %v415, %v429
        %v440 = vld [vmem:[%s1] sm:$0xff]
        %v441 = vld [vmem:[%s1 + $0x8] sm:$0xff]
        %v442 = vld [vmem:[%s1 + $0x10] sm:$0xff]
        %v443 = vld [vmem:[%s1 + $0x18] sm:$0xff]
        %445 = vset.pattern.permute.xlu0 0
        %446 = vperm.xlu0 %445, %v440
        %v447 = vpop.permute.xlu0 %446
        %450 = vset.pattern.permute.xlu0 0
        %451 = vperm.xlu0 %450, %v441
        %v452 = vpop.permute.xlu0 %451
        %455 = vset.pattern.permute.xlu0 0
        %456 = vperm.xlu0 %455, %v442
        %v457 = vpop.permute.xlu0 %456
        %460 = vset.pattern.permute.xlu0 0
        %461 = vperm.xlu0 %460, %v443
        %v462 = vpop.permute.xlu0 %461
        %v464 = vmul.f32 %v432, %v447
        %v465 = vmul.f32 %v433, %v447
        %v466 = vmul.f32 %v434, %v452
        %v467 = vmul.f32 %v435, %v452
        %v468 = vmul.f32 %v436, %v457
        %v469 = vmul.f32 %v437, %v457
        %v470 = vmul.f32 %v438, %v462
        %v471 = vmul.f32 %v439, %v462
        %472 = vrot.lane.b32.xlu0 %v385, 16
        %v473 = vpop.permute.xlu0 %472
        %474 = vrot.lane.b32.xlu0 %v387, 16
        %v475 = vpop.permute.xlu0 %474
        %476 = vrot.lane.b32.xlu0 %v389, 16
        %v477 = vpop.permute.xlu0 %476
        %478 = vrot.lane.b32.xlu0 %v391, 16
        %v479 = vpop.permute.xlu0 %478
        %480 = vrot.lane.b32.xlu0 %v386, 16
        %v481 = vpop.permute.xlu0 %480
        %482 = vrot.lane.b32.xlu0 %v388, 16
        %v483 = vpop.permute.xlu0 %482
        %484 = vrot.lane.b32.xlu0 %v390, 16
        %v485 = vpop.permute.xlu0 %484
        %486 = vrot.lane.b32.xlu0 %v392, 16
        %v487 = vpop.permute.xlu0 %486
        %vm488 = vcmp.lt.s32.totalorder %v410, 16
        %v489 = vsel %vm488, %v473, %v481
        %v490 = vsel %vm488, %v475, %v483
        %v491 = vsel %vm488, %v477, %v485
        %v492 = vsel %vm488, %v479, %v487
        %v493 = vsel %vm488, %v481, %v473
        %v494 = vsel %vm488, %v483, %v475
        %v495 = vsel %vm488, %v485, %v477
        %v496 = vsel %vm488, %v487, %v479
        %s497 = scalar_lea.vmem %s6, 2
        %v498 = vld [vmem:[%s497] sm:$0x3]
        %v500 = vlaneseq
        %v501 = vshrl.u32 %v500, 7
        %v502 = vsub.s32 0, %v501
        %v503 = vrot.slane %v498, %v502
        %v504 = vlaneseq
        %v505 = vshrl.u32 %v504, 7
        %v506 = vsub.s32 1, %v505
        %v507 = vrot.slane %v498, %v506
        %v510 = vmul.f32 %v493, %v503
        %v511 = vmul.f32 %v489, %v507
        %v512 = vmul.f32 %v494, %v503
        %v513 = vmul.f32 %v490, %v507
        %v514 = vmul.f32 %v495, %v503
        %v515 = vmul.f32 %v491, %v507
        %v516 = vmul.f32 %v496, %v503
        %v517 = vmul.f32 %v492, %v507
        %s518 = scalar_lea.vmem %s1, 32
        %v519 = vld [vmem:[%s518] sm:$0xff]
        %v520 = vld [vmem:[%s518 + $0x8] sm:$0xff]
        %v521 = vld [vmem:[%s518 + $0x10] sm:$0xff]
        %v522 = vld [vmem:[%s518 + $0x18] sm:$0xff]
        %524 = vset.pattern.permute.xlu0 0
        %525 = vperm.xlu0 %524, %v519
        %v526 = vpop.permute.xlu0 %525
        %529 = vset.pattern.permute.xlu0 0
        %530 = vperm.xlu0 %529, %v520
        %v531 = vpop.permute.xlu0 %530
        %534 = vset.pattern.permute.xlu0 0
        %535 = vperm.xlu0 %534, %v521
        %v536 = vpop.permute.xlu0 %535
        %539 = vset.pattern.permute.xlu0 0
        %540 = vperm.xlu0 %539, %v522
        %v541 = vpop.permute.xlu0 %540
        %v543 = vmul.f32 %v510, %v526
        %v544 = vmul.f32 %v511, %v526
        %v545 = vmul.f32 %v512, %v531
        %v546 = vmul.f32 %v513, %v531
        %v547 = vmul.f32 %v514, %v536
        %v548 = vmul.f32 %v515, %v536
        %v549 = vmul.f32 %v516, %v541
        %v550 = vmul.f32 %v517, %v541
        %v551 = vadd.f32 %v464, %v543
        %v552 = vadd.f32 %v465, %v544
        %v553 = vadd.f32 %v466, %v545
        %v554 = vadd.f32 %v467, %v546
        %v555 = vadd.f32 %v468, %v547
        %v556 = vadd.f32 %v469, %v548
        %v557 = vadd.f32 %v470, %v549
        %v558 = vadd.f32 %v471, %v550
        %559 = vrot.lane.b32.xlu0 %v385, 15
        %v560 = vpop.permute.xlu0 %559
        %561 = vrot.lane.b32.xlu0 %v387, 15
        %v562 = vpop.permute.xlu0 %561
        %563 = vrot.lane.b32.xlu0 %v389, 15
        %v564 = vpop.permute.xlu0 %563
        %565 = vrot.lane.b32.xlu0 %v391, 15
        %v566 = vpop.permute.xlu0 %565
        %567 = vrot.lane.b32.xlu0 %v386, 15
        %v568 = vpop.permute.xlu0 %567
        %569 = vrot.lane.b32.xlu0 %v388, 15
        %v570 = vpop.permute.xlu0 %569
        %571 = vrot.lane.b32.xlu0 %v390, 15
        %v572 = vpop.permute.xlu0 %571
        %573 = vrot.lane.b32.xlu0 %v392, 15
        %v574 = vpop.permute.xlu0 %573
        %vm575 = vcmp.lt.s32.totalorder %v410, 15
        %v576 = vsel %vm575, %v560, %v568
        %v577 = vsel %vm575, %v562, %v570
        %v578 = vsel %vm575, %v564, %v572
        %v579 = vsel %vm575, %v566, %v574
        %v580 = vsel %vm575, %v568, %v560
        %v581 = vsel %vm575, %v570, %v562
        %v582 = vsel %vm575, %v572, %v564
        %v583 = vsel %vm575, %v574, %v566
        %s584 = scalar_lea.vmem %s6, 4
        %v585 = vld [vmem:[%s584] sm:$0x3]
        %v587 = vlaneseq
        %v588 = vshrl.u32 %v587, 7
        %v589 = vsub.s32 0, %v588
        %v590 = vrot.slane %v585, %v589
        %v591 = vlaneseq
        %v592 = vshrl.u32 %v591, 7
        %v593 = vsub.s32 1, %v592
        %v594 = vrot.slane %v585, %v593
        %v597 = vmul.f32 %v580, %v590
        %v598 = vmul.f32 %v576, %v594
        %v599 = vmul.f32 %v581, %v590
        %v600 = vmul.f32 %v577, %v594
        %v601 = vmul.f32 %v582, %v590
        %v602 = vmul.f32 %v578, %v594
        %v603 = vmul.f32 %v583, %v590
        %v604 = vmul.f32 %v579, %v594
        %s605 = scalar_lea.vmem %s1, 64
        %v606 = vld [vmem:[%s605] sm:$0xff]
        %v607 = vld [vmem:[%s605 + $0x8] sm:$0xff]
        %v608 = vld [vmem:[%s605 + $0x10] sm:$0xff]
        %v609 = vld [vmem:[%s605 + $0x18] sm:$0xff]
        %611 = vset.pattern.permute.xlu0 0
        %612 = vperm.xlu0 %611, %v606
        %v613 = vpop.permute.xlu0 %612
        %616 = vset.pattern.permute.xlu0 0
        %617 = vperm.xlu0 %616, %v607
        %v618 = vpop.permute.xlu0 %617
        %621 = vset.pattern.permute.xlu0 0
        %622 = vperm.xlu0 %621, %v608
        %v623 = vpop.permute.xlu0 %622
        %626 = vset.pattern.permute.xlu0 0
        %627 = vperm.xlu0 %626, %v609
        %v628 = vpop.permute.xlu0 %627
        %v630 = vmul.f32 %v597, %v613
        %v631 = vmul.f32 %v598, %v613
        %v632 = vmul.f32 %v599, %v618
        %v633 = vmul.f32 %v600, %v618
        %v634 = vmul.f32 %v601, %v623
        %v635 = vmul.f32 %v602, %v623
        %v636 = vmul.f32 %v603, %v628
        %v637 = vmul.f32 %v604, %v628
        %v638 = vadd.f32 %v551, %v630
        %v639 = vadd.f32 %v552, %v631
        %v640 = vadd.f32 %v553, %v632
        %v641 = vadd.f32 %v554, %v633
        %v642 = vadd.f32 %v555, %v634
        %v643 = vadd.f32 %v556, %v635
        %v644 = vadd.f32 %v557, %v636
        %v645 = vadd.f32 %v558, %v637
        %646 = vrot.lane.b32.xlu0 %v385, 1
        %v647 = vpop.permute.xlu0 %646
        %648 = vrot.lane.b32.xlu0 %v387, 1
        %v649 = vpop.permute.xlu0 %648
        %650 = vrot.lane.b32.xlu0 %v389, 1
        %v651 = vpop.permute.xlu0 %650
        %652 = vrot.lane.b32.xlu0 %v391, 1
        %v653 = vpop.permute.xlu0 %652
        %654 = vrot.lane.b32.xlu0 %v386, 1
        %v655 = vpop.permute.xlu0 %654
        %656 = vrot.lane.b32.xlu0 %v388, 1
        %v657 = vpop.permute.xlu0 %656
        %658 = vrot.lane.b32.xlu0 %v390, 1
        %v659 = vpop.permute.xlu0 %658
        %660 = vrot.lane.b32.xlu0 %v392, 1
        %v661 = vpop.permute.xlu0 %660
        %vm662 = vcmp.lt.s32.totalorder %v410, 1
        %v663 = vsel %vm662, %v647, %v655
        %v664 = vsel %vm662, %v649, %v657
        %v665 = vsel %vm662, %v651, %v659
        %v666 = vsel %vm662, %v653, %v661
        %v667 = vsel %vm662, %v655, %v647
        %v668 = vsel %vm662, %v657, %v649
        %v669 = vsel %vm662, %v659, %v651
        %v670 = vsel %vm662, %v661, %v653
        %s671 = scalar_lea.vmem %s6, 6
        %v672 = vld [vmem:[%s671] sm:$0x3]
        %v674 = vlaneseq
        %v675 = vshrl.u32 %v674, 7
        %v676 = vsub.s32 0, %v675
        %v677 = vrot.slane %v672, %v676
        %v678 = vlaneseq
        %v679 = vshrl.u32 %v678, 7
        %v680 = vsub.s32 1, %v679
        %v681 = vrot.slane %v672, %v680
        %v684 = vmul.f32 %v667, %v677
        %v685 = vmul.f32 %v663, %v681
        %v686 = vmul.f32 %v668, %v677
        %v687 = vmul.f32 %v664, %v681
        %v688 = vmul.f32 %v669, %v677
        %v689 = vmul.f32 %v665, %v681
        %v690 = vmul.f32 %v670, %v677
        %v691 = vmul.f32 %v666, %v681
        %s692 = scalar_lea.vmem %s1, 96
        %v693 = vld [vmem:[%s692] sm:$0xff]
        %v694 = vld [vmem:[%s692 + $0x8] sm:$0xff]
        %v695 = vld [vmem:[%s692 + $0x10] sm:$0xff]
        %v696 = vld [vmem:[%s692 + $0x18] sm:$0xff]
        %698 = vset.pattern.permute.xlu0 0
        %699 = vperm.xlu0 %698, %v693
        %v700 = vpop.permute.xlu0 %699
        %703 = vset.pattern.permute.xlu0 0
        %704 = vperm.xlu0 %703, %v694
        %v705 = vpop.permute.xlu0 %704
        %708 = vset.pattern.permute.xlu0 0
        %709 = vperm.xlu0 %708, %v695
        %v710 = vpop.permute.xlu0 %709
        %713 = vset.pattern.permute.xlu0 0
        %714 = vperm.xlu0 %713, %v696
        %v715 = vpop.permute.xlu0 %714
        %v717 = vmul.f32 %v684, %v700
        %v718 = vmul.f32 %v685, %v700
        %v719 = vmul.f32 %v686, %v705
        %v720 = vmul.f32 %v687, %v705
        %v721 = vmul.f32 %v688, %v710
        %v722 = vmul.f32 %v689, %v710
        %v723 = vmul.f32 %v690, %v715
        %v724 = vmul.f32 %v691, %v715
        %v725 = vadd.f32 %v638, %v717
        %v726 = vadd.f32 %v639, %v718
        %v727 = vadd.f32 %v640, %v719
        %v728 = vadd.f32 %v641, %v720
        %v729 = vadd.f32 %v642, %v721
        %v730 = vadd.f32 %v643, %v722
        %v731 = vadd.f32 %v644, %v723
        %v732 = vadd.f32 %v645, %v724
        %s733 = scalar_lea.vmem %s6, 8
        %v734 = vld [vmem:[%s733] sm:$0x3]
        %v736 = vlaneseq
        %v737 = vshrl.u32 %v736, 7
        %v738 = vsub.s32 0, %v737
        %v739 = vrot.slane %v734, %v738
        %v740 = vlaneseq
        %v741 = vshrl.u32 %v740, 7
        %v742 = vsub.s32 1, %v741
        %v743 = vrot.slane %v734, %v742
        %v746 = vmul.f32 %v385, %v739
        %v747 = vmul.f32 %v386, %v743
        %v748 = vmul.f32 %v387, %v739
        %v749 = vmul.f32 %v388, %v743
        %v750 = vmul.f32 %v389, %v739
        %v751 = vmul.f32 %v390, %v743
        %v752 = vmul.f32 %v391, %v739
        %v753 = vmul.f32 %v392, %v743
        %s754 = scalar_lea.vmem %s1, 128
        %v755 = vld [vmem:[%s754] sm:$0xff]
        %v756 = vld [vmem:[%s754 + $0x8] sm:$0xff]
        %v757 = vld [vmem:[%s754 + $0x10] sm:$0xff]
        %v758 = vld [vmem:[%s754 + $0x18] sm:$0xff]
        %760 = vset.pattern.permute.xlu0 0
        %761 = vperm.xlu0 %760, %v755
        %v762 = vpop.permute.xlu0 %761
        %765 = vset.pattern.permute.xlu0 0
        %766 = vperm.xlu0 %765, %v756
        %v767 = vpop.permute.xlu0 %766
        %770 = vset.pattern.permute.xlu0 0
        %771 = vperm.xlu0 %770, %v757
        %v772 = vpop.permute.xlu0 %771
        %775 = vset.pattern.permute.xlu0 0
        %776 = vperm.xlu0 %775, %v758
        %v777 = vpop.permute.xlu0 %776
        %v779 = vmul.f32 %v746, %v762
        %v780 = vmul.f32 %v747, %v762
        %v781 = vmul.f32 %v748, %v767
        %v782 = vmul.f32 %v749, %v767
        %v783 = vmul.f32 %v750, %v772
        %v784 = vmul.f32 %v751, %v772
        %v785 = vmul.f32 %v752, %v777
        %v786 = vmul.f32 %v753, %v777
        %v787 = vadd.f32 %v725, %v779
        %v788 = vadd.f32 %v726, %v780
        %v789 = vadd.f32 %v727, %v781
        %v790 = vadd.f32 %v728, %v782
        %v791 = vadd.f32 %v729, %v783
        %v792 = vadd.f32 %v730, %v784
        %v793 = vadd.f32 %v731, %v785
        %v794 = vadd.f32 %v732, %v786
        %795 = vrot.lane.b32.xlu0 %v385, 127
        %v796 = vpop.permute.xlu0 %795
        %797 = vrot.lane.b32.xlu0 %v387, 127
        %v798 = vpop.permute.xlu0 %797
        %799 = vrot.lane.b32.xlu0 %v389, 127
        %v800 = vpop.permute.xlu0 %799
        %801 = vrot.lane.b32.xlu0 %v391, 127
        %v802 = vpop.permute.xlu0 %801
        %803 = vrot.lane.b32.xlu0 %v386, 127
        %v804 = vpop.permute.xlu0 %803
        %805 = vrot.lane.b32.xlu0 %v388, 127
        %v806 = vpop.permute.xlu0 %805
        %807 = vrot.lane.b32.xlu0 %v390, 127
        %v808 = vpop.permute.xlu0 %807
        %809 = vrot.lane.b32.xlu0 %v392, 127
        %v810 = vpop.permute.xlu0 %809
        %vm811 = vcmp.lt.s32.totalorder %v410, 127
        %v812 = vsel %vm811, %v796, %v804
        %v813 = vsel %vm811, %v798, %v806
        %v814 = vsel %vm811, %v800, %v808
        %v815 = vsel %vm811, %v802, %v810
        %v816 = vsel %vm811, %v804, %v796
        %v817 = vsel %vm811, %v806, %v798
        %v818 = vsel %vm811, %v808, %v800
        %v819 = vsel %vm811, %v810, %v802
        %s820 = scalar_lea.vmem %s6, 10
        %v821 = vld [vmem:[%s820] sm:$0x3]
        %v823 = vlaneseq
        %v824 = vshrl.u32 %v823, 7
        %v825 = vsub.s32 0, %v824
        %v826 = vrot.slane %v821, %v825
        %v827 = vlaneseq
        %v828 = vshrl.u32 %v827, 7
        %v829 = vsub.s32 1, %v828
        %v830 = vrot.slane %v821, %v829
        %v833 = vmul.f32 %v812, %v826
        %v834 = vmul.f32 %v816, %v830
        %v835 = vmul.f32 %v813, %v826
        %v836 = vmul.f32 %v817, %v830
        %v837 = vmul.f32 %v814, %v826
        %v838 = vmul.f32 %v818, %v830
        %v839 = vmul.f32 %v815, %v826
        %v840 = vmul.f32 %v819, %v830
        %s841 = scalar_lea.vmem %s1, 160
        %v842 = vld [vmem:[%s841] sm:$0xff]
        %v843 = vld [vmem:[%s841 + $0x8] sm:$0xff]
        %v844 = vld [vmem:[%s841 + $0x10] sm:$0xff]
        %v845 = vld [vmem:[%s841 + $0x18] sm:$0xff]
        %847 = vset.pattern.permute.xlu0 0
        %848 = vperm.xlu0 %847, %v842
        %v849 = vpop.permute.xlu0 %848
        %852 = vset.pattern.permute.xlu0 0
        %853 = vperm.xlu0 %852, %v843
        %v854 = vpop.permute.xlu0 %853
        %857 = vset.pattern.permute.xlu0 0
        %858 = vperm.xlu0 %857, %v844
        %v859 = vpop.permute.xlu0 %858
        %862 = vset.pattern.permute.xlu0 0
        %863 = vperm.xlu0 %862, %v845
        %v864 = vpop.permute.xlu0 %863
        %v866 = vmul.f32 %v833, %v849
        %v867 = vmul.f32 %v834, %v849
        %v868 = vmul.f32 %v835, %v854
        %v869 = vmul.f32 %v836, %v854
        %v870 = vmul.f32 %v837, %v859
        %v871 = vmul.f32 %v838, %v859
        %v872 = vmul.f32 %v839, %v864
        %v873 = vmul.f32 %v840, %v864
        %v874 = vadd.f32 %v787, %v866
        %v875 = vadd.f32 %v788, %v867
        %v876 = vadd.f32 %v789, %v868
        %v877 = vadd.f32 %v790, %v869
        %v878 = vadd.f32 %v791, %v870
        %v879 = vadd.f32 %v792, %v871
        %v880 = vadd.f32 %v793, %v872
        %v881 = vadd.f32 %v794, %v873
        %882 = vrot.lane.b32.xlu0 %v385, 113
        %v883 = vpop.permute.xlu0 %882
        %884 = vrot.lane.b32.xlu0 %v387, 113
        %v885 = vpop.permute.xlu0 %884
        %886 = vrot.lane.b32.xlu0 %v389, 113
        %v887 = vpop.permute.xlu0 %886
        %888 = vrot.lane.b32.xlu0 %v391, 113
        %v889 = vpop.permute.xlu0 %888
        %890 = vrot.lane.b32.xlu0 %v386, 113
        %v891 = vpop.permute.xlu0 %890
        %892 = vrot.lane.b32.xlu0 %v388, 113
        %v893 = vpop.permute.xlu0 %892
        %894 = vrot.lane.b32.xlu0 %v390, 113
        %v895 = vpop.permute.xlu0 %894
        %896 = vrot.lane.b32.xlu0 %v392, 113
        %v897 = vpop.permute.xlu0 %896
        %vm898 = vcmp.lt.s32.totalorder %v410, 113
        %v899 = vsel %vm898, %v883, %v891
        %v900 = vsel %vm898, %v885, %v893
        %v901 = vsel %vm898, %v887, %v895
        %v902 = vsel %vm898, %v889, %v897
        %v903 = vsel %vm898, %v891, %v883
        %v904 = vsel %vm898, %v893, %v885
        %v905 = vsel %vm898, %v895, %v887
        %v906 = vsel %vm898, %v897, %v889
        %s907 = scalar_lea.vmem %s6, 12
        %v908 = vld [vmem:[%s907] sm:$0x3]
        %v910 = vlaneseq
        %v911 = vshrl.u32 %v910, 7
        %v912 = vsub.s32 0, %v911
        %v913 = vrot.slane %v908, %v912
        %v914 = vlaneseq
        %v915 = vshrl.u32 %v914, 7
        %v916 = vsub.s32 1, %v915
        %v917 = vrot.slane %v908, %v916
        %v920 = vmul.f32 %v899, %v913
        %v921 = vmul.f32 %v903, %v917
        %v922 = vmul.f32 %v900, %v913
        %v923 = vmul.f32 %v904, %v917
        %v924 = vmul.f32 %v901, %v913
        %v925 = vmul.f32 %v905, %v917
        %v926 = vmul.f32 %v902, %v913
        %v927 = vmul.f32 %v906, %v917
        %s928 = scalar_lea.vmem %s1, 192
        %v929 = vld [vmem:[%s928] sm:$0xff]
        %v930 = vld [vmem:[%s928 + $0x8] sm:$0xff]
        %v931 = vld [vmem:[%s928 + $0x10] sm:$0xff]
        %v932 = vld [vmem:[%s928 + $0x18] sm:$0xff]
        %934 = vset.pattern.permute.xlu0 0
        %935 = vperm.xlu0 %934, %v929
        %v936 = vpop.permute.xlu0 %935
        %939 = vset.pattern.permute.xlu0 0
        %940 = vperm.xlu0 %939, %v930
        %v941 = vpop.permute.xlu0 %940
        %944 = vset.pattern.permute.xlu0 0
        %945 = vperm.xlu0 %944, %v931
        %v946 = vpop.permute.xlu0 %945
        %949 = vset.pattern.permute.xlu0 0
        %950 = vperm.xlu0 %949, %v932
        %v951 = vpop.permute.xlu0 %950
        %v953 = vmul.f32 %v920, %v936
        %v954 = vmul.f32 %v921, %v936
        %v955 = vmul.f32 %v922, %v941
        %v956 = vmul.f32 %v923, %v941
        %v957 = vmul.f32 %v924, %v946
        %v958 = vmul.f32 %v925, %v946
        %v959 = vmul.f32 %v926, %v951
        %v960 = vmul.f32 %v927, %v951
        %v961 = vadd.f32 %v874, %v953
        %v962 = vadd.f32 %v875, %v954
        %v963 = vadd.f32 %v876, %v955
        %v964 = vadd.f32 %v877, %v956
        %v965 = vadd.f32 %v878, %v957
        %v966 = vadd.f32 %v879, %v958
        %v967 = vadd.f32 %v880, %v959
        %v968 = vadd.f32 %v881, %v960
        %969 = vrot.lane.b32.xlu0 %v385, 112
        %v970 = vpop.permute.xlu0 %969
        %971 = vrot.lane.b32.xlu0 %v387, 112
        %v972 = vpop.permute.xlu0 %971
        %973 = vrot.lane.b32.xlu0 %v389, 112
        %v974 = vpop.permute.xlu0 %973
        %975 = vrot.lane.b32.xlu0 %v391, 112
        %v976 = vpop.permute.xlu0 %975
        %977 = vrot.lane.b32.xlu0 %v386, 112
        %v978 = vpop.permute.xlu0 %977
        %979 = vrot.lane.b32.xlu0 %v388, 112
        %v980 = vpop.permute.xlu0 %979
        %981 = vrot.lane.b32.xlu0 %v390, 112
        %v982 = vpop.permute.xlu0 %981
        %983 = vrot.lane.b32.xlu0 %v392, 112
        %v984 = vpop.permute.xlu0 %983
        %vm985 = vcmp.lt.s32.totalorder %v410, 112
        %v986 = vsel %vm985, %v970, %v978
        %v987 = vsel %vm985, %v972, %v980
        %v988 = vsel %vm985, %v974, %v982
        %v989 = vsel %vm985, %v976, %v984
        %v990 = vsel %vm985, %v978, %v970
        %v991 = vsel %vm985, %v980, %v972
        %v992 = vsel %vm985, %v982, %v974
        %v993 = vsel %vm985, %v984, %v976
        %s994 = scalar_lea.vmem %s6, 14
        %v995 = vld [vmem:[%s994] sm:$0x3]
        %v997 = vlaneseq
        %v998 = vshrl.u32 %v997, 7
        %v999 = vsub.s32 0, %v998
        %v1000 = vrot.slane %v995, %v999
        %v1001 = vlaneseq
        %v1002 = vshrl.u32 %v1001, 7
        %v1003 = vsub.s32 1, %v1002
        %v1004 = vrot.slane %v995, %v1003
        %v1007 = vmul.f32 %v986, %v1000
        %v1008 = vmul.f32 %v990, %v1004
        %v1009 = vmul.f32 %v987, %v1000
        %v1010 = vmul.f32 %v991, %v1004
        %v1011 = vmul.f32 %v988, %v1000
        %v1012 = vmul.f32 %v992, %v1004
        %v1013 = vmul.f32 %v989, %v1000
        %v1014 = vmul.f32 %v993, %v1004
        %s1015 = scalar_lea.vmem %s1, 224
        %v1016 = vld [vmem:[%s1015] sm:$0xff]
        %v1017 = vld [vmem:[%s1015 + $0x8] sm:$0xff]
        %v1018 = vld [vmem:[%s1015 + $0x10] sm:$0xff]
        %v1019 = vld [vmem:[%s1015 + $0x18] sm:$0xff]
        %1021 = vset.pattern.permute.xlu0 0
        %1022 = vperm.xlu0 %1021, %v1016
        %v1023 = vpop.permute.xlu0 %1022
        %1026 = vset.pattern.permute.xlu0 0
        %1027 = vperm.xlu0 %1026, %v1017
        %v1028 = vpop.permute.xlu0 %1027
        %1031 = vset.pattern.permute.xlu0 0
        %1032 = vperm.xlu0 %1031, %v1018
        %v1033 = vpop.permute.xlu0 %1032
        %1036 = vset.pattern.permute.xlu0 0
        %1037 = vperm.xlu0 %1036, %v1019
        %v1038 = vpop.permute.xlu0 %1037
        %v1040 = vmul.f32 %v1007, %v1023
        %v1041 = vmul.f32 %v1008, %v1023
        %v1042 = vmul.f32 %v1009, %v1028
        %v1043 = vmul.f32 %v1010, %v1028
        %v1044 = vmul.f32 %v1011, %v1033
        %v1045 = vmul.f32 %v1012, %v1033
        %v1046 = vmul.f32 %v1013, %v1038
        %v1047 = vmul.f32 %v1014, %v1038
        %v1048 = vadd.f32 %v961, %v1040
        %v1049 = vadd.f32 %v962, %v1041
        %v1050 = vadd.f32 %v963, %v1042
        %v1051 = vadd.f32 %v964, %v1043
        %v1052 = vadd.f32 %v965, %v1044
        %v1053 = vadd.f32 %v966, %v1045
        %v1054 = vadd.f32 %v967, %v1046
        %v1055 = vadd.f32 %v968, %v1047
        %1056 = vrot.lane.b32.xlu0 %v385, 111
        %v1057 = vpop.permute.xlu0 %1056
        %1058 = vrot.lane.b32.xlu0 %v387, 111
        %v1059 = vpop.permute.xlu0 %1058
        %1060 = vrot.lane.b32.xlu0 %v389, 111
        %v1061 = vpop.permute.xlu0 %1060
        %1062 = vrot.lane.b32.xlu0 %v391, 111
        %v1063 = vpop.permute.xlu0 %1062
        %1064 = vrot.lane.b32.xlu0 %v386, 111
        %v1065 = vpop.permute.xlu0 %1064
        %1066 = vrot.lane.b32.xlu0 %v388, 111
        %v1067 = vpop.permute.xlu0 %1066
        %1068 = vrot.lane.b32.xlu0 %v390, 111
        %v1069 = vpop.permute.xlu0 %1068
        %1070 = vrot.lane.b32.xlu0 %v392, 111
        %v1071 = vpop.permute.xlu0 %1070
        %vm1072 = vcmp.lt.s32.totalorder %v410, 111
        %v1073 = vsel %vm1072, %v1057, %v1065
        %v1074 = vsel %vm1072, %v1059, %v1067
        %v1075 = vsel %vm1072, %v1061, %v1069
        %v1076 = vsel %vm1072, %v1063, %v1071
        %v1077 = vsel %vm1072, %v1065, %v1057
        %v1078 = vsel %vm1072, %v1067, %v1059
        %v1079 = vsel %vm1072, %v1069, %v1061
        %v1080 = vsel %vm1072, %v1071, %v1063
        %s1081 = scalar_lea.vmem %s6, 16
        %v1082 = vld [vmem:[%s1081] sm:$0x3]
        %v1084 = vlaneseq
        %v1085 = vshrl.u32 %v1084, 7
        %v1086 = vsub.s32 0, %v1085
        %v1087 = vrot.slane %v1082, %v1086
        %v1088 = vlaneseq
        %v1089 = vshrl.u32 %v1088, 7
        %v1090 = vsub.s32 1, %v1089
        %v1091 = vrot.slane %v1082, %v1090
        %v1094 = vmul.f32 %v1073, %v1087
        %v1095 = vmul.f32 %v1077, %v1091
        %v1096 = vmul.f32 %v1074, %v1087
        %v1097 = vmul.f32 %v1078, %v1091
        %v1098 = vmul.f32 %v1075, %v1087
        %v1099 = vmul.f32 %v1079, %v1091
        %v1100 = vmul.f32 %v1076, %v1087
        %v1101 = vmul.f32 %v1080, %v1091
        %s1102 = scalar_lea.vmem %s1, 256
        %v1103 = vld [vmem:[%s1102] sm:$0xff]
        %v1104 = vld [vmem:[%s1102 + $0x8] sm:$0xff]
        %v1105 = vld [vmem:[%s1102 + $0x10] sm:$0xff]
        %v1106 = vld [vmem:[%s1102 + $0x18] sm:$0xff]
        %1108 = vset.pattern.permute.xlu0 0
        %1109 = vperm.xlu0 %1108, %v1103
        %v1110 = vpop.permute.xlu0 %1109
        %1113 = vset.pattern.permute.xlu0 0
        %1114 = vperm.xlu0 %1113, %v1104
        %v1115 = vpop.permute.xlu0 %1114
        %1118 = vset.pattern.permute.xlu0 0
        %1119 = vperm.xlu0 %1118, %v1105
        %v1120 = vpop.permute.xlu0 %1119
        %1123 = vset.pattern.permute.xlu0 0
        %1124 = vperm.xlu0 %1123, %v1106
        %v1125 = vpop.permute.xlu0 %1124
        %v1127 = vmul.f32 %v1094, %v1110
        %v1128 = vmul.f32 %v1095, %v1110
        %v1129 = vmul.f32 %v1096, %v1115
        %v1130 = vmul.f32 %v1097, %v1115
        %v1131 = vmul.f32 %v1098, %v1120
        %v1132 = vmul.f32 %v1099, %v1120
        %v1133 = vmul.f32 %v1100, %v1125
        %v1134 = vmul.f32 %v1101, %v1125
        %v1135 = vadd.f32 %v1048, %v1127
        %v1136 = vadd.f32 %v1049, %v1128
        %v1137 = vadd.f32 %v1050, %v1129
        %v1138 = vadd.f32 %v1051, %v1130
        %v1139 = vadd.f32 %v1052, %v1131
        %v1140 = vadd.f32 %v1053, %v1132
        %v1141 = vadd.f32 %v1054, %v1133
        %v1142 = vadd.f32 %v1055, %v1134
        %s1143 = scalar_lea.vmem %s1, 736
        %v1144 = vld [vmem:[%s1143] sm:$0xff]
        %v1145 = vld [vmem:[%s1143 + $0x8] sm:$0xff]
        %v1146 = vld [vmem:[%s1143 + $0x10] sm:$0xff]
        %v1147 = vld [vmem:[%s1143 + $0x18] sm:$0xff]
        %1149 = vset.pattern.permute.xlu0 0
        %1150 = vperm.xlu0 %1149, %v1144
        %v1151 = vpop.permute.xlu0 %1150
        %1154 = vset.pattern.permute.xlu0 0
        %1155 = vperm.xlu0 %1154, %v1145
        %v1156 = vpop.permute.xlu0 %1155
        %1159 = vset.pattern.permute.xlu0 0
        %1160 = vperm.xlu0 %1159, %v1146
        %v1161 = vpop.permute.xlu0 %1160
        %1164 = vset.pattern.permute.xlu0 0
        %1165 = vperm.xlu0 %1164, %v1147
        %v1166 = vpop.permute.xlu0 %1165
        %v1168 = vadd.f32 %v1135, %v1151
        %v1169 = vadd.f32 %v1136, %v1151
        %v1170 = vadd.f32 %v1137, %v1156
        %v1171 = vadd.f32 %v1138, %v1156
        %v1172 = vadd.f32 %v1139, %v1161
        %v1173 = vadd.f32 %v1140, %v1161
        %v1174 = vadd.f32 %v1141, %v1166
        %v1175 = vadd.f32 %v1142, %v1166
        %v1176 = vld [vmem:[%s9] sm:$0xff]
        %v1177 = vld [vmem:[%s9 + $0x8] sm:$0xff]
        %v1178 = vld [vmem:[%s9 + $0x10] sm:$0xff]
        %v1179 = vld [vmem:[%s9 + $0x18] sm:$0xff]
        %v1180 = vld [vmem:[%s9 + $0x20] sm:$0xff]
        %v1181 = vld [vmem:[%s9 + $0x28] sm:$0xff]
        %v1182 = vld [vmem:[%s9 + $0x30] sm:$0xff]
        %v1183 = vld [vmem:[%s9 + $0x38] sm:$0xff]
        %v1184 = vld [vmem:[%s9 + $0x40] sm:$0xff]
        %v1185 = vld [vmem:[%s9 + $0x48] sm:$0xff]
        %v1186 = vld [vmem:[%s9 + $0x50] sm:$0xff]
        %v1187 = vld [vmem:[%s9 + $0x58] sm:$0xff]
        %v1188 = vld [vmem:[%s9 + $0x60] sm:$0xff]
        %v1189 = vld [vmem:[%s9 + $0x68] sm:$0xff]
        %v1190 = vld [vmem:[%s9 + $0x70] sm:$0xff]
        %v1191 = vld [vmem:[%s9 + $0x78] sm:$0xff]
        %v1192 = vld [vmem:[%s9 + $0x80] sm:$0xff]
        %v1193 = vld [vmem:[%s9 + $0x88] sm:$0xff]
        %v1194 = vld [vmem:[%s9 + $0x90] sm:$0xff]
        %v1195 = vld [vmem:[%s9 + $0x98] sm:$0xff]
        %v1196 = vld [vmem:[%s9 + $0xa0] sm:$0xff]
        %v1197 = vld [vmem:[%s9 + $0xa8] sm:$0xff]
        %v1198 = vld [vmem:[%s9 + $0xb0] sm:$0xff]
        %v1199 = vld [vmem:[%s9 + $0xb8] sm:$0xff]
        %v1200 = vld [vmem:[%s9 + $0xc0] sm:$0xff]
        %v1201 = vld [vmem:[%s9 + $0xc8] sm:$0xff]
        %v1202 = vld [vmem:[%s9 + $0xd0] sm:$0xff]
        %v1203 = vld [vmem:[%s9 + $0xd8] sm:$0xff]
        %v1204 = vld [vmem:[%s9 + $0xe0] sm:$0xff]
        %v1205 = vld [vmem:[%s9 + $0xe8] sm:$0xff]
        %v1206 = vld [vmem:[%s9 + $0xf0] sm:$0xff]
        %v1207 = vld [vmem:[%s9 + $0xf8] sm:$0xff]
        %1208 = vmatprep.subr.mxu0 0.0
        %1209 = vmatpush1.msra.mxu0 %v1191
        %1210 = vmatprep.subr.mxu0 0.0
        %1211 = vmatpush1.msra.mxu0 %v1190
        %1212 = vmatprep.subr.mxu0 0.0
        %1213 = vmatpush1.msra.mxu0 %v1189
        %1214 = vmatprep.subr.mxu0 0.0
        %1215 = vmatpush1.msra.mxu0 %v1188
        %1216 = vmatprep.subr.mxu0 0.0
        %1217 = vmatpush1.msra.mxu0 %v1187
        %1218 = vmatprep.subr.mxu0 0.0
        %1219 = vmatpush1.msra.mxu0 %v1186
        %1220 = vmatprep.subr.mxu0 0.0
        %1221 = vmatpush1.msra.mxu0 %v1185
        %1222 = vmatprep.subr.mxu0 0.0
        %1223 = vmatpush1.msra.mxu0 %v1184
        %1224 = vmatprep.subr.mxu0 0.0
        %1225 = vmatpush1.msra.mxu0 %v1183
        %1226 = vmatprep.subr.mxu0 0.0
        %1227 = vmatpush1.msra.mxu0 %v1182
        %1228 = vmatprep.subr.mxu0 0.0
        %1229 = vmatpush1.msra.mxu0 %v1181
        %1230 = vmatprep.subr.mxu0 0.0
        %1231 = vmatpush1.msra.mxu0 %v1180
        %1232 = vmatprep.subr.mxu0 0.0
        %1233 = vmatpush1.msra.mxu0 %v1179
        %1234 = vmatprep.subr.mxu0 0.0
        %1235 = vmatpush1.msra.mxu0 %v1178
        %1236 = vmatprep.subr.mxu0 0.0
        %1237 = vmatpush1.msra.mxu0 %v1177
        %1238 = vmatprep.subr.mxu0 0.0
        %1239 = vmatpush1.msra.mxu0 %v1176
        %1240 = vmatprep.subr.mxu0 0.0
        %1241 = vmatpush2.msra.mxu0 %v1207
        %1242 = vmatprep.subr.mxu0 0.0
        %1243 = vmatpush2.msra.mxu0 %v1206
        %1244 = vmatprep.subr.mxu0 0.0
        %1245 = vmatpush2.msra.mxu0 %v1205
        %1246 = vmatprep.subr.mxu0 0.0
        %1247 = vmatpush2.msra.mxu0 %v1204
        %1248 = vmatprep.subr.mxu0 0.0
        %1249 = vmatpush2.msra.mxu0 %v1203
        %1250 = vmatprep.subr.mxu0 0.0
        %1251 = vmatpush2.msra.mxu0 %v1202
        %1252 = vmatprep.subr.mxu0 0.0
        %1253 = vmatpush2.msra.mxu0 %v1201
        %1254 = vmatprep.subr.mxu0 0.0
        %1255 = vmatpush2.msra.mxu0 %v1200
        %1256 = vmatprep.subr.mxu0 0.0
        %1257 = vmatpush2.msra.mxu0 %v1199
        %1258 = vmatprep.subr.mxu0 0.0
        %1259 = vmatpush2.msra.mxu0 %v1198
        %1260 = vmatprep.subr.mxu0 0.0
        %1261 = vmatpush2.msra.mxu0 %v1197
        %1262 = vmatprep.subr.mxu0 0.0
        %1263 = vmatpush2.msra.mxu0 %v1196
        %1264 = vmatprep.subr.mxu0 0.0
        %1265 = vmatpush2.msra.mxu0 %v1195
        %1266 = vmatprep.subr.mxu0 0.0
        %1267 = vmatpush2.msra.mxu0 %v1194
        %1268 = vmatprep.subr.mxu0 0.0
        %1269 = vmatpush2.msra.mxu0 %v1193
        %1270 = vmatprep.subr.mxu0 0.0
        %1271 = vmatpush2.msra.mxu0 %v1192
        %1272 = vmatprep.mubr.f32.mxu0 %v386
        %1273 = vmatmul.mubr.f32.gmra.mxu0 %v385
        %v1274 = vpop.f32.mrf.mxu0
        %v1275 = vadd.f32 0.0, %v1274
        %v1276 = vpop.f32.mrf.mxu0
        %1277 = vmatprep.mubr.f32.mxu0 %v388
        %1278 = vmatmul.mubr.f32.gmra.mxu0 %v387
        %v1279 = vpop.f32.mrf.mxu0
        %v1280 = vadd.f32 0.0, %v1279
        %v1281 = vpop.f32.mrf.mxu0
        %1282 = vmatprep.mubr.f32.mxu0 %v390
        %1283 = vmatmul.mubr.f32.gmra.mxu0 %v389
        %v1284 = vpop.f32.mrf.mxu0
        %v1285 = vadd.f32 0.0, %v1284
        %v1286 = vpop.f32.mrf.mxu0
        %1287 = vmatprep.mubr.f32.mxu0 %v392
        %1288 = vmatmul.mubr.f32.gmra.mxu0 %v391
        %v1289 = vpop.f32.mrf.mxu0
        %v1290 = vadd.f32 0.0, %v1289
        %v1291 = vpop.f32.mrf.mxu0
        %1292 = vdwg.mxu0
        %v1293 = vld [vmem:[%s10] sm:$0xff]
        %v1294 = vld [vmem:[%s10 + $0x8] sm:$0xff]
        %v1295 = vld [vmem:[%s10 + $0x10] sm:$0xff]
        %v1296 = vld [vmem:[%s10 + $0x18] sm:$0xff]
        %vm1297 = vcmask 130048
        %v1299 = vsel %vm1297, %v1275, 0
        %v1302 = vsel %vm1297, %v1280, 0
        %v1305 = vsel %vm1297, %v1285, 0
        %v1308 = vsel %vm1297, %v1290, 0
        %1310 = vmatprep.subr.mxu0 0.0
        %1311 = vmatpush1.msra.mxu0 0.0
        %1312 = vmatprep.subr.mxu0 0.0
        %1313 = vmatpush1.msra.mxu0 0.0
        %1314 = vmatprep.subr.mxu0 0.0
        %1315 = vmatpush1.msra.mxu0 0.0
        %1316 = vmatprep.subr.mxu0 0.0
        %1317 = vmatpush1.msra.mxu0 0.0
        %1318 = vmatprep.subr.mxu0 0.0
        %1319 = vmatpush1.msra.mxu0 0.0
        %1320 = vmatprep.subr.mxu0 0.0
        %1321 = vmatpush1.msra.mxu0 0.0
        %1322 = vmatprep.subr.mxu0 0.0
        %1323 = vmatpush1.msra.mxu0 0.0
        %1324 = vmatprep.subr.mxu0 0.0
        %1325 = vmatpush1.msra.mxu0 0.0
        %1326 = vmatprep.subr.mxu0 0.0
        %1327 = vmatpush1.msra.mxu0 0.0
        %1328 = vmatprep.subr.mxu0 0.0
        %1329 = vmatpush1.msra.mxu0 0.0
        %1330 = vmatprep.subr.mxu0 0.0
        %1331 = vmatpush1.msra.mxu0 0.0
        %1332 = vmatprep.subr.mxu0 0.0
        %1333 = vmatpush1.msra.mxu0 0.0
        %1334 = vmatprep.subr.mxu0 0.0
        %1335 = vmatpush1.msra.mxu0 0.0
        %1336 = vmatprep.subr.mxu0 0.0
        %1337 = vmatpush1.msra.mxu0 0.0
        %1338 = vmatprep.subr.mxu0 %v1296
        %1339 = vmatpush1.msra.mxu0 %v1295
        %1340 = vmatprep.subr.mxu0 %v1294
        %1341 = vmatpush1.msra.mxu0 %v1293
        %1342 = vmatprep.subr.mxu0 0.0
        %1343 = vmatpush2.msra.mxu0 0.0
        %1344 = vmatprep.subr.mxu0 0.0
        %1345 = vmatpush2.msra.mxu0 0.0
        %1346 = vmatprep.subr.mxu0 0.0
        %1347 = vmatpush2.msra.mxu0 0.0
        %1348 = vmatprep.subr.mxu0 0.0
        %1349 = vmatpush2.msra.mxu0 0.0
        %1350 = vmatprep.subr.mxu0 0.0
        %1351 = vmatpush2.msra.mxu0 0.0
        %1352 = vmatprep.subr.mxu0 0.0
        %1353 = vmatpush2.msra.mxu0 0.0
        %1354 = vmatprep.subr.mxu0 0.0
        %1355 = vmatpush2.msra.mxu0 0.0
        %1356 = vmatprep.subr.mxu0 0.0
        %1357 = vmatpush2.msra.mxu0 0.0
        %1358 = vmatprep.subr.mxu0 0.0
        %1359 = vmatpush2.msra.mxu0 0.0
        %1360 = vmatprep.subr.mxu0 0.0
        %1361 = vmatpush2.msra.mxu0 0.0
        %1362 = vmatprep.subr.mxu0 0.0
        %1363 = vmatpush2.msra.mxu0 0.0
        %1364 = vmatprep.subr.mxu0 0.0
        %1365 = vmatpush2.msra.mxu0 0.0
        %1366 = vmatprep.subr.mxu0 0.0
        %1367 = vmatpush2.msra.mxu0 0.0
        %1368 = vmatprep.subr.mxu0 0.0
        %1369 = vmatpush2.msra.mxu0 0.0
        %1370 = vmatprep.subr.mxu0 0.0
        %1371 = vmatpush2.msra.mxu0 0.0
        %1372 = vmatprep.subr.mxu0 0.0
        %1373 = vmatpush2.msra.mxu0 0.0
        %1374 = vmatprep.mubr.f32.mxu0 0.0
        %1375 = vmatmul.mubr.f32.gmra.mxu0 %v1299
        %v1376 = vpop.f32.mrf.mxu0
        %v1377 = vadd.f32 0.0, %v1376
        %v1378 = vpop.f32.mrf.mxu0
        %v1379 = vadd.f32 0.0, %v1378
        %1380 = vmatprep.mubr.f32.mxu0 0.0
        %1381 = vmatmul.mubr.f32.gmra.mxu0 %v1302
        %v1382 = vpop.f32.mrf.mxu0
        %v1383 = vadd.f32 0.0, %v1382
        %v1384 = vpop.f32.mrf.mxu0
        %v1385 = vadd.f32 0.0, %v1384
        %1386 = vmatprep.mubr.f32.mxu0 0.0
        %1387 = vmatmul.mubr.f32.gmra.mxu0 %v1305
        %v1388 = vpop.f32.mrf.mxu0
        %v1389 = vadd.f32 0.0, %v1388
        %v1390 = vpop.f32.mrf.mxu0
        %v1391 = vadd.f32 0.0, %v1390
        %1392 = vmatprep.mubr.f32.mxu0 0.0
        %1393 = vmatmul.mubr.f32.gmra.mxu0 %v1308
        %v1394 = vpop.f32.mrf.mxu0
        %v1395 = vadd.f32 0.0, %v1394
        %v1396 = vpop.f32.mrf.mxu0
        %v1397 = vadd.f32 0.0, %v1396
        %1398 = vdwg.mxu0
        %v1399 = vadd.f32 %v385, %v493
        %v1400 = vadd.f32 %v386, %v489
        %v1401 = vadd.f32 %v387, %v494
        %v1402 = vadd.f32 %v388, %v490
        %v1403 = vadd.f32 %v389, %v495
        %v1404 = vadd.f32 %v390, %v491
        %v1405 = vadd.f32 %v391, %v496
        %v1406 = vadd.f32 %v392, %v492
        %1407 = vrot.lane.b32.xlu0 %v1399, 32
        %v1408 = vpop.permute.xlu0 %1407
        %1409 = vrot.lane.b32.xlu0 %v1401, 32
        %v1410 = vpop.permute.xlu0 %1409
        %1411 = vrot.lane.b32.xlu0 %v1403, 32
        %v1412 = vpop.permute.xlu0 %1411
        %1413 = vrot.lane.b32.xlu0 %v1405, 32
        %v1414 = vpop.permute.xlu0 %1413
        %1415 = vrot.lane.b32.xlu0 %v1400, 32
        %v1416 = vpop.permute.xlu0 %1415
        %1417 = vrot.lane.b32.xlu0 %v1402, 32
        %v1418 = vpop.permute.xlu0 %1417
        %1419 = vrot.lane.b32.xlu0 %v1404, 32
        %v1420 = vpop.permute.xlu0 %1419
        %1421 = vrot.lane.b32.xlu0 %v1406, 32
        %v1422 = vpop.permute.xlu0 %1421
        %vm1423 = vcmp.lt.s32.totalorder %v410, 32
        %v1424 = vsel %vm1423, %v1408, %v1416
        %v1425 = vsel %vm1423, %v1410, %v1418
        %v1426 = vsel %vm1423, %v1412, %v1420
        %v1427 = vsel %vm1423, %v1414, %v1422
        %v1428 = vsel %vm1423, %v1416, %v1408
        %v1429 = vsel %vm1423, %v1418, %v1410
        %v1430 = vsel %vm1423, %v1420, %v1412
        %v1431 = vsel %vm1423, %v1422, %v1414
        %v1432 = vadd.f32 %v1399, %v1428
        %v1433 = vadd.f32 %v1400, %v1424
        %v1434 = vadd.f32 %v1401, %v1429
        %v1435 = vadd.f32 %v1402, %v1425
        %v1436 = vadd.f32 %v1403, %v1430
        %v1437 = vadd.f32 %v1404, %v1426
        %v1438 = vadd.f32 %v1405, %v1431
        %v1439 = vadd.f32 %v1406, %v1427
        %1440 = vrot.lane.b32.xlu0 %v1432, 64
        %v1441 = vpop.permute.xlu0 %1440
        %1442 = vrot.lane.b32.xlu0 %v1434, 64
        %v1443 = vpop.permute.xlu0 %1442
        %1444 = vrot.lane.b32.xlu0 %v1436, 64
        %v1445 = vpop.permute.xlu0 %1444
        %1446 = vrot.lane.b32.xlu0 %v1438, 64
        %v1447 = vpop.permute.xlu0 %1446
        %1448 = vrot.lane.b32.xlu0 %v1433, 64
        %v1449 = vpop.permute.xlu0 %1448
        %1450 = vrot.lane.b32.xlu0 %v1435, 64
        %v1451 = vpop.permute.xlu0 %1450
        %1452 = vrot.lane.b32.xlu0 %v1437, 64
        %v1453 = vpop.permute.xlu0 %1452
        %1454 = vrot.lane.b32.xlu0 %v1439, 64
        %v1455 = vpop.permute.xlu0 %1454
        %vm1456 = vcmp.lt.s32.totalorder %v410, 64
        %v1457 = vsel %vm1456, %v1441, %v1449
        %v1458 = vsel %vm1456, %v1443, %v1451
        %v1459 = vsel %vm1456, %v1445, %v1453
        %v1460 = vsel %vm1456, %v1447, %v1455
        %v1461 = vsel %vm1456, %v1449, %v1441
        %v1462 = vsel %vm1456, %v1451, %v1443
        %v1463 = vsel %vm1456, %v1453, %v1445
        %v1464 = vsel %vm1456, %v1455, %v1447
        %v1465 = vadd.f32 %v1432, %v1461
        %v1466 = vadd.f32 %v1433, %v1457
        %v1467 = vadd.f32 %v1434, %v1462
        %v1468 = vadd.f32 %v1435, %v1458
        %v1469 = vadd.f32 %v1436, %v1463
        %v1470 = vadd.f32 %v1437, %v1459
        %v1471 = vadd.f32 %v1438, %v1464
        %v1472 = vadd.f32 %v1439, %v1460
        %v1473 = vadd.f32 %v1465, %v1466
        %v1474 = vadd.f32 %v1467, %v1468
        %v1475 = vadd.f32 %v1469, %v1470
        %v1476 = vadd.f32 %v1471, %v1472
        %v1477 = vmul.f32 %v1473, 0.0625
        %v1478 = vmul.f32 %v1474, 0.0625
        %v1479 = vmul.f32 %v1475, 0.0625
        %v1480 = vmul.f32 %v1476, 0.0625
        %1481 = vrot.lane.b32.xlu0 %v1477, 3
        %v1482 = vpop.permute.xlu0 %1481
        %1483 = vrot.lane.b32.xlu0 %v1478, 3
        %v1484 = vpop.permute.xlu0 %1483
        %1485 = vrot.lane.b32.xlu0 %v1479, 3
        %v1486 = vpop.permute.xlu0 %1485
        %1487 = vrot.lane.b32.xlu0 %v1480, 3
        %v1488 = vpop.permute.xlu0 %1487
        %v1489 = vadd.f32 %v1377, %v1482
        %v1490 = vadd.f32 %v1379, %v1482
        %v1491 = vadd.f32 %v1383, %v1484
        %v1492 = vadd.f32 %v1385, %v1484
        %v1493 = vadd.f32 %v1389, %v1486
        %v1494 = vadd.f32 %v1391, %v1486
        %v1495 = vadd.f32 %v1395, %v1488
        %v1496 = vadd.f32 %v1397, %v1488
        %v1497 = vld [vmem:[%s7] sm:$0x3]
        %v1499 = vlaneseq
        %v1500 = vshrl.u32 %v1499, 7
        %v1501 = vsub.s32 0, %v1500
        %v1502 = vrot.slane %v1497, %v1501
        %v1503 = vlaneseq
        %v1504 = vshrl.u32 %v1503, 7
        %v1505 = vsub.s32 1, %v1504
        %v1506 = vrot.slane %v1497, %v1505
        %v1509 = vmul.f32 %v1489, %v1502
        %v1510 = vmul.f32 %v1490, %v1506
        %v1511 = vmul.f32 %v1491, %v1502
        %v1512 = vmul.f32 %v1492, %v1506
        %v1513 = vmul.f32 %v1493, %v1502
        %v1514 = vmul.f32 %v1494, %v1506
        %v1515 = vmul.f32 %v1495, %v1502
        %v1516 = vmul.f32 %v1496, %v1506
        %s1517 = scalar_lea.vmem %s1, 288
        %v1518 = vld [vmem:[%s1517] sm:$0xff]
        %v1519 = vld [vmem:[%s1517 + $0x8] sm:$0xff]
        %v1520 = vld [vmem:[%s1517 + $0x10] sm:$0xff]
        %v1521 = vld [vmem:[%s1517 + $0x18] sm:$0xff]
        %1523 = vset.pattern.permute.xlu0 0
        %1524 = vperm.xlu0 %1523, %v1518
        %v1525 = vpop.permute.xlu0 %1524
        %1528 = vset.pattern.permute.xlu0 0
        %1529 = vperm.xlu0 %1528, %v1519
        %v1530 = vpop.permute.xlu0 %1529
        %1533 = vset.pattern.permute.xlu0 0
        %1534 = vperm.xlu0 %1533, %v1520
        %v1535 = vpop.permute.xlu0 %1534
        %1538 = vset.pattern.permute.xlu0 0
        %1539 = vperm.xlu0 %1538, %v1521
        %v1540 = vpop.permute.xlu0 %1539
        %v1542 = vmul.f32 %v1509, %v1525
        %v1543 = vmul.f32 %v1510, %v1525
        %v1544 = vmul.f32 %v1511, %v1530
        %v1545 = vmul.f32 %v1512, %v1530
        %v1546 = vmul.f32 %v1513, %v1535
        %v1547 = vmul.f32 %v1514, %v1535
        %v1548 = vmul.f32 %v1515, %v1540
        %v1549 = vmul.f32 %v1516, %v1540
        %1550 = vrot.lane.b32.xlu0 %v1477, 2
        %v1551 = vpop.permute.xlu0 %1550
        %1552 = vrot.lane.b32.xlu0 %v1478, 2
        %v1553 = vpop.permute.xlu0 %1552
        %1554 = vrot.lane.b32.xlu0 %v1479, 2
        %v1555 = vpop.permute.xlu0 %1554
        %1556 = vrot.lane.b32.xlu0 %v1480, 2
        %v1557 = vpop.permute.xlu0 %1556
        %v1558 = vadd.f32 %v1377, %v1551
        %v1559 = vadd.f32 %v1379, %v1551
        %v1560 = vadd.f32 %v1383, %v1553
        %v1561 = vadd.f32 %v1385, %v1553
        %v1562 = vadd.f32 %v1389, %v1555
        %v1563 = vadd.f32 %v1391, %v1555
        %v1564 = vadd.f32 %v1395, %v1557
        %v1565 = vadd.f32 %v1397, %v1557
        %s1566 = scalar_lea.vmem %s7, 2
        %v1567 = vld [vmem:[%s1566] sm:$0x3]
        %v1569 = vlaneseq
        %v1570 = vshrl.u32 %v1569, 7
        %v1571 = vsub.s32 0, %v1570
        %v1572 = vrot.slane %v1567, %v1571
        %v1573 = vlaneseq
        %v1574 = vshrl.u32 %v1573, 7
        %v1575 = vsub.s32 1, %v1574
        %v1576 = vrot.slane %v1567, %v1575
        %v1579 = vmul.f32 %v1558, %v1572
        %v1580 = vmul.f32 %v1559, %v1576
        %v1581 = vmul.f32 %v1560, %v1572
        %v1582 = vmul.f32 %v1561, %v1576
        %v1583 = vmul.f32 %v1562, %v1572
        %v1584 = vmul.f32 %v1563, %v1576
        %v1585 = vmul.f32 %v1564, %v1572
        %v1586 = vmul.f32 %v1565, %v1576
        %s1587 = scalar_lea.vmem %s1, 320
        %v1588 = vld [vmem:[%s1587] sm:$0xff]
        %v1589 = vld [vmem:[%s1587 + $0x8] sm:$0xff]
        %v1590 = vld [vmem:[%s1587 + $0x10] sm:$0xff]
        %v1591 = vld [vmem:[%s1587 + $0x18] sm:$0xff]
        %1593 = vset.pattern.permute.xlu0 0
        %1594 = vperm.xlu0 %1593, %v1588
        %v1595 = vpop.permute.xlu0 %1594
        %1598 = vset.pattern.permute.xlu0 0
        %1599 = vperm.xlu0 %1598, %v1589
        %v1600 = vpop.permute.xlu0 %1599
        %1603 = vset.pattern.permute.xlu0 0
        %1604 = vperm.xlu0 %1603, %v1590
        %v1605 = vpop.permute.xlu0 %1604
        %1608 = vset.pattern.permute.xlu0 0
        %1609 = vperm.xlu0 %1608, %v1591
        %v1610 = vpop.permute.xlu0 %1609
        %v1612 = vmul.f32 %v1579, %v1595
        %v1613 = vmul.f32 %v1580, %v1595
        %v1614 = vmul.f32 %v1581, %v1600
        %v1615 = vmul.f32 %v1582, %v1600
        %v1616 = vmul.f32 %v1583, %v1605
        %v1617 = vmul.f32 %v1584, %v1605
        %v1618 = vmul.f32 %v1585, %v1610
        %v1619 = vmul.f32 %v1586, %v1610
        %v1620 = vadd.f32 %v1542, %v1612
        %v1621 = vadd.f32 %v1543, %v1613
        %v1622 = vadd.f32 %v1544, %v1614
        %v1623 = vadd.f32 %v1545, %v1615
        %v1624 = vadd.f32 %v1546, %v1616
        %v1625 = vadd.f32 %v1547, %v1617
        %v1626 = vadd.f32 %v1548, %v1618
        %v1627 = vadd.f32 %v1549, %v1619
        %1628 = vrot.lane.b32.xlu0 %v1477, 1
        %v1629 = vpop.permute.xlu0 %1628
        %1630 = vrot.lane.b32.xlu0 %v1478, 1
        %v1631 = vpop.permute.xlu0 %1630
        %1632 = vrot.lane.b32.xlu0 %v1479, 1
        %v1633 = vpop.permute.xlu0 %1632
        %1634 = vrot.lane.b32.xlu0 %v1480, 1
        %v1635 = vpop.permute.xlu0 %1634
        %v1636 = vadd.f32 %v1377, %v1629
        %v1637 = vadd.f32 %v1379, %v1629
        %v1638 = vadd.f32 %v1383, %v1631
        %v1639 = vadd.f32 %v1385, %v1631
        %v1640 = vadd.f32 %v1389, %v1633
        %v1641 = vadd.f32 %v1391, %v1633
        %v1642 = vadd.f32 %v1395, %v1635
        %v1643 = vadd.f32 %v1397, %v1635
        %s1644 = scalar_lea.vmem %s7, 4
        %v1645 = vld [vmem:[%s1644] sm:$0x3]
        %v1647 = vlaneseq
        %v1648 = vshrl.u32 %v1647, 7
        %v1649 = vsub.s32 0, %v1648
        %v1650 = vrot.slane %v1645, %v1649
        %v1651 = vlaneseq
        %v1652 = vshrl.u32 %v1651, 7
        %v1653 = vsub.s32 1, %v1652
        %v1654 = vrot.slane %v1645, %v1653
        %v1657 = vmul.f32 %v1636, %v1650
        %v1658 = vmul.f32 %v1637, %v1654
        %v1659 = vmul.f32 %v1638, %v1650
        %v1660 = vmul.f32 %v1639, %v1654
        %v1661 = vmul.f32 %v1640, %v1650
        %v1662 = vmul.f32 %v1641, %v1654
        %v1663 = vmul.f32 %v1642, %v1650
        %v1664 = vmul.f32 %v1643, %v1654
        %s1665 = scalar_lea.vmem %s1, 352
        %v1666 = vld [vmem:[%s1665] sm:$0xff]
        %v1667 = vld [vmem:[%s1665 + $0x8] sm:$0xff]
        %v1668 = vld [vmem:[%s1665 + $0x10] sm:$0xff]
        %v1669 = vld [vmem:[%s1665 + $0x18] sm:$0xff]
        %1671 = vset.pattern.permute.xlu0 0
        %1672 = vperm.xlu0 %1671, %v1666
        %v1673 = vpop.permute.xlu0 %1672
        %1676 = vset.pattern.permute.xlu0 0
        %1677 = vperm.xlu0 %1676, %v1667
        %v1678 = vpop.permute.xlu0 %1677
        %1681 = vset.pattern.permute.xlu0 0
        %1682 = vperm.xlu0 %1681, %v1668
        %v1683 = vpop.permute.xlu0 %1682
        %1686 = vset.pattern.permute.xlu0 0
        %1687 = vperm.xlu0 %1686, %v1669
        %v1688 = vpop.permute.xlu0 %1687
        %v1690 = vmul.f32 %v1657, %v1673
        %v1691 = vmul.f32 %v1658, %v1673
        %v1692 = vmul.f32 %v1659, %v1678
        %v1693 = vmul.f32 %v1660, %v1678
        %v1694 = vmul.f32 %v1661, %v1683
        %v1695 = vmul.f32 %v1662, %v1683
        %v1696 = vmul.f32 %v1663, %v1688
        %v1697 = vmul.f32 %v1664, %v1688
        %v1698 = vadd.f32 %v1620, %v1690
        %v1699 = vadd.f32 %v1621, %v1691
        %v1700 = vadd.f32 %v1622, %v1692
        %v1701 = vadd.f32 %v1623, %v1693
        %v1702 = vadd.f32 %v1624, %v1694
        %v1703 = vadd.f32 %v1625, %v1695
        %v1704 = vadd.f32 %v1626, %v1696
        %v1705 = vadd.f32 %v1627, %v1697
        %v1706 = vadd.f32 %v1377, %v1477
        %v1707 = vadd.f32 %v1379, %v1477
        %v1708 = vadd.f32 %v1383, %v1478
        %v1709 = vadd.f32 %v1385, %v1478
        %v1710 = vadd.f32 %v1389, %v1479
        %v1711 = vadd.f32 %v1391, %v1479
        %v1712 = vadd.f32 %v1395, %v1480
        %v1713 = vadd.f32 %v1397, %v1480
        %s1714 = scalar_lea.vmem %s7, 6
        %v1715 = vld [vmem:[%s1714] sm:$0x3]
        %v1717 = vlaneseq
        %v1718 = vshrl.u32 %v1717, 7
        %v1719 = vsub.s32 0, %v1718
        %v1720 = vrot.slane %v1715, %v1719
        %v1721 = vlaneseq
        %v1722 = vshrl.u32 %v1721, 7
        %v1723 = vsub.s32 1, %v1722
        %v1724 = vrot.slane %v1715, %v1723
        %v1727 = vmul.f32 %v1706, %v1720
        %v1728 = vmul.f32 %v1707, %v1724
        %v1729 = vmul.f32 %v1708, %v1720
        %v1730 = vmul.f32 %v1709, %v1724
        %v1731 = vmul.f32 %v1710, %v1720
        %v1732 = vmul.f32 %v1711, %v1724
        %v1733 = vmul.f32 %v1712, %v1720
        %v1734 = vmul.f32 %v1713, %v1724
        %s1735 = scalar_lea.vmem %s1, 384
        %v1736 = vld [vmem:[%s1735] sm:$0xff]
        %v1737 = vld [vmem:[%s1735 + $0x8] sm:$0xff]
        %v1738 = vld [vmem:[%s1735 + $0x10] sm:$0xff]
        %v1739 = vld [vmem:[%s1735 + $0x18] sm:$0xff]
        %1741 = vset.pattern.permute.xlu0 0
        %1742 = vperm.xlu0 %1741, %v1736
        %v1743 = vpop.permute.xlu0 %1742
        %1746 = vset.pattern.permute.xlu0 0
        %1747 = vperm.xlu0 %1746, %v1737
        %v1748 = vpop.permute.xlu0 %1747
        %1751 = vset.pattern.permute.xlu0 0
        %1752 = vperm.xlu0 %1751, %v1738
        %v1753 = vpop.permute.xlu0 %1752
        %1756 = vset.pattern.permute.xlu0 0
        %1757 = vperm.xlu0 %1756, %v1739
        %v1758 = vpop.permute.xlu0 %1757
        %v1760 = vmul.f32 %v1727, %v1743
        %v1761 = vmul.f32 %v1728, %v1743
        %v1762 = vmul.f32 %v1729, %v1748
        %v1763 = vmul.f32 %v1730, %v1748
        %v1764 = vmul.f32 %v1731, %v1753
        %v1765 = vmul.f32 %v1732, %v1753
        %v1766 = vmul.f32 %v1733, %v1758
        %v1767 = vmul.f32 %v1734, %v1758
        %v1768 = vadd.f32 %v1698, %v1760
        %v1769 = vadd.f32 %v1699, %v1761
        %v1770 = vadd.f32 %v1700, %v1762
        %v1771 = vadd.f32 %v1701, %v1763
        %v1772 = vadd.f32 %v1702, %v1764
        %v1773 = vadd.f32 %v1703, %v1765
        %v1774 = vadd.f32 %v1704, %v1766
        %v1775 = vadd.f32 %v1705, %v1767
        %1776 = vrot.lane.b32.xlu0 %v1477, 127
        %v1777 = vpop.permute.xlu0 %1776
        %1778 = vrot.lane.b32.xlu0 %v1478, 127
        %v1779 = vpop.permute.xlu0 %1778
        %1780 = vrot.lane.b32.xlu0 %v1479, 127
        %v1781 = vpop.permute.xlu0 %1780
        %1782 = vrot.lane.b32.xlu0 %v1480, 127
        %v1783 = vpop.permute.xlu0 %1782
        %v1784 = vadd.f32 %v1377, %v1777
        %v1785 = vadd.f32 %v1379, %v1777
        %v1786 = vadd.f32 %v1383, %v1779
        %v1787 = vadd.f32 %v1385, %v1779
        %v1788 = vadd.f32 %v1389, %v1781
        %v1789 = vadd.f32 %v1391, %v1781
        %v1790 = vadd.f32 %v1395, %v1783
        %v1791 = vadd.f32 %v1397, %v1783
        %s1792 = scalar_lea.vmem %s7, 8
        %v1793 = vld [vmem:[%s1792] sm:$0x3]
        %v1795 = vlaneseq
        %v1796 = vshrl.u32 %v1795, 7
        %v1797 = vsub.s32 0, %v1796
        %v1798 = vrot.slane %v1793, %v1797
        %v1799 = vlaneseq
        %v1800 = vshrl.u32 %v1799, 7
        %v1801 = vsub.s32 1, %v1800
        %v1802 = vrot.slane %v1793, %v1801
        %v1805 = vmul.f32 %v1784, %v1798
        %v1806 = vmul.f32 %v1785, %v1802
        %v1807 = vmul.f32 %v1786, %v1798
        %v1808 = vmul.f32 %v1787, %v1802
        %v1809 = vmul.f32 %v1788, %v1798
        %v1810 = vmul.f32 %v1789, %v1802
        %v1811 = vmul.f32 %v1790, %v1798
        %v1812 = vmul.f32 %v1791, %v1802
        %s1813 = scalar_lea.vmem %s1, 416
        %v1814 = vld [vmem:[%s1813] sm:$0xff]
        %v1815 = vld [vmem:[%s1813 + $0x8] sm:$0xff]
        %v1816 = vld [vmem:[%s1813 + $0x10] sm:$0xff]
        %v1817 = vld [vmem:[%s1813 + $0x18] sm:$0xff]
        %1819 = vset.pattern.permute.xlu0 0
        %1820 = vperm.xlu0 %1819, %v1814
        %v1821 = vpop.permute.xlu0 %1820
        %1824 = vset.pattern.permute.xlu0 0
        %1825 = vperm.xlu0 %1824, %v1815
        %v1826 = vpop.permute.xlu0 %1825
        %1829 = vset.pattern.permute.xlu0 0
        %1830 = vperm.xlu0 %1829, %v1816
        %v1831 = vpop.permute.xlu0 %1830
        %1834 = vset.pattern.permute.xlu0 0
        %1835 = vperm.xlu0 %1834, %v1817
        %v1836 = vpop.permute.xlu0 %1835
        %v1838 = vmul.f32 %v1805, %v1821
        %v1839 = vmul.f32 %v1806, %v1821
        %v1840 = vmul.f32 %v1807, %v1826
        %v1841 = vmul.f32 %v1808, %v1826
        %v1842 = vmul.f32 %v1809, %v1831
        %v1843 = vmul.f32 %v1810, %v1831
        %v1844 = vmul.f32 %v1811, %v1836
        %v1845 = vmul.f32 %v1812, %v1836
        %v1846 = vadd.f32 %v1768, %v1838
        %v1847 = vadd.f32 %v1769, %v1839
        %v1848 = vadd.f32 %v1770, %v1840
        %v1849 = vadd.f32 %v1771, %v1841
        %v1850 = vadd.f32 %v1772, %v1842
        %v1851 = vadd.f32 %v1773, %v1843
        %v1852 = vadd.f32 %v1774, %v1844
        %v1853 = vadd.f32 %v1775, %v1845
        %1854 = vrot.lane.b32.xlu0 %v1477, 126
        %v1855 = vpop.permute.xlu0 %1854
        %1856 = vrot.lane.b32.xlu0 %v1478, 126
        %v1857 = vpop.permute.xlu0 %1856
        %1858 = vrot.lane.b32.xlu0 %v1479, 126
        %v1859 = vpop.permute.xlu0 %1858
        %1860 = vrot.lane.b32.xlu0 %v1480, 126
        %v1861 = vpop.permute.xlu0 %1860
        %v1862 = vadd.f32 %v1377, %v1855
        %v1863 = vadd.f32 %v1379, %v1855
        %v1864 = vadd.f32 %v1383, %v1857
        %v1865 = vadd.f32 %v1385, %v1857
        %v1866 = vadd.f32 %v1389, %v1859
        %v1867 = vadd.f32 %v1391, %v1859
        %v1868 = vadd.f32 %v1395, %v1861
        %v1869 = vadd.f32 %v1397, %v1861
        %s1870 = scalar_lea.vmem %s7, 10
        %v1871 = vld [vmem:[%s1870] sm:$0x3]
        %v1873 = vlaneseq
        %v1874 = vshrl.u32 %v1873, 7
        %v1875 = vsub.s32 0, %v1874
        %v1876 = vrot.slane %v1871, %v1875
        %v1877 = vlaneseq
        %v1878 = vshrl.u32 %v1877, 7
        %v1879 = vsub.s32 1, %v1878
        %v1880 = vrot.slane %v1871, %v1879
        %v1883 = vmul.f32 %v1862, %v1876
        %v1884 = vmul.f32 %v1863, %v1880
        %v1885 = vmul.f32 %v1864, %v1876
        %v1886 = vmul.f32 %v1865, %v1880
        %v1887 = vmul.f32 %v1866, %v1876
        %v1888 = vmul.f32 %v1867, %v1880
        %v1889 = vmul.f32 %v1868, %v1876
        %v1890 = vmul.f32 %v1869, %v1880
        %s1891 = scalar_lea.vmem %s1, 448
        %v1892 = vld [vmem:[%s1891] sm:$0xff]
        %v1893 = vld [vmem:[%s1891 + $0x8] sm:$0xff]
        %v1894 = vld [vmem:[%s1891 + $0x10] sm:$0xff]
        %v1895 = vld [vmem:[%s1891 + $0x18] sm:$0xff]
        %1897 = vset.pattern.permute.xlu0 0
        %1898 = vperm.xlu0 %1897, %v1892
        %v1899 = vpop.permute.xlu0 %1898
        %1902 = vset.pattern.permute.xlu0 0
        %1903 = vperm.xlu0 %1902, %v1893
        %v1904 = vpop.permute.xlu0 %1903
        %1907 = vset.pattern.permute.xlu0 0
        %1908 = vperm.xlu0 %1907, %v1894
        %v1909 = vpop.permute.xlu0 %1908
        %1912 = vset.pattern.permute.xlu0 0
        %1913 = vperm.xlu0 %1912, %v1895
        %v1914 = vpop.permute.xlu0 %1913
        %v1916 = vmul.f32 %v1883, %v1899
        %v1917 = vmul.f32 %v1884, %v1899
        %v1918 = vmul.f32 %v1885, %v1904
        %v1919 = vmul.f32 %v1886, %v1904
        %v1920 = vmul.f32 %v1887, %v1909
        %v1921 = vmul.f32 %v1888, %v1909
        %v1922 = vmul.f32 %v1889, %v1914
        %v1923 = vmul.f32 %v1890, %v1914
        %v1924 = vadd.f32 %v1846, %v1916
        %v1925 = vadd.f32 %v1847, %v1917
        %v1926 = vadd.f32 %v1848, %v1918
        %v1927 = vadd.f32 %v1849, %v1919
        %v1928 = vadd.f32 %v1850, %v1920
        %v1929 = vadd.f32 %v1851, %v1921
        %v1930 = vadd.f32 %v1852, %v1922
        %v1931 = vadd.f32 %v1853, %v1923
        %1932 = vrot.lane.b32.xlu0 %v1477, 125
        %v1933 = vpop.permute.xlu0 %1932
        %1934 = vrot.lane.b32.xlu0 %v1478, 125
        %v1935 = vpop.permute.xlu0 %1934
        %1936 = vrot.lane.b32.xlu0 %v1479, 125
        %v1937 = vpop.permute.xlu0 %1936
        %1938 = vrot.lane.b32.xlu0 %v1480, 125
        %v1939 = vpop.permute.xlu0 %1938
        %v1940 = vadd.f32 %v1377, %v1933
        %v1941 = vadd.f32 %v1379, %v1933
        %v1942 = vadd.f32 %v1383, %v1935
        %v1943 = vadd.f32 %v1385, %v1935
        %v1944 = vadd.f32 %v1389, %v1937
        %v1945 = vadd.f32 %v1391, %v1937
        %v1946 = vadd.f32 %v1395, %v1939
        %v1947 = vadd.f32 %v1397, %v1939
        %s1948 = scalar_lea.vmem %s7, 12
        %v1949 = vld [vmem:[%s1948] sm:$0x3]
        %v1951 = vlaneseq
        %v1952 = vshrl.u32 %v1951, 7
        %v1953 = vsub.s32 0, %v1952
        %v1954 = vrot.slane %v1949, %v1953
        %v1955 = vlaneseq
        %v1956 = vshrl.u32 %v1955, 7
        %v1957 = vsub.s32 1, %v1956
        %v1958 = vrot.slane %v1949, %v1957
        %v1961 = vmul.f32 %v1940, %v1954
        %v1962 = vmul.f32 %v1941, %v1958
        %v1963 = vmul.f32 %v1942, %v1954
        %v1964 = vmul.f32 %v1943, %v1958
        %v1965 = vmul.f32 %v1944, %v1954
        %v1966 = vmul.f32 %v1945, %v1958
        %v1967 = vmul.f32 %v1946, %v1954
        %v1968 = vmul.f32 %v1947, %v1958
        %s1969 = scalar_lea.vmem %s1, 480
        %v1970 = vld [vmem:[%s1969] sm:$0xff]
        %v1971 = vld [vmem:[%s1969 + $0x8] sm:$0xff]
        %v1972 = vld [vmem:[%s1969 + $0x10] sm:$0xff]
        %v1973 = vld [vmem:[%s1969 + $0x18] sm:$0xff]
        %1975 = vset.pattern.permute.xlu0 0
        %1976 = vperm.xlu0 %1975, %v1970
        %v1977 = vpop.permute.xlu0 %1976
        %1980 = vset.pattern.permute.xlu0 0
        %1981 = vperm.xlu0 %1980, %v1971
        %v1982 = vpop.permute.xlu0 %1981
        %1985 = vset.pattern.permute.xlu0 0
        %1986 = vperm.xlu0 %1985, %v1972
        %v1987 = vpop.permute.xlu0 %1986
        %1990 = vset.pattern.permute.xlu0 0
        %1991 = vperm.xlu0 %1990, %v1973
        %v1992 = vpop.permute.xlu0 %1991
        %v1994 = vmul.f32 %v1961, %v1977
        %v1995 = vmul.f32 %v1962, %v1977
        %v1996 = vmul.f32 %v1963, %v1982
        %v1997 = vmul.f32 %v1964, %v1982
        %v1998 = vmul.f32 %v1965, %v1987
        %v1999 = vmul.f32 %v1966, %v1987
        %v2000 = vmul.f32 %v1967, %v1992
        %v2001 = vmul.f32 %v1968, %v1992
        %v2002 = vadd.f32 %v1924, %v1994
        %v2003 = vadd.f32 %v1925, %v1995
        %v2004 = vadd.f32 %v1926, %v1996
        %v2005 = vadd.f32 %v1927, %v1997
        %v2006 = vadd.f32 %v1928, %v1998
        %v2007 = vadd.f32 %v1929, %v1999
        %v2008 = vadd.f32 %v1930, %v2000
        %v2009 = vadd.f32 %v1931, %v2001
        %s2010 = scalar_lea.vmem %s1, 768
        %v2011 = vld [vmem:[%s2010] sm:$0xff]
        %v2012 = vld [vmem:[%s2010 + $0x8] sm:$0xff]
        %v2013 = vld [vmem:[%s2010 + $0x10] sm:$0xff]
        %v2014 = vld [vmem:[%s2010 + $0x18] sm:$0xff]
        %2016 = vset.pattern.permute.xlu0 0
        %2017 = vperm.xlu0 %2016, %v2011
        %v2018 = vpop.permute.xlu0 %2017
        %2021 = vset.pattern.permute.xlu0 0
        %2022 = vperm.xlu0 %2021, %v2012
        %v2023 = vpop.permute.xlu0 %2022
        %2026 = vset.pattern.permute.xlu0 0
        %2027 = vperm.xlu0 %2026, %v2013
        %v2028 = vpop.permute.xlu0 %2027
        %2031 = vset.pattern.permute.xlu0 0
        %2032 = vperm.xlu0 %2031, %v2014
        %v2033 = vpop.permute.xlu0 %2032
        %v2035 = vadd.f32 %v2002, %v2018
        %v2036 = vadd.f32 %v2003, %v2018
        %v2037 = vadd.f32 %v2004, %v2023
        %v2038 = vadd.f32 %v2005, %v2023
        %v2039 = vadd.f32 %v2006, %v2028
        %v2040 = vadd.f32 %v2007, %v2028
        %v2041 = vadd.f32 %v2008, %v2033
        %v2042 = vadd.f32 %v2009, %v2033
        %v2043 = vmax.f32 %v2035, 0.0
        %v2044 = vmax.f32 %v2036, 0.0
        %v2045 = vmax.f32 %v2037, 0.0
        %v2046 = vmax.f32 %v2038, 0.0
        %v2047 = vmax.f32 %v2039, 0.0
        %v2048 = vmax.f32 %v2040, 0.0
        %v2049 = vmax.f32 %v2041, 0.0
        %v2050 = vmax.f32 %v2042, 0.0
        %2051 = vrot.lane.b32.xlu0 %v2043, 48
        %v2052 = vpop.permute.xlu0 %2051
        %2053 = vrot.lane.b32.xlu0 %v2045, 48
        %v2054 = vpop.permute.xlu0 %2053
        %2055 = vrot.lane.b32.xlu0 %v2047, 48
        %v2056 = vpop.permute.xlu0 %2055
        %2057 = vrot.lane.b32.xlu0 %v2049, 48
        %v2058 = vpop.permute.xlu0 %2057
        %2059 = vrot.lane.b32.xlu0 %v2044, 48
        %v2060 = vpop.permute.xlu0 %2059
        %2061 = vrot.lane.b32.xlu0 %v2046, 48
        %v2062 = vpop.permute.xlu0 %2061
        %2063 = vrot.lane.b32.xlu0 %v2048, 48
        %v2064 = vpop.permute.xlu0 %2063
        %2065 = vrot.lane.b32.xlu0 %v2050, 48
        %v2066 = vpop.permute.xlu0 %2065
        %vm2067 = vcmp.lt.s32.totalorder %v410, 48
        %v2068 = vsel %vm2067, %v2052, %v2060
        %v2069 = vsel %vm2067, %v2054, %v2062
        %v2070 = vsel %vm2067, %v2056, %v2064
        %v2071 = vsel %vm2067, %v2058, %v2066
        %v2072 = vsel %vm2067, %v2060, %v2052
        %v2073 = vsel %vm2067, %v2062, %v2054
        %v2074 = vsel %vm2067, %v2064, %v2056
        %v2075 = vsel %vm2067, %v2066, %v2058
        %v2076 = vld [vmem:[%s8] sm:$0x3]
        %v2078 = vlaneseq
        %v2079 = vshrl.u32 %v2078, 7
        %v2080 = vsub.s32 0, %v2079
        %v2081 = vrot.slane %v2076, %v2080
        %v2082 = vlaneseq
        %v2083 = vshrl.u32 %v2082, 7
        %v2084 = vsub.s32 1, %v2083
        %v2085 = vrot.slane %v2076, %v2084
        %v2088 = vmul.f32 %v2072, %v2081
        %v2089 = vmul.f32 %v2068, %v2085
        %v2090 = vmul.f32 %v2073, %v2081
        %v2091 = vmul.f32 %v2069, %v2085
        %v2092 = vmul.f32 %v2074, %v2081
        %v2093 = vmul.f32 %v2070, %v2085
        %v2094 = vmul.f32 %v2075, %v2081
        %v2095 = vmul.f32 %v2071, %v2085
        %s2096 = scalar_lea.vmem %s1, 512
        %v2097 = vld [vmem:[%s2096] sm:$0xff]
        %v2098 = vld [vmem:[%s2096 + $0x8] sm:$0xff]
        %v2099 = vld [vmem:[%s2096 + $0x10] sm:$0xff]
        %v2100 = vld [vmem:[%s2096 + $0x18] sm:$0xff]
        %2102 = vset.pattern.permute.xlu0 0
        %2103 = vperm.xlu0 %2102, %v2097
        %v2104 = vpop.permute.xlu0 %2103
        %2107 = vset.pattern.permute.xlu0 0
        %2108 = vperm.xlu0 %2107, %v2098
        %v2109 = vpop.permute.xlu0 %2108
        %2112 = vset.pattern.permute.xlu0 0
        %2113 = vperm.xlu0 %2112, %v2099
        %v2114 = vpop.permute.xlu0 %2113
        %2117 = vset.pattern.permute.xlu0 0
        %2118 = vperm.xlu0 %2117, %v2100
        %v2119 = vpop.permute.xlu0 %2118
        %v2121 = vmul.f32 %v2088, %v2104
        %v2122 = vmul.f32 %v2089, %v2104
        %v2123 = vmul.f32 %v2090, %v2109
        %v2124 = vmul.f32 %v2091, %v2109
        %v2125 = vmul.f32 %v2092, %v2114
        %v2126 = vmul.f32 %v2093, %v2114
        %v2127 = vmul.f32 %v2094, %v2119
        %v2128 = vmul.f32 %v2095, %v2119
        %2129 = vrot.lane.b32.xlu0 %v2043, 32
        %v2130 = vpop.permute.xlu0 %2129
        %2131 = vrot.lane.b32.xlu0 %v2045, 32
        %v2132 = vpop.permute.xlu0 %2131
        %2133 = vrot.lane.b32.xlu0 %v2047, 32
        %v2134 = vpop.permute.xlu0 %2133
        %2135 = vrot.lane.b32.xlu0 %v2049, 32
        %v2136 = vpop.permute.xlu0 %2135
        %2137 = vrot.lane.b32.xlu0 %v2044, 32
        %v2138 = vpop.permute.xlu0 %2137
        %2139 = vrot.lane.b32.xlu0 %v2046, 32
        %v2140 = vpop.permute.xlu0 %2139
        %2141 = vrot.lane.b32.xlu0 %v2048, 32
        %v2142 = vpop.permute.xlu0 %2141
        %2143 = vrot.lane.b32.xlu0 %v2050, 32
        %v2144 = vpop.permute.xlu0 %2143
        %v2145 = vsel %vm1423, %v2130, %v2138
        %v2146 = vsel %vm1423, %v2132, %v2140
        %v2147 = vsel %vm1423, %v2134, %v2142
        %v2148 = vsel %vm1423, %v2136, %v2144
        %v2149 = vsel %vm1423, %v2138, %v2130
        %v2150 = vsel %vm1423, %v2140, %v2132
        %v2151 = vsel %vm1423, %v2142, %v2134
        %v2152 = vsel %vm1423, %v2144, %v2136
        %s2153 = scalar_lea.vmem %s8, 2
        %v2154 = vld [vmem:[%s2153] sm:$0x3]
        %v2156 = vlaneseq
        %v2157 = vshrl.u32 %v2156, 7
        %v2158 = vsub.s32 0, %v2157
        %v2159 = vrot.slane %v2154, %v2158
        %v2160 = vlaneseq
        %v2161 = vshrl.u32 %v2160, 7
        %v2162 = vsub.s32 1, %v2161
        %v2163 = vrot.slane %v2154, %v2162
        %v2166 = vmul.f32 %v2149, %v2159
        %v2167 = vmul.f32 %v2145, %v2163
        %v2168 = vmul.f32 %v2150, %v2159
        %v2169 = vmul.f32 %v2146, %v2163
        %v2170 = vmul.f32 %v2151, %v2159
        %v2171 = vmul.f32 %v2147, %v2163
        %v2172 = vmul.f32 %v2152, %v2159
        %v2173 = vmul.f32 %v2148, %v2163
        %s2174 = scalar_lea.vmem %s1, 544
        %v2175 = vld [vmem:[%s2174] sm:$0xff]
        %v2176 = vld [vmem:[%s2174 + $0x8] sm:$0xff]
        %v2177 = vld [vmem:[%s2174 + $0x10] sm:$0xff]
        %v2178 = vld [vmem:[%s2174 + $0x18] sm:$0xff]
        %2180 = vset.pattern.permute.xlu0 0
        %2181 = vperm.xlu0 %2180, %v2175
        %v2182 = vpop.permute.xlu0 %2181
        %2185 = vset.pattern.permute.xlu0 0
        %2186 = vperm.xlu0 %2185, %v2176
        %v2187 = vpop.permute.xlu0 %2186
        %2190 = vset.pattern.permute.xlu0 0
        %2191 = vperm.xlu0 %2190, %v2177
        %v2192 = vpop.permute.xlu0 %2191
        %2195 = vset.pattern.permute.xlu0 0
        %2196 = vperm.xlu0 %2195, %v2178
        %v2197 = vpop.permute.xlu0 %2196
        %v2199 = vmul.f32 %v2166, %v2182
        %v2200 = vmul.f32 %v2167, %v2182
        %v2201 = vmul.f32 %v2168, %v2187
        %v2202 = vmul.f32 %v2169, %v2187
        %v2203 = vmul.f32 %v2170, %v2192
        %v2204 = vmul.f32 %v2171, %v2192
        %v2205 = vmul.f32 %v2172, %v2197
        %v2206 = vmul.f32 %v2173, %v2197
        %v2207 = vadd.f32 %v2121, %v2199
        %v2208 = vadd.f32 %v2122, %v2200
        %v2209 = vadd.f32 %v2123, %v2201
        %v2210 = vadd.f32 %v2124, %v2202
        %v2211 = vadd.f32 %v2125, %v2203
        %v2212 = vadd.f32 %v2126, %v2204
        %v2213 = vadd.f32 %v2127, %v2205
        %v2214 = vadd.f32 %v2128, %v2206
        %2215 = vrot.lane.b32.xlu0 %v2043, 16
        %v2216 = vpop.permute.xlu0 %2215
        %2217 = vrot.lane.b32.xlu0 %v2045, 16
        %v2218 = vpop.permute.xlu0 %2217
        %2219 = vrot.lane.b32.xlu0 %v2047, 16
        %v2220 = vpop.permute.xlu0 %2219
        %2221 = vrot.lane.b32.xlu0 %v2049, 16
        %v2222 = vpop.permute.xlu0 %2221
        %2223 = vrot.lane.b32.xlu0 %v2044, 16
        %v2224 = vpop.permute.xlu0 %2223
        %2225 = vrot.lane.b32.xlu0 %v2046, 16
        %v2226 = vpop.permute.xlu0 %2225
        %2227 = vrot.lane.b32.xlu0 %v2048, 16
        %v2228 = vpop.permute.xlu0 %2227
        %2229 = vrot.lane.b32.xlu0 %v2050, 16
        %v2230 = vpop.permute.xlu0 %2229
        %v2231 = vsel %vm488, %v2216, %v2224
        %v2232 = vsel %vm488, %v2218, %v2226
        %v2233 = vsel %vm488, %v2220, %v2228
        %v2234 = vsel %vm488, %v2222, %v2230
        %v2235 = vsel %vm488, %v2224, %v2216
        %v2236 = vsel %vm488, %v2226, %v2218
        %v2237 = vsel %vm488, %v2228, %v2220
        %v2238 = vsel %vm488, %v2230, %v2222
        %s2239 = scalar_lea.vmem %s8, 4
        %v2240 = vld [vmem:[%s2239] sm:$0x3]
        %v2242 = vlaneseq
        %v2243 = vshrl.u32 %v2242, 7
        %v2244 = vsub.s32 0, %v2243
        %v2245 = vrot.slane %v2240, %v2244
        %v2246 = vlaneseq
        %v2247 = vshrl.u32 %v2246, 7
        %v2248 = vsub.s32 1, %v2247
        %v2249 = vrot.slane %v2240, %v2248
        %v2252 = vmul.f32 %v2235, %v2245
        %v2253 = vmul.f32 %v2231, %v2249
        %v2254 = vmul.f32 %v2236, %v2245
        %v2255 = vmul.f32 %v2232, %v2249
        %v2256 = vmul.f32 %v2237, %v2245
        %v2257 = vmul.f32 %v2233, %v2249
        %v2258 = vmul.f32 %v2238, %v2245
        %v2259 = vmul.f32 %v2234, %v2249
        %s2260 = scalar_lea.vmem %s1, 576
        %v2261 = vld [vmem:[%s2260] sm:$0xff]
        %v2262 = vld [vmem:[%s2260 + $0x8] sm:$0xff]
        %v2263 = vld [vmem:[%s2260 + $0x10] sm:$0xff]
        %v2264 = vld [vmem:[%s2260 + $0x18] sm:$0xff]
        %2266 = vset.pattern.permute.xlu0 0
        %2267 = vperm.xlu0 %2266, %v2261
        %v2268 = vpop.permute.xlu0 %2267
        %2271 = vset.pattern.permute.xlu0 0
        %2272 = vperm.xlu0 %2271, %v2262
        %v2273 = vpop.permute.xlu0 %2272
        %2276 = vset.pattern.permute.xlu0 0
        %2277 = vperm.xlu0 %2276, %v2263
        %v2278 = vpop.permute.xlu0 %2277
        %2281 = vset.pattern.permute.xlu0 0
        %2282 = vperm.xlu0 %2281, %v2264
        %v2283 = vpop.permute.xlu0 %2282
        %v2285 = vmul.f32 %v2252, %v2268
        %v2286 = vmul.f32 %v2253, %v2268
        %v2287 = vmul.f32 %v2254, %v2273
        %v2288 = vmul.f32 %v2255, %v2273
        %v2289 = vmul.f32 %v2256, %v2278
        %v2290 = vmul.f32 %v2257, %v2278
        %v2291 = vmul.f32 %v2258, %v2283
        %v2292 = vmul.f32 %v2259, %v2283
        %v2293 = vadd.f32 %v2207, %v2285
        %v2294 = vadd.f32 %v2208, %v2286
        %v2295 = vadd.f32 %v2209, %v2287
        %v2296 = vadd.f32 %v2210, %v2288
        %v2297 = vadd.f32 %v2211, %v2289
        %v2298 = vadd.f32 %v2212, %v2290
        %v2299 = vadd.f32 %v2213, %v2291
        %v2300 = vadd.f32 %v2214, %v2292
        %s2301 = scalar_lea.vmem %s8, 6
        %v2302 = vld [vmem:[%s2301] sm:$0x3]
        %v2304 = vlaneseq
        %v2305 = vshrl.u32 %v2304, 7
        %v2306 = vsub.s32 0, %v2305
        %v2307 = vrot.slane %v2302, %v2306
        %v2308 = vlaneseq
        %v2309 = vshrl.u32 %v2308, 7
        %v2310 = vsub.s32 1, %v2309
        %v2311 = vrot.slane %v2302, %v2310
        %v2314 = vmul.f32 %v2043, %v2307
        %v2315 = vmul.f32 %v2044, %v2311
        %v2316 = vmul.f32 %v2045, %v2307
        %v2317 = vmul.f32 %v2046, %v2311
        %v2318 = vmul.f32 %v2047, %v2307
        %v2319 = vmul.f32 %v2048, %v2311
        %v2320 = vmul.f32 %v2049, %v2307
        %v2321 = vmul.f32 %v2050, %v2311
        %s2322 = scalar_lea.vmem %s1, 608
        %v2323 = vld [vmem:[%s2322] sm:$0xff]
        %v2324 = vld [vmem:[%s2322 + $0x8] sm:$0xff]
        %v2325 = vld [vmem:[%s2322 + $0x10] sm:$0xff]
        %v2326 = vld [vmem:[%s2322 + $0x18] sm:$0xff]
        %2328 = vset.pattern.permute.xlu0 0
        %2329 = vperm.xlu0 %2328, %v2323
        %v2330 = vpop.permute.xlu0 %2329
        %2333 = vset.pattern.permute.xlu0 0
        %2334 = vperm.xlu0 %2333, %v2324
        %v2335 = vpop.permute.xlu0 %2334
        %2338 = vset.pattern.permute.xlu0 0
        %2339 = vperm.xlu0 %2338, %v2325
        %v2340 = vpop.permute.xlu0 %2339
        %2343 = vset.pattern.permute.xlu0 0
        %2344 = vperm.xlu0 %2343, %v2326
        %v2345 = vpop.permute.xlu0 %2344
        %v2347 = vmul.f32 %v2314, %v2330
        %v2348 = vmul.f32 %v2315, %v2330
        %v2349 = vmul.f32 %v2316, %v2335
        %v2350 = vmul.f32 %v2317, %v2335
        %v2351 = vmul.f32 %v2318, %v2340
        %v2352 = vmul.f32 %v2319, %v2340
        %v2353 = vmul.f32 %v2320, %v2345
        %v2354 = vmul.f32 %v2321, %v2345
        %v2355 = vadd.f32 %v2293, %v2347
        %v2356 = vadd.f32 %v2294, %v2348
        %v2357 = vadd.f32 %v2295, %v2349
        %v2358 = vadd.f32 %v2296, %v2350
        %v2359 = vadd.f32 %v2297, %v2351
        %v2360 = vadd.f32 %v2298, %v2352
        %v2361 = vadd.f32 %v2299, %v2353
        %v2362 = vadd.f32 %v2300, %v2354
        %2363 = vrot.lane.b32.xlu0 %v2043, 112
        %v2364 = vpop.permute.xlu0 %2363
        %2365 = vrot.lane.b32.xlu0 %v2045, 112
        %v2366 = vpop.permute.xlu0 %2365
        %2367 = vrot.lane.b32.xlu0 %v2047, 112
        %v2368 = vpop.permute.xlu0 %2367
        %2369 = vrot.lane.b32.xlu0 %v2049, 112
        %v2370 = vpop.permute.xlu0 %2369
        %2371 = vrot.lane.b32.xlu0 %v2044, 112
        %v2372 = vpop.permute.xlu0 %2371
        %2373 = vrot.lane.b32.xlu0 %v2046, 112
        %v2374 = vpop.permute.xlu0 %2373
        %2375 = vrot.lane.b32.xlu0 %v2048, 112
        %v2376 = vpop.permute.xlu0 %2375
        %2377 = vrot.lane.b32.xlu0 %v2050, 112
        %v2378 = vpop.permute.xlu0 %2377
        %v2379 = vsel %vm985, %v2364, %v2372
        %v2380 = vsel %vm985, %v2366, %v2374
        %v2381 = vsel %vm985, %v2368, %v2376
        %v2382 = vsel %vm985, %v2370, %v2378
        %v2383 = vsel %vm985, %v2372, %v2364
        %v2384 = vsel %vm985, %v2374, %v2366
        %v2385 = vsel %vm985, %v2376, %v2368
        %v2386 = vsel %vm985, %v2378, %v2370
        %s2387 = scalar_lea.vmem %s8, 8
        %v2388 = vld [vmem:[%s2387] sm:$0x3]
        %v2390 = vlaneseq
        %v2391 = vshrl.u32 %v2390, 7
        %v2392 = vsub.s32 0, %v2391
        %v2393 = vrot.slane %v2388, %v2392
        %v2394 = vlaneseq
        %v2395 = vshrl.u32 %v2394, 7
        %v2396 = vsub.s32 1, %v2395
        %v2397 = vrot.slane %v2388, %v2396
        %v2400 = vmul.f32 %v2379, %v2393
        %v2401 = vmul.f32 %v2383, %v2397
        %v2402 = vmul.f32 %v2380, %v2393
        %v2403 = vmul.f32 %v2384, %v2397
        %v2404 = vmul.f32 %v2381, %v2393
        %v2405 = vmul.f32 %v2385, %v2397
        %v2406 = vmul.f32 %v2382, %v2393
        %v2407 = vmul.f32 %v2386, %v2397
        %s2408 = scalar_lea.vmem %s1, 640
        %v2409 = vld [vmem:[%s2408] sm:$0xff]
        %v2410 = vld [vmem:[%s2408 + $0x8] sm:$0xff]
        %v2411 = vld [vmem:[%s2408 + $0x10] sm:$0xff]
        %v2412 = vld [vmem:[%s2408 + $0x18] sm:$0xff]
        %2414 = vset.pattern.permute.xlu0 0
        %2415 = vperm.xlu0 %2414, %v2409
        %v2416 = vpop.permute.xlu0 %2415
        %2419 = vset.pattern.permute.xlu0 0
        %2420 = vperm.xlu0 %2419, %v2410
        %v2421 = vpop.permute.xlu0 %2420
        %2424 = vset.pattern.permute.xlu0 0
        %2425 = vperm.xlu0 %2424, %v2411
        %v2426 = vpop.permute.xlu0 %2425
        %2429 = vset.pattern.permute.xlu0 0
        %2430 = vperm.xlu0 %2429, %v2412
        %v2431 = vpop.permute.xlu0 %2430
        %v2433 = vmul.f32 %v2400, %v2416
        %v2434 = vmul.f32 %v2401, %v2416
        %v2435 = vmul.f32 %v2402, %v2421
        %v2436 = vmul.f32 %v2403, %v2421
        %v2437 = vmul.f32 %v2404, %v2426
        %v2438 = vmul.f32 %v2405, %v2426
        %v2439 = vmul.f32 %v2406, %v2431
        %v2440 = vmul.f32 %v2407, %v2431
        %v2441 = vadd.f32 %v2355, %v2433
        %v2442 = vadd.f32 %v2356, %v2434
        %v2443 = vadd.f32 %v2357, %v2435
        %v2444 = vadd.f32 %v2358, %v2436
        %v2445 = vadd.f32 %v2359, %v2437
        %v2446 = vadd.f32 %v2360, %v2438
        %v2447 = vadd.f32 %v2361, %v2439
        %v2448 = vadd.f32 %v2362, %v2440
        %2449 = vrot.lane.b32.xlu0 %v2043, 96
        %v2450 = vpop.permute.xlu0 %2449
        %2451 = vrot.lane.b32.xlu0 %v2045, 96
        %v2452 = vpop.permute.xlu0 %2451
        %2453 = vrot.lane.b32.xlu0 %v2047, 96
        %v2454 = vpop.permute.xlu0 %2453
        %2455 = vrot.lane.b32.xlu0 %v2049, 96
        %v2456 = vpop.permute.xlu0 %2455
        %2457 = vrot.lane.b32.xlu0 %v2044, 96
        %v2458 = vpop.permute.xlu0 %2457
        %2459 = vrot.lane.b32.xlu0 %v2046, 96
        %v2460 = vpop.permute.xlu0 %2459
        %2461 = vrot.lane.b32.xlu0 %v2048, 96
        %v2462 = vpop.permute.xlu0 %2461
        %2463 = vrot.lane.b32.xlu0 %v2050, 96
        %v2464 = vpop.permute.xlu0 %2463
        %vm2465 = vcmp.lt.s32.totalorder %v410, 96
        %v2466 = vsel %vm2465, %v2450, %v2458
        %v2467 = vsel %vm2465, %v2452, %v2460
        %v2468 = vsel %vm2465, %v2454, %v2462
        %v2469 = vsel %vm2465, %v2456, %v2464
        %v2470 = vsel %vm2465, %v2458, %v2450
        %v2471 = vsel %vm2465, %v2460, %v2452
        %v2472 = vsel %vm2465, %v2462, %v2454
        %v2473 = vsel %vm2465, %v2464, %v2456
        %s2474 = scalar_lea.vmem %s8, 10
        %v2475 = vld [vmem:[%s2474] sm:$0x3]
        %v2477 = vlaneseq
        %v2478 = vshrl.u32 %v2477, 7
        %v2479 = vsub.s32 0, %v2478
        %v2480 = vrot.slane %v2475, %v2479
        %v2481 = vlaneseq
        %v2482 = vshrl.u32 %v2481, 7
        %v2483 = vsub.s32 1, %v2482
        %v2484 = vrot.slane %v2475, %v2483
        %v2487 = vmul.f32 %v2466, %v2480
        %v2488 = vmul.f32 %v2470, %v2484
        %v2489 = vmul.f32 %v2467, %v2480
        %v2490 = vmul.f32 %v2471, %v2484
        %v2491 = vmul.f32 %v2468, %v2480
        %v2492 = vmul.f32 %v2472, %v2484
        %v2493 = vmul.f32 %v2469, %v2480
        %v2494 = vmul.f32 %v2473, %v2484
        %s2495 = scalar_lea.vmem %s1, 672
        %v2496 = vld [vmem:[%s2495] sm:$0xff]
        %v2497 = vld [vmem:[%s2495 + $0x8] sm:$0xff]
        %v2498 = vld [vmem:[%s2495 + $0x10] sm:$0xff]
        %v2499 = vld [vmem:[%s2495 + $0x18] sm:$0xff]
        %2501 = vset.pattern.permute.xlu0 0
        %2502 = vperm.xlu0 %2501, %v2496
        %v2503 = vpop.permute.xlu0 %2502
        %2506 = vset.pattern.permute.xlu0 0
        %2507 = vperm.xlu0 %2506, %v2497
        %v2508 = vpop.permute.xlu0 %2507
        %2511 = vset.pattern.permute.xlu0 0
        %2512 = vperm.xlu0 %2511, %v2498
        %v2513 = vpop.permute.xlu0 %2512
        %2516 = vset.pattern.permute.xlu0 0
        %2517 = vperm.xlu0 %2516, %v2499
        %v2518 = vpop.permute.xlu0 %2517
        %v2520 = vmul.f32 %v2487, %v2503
        %v2521 = vmul.f32 %v2488, %v2503
        %v2522 = vmul.f32 %v2489, %v2508
        %v2523 = vmul.f32 %v2490, %v2508
        %v2524 = vmul.f32 %v2491, %v2513
        %v2525 = vmul.f32 %v2492, %v2513
        %v2526 = vmul.f32 %v2493, %v2518
        %v2527 = vmul.f32 %v2494, %v2518
        %v2528 = vadd.f32 %v2441, %v2520
        %v2529 = vadd.f32 %v2442, %v2521
        %v2530 = vadd.f32 %v2443, %v2522
        %v2531 = vadd.f32 %v2444, %v2523
        %v2532 = vadd.f32 %v2445, %v2524
        %v2533 = vadd.f32 %v2446, %v2525
        %v2534 = vadd.f32 %v2447, %v2526
        %v2535 = vadd.f32 %v2448, %v2527
        %2536 = vrot.lane.b32.xlu0 %v2043, 80
        %v2537 = vpop.permute.xlu0 %2536
        %2538 = vrot.lane.b32.xlu0 %v2045, 80
        %v2539 = vpop.permute.xlu0 %2538
        %2540 = vrot.lane.b32.xlu0 %v2047, 80
        %v2541 = vpop.permute.xlu0 %2540
        %2542 = vrot.lane.b32.xlu0 %v2049, 80
        %v2543 = vpop.permute.xlu0 %2542
        %2544 = vrot.lane.b32.xlu0 %v2044, 80
        %v2545 = vpop.permute.xlu0 %2544
        %2546 = vrot.lane.b32.xlu0 %v2046, 80
        %v2547 = vpop.permute.xlu0 %2546
        %2548 = vrot.lane.b32.xlu0 %v2048, 80
        %v2549 = vpop.permute.xlu0 %2548
        %2550 = vrot.lane.b32.xlu0 %v2050, 80
        %v2551 = vpop.permute.xlu0 %2550
        %vm2552 = vcmp.lt.s32.totalorder %v410, 80
        %v2553 = vsel %vm2552, %v2537, %v2545
        %v2554 = vsel %vm2552, %v2539, %v2547
        %v2555 = vsel %vm2552, %v2541, %v2549
        %v2556 = vsel %vm2552, %v2543, %v2551
        %v2557 = vsel %vm2552, %v2545, %v2537
        %v2558 = vsel %vm2552, %v2547, %v2539
        %v2559 = vsel %vm2552, %v2549, %v2541
        %v2560 = vsel %vm2552, %v2551, %v2543
        %s2561 = scalar_lea.vmem %s8, 12
        %v2562 = vld [vmem:[%s2561] sm:$0x3]
        %v2564 = vlaneseq
        %v2565 = vshrl.u32 %v2564, 7
        %v2566 = vsub.s32 0, %v2565
        %v2567 = vrot.slane %v2562, %v2566
        %v2568 = vlaneseq
        %v2569 = vshrl.u32 %v2568, 7
        %v2570 = vsub.s32 1, %v2569
        %v2571 = vrot.slane %v2562, %v2570
        %v2574 = vmul.f32 %v2553, %v2567
        %v2575 = vmul.f32 %v2557, %v2571
        %v2576 = vmul.f32 %v2554, %v2567
        %v2577 = vmul.f32 %v2558, %v2571
        %v2578 = vmul.f32 %v2555, %v2567
        %v2579 = vmul.f32 %v2559, %v2571
        %v2580 = vmul.f32 %v2556, %v2567
        %v2581 = vmul.f32 %v2560, %v2571
        %s2582 = scalar_lea.vmem %s1, 704
        %v2583 = vld [vmem:[%s2582] sm:$0xff]
        %v2584 = vld [vmem:[%s2582 + $0x8] sm:$0xff]
        %v2585 = vld [vmem:[%s2582 + $0x10] sm:$0xff]
        %v2586 = vld [vmem:[%s2582 + $0x18] sm:$0xff]
        %2588 = vset.pattern.permute.xlu0 0
        %2589 = vperm.xlu0 %2588, %v2583
        %v2590 = vpop.permute.xlu0 %2589
        %2593 = vset.pattern.permute.xlu0 0
        %2594 = vperm.xlu0 %2593, %v2584
        %v2595 = vpop.permute.xlu0 %2594
        %2598 = vset.pattern.permute.xlu0 0
        %2599 = vperm.xlu0 %2598, %v2585
        %v2600 = vpop.permute.xlu0 %2599
        %2603 = vset.pattern.permute.xlu0 0
        %2604 = vperm.xlu0 %2603, %v2586
        %v2605 = vpop.permute.xlu0 %2604
        %v2607 = vmul.f32 %v2574, %v2590
        %v2608 = vmul.f32 %v2575, %v2590
        %v2609 = vmul.f32 %v2576, %v2595
        %v2610 = vmul.f32 %v2577, %v2595
        %v2611 = vmul.f32 %v2578, %v2600
        %v2612 = vmul.f32 %v2579, %v2600
        %v2613 = vmul.f32 %v2580, %v2605
        %v2614 = vmul.f32 %v2581, %v2605
        %v2615 = vadd.f32 %v2528, %v2607
        %v2616 = vadd.f32 %v2529, %v2608
        %v2617 = vadd.f32 %v2530, %v2609
        %v2618 = vadd.f32 %v2531, %v2610
        %v2619 = vadd.f32 %v2532, %v2611
        %v2620 = vadd.f32 %v2533, %v2612
        %v2621 = vadd.f32 %v2534, %v2613
        %v2622 = vadd.f32 %v2535, %v2614
        %s2623 = scalar_lea.vmem %s1, 800
        %v2624 = vld [vmem:[%s2623] sm:$0xff]
        %v2625 = vld [vmem:[%s2623 + $0x8] sm:$0xff]
        %v2626 = vld [vmem:[%s2623 + $0x10] sm:$0xff]
        %v2627 = vld [vmem:[%s2623 + $0x18] sm:$0xff]
        %2629 = vset.pattern.permute.xlu0 0
        %2630 = vperm.xlu0 %2629, %v2624
        %v2631 = vpop.permute.xlu0 %2630
        %2634 = vset.pattern.permute.xlu0 0
        %2635 = vperm.xlu0 %2634, %v2625
        %v2636 = vpop.permute.xlu0 %2635
        %2639 = vset.pattern.permute.xlu0 0
        %2640 = vperm.xlu0 %2639, %v2626
        %v2641 = vpop.permute.xlu0 %2640
        %2644 = vset.pattern.permute.xlu0 0
        %2645 = vperm.xlu0 %2644, %v2627
        %v2646 = vpop.permute.xlu0 %2645
        %v2648 = vadd.f32 %v2615, %v2631
        %v2649 = vadd.f32 %v2616, %v2631
        %v2650 = vadd.f32 %v2617, %v2636
        %v2651 = vadd.f32 %v2618, %v2636
        %v2652 = vadd.f32 %v2619, %v2641
        %v2653 = vadd.f32 %v2620, %v2641
        %v2654 = vadd.f32 %v2621, %v2646
        %v2655 = vadd.f32 %v2622, %v2646
        %v2656 = vsub.f32 0.0, %v2648
        %v2657 = vsub.f32 0.0, %v2649
        %v2658 = vsub.f32 0.0, %v2650
        %v2659 = vsub.f32 0.0, %v2651
        %v2660 = vsub.f32 0.0, %v2652
        %v2661 = vsub.f32 0.0, %v2653
        %v2662 = vsub.f32 0.0, %v2654
        %v2663 = vsub.f32 0.0, %v2655
        %v2664 = vmul.f32 %v2656, 1.442695
        %v2665 = vpow.pop %v2664
        %v2666 = vmul.f32 %v2657, 1.442695
        %v2667 = vpow.pop %v2666
        %v2668 = vmul.f32 %v2658, 1.442695
        %v2669 = vpow.pop %v2668
        %v2670 = vmul.f32 %v2659, 1.442695
        %v2671 = vpow.pop %v2670
        %v2672 = vmul.f32 %v2660, 1.442695
        %v2673 = vpow.pop %v2672
        %v2674 = vmul.f32 %v2661, 1.442695
        %v2675 = vpow.pop %v2674
        %v2676 = vmul.f32 %v2662, 1.442695
        %v2677 = vpow.pop %v2676
        %v2678 = vmul.f32 %v2663, 1.442695
        %v2679 = vpow.pop %v2678
        %v2680 = vadd.f32 %v2665, 1.0
        %v2681 = vadd.f32 %v2667, 1.0
        %v2682 = vadd.f32 %v2669, 1.0
        %v2683 = vadd.f32 %v2671, 1.0
        %v2684 = vadd.f32 %v2673, 1.0
        %v2685 = vadd.f32 %v2675, 1.0
        %v2686 = vadd.f32 %v2677, 1.0
        %v2687 = vadd.f32 %v2679, 1.0
        %v2688 = vrcp.pop %v2680
        %v2689 = vmul.f32 1.0, %v2688
        %v2690 = vrcp.pop %v2681
        %v2691 = vmul.f32 1.0, %v2690
        %v2692 = vrcp.pop %v2682
        %v2693 = vmul.f32 1.0, %v2692
        %v2694 = vrcp.pop %v2683
        %v2695 = vmul.f32 1.0, %v2694
        %v2696 = vrcp.pop %v2684
        %v2697 = vmul.f32 1.0, %v2696
        %v2698 = vrcp.pop %v2685
        %v2699 = vmul.f32 1.0, %v2698
        %v2700 = vrcp.pop %v2686
        %v2701 = vmul.f32 1.0, %v2700
        %v2702 = vrcp.pop %v2687
        %v2703 = vmul.f32 1.0, %v2702
        %v2704 = vmul.f32 %v2689, %v1168
        %v2705 = vmul.f32 %v2691, %v1169
        %v2706 = vmul.f32 %v2693, %v1170
        %v2707 = vmul.f32 %v2695, %v1171
        %v2708 = vmul.f32 %v2697, %v1172
        %v2709 = vmul.f32 %v2699, %v1173
        %v2710 = vmul.f32 %v2701, %v1174
        %v2711 = vmul.f32 %v2703, %v1175
        %v2712 = vld [vmem:[%s2] sm:$0xff]
        %v2713 = vld [vmem:[%s2 + $0x8] sm:$0xff]
        %v2714 = vld [vmem:[%s2 + $0x10] sm:$0xff]
        %v2715 = vld [vmem:[%s2 + $0x18] sm:$0xff]
        %v2716 = vld [vmem:[%s2 + $0x20] sm:$0xff]
        %v2717 = vld [vmem:[%s2 + $0x28] sm:$0xff]
        %v2718 = vld [vmem:[%s2 + $0x30] sm:$0xff]
        %v2719 = vld [vmem:[%s2 + $0x38] sm:$0xff]
        %v2720 = vld [vmem:[%s3] sm:$0xff]
        %v2721 = vld [vmem:[%s3 + $0x8] sm:$0xff]
        %v2722 = vld [vmem:[%s3 + $0x10] sm:$0xff]
        %v2723 = vld [vmem:[%s3 + $0x18] sm:$0xff]
        %v2724 = vld [vmem:[%s3 + $0x20] sm:$0xff]
        %v2725 = vld [vmem:[%s3 + $0x28] sm:$0xff]
        %v2726 = vld [vmem:[%s3 + $0x30] sm:$0xff]
        %v2727 = vld [vmem:[%s3 + $0x38] sm:$0xff]
        %2729 = vset.pattern.permute.xlu0 0
        %2730 = vperm.xlu0 %2729, %v2720
        %v2731 = vpop.permute.xlu0 %2730
        %2734 = vset.pattern.permute.xlu0 0
        %2735 = vperm.xlu0 %2734, %v2721
        %v2736 = vpop.permute.xlu0 %2735
        %2739 = vset.pattern.permute.xlu0 0
        %2740 = vperm.xlu0 %2739, %v2722
        %v2741 = vpop.permute.xlu0 %2740
        %2744 = vset.pattern.permute.xlu0 0
        %2745 = vperm.xlu0 %2744, %v2723
        %v2746 = vpop.permute.xlu0 %2745
        %2749 = vset.pattern.permute.xlu0 0
        %2750 = vperm.xlu0 %2749, %v2724
        %v2751 = vpop.permute.xlu0 %2750
        %2754 = vset.pattern.permute.xlu0 0
        %2755 = vperm.xlu0 %2754, %v2725
        %v2756 = vpop.permute.xlu0 %2755
        %2759 = vset.pattern.permute.xlu0 0
        %2760 = vperm.xlu0 %2759, %v2726
        %v2761 = vpop.permute.xlu0 %2760
        %2764 = vset.pattern.permute.xlu0 0
        %2765 = vperm.xlu0 %2764, %v2727
        %v2766 = vpop.permute.xlu0 %2765
        %vm2768 = vcmask 261120
        %v2770 = vsel %vm2768, %v2712, 0
        %v2773 = vsel %vm2768, %v2713, 0
        %v2776 = vsel %vm2768, %v2714, 0
        %v2779 = vsel %vm2768, %v2715, 0
        %v2782 = vsel %vm2768, %v2716, 0
        %v2785 = vsel %vm2768, %v2717, 0
        %v2788 = vsel %vm2768, %v2718, 0
        %v2791 = vsel %vm2768, %v2719, 0
        %2793 = vmatprep.subr.mxu0 0.0
        %2794 = vmatpush1.msra.mxu0 0.0
        %2795 = vmatprep.subr.mxu0 0.0
        %2796 = vmatpush1.msra.mxu0 0.0
        %2797 = vmatprep.subr.mxu0 0.0
        %2798 = vmatpush1.msra.mxu0 0.0
        %2799 = vmatprep.subr.mxu0 0.0
        %2800 = vmatpush1.msra.mxu0 0.0
        %2801 = vmatprep.subr.mxu0 0.0
        %2802 = vmatpush1.msra.mxu0 0.0
        %2803 = vmatprep.subr.mxu0 0.0
        %2804 = vmatpush1.msra.mxu0 0.0
        %2805 = vmatprep.subr.mxu0 0.0
        %2806 = vmatpush1.msra.mxu0 0.0
        %2807 = vmatprep.subr.mxu0 0.0
        %2808 = vmatpush1.msra.mxu0 0.0
        %2809 = vmatprep.subr.mxu0 0.0
        %2810 = vmatpush1.msra.mxu0 0.0
        %2811 = vmatprep.subr.mxu0 0.0
        %2812 = vmatpush1.msra.mxu0 0.0
        %2813 = vmatprep.subr.mxu0 0.0
        %2814 = vmatpush1.msra.mxu0 0.0
        %2815 = vmatprep.subr.mxu0 0.0
        %2816 = vmatpush1.msra.mxu0 0.0
        %2817 = vmatprep.subr.mxu0 %v2711
        %2818 = vmatpush1.msra.mxu0 %v2710
        %2819 = vmatprep.subr.mxu0 %v2709
        %2820 = vmatpush1.msra.mxu0 %v2708
        %2821 = vmatprep.subr.mxu0 %v2707
        %2822 = vmatpush1.msra.mxu0 %v2706
        %2823 = vmatprep.subr.mxu0 %v2705
        %2824 = vmatpush1.msra.mxu0 %v2704
        %2825 = vmatprep.subr.mxu0 0.0
        %2826 = vmatpush2.msra.mxu0 0.0
        %2827 = vmatprep.subr.mxu0 0.0
        %2828 = vmatpush2.msra.mxu0 0.0
        %2829 = vmatprep.subr.mxu0 0.0
        %2830 = vmatpush2.msra.mxu0 0.0
        %2831 = vmatprep.subr.mxu0 0.0
        %2832 = vmatpush2.msra.mxu0 0.0
        %2833 = vmatprep.subr.mxu0 0.0
        %2834 = vmatpush2.msra.mxu0 0.0
        %2835 = vmatprep.subr.mxu0 0.0
        %2836 = vmatpush2.msra.mxu0 0.0
        %2837 = vmatprep.subr.mxu0 0.0
        %2838 = vmatpush2.msra.mxu0 0.0
        %2839 = vmatprep.subr.mxu0 0.0
        %2840 = vmatpush2.msra.mxu0 0.0
        %2841 = vmatprep.subr.mxu0 0.0
        %2842 = vmatpush2.msra.mxu0 0.0
        %2843 = vmatprep.subr.mxu0 0.0
        %2844 = vmatpush2.msra.mxu0 0.0
        %2845 = vmatprep.subr.mxu0 0.0
        %2846 = vmatpush2.msra.mxu0 0.0
        %2847 = vmatprep.subr.mxu0 0.0
        %2848 = vmatpush2.msra.mxu0 0.0
        %2849 = vmatprep.subr.mxu0 0.0
        %2850 = vmatpush2.msra.mxu0 0.0
        %2851 = vmatprep.subr.mxu0 0.0
        %2852 = vmatpush2.msra.mxu0 0.0
        %2853 = vmatprep.subr.mxu0 0.0
        %2854 = vmatpush2.msra.mxu0 0.0
        %2855 = vmatprep.subr.mxu0 0.0
        %2856 = vmatpush2.msra.mxu0 0.0
        %2857 = vmatprep.mubr.f32.mxu0 0.0
        %2858 = vmatmul.mubr.f32.gmra.mxu0 %v2770
        %v2859 = vpop.f32.mrf.mxu0
        %v2860 = vadd.f32 %v2731, %v2859
        %v2861 = vpop.f32.mrf.mxu0
        %v2862 = vadd.f32 %v2731, %v2861
        %2863 = vmatprep.mubr.f32.mxu0 0.0
        %2864 = vmatmul.mubr.f32.gmra.mxu0 %v2773
        %v2865 = vpop.f32.mrf.mxu0
        %v2866 = vadd.f32 %v2736, %v2865
        %v2867 = vpop.f32.mrf.mxu0
        %v2868 = vadd.f32 %v2736, %v2867
        %2869 = vmatprep.mubr.f32.mxu0 0.0
        %2870 = vmatmul.mubr.f32.gmra.mxu0 %v2776
        %v2871 = vpop.f32.mrf.mxu0
        %v2872 = vadd.f32 %v2741, %v2871
        %v2873 = vpop.f32.mrf.mxu0
        %v2874 = vadd.f32 %v2741, %v2873
        %2875 = vmatprep.mubr.f32.mxu0 0.0
        %2876 = vmatmul.mubr.f32.gmra.mxu0 %v2779
        %v2877 = vpop.f32.mrf.mxu0
        %v2878 = vadd.f32 %v2746, %v2877
        %v2879 = vpop.f32.mrf.mxu0
        %v2880 = vadd.f32 %v2746, %v2879
        %2881 = vmatprep.mubr.f32.mxu0 0.0
        %2882 = vmatmul.mubr.f32.gmra.mxu0 %v2782
        %v2883 = vpop.f32.mrf.mxu0
        %v2884 = vadd.f32 %v2751, %v2883
        %v2885 = vpop.f32.mrf.mxu0
        %v2886 = vadd.f32 %v2751, %v2885
        %2887 = vmatprep.mubr.f32.mxu0 0.0
        %2888 = vmatmul.mubr.f32.gmra.mxu0 %v2785
        %v2889 = vpop.f32.mrf.mxu0
        %v2890 = vadd.f32 %v2756, %v2889
        %v2891 = vpop.f32.mrf.mxu0
        %v2892 = vadd.f32 %v2756, %v2891
        %2893 = vmatprep.mubr.f32.mxu0 0.0
        %2894 = vmatmul.mubr.f32.gmra.mxu0 %v2788
        %v2895 = vpop.f32.mrf.mxu0
        %v2896 = vadd.f32 %v2761, %v2895
        %v2897 = vpop.f32.mrf.mxu0
        %v2898 = vadd.f32 %v2761, %v2897
        %2899 = vmatprep.mubr.f32.mxu0 0.0
        %2900 = vmatmul.mubr.f32.gmra.mxu0 %v2791
        %v2901 = vpop.f32.mrf.mxu0
        %v2902 = vadd.f32 %v2766, %v2901
        %v2903 = vpop.f32.mrf.mxu0
        %v2904 = vadd.f32 %v2766, %v2903
        %2905 = vdwg.mxu0
        %v2906 = vmul.f32 %v2860, 0.5
        %v2907 = vmul.f32 %v2862, 0.5
        %v2908 = vmul.f32 %v2866, 0.5
        %v2909 = vmul.f32 %v2868, 0.5
        %v2910 = vmul.f32 %v2872, 0.5
        %v2911 = vmul.f32 %v2874, 0.5
        %v2912 = vmul.f32 %v2878, 0.5
        %v2913 = vmul.f32 %v2880, 0.5
        %v2914 = vmul.f32 %v2884, 0.5
        %v2915 = vmul.f32 %v2886, 0.5
        %v2916 = vmul.f32 %v2890, 0.5
        %v2917 = vmul.f32 %v2892, 0.5
        %v2918 = vmul.f32 %v2896, 0.5
        %v2919 = vmul.f32 %v2898, 0.5
        %v2920 = vmul.f32 %v2902, 0.5
        %v2921 = vmul.f32 %v2904, 0.5
        %v2922 = vmul.f32 %v2860, 0.70710677
        %v2923 = vmul.f32 %v2862, 0.70710677
        %v2924 = vmul.f32 %v2866, 0.70710677
        %v2925 = vmul.f32 %v2868, 0.70710677
        %v2926 = vmul.f32 %v2872, 0.70710677
        %v2927 = vmul.f32 %v2874, 0.70710677
        %v2928 = vmul.f32 %v2878, 0.70710677
        %v2929 = vmul.f32 %v2880, 0.70710677
        %v2930 = vmul.f32 %v2884, 0.70710677
        %v2931 = vmul.f32 %v2886, 0.70710677
        %v2932 = vmul.f32 %v2890, 0.70710677
        %v2933 = vmul.f32 %v2892, 0.70710677
        %v2934 = vmul.f32 %v2896, 0.70710677
        %v2935 = vmul.f32 %v2898, 0.70710677
        %v2936 = vmul.f32 %v2902, 0.70710677
        %v2937 = vmul.f32 %v2904, 0.70710677
        %vm2938 = vcmp.ge.f32.partialorder %v2922, 0.0
        %vm2939 = vcmp.ge.f32.partialorder %v2923, 0.0
        %vm2940 = vcmp.ge.f32.partialorder %v2924, 0.0
        %vm2941 = vcmp.ge.f32.partialorder %v2925, 0.0
        %vm2942 = vcmp.ge.f32.partialorder %v2926, 0.0
        %vm2943 = vcmp.ge.f32.partialorder %v2927, 0.0
        %vm2944 = vcmp.ge.f32.partialorder %v2928, 0.0
        %vm2945 = vcmp.ge.f32.partialorder %v2929, 0.0
        %vm2946 = vcmp.ge.f32.partialorder %v2930, 0.0
        %vm2947 = vcmp.ge.f32.partialorder %v2931, 0.0
        %vm2948 = vcmp.ge.f32.partialorder %v2932, 0.0
        %vm2949 = vcmp.ge.f32.partialorder %v2933, 0.0
        %vm2950 = vcmp.ge.f32.partialorder %v2934, 0.0
        %vm2951 = vcmp.ge.f32.partialorder %v2935, 0.0
        %vm2952 = vcmp.ge.f32.partialorder %v2936, 0.0
        %vm2953 = vcmp.ge.f32.partialorder %v2937, 0.0
        %v2954 = vsel %vm2938, 1.0, -1.0
        %v2955 = vsel %vm2939, 1.0, -1.0
        %v2956 = vsel %vm2940, 1.0, -1.0
        %v2957 = vsel %vm2941, 1.0, -1.0
        %v2958 = vsel %vm2942, 1.0, -1.0
        %v2959 = vsel %vm2943, 1.0, -1.0
        %v2960 = vsel %vm2944, 1.0, -1.0
        %v2961 = vsel %vm2945, 1.0, -1.0
        %v2962 = vsel %vm2946, 1.0, -1.0
        %v2963 = vsel %vm2947, 1.0, -1.0
        %v2964 = vsel %vm2948, 1.0, -1.0
        %v2965 = vsel %vm2949, 1.0, -1.0
        %v2966 = vsel %vm2950, 1.0, -1.0
        %v2967 = vsel %vm2951, 1.0, -1.0
        %v2968 = vsel %vm2952, 1.0, -1.0
        %v2969 = vsel %vm2953, 1.0, -1.0
        %v2970 = vand.u32 2147483647, %v2922
        %v2971 = vand.u32 2147483647, %v2923
        %v2972 = vand.u32 2147483647, %v2924
        %v2973 = vand.u32 2147483647, %v2925
        %v2974 = vand.u32 2147483647, %v2926
        %v2975 = vand.u32 2147483647, %v2927
        %v2976 = vand.u32 2147483647, %v2928
        %v2977 = vand.u32 2147483647, %v2929
        %v2978 = vand.u32 2147483647, %v2930
        %v2979 = vand.u32 2147483647, %v2931
        %v2980 = vand.u32 2147483647, %v2932
        %v2981 = vand.u32 2147483647, %v2933
        %v2982 = vand.u32 2147483647, %v2934
        %v2983 = vand.u32 2147483647, %v2935
        %v2984 = vand.u32 2147483647, %v2936
        %v2985 = vand.u32 2147483647, %v2937
        %v2986 = vmul.f32 %v2970, 0.3275911
        %v2987 = vmul.f32 %v2971, 0.3275911
        %v2988 = vmul.f32 %v2972, 0.3275911
        %v2989 = vmul.f32 %v2973, 0.3275911
        %v2990 = vmul.f32 %v2974, 0.3275911
        %v2991 = vmul.f32 %v2975, 0.3275911
        %v2992 = vmul.f32 %v2976, 0.3275911
        %v2993 = vmul.f32 %v2977, 0.3275911
        %v2994 = vmul.f32 %v2978, 0.3275911
        %v2995 = vmul.f32 %v2979, 0.3275911
        %v2996 = vmul.f32 %v2980, 0.3275911
        %v2997 = vmul.f32 %v2981, 0.3275911
        %v2998 = vmul.f32 %v2982, 0.3275911
        %v2999 = vmul.f32 %v2983, 0.3275911
        %v3000 = vmul.f32 %v2984, 0.3275911
        %v3001 = vmul.f32 %v2985, 0.3275911
        %v3002 = vadd.f32 %v2986, 1.0
        %v3003 = vadd.f32 %v2987, 1.0
        %v3004 = vadd.f32 %v2988, 1.0
        %v3005 = vadd.f32 %v2989, 1.0
        %v3006 = vadd.f32 %v2990, 1.0
        %v3007 = vadd.f32 %v2991, 1.0
        %v3008 = vadd.f32 %v2992, 1.0
        %v3009 = vadd.f32 %v2993, 1.0
        %v3010 = vadd.f32 %v2994, 1.0
        %v3011 = vadd.f32 %v2995, 1.0
        %v3012 = vadd.f32 %v2996, 1.0
        %v3013 = vadd.f32 %v2997, 1.0
        %v3014 = vadd.f32 %v2998, 1.0
        %v3015 = vadd.f32 %v2999, 1.0
        %v3016 = vadd.f32 %v3000, 1.0
        %v3017 = vadd.f32 %v3001, 1.0
        %v3018 = vrcp.pop %v3002
        %v3019 = vmul.f32 1.0, %v3018
        %v3020 = vrcp.pop %v3003
        %v3021 = vmul.f32 1.0, %v3020
        %v3022 = vrcp.pop %v3004
        %v3023 = vmul.f32 1.0, %v3022
        %v3024 = vrcp.pop %v3005
        %v3025 = vmul.f32 1.0, %v3024
        %v3026 = vrcp.pop %v3006
        %v3027 = vmul.f32 1.0, %v3026
        %v3028 = vrcp.pop %v3007
        %v3029 = vmul.f32 1.0, %v3028
        %v3030 = vrcp.pop %v3008
        %v3031 = vmul.f32 1.0, %v3030
        %v3032 = vrcp.pop %v3009
        %v3033 = vmul.f32 1.0, %v3032
        %v3034 = vrcp.pop %v3010
        %v3035 = vmul.f32 1.0, %v3034
        %v3036 = vrcp.pop %v3011
        %v3037 = vmul.f32 1.0, %v3036
        %v3038 = vrcp.pop %v3012
        %v3039 = vmul.f32 1.0, %v3038
        %v3040 = vrcp.pop %v3013
        %v3041 = vmul.f32 1.0, %v3040
        %v3042 = vrcp.pop %v3014
        %v3043 = vmul.f32 1.0, %v3042
        %v3044 = vrcp.pop %v3015
        %v3045 = vmul.f32 1.0, %v3044
        %v3046 = vrcp.pop %v3016
        %v3047 = vmul.f32 1.0, %v3046
        %v3048 = vrcp.pop %v3017
        %v3049 = vmul.f32 1.0, %v3048
        %v3050 = vmul.f32 %v3019, 1.0614054
        %v3051 = vmul.f32 %v3021, 1.0614054
        %v3052 = vmul.f32 %v3023, 1.0614054
        %v3053 = vmul.f32 %v3025, 1.0614054
        %v3054 = vmul.f32 %v3027, 1.0614054
        %v3055 = vmul.f32 %v3029, 1.0614054
        %v3056 = vmul.f32 %v3031, 1.0614054
        %v3057 = vmul.f32 %v3033, 1.0614054
        %v3058 = vmul.f32 %v3035, 1.0614054
        %v3059 = vmul.f32 %v3037, 1.0614054
        %v3060 = vmul.f32 %v3039, 1.0614054
        %v3061 = vmul.f32 %v3041, 1.0614054
        %v3062 = vmul.f32 %v3043, 1.0614054
        %v3063 = vmul.f32 %v3045, 1.0614054
        %v3064 = vmul.f32 %v3047, 1.0614054
        %v3065 = vmul.f32 %v3049, 1.0614054
        %v3066 = vadd.f32 %v3050, -1.4531521
        %v3067 = vadd.f32 %v3051, -1.4531521
        %v3068 = vadd.f32 %v3052, -1.4531521
        %v3069 = vadd.f32 %v3053, -1.4531521
        %v3070 = vadd.f32 %v3054, -1.4531521
        %v3071 = vadd.f32 %v3055, -1.4531521
        %v3072 = vadd.f32 %v3056, -1.4531521
        %v3073 = vadd.f32 %v3057, -1.4531521
        %v3074 = vadd.f32 %v3058, -1.4531521
        %v3075 = vadd.f32 %v3059, -1.4531521
        %v3076 = vadd.f32 %v3060, -1.4531521
        %v3077 = vadd.f32 %v3061, -1.4531521
        %v3078 = vadd.f32 %v3062, -1.4531521
        %v3079 = vadd.f32 %v3063, -1.4531521
        %v3080 = vadd.f32 %v3064, -1.4531521
        %v3081 = vadd.f32 %v3065, -1.4531521
        %v3082 = vmul.f32 %v3066, %v3019
        %v3083 = vmul.f32 %v3067, %v3021
        %v3084 = vmul.f32 %v3068, %v3023
        %v3085 = vmul.f32 %v3069, %v3025
        %v3086 = vmul.f32 %v3070, %v3027
        %v3087 = vmul.f32 %v3071, %v3029
        %v3088 = vmul.f32 %v3072, %v3031
        %v3089 = vmul.f32 %v3073, %v3033
        %v3090 = vmul.f32 %v3074, %v3035
        %v3091 = vmul.f32 %v3075, %v3037
        %v3092 = vmul.f32 %v3076, %v3039
        %v3093 = vmul.f32 %v3077, %v3041
        %v3094 = vmul.f32 %v3078, %v3043
        %v3095 = vmul.f32 %v3079, %v3045
        %v3096 = vmul.f32 %v3080, %v3047
        %v3097 = vmul.f32 %v3081, %v3049
        %v3098 = vadd.f32 %v3082, 1.4214138
        %v3099 = vadd.f32 %v3083, 1.4214138
        %v3100 = vadd.f32 %v3084, 1.4214138
        %v3101 = vadd.f32 %v3085, 1.4214138
        %v3102 = vadd.f32 %v3086, 1.4214138
        %v3103 = vadd.f32 %v3087, 1.4214138
        %v3104 = vadd.f32 %v3088, 1.4214138
        %v3105 = vadd.f32 %v3089, 1.4214138
        %v3106 = vadd.f32 %v3090, 1.4214138
        %v3107 = vadd.f32 %v3091, 1.4214138
        %v3108 = vadd.f32 %v3092, 1.4214138
        %v3109 = vadd.f32 %v3093, 1.4214138
        %v3110 = vadd.f32 %v3094, 1.4214138
        %v3111 = vadd.f32 %v3095, 1.4214138
        %v3112 = vadd.f32 %v3096, 1.4214138
        %v3113 = vadd.f32 %v3097, 1.4214138
        %v3114 = vmul.f32 %v3098, %v3019
        %v3115 = vmul.f32 %v3099, %v3021
        %v3116 = vmul.f32 %v3100, %v3023
        %v3117 = vmul.f32 %v3101, %v3025
        %v3118 = vmul.f32 %v3102, %v3027
        %v3119 = vmul.f32 %v3103, %v3029
        %v3120 = vmul.f32 %v3104, %v3031
        %v3121 = vmul.f32 %v3105, %v3033
        %v3122 = vmul.f32 %v3106, %v3035
        %v3123 = vmul.f32 %v3107, %v3037
        %v3124 = vmul.f32 %v3108, %v3039
        %v3125 = vmul.f32 %v3109, %v3041
        %v3126 = vmul.f32 %v3110, %v3043
        %v3127 = vmul.f32 %v3111, %v3045
        %v3128 = vmul.f32 %v3112, %v3047
        %v3129 = vmul.f32 %v3113, %v3049
        %v3130 = vadd.f32 %v3114, -0.28449672
        %v3131 = vadd.f32 %v3115, -0.28449672
        %v3132 = vadd.f32 %v3116, -0.28449672
        %v3133 = vadd.f32 %v3117, -0.28449672
        %v3134 = vadd.f32 %v3118, -0.28449672
        %v3135 = vadd.f32 %v3119, -0.28449672
        %v3136 = vadd.f32 %v3120, -0.28449672
        %v3137 = vadd.f32 %v3121, -0.28449672
        %v3138 = vadd.f32 %v3122, -0.28449672
        %v3139 = vadd.f32 %v3123, -0.28449672
        %v3140 = vadd.f32 %v3124, -0.28449672
        %v3141 = vadd.f32 %v3125, -0.28449672
        %v3142 = vadd.f32 %v3126, -0.28449672
        %v3143 = vadd.f32 %v3127, -0.28449672
        %v3144 = vadd.f32 %v3128, -0.28449672
        %v3145 = vadd.f32 %v3129, -0.28449672
        %v3146 = vmul.f32 %v3130, %v3019
        %v3147 = vmul.f32 %v3131, %v3021
        %v3148 = vmul.f32 %v3132, %v3023
        %v3149 = vmul.f32 %v3133, %v3025
        %v3150 = vmul.f32 %v3134, %v3027
        %v3151 = vmul.f32 %v3135, %v3029
        %v3152 = vmul.f32 %v3136, %v3031
        %v3153 = vmul.f32 %v3137, %v3033
        %v3154 = vmul.f32 %v3138, %v3035
        %v3155 = vmul.f32 %v3139, %v3037
        %v3156 = vmul.f32 %v3140, %v3039
        %v3157 = vmul.f32 %v3141, %v3041
        %v3158 = vmul.f32 %v3142, %v3043
        %v3159 = vmul.f32 %v3143, %v3045
        %v3160 = vmul.f32 %v3144, %v3047
        %v3161 = vmul.f32 %v3145, %v3049
        %v3162 = vadd.f32 %v3146, 0.2548296
        %v3163 = vadd.f32 %v3147, 0.2548296
        %v3164 = vadd.f32 %v3148, 0.2548296
        %v3165 = vadd.f32 %v3149, 0.2548296
        %v3166 = vadd.f32 %v3150, 0.2548296
        %v3167 = vadd.f32 %v3151, 0.2548296
        %v3168 = vadd.f32 %v3152, 0.2548296
        %v3169 = vadd.f32 %v3153, 0.2548296
        %v3170 = vadd.f32 %v3154, 0.2548296
        %v3171 = vadd.f32 %v3155, 0.2548296
        %v3172 = vadd.f32 %v3156, 0.2548296
        %v3173 = vadd.f32 %v3157, 0.2548296
        %v3174 = vadd.f32 %v3158, 0.2548296
        %v3175 = vadd.f32 %v3159, 0.2548296
        %v3176 = vadd.f32 %v3160, 0.2548296
        %v3177 = vadd.f32 %v3161, 0.2548296
        %v3178 = vmul.f32 %v3162, %v3019
        %v3179 = vmul.f32 %v3163, %v3021
        %v3180 = vmul.f32 %v3164, %v3023
        %v3181 = vmul.f32 %v3165, %v3025
        %v3182 = vmul.f32 %v3166, %v3027
        %v3183 = vmul.f32 %v3167, %v3029
        %v3184 = vmul.f32 %v3168, %v3031
        %v3185 = vmul.f32 %v3169, %v3033
        %v3186 = vmul.f32 %v3170, %v3035
        %v3187 = vmul.f32 %v3171, %v3037
        %v3188 = vmul.f32 %v3172, %v3039
        %v3189 = vmul.f32 %v3173, %v3041
        %v3190 = vmul.f32 %v3174, %v3043
        %v3191 = vmul.f32 %v3175, %v3045
        %v3192 = vmul.f32 %v3176, %v3047
        %v3193 = vmul.f32 %v3177, %v3049
        %v3194 = vsub.f32 0.0, %v2970
        %v3195 = vsub.f32 0.0, %v2971
        %v3196 = vsub.f32 0.0, %v2972
        %v3197 = vsub.f32 0.0, %v2973
        %v3198 = vsub.f32 0.0, %v2974
        %v3199 = vsub.f32 0.0, %v2975
        %v3200 = vsub.f32 0.0, %v2976
        %v3201 = vsub.f32 0.0, %v2977
        %v3202 = vsub.f32 0.0, %v2978
        %v3203 = vsub.f32 0.0, %v2979
        %v3204 = vsub.f32 0.0, %v2980
        %v3205 = vsub.f32 0.0, %v2981
        %v3206 = vsub.f32 0.0, %v2982
        %v3207 = vsub.f32 0.0, %v2983
        %v3208 = vsub.f32 0.0, %v2984
        %v3209 = vsub.f32 0.0, %v2985
        %v3210 = vmul.f32 %v3194, %v2970
        %v3211 = vmul.f32 %v3195, %v2971
        %v3212 = vmul.f32 %v3196, %v2972
        %v3213 = vmul.f32 %v3197, %v2973
        %v3214 = vmul.f32 %v3198, %v2974
        %v3215 = vmul.f32 %v3199, %v2975
        %v3216 = vmul.f32 %v3200, %v2976
        %v3217 = vmul.f32 %v3201, %v2977
        %v3218 = vmul.f32 %v3202, %v2978
        %v3219 = vmul.f32 %v3203, %v2979
        %v3220 = vmul.f32 %v3204, %v2980
        %v3221 = vmul.f32 %v3205, %v2981
        %v3222 = vmul.f32 %v3206, %v2982
        %v3223 = vmul.f32 %v3207, %v2983
        %v3224 = vmul.f32 %v3208, %v2984
        %v3225 = vmul.f32 %v3209, %v2985
        %v3226 = vmul.f32 %v3210, 1.442695
        %v3227 = vpow.pop %v3226
        %v3228 = vmul.f32 %v3211, 1.442695
        %v3229 = vpow.pop %v3228
        %v3230 = vmul.f32 %v3212, 1.442695
        %v3231 = vpow.pop %v3230
        %v3232 = vmul.f32 %v3213, 1.442695
        %v3233 = vpow.pop %v3232
        %v3234 = vmul.f32 %v3214, 1.442695
        %v3235 = vpow.pop %v3234
        %v3236 = vmul.f32 %v3215, 1.442695
        %v3237 = vpow.pop %v3236
        %v3238 = vmul.f32 %v3216, 1.442695
        %v3239 = vpow.pop %v3238
        %v3240 = vmul.f32 %v3217, 1.442695
        %v3241 = vpow.pop %v3240
        %v3242 = vmul.f32 %v3218, 1.442695
        %v3243 = vpow.pop %v3242
        %v3244 = vmul.f32 %v3219, 1.442695
        %v3245 = vpow.pop %v3244
        %v3246 = vmul.f32 %v3220, 1.442695
        %v3247 = vpow.pop %v3246
        %v3248 = vmul.f32 %v3221, 1.442695
        %v3249 = vpow.pop %v3248
        %v3250 = vmul.f32 %v3222, 1.442695
        %v3251 = vpow.pop %v3250
        %v3252 = vmul.f32 %v3223, 1.442695
        %v3253 = vpow.pop %v3252
        %v3254 = vmul.f32 %v3224, 1.442695
        %v3255 = vpow.pop %v3254
        %v3256 = vmul.f32 %v3225, 1.442695
        %v3257 = vpow.pop %v3256
        %v3258 = vmul.f32 %v3178, %v3227
        %v3259 = vmul.f32 %v3179, %v3229
        %v3260 = vmul.f32 %v3180, %v3231
        %v3261 = vmul.f32 %v3181, %v3233
        %v3262 = vmul.f32 %v3182, %v3235
        %v3263 = vmul.f32 %v3183, %v3237
        %v3264 = vmul.f32 %v3184, %v3239
        %v3265 = vmul.f32 %v3185, %v3241
        %v3266 = vmul.f32 %v3186, %v3243
        %v3267 = vmul.f32 %v3187, %v3245
        %v3268 = vmul.f32 %v3188, %v3247
        %v3269 = vmul.f32 %v3189, %v3249
        %v3270 = vmul.f32 %v3190, %v3251
        %v3271 = vmul.f32 %v3191, %v3253
        %v3272 = vmul.f32 %v3192, %v3255
        %v3273 = vmul.f32 %v3193, %v3257
        %v3274 = vsub.f32 1.0, %v3258
        %v3275 = vsub.f32 1.0, %v3259
        %v3276 = vsub.f32 1.0, %v3260
        %v3277 = vsub.f32 1.0, %v3261
        %v3278 = vsub.f32 1.0, %v3262
        %v3279 = vsub.f32 1.0, %v3263
        %v3280 = vsub.f32 1.0, %v3264
        %v3281 = vsub.f32 1.0, %v3265
        %v3282 = vsub.f32 1.0, %v3266
        %v3283 = vsub.f32 1.0, %v3267
        %v3284 = vsub.f32 1.0, %v3268
        %v3285 = vsub.f32 1.0, %v3269
        %v3286 = vsub.f32 1.0, %v3270
        %v3287 = vsub.f32 1.0, %v3271
        %v3288 = vsub.f32 1.0, %v3272
        %v3289 = vsub.f32 1.0, %v3273
        %v3290 = vmul.f32 %v2954, %v3274
        %v3291 = vmul.f32 %v2955, %v3275
        %v3292 = vmul.f32 %v2956, %v3276
        %v3293 = vmul.f32 %v2957, %v3277
        %v3294 = vmul.f32 %v2958, %v3278
        %v3295 = vmul.f32 %v2959, %v3279
        %v3296 = vmul.f32 %v2960, %v3280
        %v3297 = vmul.f32 %v2961, %v3281
        %v3298 = vmul.f32 %v2962, %v3282
        %v3299 = vmul.f32 %v2963, %v3283
        %v3300 = vmul.f32 %v2964, %v3284
        %v3301 = vmul.f32 %v2965, %v3285
        %v3302 = vmul.f32 %v2966, %v3286
        %v3303 = vmul.f32 %v2967, %v3287
        %v3304 = vmul.f32 %v2968, %v3288
        %v3305 = vmul.f32 %v2969, %v3289
        %v3306 = vadd.f32 %v3290, 1.0
        %v3307 = vadd.f32 %v3291, 1.0
        %v3308 = vadd.f32 %v3292, 1.0
        %v3309 = vadd.f32 %v3293, 1.0
        %v3310 = vadd.f32 %v3294, 1.0
        %v3311 = vadd.f32 %v3295, 1.0
        %v3312 = vadd.f32 %v3296, 1.0
        %v3313 = vadd.f32 %v3297, 1.0
        %v3314 = vadd.f32 %v3298, 1.0
        %v3315 = vadd.f32 %v3299, 1.0
        %v3316 = vadd.f32 %v3300, 1.0
        %v3317 = vadd.f32 %v3301, 1.0
        %v3318 = vadd.f32 %v3302, 1.0
        %v3319 = vadd.f32 %v3303, 1.0
        %v3320 = vadd.f32 %v3304, 1.0
        %v3321 = vadd.f32 %v3305, 1.0
        %v3322 = vmul.f32 %v2906, %v3306
        %v3323 = vmul.f32 %v2907, %v3307
        %v3324 = vmul.f32 %v2908, %v3308
        %v3325 = vmul.f32 %v2909, %v3309
        %v3326 = vmul.f32 %v2910, %v3310
        %v3327 = vmul.f32 %v2911, %v3311
        %v3328 = vmul.f32 %v2912, %v3312
        %v3329 = vmul.f32 %v2913, %v3313
        %v3330 = vmul.f32 %v2914, %v3314
        %v3331 = vmul.f32 %v2915, %v3315
        %v3332 = vmul.f32 %v2916, %v3316
        %v3333 = vmul.f32 %v2917, %v3317
        %v3334 = vmul.f32 %v2918, %v3318
        %v3335 = vmul.f32 %v2919, %v3319
        %v3336 = vmul.f32 %v2920, %v3320
        %v3337 = vmul.f32 %v2921, %v3321
        %v3338 = vld [vmem:[%s4] sm:$0xff]
        %v3339 = vld [vmem:[%s4 + $0x8] sm:$0xff]
        %v3340 = vld [vmem:[%s4 + $0x10] sm:$0xff]
        %v3341 = vld [vmem:[%s4 + $0x18] sm:$0xff]
        %v3342 = vld [vmem:[%s5] sm:$0xff]
        %v3343 = vld [vmem:[%s5 + $0x8] sm:$0xff]
        %v3344 = vld [vmem:[%s5 + $0x10] sm:$0xff]
        %v3345 = vld [vmem:[%s5 + $0x18] sm:$0xff]
        %3347 = vset.pattern.permute.xlu0 0
        %3348 = vperm.xlu0 %3347, %v3342
        %v3349 = vpop.permute.xlu0 %3348
        %3352 = vset.pattern.permute.xlu0 0
        %3353 = vperm.xlu0 %3352, %v3343
        %v3354 = vpop.permute.xlu0 %3353
        %3357 = vset.pattern.permute.xlu0 0
        %3358 = vperm.xlu0 %3357, %v3344
        %v3359 = vpop.permute.xlu0 %3358
        %3362 = vset.pattern.permute.xlu0 0
        %3363 = vperm.xlu0 %3362, %v3345
        %v3364 = vpop.permute.xlu0 %3363
        %vm3366 = vcmask 523264
        %v3368 = vsel %vm3366, %v3338, 0
        %v3371 = vsel %vm3366, %v3339, 0
        %v3374 = vsel %vm3366, %v3340, 0
        %v3377 = vsel %vm3366, %v3341, 0
        %3379 = vmatprep.subr.mxu0 0.0
        %3380 = vmatpush1.msra.mxu0 0.0
        %3381 = vmatprep.subr.mxu0 0.0
        %3382 = vmatpush1.msra.mxu0 0.0
        %3383 = vmatprep.subr.mxu0 0.0
        %3384 = vmatpush1.msra.mxu0 0.0
        %3385 = vmatprep.subr.mxu0 0.0
        %3386 = vmatpush1.msra.mxu0 0.0
        %3387 = vmatprep.subr.mxu0 0.0
        %3388 = vmatpush1.msra.mxu0 0.0
        %3389 = vmatprep.subr.mxu0 0.0
        %3390 = vmatpush1.msra.mxu0 0.0
        %3391 = vmatprep.subr.mxu0 0.0
        %3392 = vmatpush1.msra.mxu0 0.0
        %3393 = vmatprep.subr.mxu0 0.0
        %3394 = vmatpush1.msra.mxu0 0.0
        %3395 = vmatprep.subr.mxu0 %v3337
        %3396 = vmatpush1.msra.mxu0 %v3336
        %3397 = vmatprep.subr.mxu0 %v3335
        %3398 = vmatpush1.msra.mxu0 %v3334
        %3399 = vmatprep.subr.mxu0 %v3333
        %3400 = vmatpush1.msra.mxu0 %v3332
        %3401 = vmatprep.subr.mxu0 %v3331
        %3402 = vmatpush1.msra.mxu0 %v3330
        %3403 = vmatprep.subr.mxu0 %v3329
        %3404 = vmatpush1.msra.mxu0 %v3328
        %3405 = vmatprep.subr.mxu0 %v3327
        %3406 = vmatpush1.msra.mxu0 %v3326
        %3407 = vmatprep.subr.mxu0 %v3325
        %3408 = vmatpush1.msra.mxu0 %v3324
        %3409 = vmatprep.subr.mxu0 %v3323
        %3410 = vmatpush1.msra.mxu0 %v3322
        %3411 = vmatprep.subr.mxu0 0.0
        %3412 = vmatpush2.msra.mxu0 0.0
        %3413 = vmatprep.subr.mxu0 0.0
        %3414 = vmatpush2.msra.mxu0 0.0
        %3415 = vmatprep.subr.mxu0 0.0
        %3416 = vmatpush2.msra.mxu0 0.0
        %3417 = vmatprep.subr.mxu0 0.0
        %3418 = vmatpush2.msra.mxu0 0.0
        %3419 = vmatprep.subr.mxu0 0.0
        %3420 = vmatpush2.msra.mxu0 0.0
        %3421 = vmatprep.subr.mxu0 0.0
        %3422 = vmatpush2.msra.mxu0 0.0
        %3423 = vmatprep.subr.mxu0 0.0
        %3424 = vmatpush2.msra.mxu0 0.0
        %3425 = vmatprep.subr.mxu0 0.0
        %3426 = vmatpush2.msra.mxu0 0.0
        %3427 = vmatprep.subr.mxu0 0.0
        %3428 = vmatpush2.msra.mxu0 0.0
        %3429 = vmatprep.subr.mxu0 0.0
        %3430 = vmatpush2.msra.mxu0 0.0
        %3431 = vmatprep.subr.mxu0 0.0
        %3432 = vmatpush2.msra.mxu0 0.0
        %3433 = vmatprep.subr.mxu0 0.0
        %3434 = vmatpush2.msra.mxu0 0.0
        %3435 = vmatprep.subr.mxu0 0.0
        %3436 = vmatpush2.msra.mxu0 0.0
        %3437 = vmatprep.subr.mxu0 0.0
        %3438 = vmatpush2.msra.mxu0 0.0
        %3439 = vmatprep.subr.mxu0 0.0
        %3440 = vmatpush2.msra.mxu0 0.0
        %3441 = vmatprep.subr.mxu0 0.0
        %3442 = vmatpush2.msra.mxu0 0.0
        %3443 = vmatprep.mubr.f32.mxu0 0.0
        %3444 = vmatmul.mubr.f32.gmra.mxu0 %v3368
        %v3445 = vpop.f32.mrf.mxu0
        %v3446 = vadd.f32 %v3349, %v3445
        %v3447 = vpop.f32.mrf.mxu0
        %v3448 = vadd.f32 %v3349, %v3447
        %3449 = vmatprep.mubr.f32.mxu0 0.0
        %3450 = vmatmul.mubr.f32.gmra.mxu0 %v3371
        %v3451 = vpop.f32.mrf.mxu0
        %v3452 = vadd.f32 %v3354, %v3451
        %v3453 = vpop.f32.mrf.mxu0
        %v3454 = vadd.f32 %v3354, %v3453
        %3455 = vmatprep.mubr.f32.mxu0 0.0
        %3456 = vmatmul.mubr.f32.gmra.mxu0 %v3374
        %v3457 = vpop.f32.mrf.mxu0
        %v3458 = vadd.f32 %v3359, %v3457
        %v3459 = vpop.f32.mrf.mxu0
        %v3460 = vadd.f32 %v3359, %v3459
        %3461 = vmatprep.mubr.f32.mxu0 0.0
        %3462 = vmatmul.mubr.f32.gmra.mxu0 %v3377
        %v3463 = vpop.f32.mrf.mxu0
        %v3464 = vadd.f32 %v3364, %v3463
        %v3465 = vpop.f32.mrf.mxu0
        %v3466 = vadd.f32 %v3364, %v3465
        %3467 = vdwg.mxu0
        %s3468 = scalar_lea.vmem %s1, 832
        %v3469 = vld [vmem:[%s3468] sm:$0xff]
        %v3470 = vld [vmem:[%s3468 + $0x8] sm:$0xff]
        %v3471 = vld [vmem:[%s3468 + $0x10] sm:$0xff]
        %v3472 = vld [vmem:[%s3468 + $0x18] sm:$0xff]
        %3474 = vset.pattern.permute.xlu0 0
        %3475 = vperm.xlu0 %3474, %v3469
        %v3476 = vpop.permute.xlu0 %3475
        %3479 = vset.pattern.permute.xlu0 0
        %3480 = vperm.xlu0 %3479, %v3470
        %v3481 = vpop.permute.xlu0 %3480
        %3484 = vset.pattern.permute.xlu0 0
        %3485 = vperm.xlu0 %3484, %v3471
        %v3486 = vpop.permute.xlu0 %3485
        %3489 = vset.pattern.permute.xlu0 0
        %3490 = vperm.xlu0 %3489, %v3472
        %v3491 = vpop.permute.xlu0 %3490
        %v3493 = vmul.f32 %v3446, %v3476
        %v3494 = vmul.f32 %v3448, %v3476
        %v3495 = vmul.f32 %v3452, %v3481
        %v3496 = vmul.f32 %v3454, %v3481
        %v3497 = vmul.f32 %v3458, %v3486
        %v3498 = vmul.f32 %v3460, %v3486
        %v3499 = vmul.f32 %v3464, %v3491
        %v3500 = vmul.f32 %v3466, %v3491
        %v3501 = vadd.f32 %v3493, %v385
        %v3502 = vadd.f32 %v3494, %v386
        %v3503 = vadd.f32 %v3495, %v387
        %v3504 = vadd.f32 %v3496, %v388
        %v3505 = vadd.f32 %v3497, %v389
        %v3506 = vadd.f32 %v3498, %v390
        %v3507 = vadd.f32 %v3499, %v391
        %v3508 = vadd.f32 %v3500, %v392
        %3509 = vrot.lane.b32.xlu0 %v3501, 17
        %v3510 = vpop.permute.xlu0 %3509
        %3511 = vrot.lane.b32.xlu0 %v3503, 17
        %v3512 = vpop.permute.xlu0 %3511
        %3513 = vrot.lane.b32.xlu0 %v3505, 17
        %v3514 = vpop.permute.xlu0 %3513
        %3515 = vrot.lane.b32.xlu0 %v3507, 17
        %v3516 = vpop.permute.xlu0 %3515
        %3517 = vrot.lane.b32.xlu0 %v3502, 17
        %v3518 = vpop.permute.xlu0 %3517
        %3519 = vrot.lane.b32.xlu0 %v3504, 17
        %v3520 = vpop.permute.xlu0 %3519
        %3521 = vrot.lane.b32.xlu0 %v3506, 17
        %v3522 = vpop.permute.xlu0 %3521
        %3523 = vrot.lane.b32.xlu0 %v3508, 17
        %v3524 = vpop.permute.xlu0 %3523
        %v3525 = vsel %vm411, %v3510, %v3518
        %v3526 = vsel %vm411, %v3512, %v3520
        %v3527 = vsel %vm411, %v3514, %v3522
        %v3528 = vsel %vm411, %v3516, %v3524
        %v3529 = vsel %vm411, %v3518, %v3510
        %v3530 = vsel %vm411, %v3520, %v3512
        %v3531 = vsel %vm411, %v3522, %v3514
        %v3532 = vsel %vm411, %v3524, %v3516
        %v3533 = vmul.f32 %v3529, %v425
        %v3534 = vmul.f32 %v3525, %v429
        %v3535 = vmul.f32 %v3530, %v425
        %v3536 = vmul.f32 %v3526, %v429
        %v3537 = vmul.f32 %v3531, %v425
        %v3538 = vmul.f32 %v3527, %v429
        %v3539 = vmul.f32 %v3532, %v425
        %v3540 = vmul.f32 %v3528, %v429
        %s3541 = scalar_lea.vmem %s1, 864
        %v3542 = vld [vmem:[%s3541] sm:$0xff]
        %v3543 = vld [vmem:[%s3541 + $0x8] sm:$0xff]
        %v3544 = vld [vmem:[%s3541 + $0x10] sm:$0xff]
        %v3545 = vld [vmem:[%s3541 + $0x18] sm:$0xff]
        %3547 = vset.pattern.permute.xlu0 0
        %3548 = vperm.xlu0 %3547, %v3542
        %v3549 = vpop.permute.xlu0 %3548
        %3552 = vset.pattern.permute.xlu0 0
        %3553 = vperm.xlu0 %3552, %v3543
        %v3554 = vpop.permute.xlu0 %3553
        %3557 = vset.pattern.permute.xlu0 0
        %3558 = vperm.xlu0 %3557, %v3544
        %v3559 = vpop.permute.xlu0 %3558
        %3562 = vset.pattern.permute.xlu0 0
        %3563 = vperm.xlu0 %3562, %v3545
        %v3564 = vpop.permute.xlu0 %3563
        %v3566 = vmul.f32 %v3533, %v3549
        %v3567 = vmul.f32 %v3534, %v3549
        %v3568 = vmul.f32 %v3535, %v3554
        %v3569 = vmul.f32 %v3536, %v3554
        %v3570 = vmul.f32 %v3537, %v3559
        %v3571 = vmul.f32 %v3538, %v3559
        %v3572 = vmul.f32 %v3539, %v3564
        %v3573 = vmul.f32 %v3540, %v3564
        %3574 = vrot.lane.b32.xlu0 %v3501, 16
        %v3575 = vpop.permute.xlu0 %3574
        %3576 = vrot.lane.b32.xlu0 %v3503, 16
        %v3577 = vpop.permute.xlu0 %3576
        %3578 = vrot.lane.b32.xlu0 %v3505, 16
        %v3579 = vpop.permute.xlu0 %3578
        %3580 = vrot.lane.b32.xlu0 %v3507, 16
        %v3581 = vpop.permute.xlu0 %3580
        %3582 = vrot.lane.b32.xlu0 %v3502, 16
        %v3583 = vpop.permute.xlu0 %3582
        %3584 = vrot.lane.b32.xlu0 %v3504, 16
        %v3585 = vpop.permute.xlu0 %3584
        %3586 = vrot.lane.b32.xlu0 %v3506, 16
        %v3587 = vpop.permute.xlu0 %3586
        %3588 = vrot.lane.b32.xlu0 %v3508, 16
        %v3589 = vpop.permute.xlu0 %3588
        %v3590 = vsel %vm488, %v3575, %v3583
        %v3591 = vsel %vm488, %v3577, %v3585
        %v3592 = vsel %vm488, %v3579, %v3587
        %v3593 = vsel %vm488, %v3581, %v3589
        %v3594 = vsel %vm488, %v3583, %v3575
        %v3595 = vsel %vm488, %v3585, %v3577
        %v3596 = vsel %vm488, %v3587, %v3579
        %v3597 = vsel %vm488, %v3589, %v3581
        %v3598 = vmul.f32 %v3594, %v503
        %v3599 = vmul.f32 %v3590, %v507
        %v3600 = vmul.f32 %v3595, %v503
        %v3601 = vmul.f32 %v3591, %v507
        %v3602 = vmul.f32 %v3596, %v503
        %v3603 = vmul.f32 %v3592, %v507
        %v3604 = vmul.f32 %v3597, %v503
        %v3605 = vmul.f32 %v3593, %v507
        %s3606 = scalar_lea.vmem %s1, 896
        %v3607 = vld [vmem:[%s3606] sm:$0xff]
        %v3608 = vld [vmem:[%s3606 + $0x8] sm:$0xff]
        %v3609 = vld [vmem:[%s3606 + $0x10] sm:$0xff]
        %v3610 = vld [vmem:[%s3606 + $0x18] sm:$0xff]
        %3612 = vset.pattern.permute.xlu0 0
        %3613 = vperm.xlu0 %3612, %v3607
        %v3614 = vpop.permute.xlu0 %3613
        %3617 = vset.pattern.permute.xlu0 0
        %3618 = vperm.xlu0 %3617, %v3608
        %v3619 = vpop.permute.xlu0 %3618
        %3622 = vset.pattern.permute.xlu0 0
        %3623 = vperm.xlu0 %3622, %v3609
        %v3624 = vpop.permute.xlu0 %3623
        %3627 = vset.pattern.permute.xlu0 0
        %3628 = vperm.xlu0 %3627, %v3610
        %v3629 = vpop.permute.xlu0 %3628
        %v3631 = vmul.f32 %v3598, %v3614
        %v3632 = vmul.f32 %v3599, %v3614
        %v3633 = vmul.f32 %v3600, %v3619
        %v3634 = vmul.f32 %v3601, %v3619
        %v3635 = vmul.f32 %v3602, %v3624
        %v3636 = vmul.f32 %v3603, %v3624
        %v3637 = vmul.f32 %v3604, %v3629
        %v3638 = vmul.f32 %v3605, %v3629
        %v3639 = vadd.f32 %v3566, %v3631
        %v3640 = vadd.f32 %v3567, %v3632
        %v3641 = vadd.f32 %v3568, %v3633
        %v3642 = vadd.f32 %v3569, %v3634
        %v3643 = vadd.f32 %v3570, %v3635
        %v3644 = vadd.f32 %v3571, %v3636
        %v3645 = vadd.f32 %v3572, %v3637
        %v3646 = vadd.f32 %v3573, %v3638
        %3647 = vrot.lane.b32.xlu0 %v3501, 15
        %v3648 = vpop.permute.xlu0 %3647
        %3649 = vrot.lane.b32.xlu0 %v3503, 15
        %v3650 = vpop.permute.xlu0 %3649
        %3651 = vrot.lane.b32.xlu0 %v3505, 15
        %v3652 = vpop.permute.xlu0 %3651
        %3653 = vrot.lane.b32.xlu0 %v3507, 15
        %v3654 = vpop.permute.xlu0 %3653
        %3655 = vrot.lane.b32.xlu0 %v3502, 15
        %v3656 = vpop.permute.xlu0 %3655
        %3657 = vrot.lane.b32.xlu0 %v3504, 15
        %v3658 = vpop.permute.xlu0 %3657
        %3659 = vrot.lane.b32.xlu0 %v3506, 15
        %v3660 = vpop.permute.xlu0 %3659
        %3661 = vrot.lane.b32.xlu0 %v3508, 15
        %v3662 = vpop.permute.xlu0 %3661
        %v3663 = vsel %vm575, %v3648, %v3656
        %v3664 = vsel %vm575, %v3650, %v3658
        %v3665 = vsel %vm575, %v3652, %v3660
        %v3666 = vsel %vm575, %v3654, %v3662
        %v3667 = vsel %vm575, %v3656, %v3648
        %v3668 = vsel %vm575, %v3658, %v3650
        %v3669 = vsel %vm575, %v3660, %v3652
        %v3670 = vsel %vm575, %v3662, %v3654
        %v3671 = vmul.f32 %v3667, %v590
        %v3672 = vmul.f32 %v3663, %v594
        %v3673 = vmul.f32 %v3668, %v590
        %v3674 = vmul.f32 %v3664, %v594
        %v3675 = vmul.f32 %v3669, %v590
        %v3676 = vmul.f32 %v3665, %v594
        %v3677 = vmul.f32 %v3670, %v590
        %v3678 = vmul.f32 %v3666, %v594
        %s3679 = scalar_lea.vmem %s1, 928
        %v3680 = vld [vmem:[%s3679] sm:$0xff]
        %v3681 = vld [vmem:[%s3679 + $0x8] sm:$0xff]
        %v3682 = vld [vmem:[%s3679 + $0x10] sm:$0xff]
        %v3683 = vld [vmem:[%s3679 + $0x18] sm:$0xff]
        %3685 = vset.pattern.permute.xlu0 0
        %3686 = vperm.xlu0 %3685, %v3680
        %v3687 = vpop.permute.xlu0 %3686
        %3690 = vset.pattern.permute.xlu0 0
        %3691 = vperm.xlu0 %3690, %v3681
        %v3692 = vpop.permute.xlu0 %3691
        %3695 = vset.pattern.permute.xlu0 0
        %3696 = vperm.xlu0 %3695, %v3682
        %v3697 = vpop.permute.xlu0 %3696
        %3700 = vset.pattern.permute.xlu0 0
        %3701 = vperm.xlu0 %3700, %v3683
        %v3702 = vpop.permute.xlu0 %3701
        %v3704 = vmul.f32 %v3671, %v3687
        %v3705 = vmul.f32 %v3672, %v3687
        %v3706 = vmul.f32 %v3673, %v3692
        %v3707 = vmul.f32 %v3674, %v3692
        %v3708 = vmul.f32 %v3675, %v3697
        %v3709 = vmul.f32 %v3676, %v3697
        %v3710 = vmul.f32 %v3677, %v3702
        %v3711 = vmul.f32 %v3678, %v3702
        %v3712 = vadd.f32 %v3639, %v3704
        %v3713 = vadd.f32 %v3640, %v3705
        %v3714 = vadd.f32 %v3641, %v3706
        %v3715 = vadd.f32 %v3642, %v3707
        %v3716 = vadd.f32 %v3643, %v3708
        %v3717 = vadd.f32 %v3644, %v3709
        %v3718 = vadd.f32 %v3645, %v3710
        %v3719 = vadd.f32 %v3646, %v3711
        %3720 = vrot.lane.b32.xlu0 %v3501, 1
        %v3721 = vpop.permute.xlu0 %3720
        %3722 = vrot.lane.b32.xlu0 %v3503, 1
        %v3723 = vpop.permute.xlu0 %3722
        %3724 = vrot.lane.b32.xlu0 %v3505, 1
        %v3725 = vpop.permute.xlu0 %3724
        %3726 = vrot.lane.b32.xlu0 %v3507, 1
        %v3727 = vpop.permute.xlu0 %3726
        %3728 = vrot.lane.b32.xlu0 %v3502, 1
        %v3729 = vpop.permute.xlu0 %3728
        %3730 = vrot.lane.b32.xlu0 %v3504, 1
        %v3731 = vpop.permute.xlu0 %3730
        %3732 = vrot.lane.b32.xlu0 %v3506, 1
        %v3733 = vpop.permute.xlu0 %3732
        %3734 = vrot.lane.b32.xlu0 %v3508, 1
        %v3735 = vpop.permute.xlu0 %3734
        %v3736 = vsel %vm662, %v3721, %v3729
        %v3737 = vsel %vm662, %v3723, %v3731
        %v3738 = vsel %vm662, %v3725, %v3733
        %v3739 = vsel %vm662, %v3727, %v3735
        %v3740 = vsel %vm662, %v3729, %v3721
        %v3741 = vsel %vm662, %v3731, %v3723
        %v3742 = vsel %vm662, %v3733, %v3725
        %v3743 = vsel %vm662, %v3735, %v3727
        %v3744 = vmul.f32 %v3740, %v677
        %v3745 = vmul.f32 %v3736, %v681
        %v3746 = vmul.f32 %v3741, %v677
        %v3747 = vmul.f32 %v3737, %v681
        %v3748 = vmul.f32 %v3742, %v677
        %v3749 = vmul.f32 %v3738, %v681
        %v3750 = vmul.f32 %v3743, %v677
        %v3751 = vmul.f32 %v3739, %v681
        %s3752 = scalar_lea.vmem %s1, 960
        %v3753 = vld [vmem:[%s3752] sm:$0xff]
        %v3754 = vld [vmem:[%s3752 + $0x8] sm:$0xff]
        %v3755 = vld [vmem:[%s3752 + $0x10] sm:$0xff]
        %v3756 = vld [vmem:[%s3752 + $0x18] sm:$0xff]
        %3758 = vset.pattern.permute.xlu0 0
        %3759 = vperm.xlu0 %3758, %v3753
        %v3760 = vpop.permute.xlu0 %3759
        %3763 = vset.pattern.permute.xlu0 0
        %3764 = vperm.xlu0 %3763, %v3754
        %v3765 = vpop.permute.xlu0 %3764
        %3768 = vset.pattern.permute.xlu0 0
        %3769 = vperm.xlu0 %3768, %v3755
        %v3770 = vpop.permute.xlu0 %3769
        %3773 = vset.pattern.permute.xlu0 0
        %3774 = vperm.xlu0 %3773, %v3756
        %v3775 = vpop.permute.xlu0 %3774
        %v3777 = vmul.f32 %v3744, %v3760
        %v3778 = vmul.f32 %v3745, %v3760
        %v3779 = vmul.f32 %v3746, %v3765
        %v3780 = vmul.f32 %v3747, %v3765
        %v3781 = vmul.f32 %v3748, %v3770
        %v3782 = vmul.f32 %v3749, %v3770
        %v3783 = vmul.f32 %v3750, %v3775
        %v3784 = vmul.f32 %v3751, %v3775
        %v3785 = vadd.f32 %v3712, %v3777
        %v3786 = vadd.f32 %v3713, %v3778
        %v3787 = vadd.f32 %v3714, %v3779
        %v3788 = vadd.f32 %v3715, %v3780
        %v3789 = vadd.f32 %v3716, %v3781
        %v3790 = vadd.f32 %v3717, %v3782
        %v3791 = vadd.f32 %v3718, %v3783
        %v3792 = vadd.f32 %v3719, %v3784
        %v3793 = vmul.f32 %v3501, %v739
        %v3794 = vmul.f32 %v3502, %v743
        %v3795 = vmul.f32 %v3503, %v739
        %v3796 = vmul.f32 %v3504, %v743
        %v3797 = vmul.f32 %v3505, %v739
        %v3798 = vmul.f32 %v3506, %v743
        %v3799 = vmul.f32 %v3507, %v739
        %v3800 = vmul.f32 %v3508, %v743
        %s3801 = scalar_lea.vmem %s1, 992
        %v3802 = vld [vmem:[%s3801] sm:$0xff]
        %v3803 = vld [vmem:[%s3801 + $0x8] sm:$0xff]
        %v3804 = vld [vmem:[%s3801 + $0x10] sm:$0xff]
        %v3805 = vld [vmem:[%s3801 + $0x18] sm:$0xff]
        %3807 = vset.pattern.permute.xlu0 0
        %3808 = vperm.xlu0 %3807, %v3802
        %v3809 = vpop.permute.xlu0 %3808
        %3812 = vset.pattern.permute.xlu0 0
        %3813 = vperm.xlu0 %3812, %v3803
        %v3814 = vpop.permute.xlu0 %3813
        %3817 = vset.pattern.permute.xlu0 0
        %3818 = vperm.xlu0 %3817, %v3804
        %v3819 = vpop.permute.xlu0 %3818
        %3822 = vset.pattern.permute.xlu0 0
        %3823 = vperm.xlu0 %3822, %v3805
        %v3824 = vpop.permute.xlu0 %3823
        %v3826 = vmul.f32 %v3793, %v3809
        %v3827 = vmul.f32 %v3794, %v3809
        %v3828 = vmul.f32 %v3795, %v3814
        %v3829 = vmul.f32 %v3796, %v3814
        %v3830 = vmul.f32 %v3797, %v3819
        %v3831 = vmul.f32 %v3798, %v3819
        %v3832 = vmul.f32 %v3799, %v3824
        %v3833 = vmul.f32 %v3800, %v3824
        %v3834 = vadd.f32 %v3785, %v3826
        %v3835 = vadd.f32 %v3786, %v3827
        %v3836 = vadd.f32 %v3787, %v3828
        %v3837 = vadd.f32 %v3788, %v3829
        %v3838 = vadd.f32 %v3789, %v3830
        %v3839 = vadd.f32 %v3790, %v3831
        %v3840 = vadd.f32 %v3791, %v3832
        %v3841 = vadd.f32 %v3792, %v3833
        %3842 = vrot.lane.b32.xlu0 %v3501, 127
        %v3843 = vpop.permute.xlu0 %3842
        %3844 = vrot.lane.b32.xlu0 %v3503, 127
        %v3845 = vpop.permute.xlu0 %3844
        %3846 = vrot.lane.b32.xlu0 %v3505, 127
        %v3847 = vpop.permute.xlu0 %3846
        %3848 = vrot.lane.b32.xlu0 %v3507, 127
        %v3849 = vpop.permute.xlu0 %3848
        %3850 = vrot.lane.b32.xlu0 %v3502, 127
        %v3851 = vpop.permute.xlu0 %3850
        %3852 = vrot.lane.b32.xlu0 %v3504, 127
        %v3853 = vpop.permute.xlu0 %3852
        %3854 = vrot.lane.b32.xlu0 %v3506, 127
        %v3855 = vpop.permute.xlu0 %3854
        %3856 = vrot.lane.b32.xlu0 %v3508, 127
        %v3857 = vpop.permute.xlu0 %3856
        %v3858 = vsel %vm811, %v3843, %v3851
        %v3859 = vsel %vm811, %v3845, %v3853
        %v3860 = vsel %vm811, %v3847, %v3855
        %v3861 = vsel %vm811, %v3849, %v3857
        %v3862 = vsel %vm811, %v3851, %v3843
        %v3863 = vsel %vm811, %v3853, %v3845
        %v3864 = vsel %vm811, %v3855, %v3847
        %v3865 = vsel %vm811, %v3857, %v3849
        %v3866 = vmul.f32 %v3858, %v826
        %v3867 = vmul.f32 %v3862, %v830
        %v3868 = vmul.f32 %v3859, %v826
        %v3869 = vmul.f32 %v3863, %v830
        %v3870 = vmul.f32 %v3860, %v826
        %v3871 = vmul.f32 %v3864, %v830
        %v3872 = vmul.f32 %v3861, %v826
        %v3873 = vmul.f32 %v3865, %v830
        %s3874 = scalar_lea.vmem %s1, 1024
        %v3875 = vld [vmem:[%s3874] sm:$0xff]
        %v3876 = vld [vmem:[%s3874 + $0x8] sm:$0xff]
        %v3877 = vld [vmem:[%s3874 + $0x10] sm:$0xff]
        %v3878 = vld [vmem:[%s3874 + $0x18] sm:$0xff]
        %3880 = vset.pattern.permute.xlu0 0
        %3881 = vperm.xlu0 %3880, %v3875
        %v3882 = vpop.permute.xlu0 %3881
        %3885 = vset.pattern.permute.xlu0 0
        %3886 = vperm.xlu0 %3885, %v3876
        %v3887 = vpop.permute.xlu0 %3886
        %3890 = vset.pattern.permute.xlu0 0
        %3891 = vperm.xlu0 %3890, %v3877
        %v3892 = vpop.permute.xlu0 %3891
        %3895 = vset.pattern.permute.xlu0 0
        %3896 = vperm.xlu0 %3895, %v3878
        %v3897 = vpop.permute.xlu0 %3896
        %v3899 = vmul.f32 %v3866, %v3882
        %v3900 = vmul.f32 %v3867, %v3882
        %v3901 = vmul.f32 %v3868, %v3887
        %v3902 = vmul.f32 %v3869, %v3887
        %v3903 = vmul.f32 %v3870, %v3892
        %v3904 = vmul.f32 %v3871, %v3892
        %v3905 = vmul.f32 %v3872, %v3897
        %v3906 = vmul.f32 %v3873, %v3897
        %v3907 = vadd.f32 %v3834, %v3899
        %v3908 = vadd.f32 %v3835, %v3900
        %v3909 = vadd.f32 %v3836, %v3901
        %v3910 = vadd.f32 %v3837, %v3902
        %v3911 = vadd.f32 %v3838, %v3903
        %v3912 = vadd.f32 %v3839, %v3904
        %v3913 = vadd.f32 %v3840, %v3905
        %v3914 = vadd.f32 %v3841, %v3906
        %3915 = vrot.lane.b32.xlu0 %v3501, 113
        %v3916 = vpop.permute.xlu0 %3915
        %3917 = vrot.lane.b32.xlu0 %v3503, 113
        %v3918 = vpop.permute.xlu0 %3917
        %3919 = vrot.lane.b32.xlu0 %v3505, 113
        %v3920 = vpop.permute.xlu0 %3919
        %3921 = vrot.lane.b32.xlu0 %v3507, 113
        %v3922 = vpop.permute.xlu0 %3921
        %3923 = vrot.lane.b32.xlu0 %v3502, 113
        %v3924 = vpop.permute.xlu0 %3923
        %3925 = vrot.lane.b32.xlu0 %v3504, 113
        %v3926 = vpop.permute.xlu0 %3925
        %3927 = vrot.lane.b32.xlu0 %v3506, 113
        %v3928 = vpop.permute.xlu0 %3927
        %3929 = vrot.lane.b32.xlu0 %v3508, 113
        %v3930 = vpop.permute.xlu0 %3929
        %v3931 = vsel %vm898, %v3916, %v3924
        %v3932 = vsel %vm898, %v3918, %v3926
        %v3933 = vsel %vm898, %v3920, %v3928
        %v3934 = vsel %vm898, %v3922, %v3930
        %v3935 = vsel %vm898, %v3924, %v3916
        %v3936 = vsel %vm898, %v3926, %v3918
        %v3937 = vsel %vm898, %v3928, %v3920
        %v3938 = vsel %vm898, %v3930, %v3922
        %v3939 = vmul.f32 %v3931, %v913
        %v3940 = vmul.f32 %v3935, %v917
        %v3941 = vmul.f32 %v3932, %v913
        %v3942 = vmul.f32 %v3936, %v917
        %v3943 = vmul.f32 %v3933, %v913
        %v3944 = vmul.f32 %v3937, %v917
        %v3945 = vmul.f32 %v3934, %v913
        %v3946 = vmul.f32 %v3938, %v917
        %s3947 = scalar_lea.vmem %s1, 1056
        %v3948 = vld [vmem:[%s3947] sm:$0xff]
        %v3949 = vld [vmem:[%s3947 + $0x8] sm:$0xff]
        %v3950 = vld [vmem:[%s3947 + $0x10] sm:$0xff]
        %v3951 = vld [vmem:[%s3947 + $0x18] sm:$0xff]
        %3953 = vset.pattern.permute.xlu0 0
        %3954 = vperm.xlu0 %3953, %v3948
        %v3955 = vpop.permute.xlu0 %3954
        %3958 = vset.pattern.permute.xlu0 0
        %3959 = vperm.xlu0 %3958, %v3949
        %v3960 = vpop.permute.xlu0 %3959
        %3963 = vset.pattern.permute.xlu0 0
        %3964 = vperm.xlu0 %3963, %v3950
        %v3965 = vpop.permute.xlu0 %3964
        %3968 = vset.pattern.permute.xlu0 0
        %3969 = vperm.xlu0 %3968, %v3951
        %v3970 = vpop.permute.xlu0 %3969
        %v3972 = vmul.f32 %v3939, %v3955
        %v3973 = vmul.f32 %v3940, %v3955
        %v3974 = vmul.f32 %v3941, %v3960
        %v3975 = vmul.f32 %v3942, %v3960
        %v3976 = vmul.f32 %v3943, %v3965
        %v3977 = vmul.f32 %v3944, %v3965
        %v3978 = vmul.f32 %v3945, %v3970
        %v3979 = vmul.f32 %v3946, %v3970
        %v3980 = vadd.f32 %v3907, %v3972
        %v3981 = vadd.f32 %v3908, %v3973
        %v3982 = vadd.f32 %v3909, %v3974
        %v3983 = vadd.f32 %v3910, %v3975
        %v3984 = vadd.f32 %v3911, %v3976
        %v3985 = vadd.f32 %v3912, %v3977
        %v3986 = vadd.f32 %v3913, %v3978
        %v3987 = vadd.f32 %v3914, %v3979
        %3988 = vrot.lane.b32.xlu0 %v3501, 112
        %v3989 = vpop.permute.xlu0 %3988
        %3990 = vrot.lane.b32.xlu0 %v3503, 112
        %v3991 = vpop.permute.xlu0 %3990
        %3992 = vrot.lane.b32.xlu0 %v3505, 112
        %v3993 = vpop.permute.xlu0 %3992
        %3994 = vrot.lane.b32.xlu0 %v3507, 112
        %v3995 = vpop.permute.xlu0 %3994
        %3996 = vrot.lane.b32.xlu0 %v3502, 112
        %v3997 = vpop.permute.xlu0 %3996
        %3998 = vrot.lane.b32.xlu0 %v3504, 112
        %v3999 = vpop.permute.xlu0 %3998
        %4000 = vrot.lane.b32.xlu0 %v3506, 112
        %v4001 = vpop.permute.xlu0 %4000
        %4002 = vrot.lane.b32.xlu0 %v3508, 112
        %v4003 = vpop.permute.xlu0 %4002
        %v4004 = vsel %vm985, %v3989, %v3997
        %v4005 = vsel %vm985, %v3991, %v3999
        %v4006 = vsel %vm985, %v3993, %v4001
        %v4007 = vsel %vm985, %v3995, %v4003
        %v4008 = vsel %vm985, %v3997, %v3989
        %v4009 = vsel %vm985, %v3999, %v3991
        %v4010 = vsel %vm985, %v4001, %v3993
        %v4011 = vsel %vm985, %v4003, %v3995
        %v4012 = vmul.f32 %v4004, %v1000
        %v4013 = vmul.f32 %v4008, %v1004
        %v4014 = vmul.f32 %v4005, %v1000
        %v4015 = vmul.f32 %v4009, %v1004
        %v4016 = vmul.f32 %v4006, %v1000
        %v4017 = vmul.f32 %v4010, %v1004
        %v4018 = vmul.f32 %v4007, %v1000
        %v4019 = vmul.f32 %v4011, %v1004
        %s4020 = scalar_lea.vmem %s1, 1088
        %v4021 = vld [vmem:[%s4020] sm:$0xff]
        %v4022 = vld [vmem:[%s4020 + $0x8] sm:$0xff]
        %v4023 = vld [vmem:[%s4020 + $0x10] sm:$0xff]
        %v4024 = vld [vmem:[%s4020 + $0x18] sm:$0xff]
        %4026 = vset.pattern.permute.xlu0 0
        %4027 = vperm.xlu0 %4026, %v4021
        %v4028 = vpop.permute.xlu0 %4027
        %4031 = vset.pattern.permute.xlu0 0
        %4032 = vperm.xlu0 %4031, %v4022
        %v4033 = vpop.permute.xlu0 %4032
        %4036 = vset.pattern.permute.xlu0 0
        %4037 = vperm.xlu0 %4036, %v4023
        %v4038 = vpop.permute.xlu0 %4037
        %4041 = vset.pattern.permute.xlu0 0
        %4042 = vperm.xlu0 %4041, %v4024
        %v4043 = vpop.permute.xlu0 %4042
        %v4045 = vmul.f32 %v4012, %v4028
        %v4046 = vmul.f32 %v4013, %v4028
        %v4047 = vmul.f32 %v4014, %v4033
        %v4048 = vmul.f32 %v4015, %v4033
        %v4049 = vmul.f32 %v4016, %v4038
        %v4050 = vmul.f32 %v4017, %v4038
        %v4051 = vmul.f32 %v4018, %v4043
        %v4052 = vmul.f32 %v4019, %v4043
        %v4053 = vadd.f32 %v3980, %v4045
        %v4054 = vadd.f32 %v3981, %v4046
        %v4055 = vadd.f32 %v3982, %v4047
        %v4056 = vadd.f32 %v3983, %v4048
        %v4057 = vadd.f32 %v3984, %v4049
        %v4058 = vadd.f32 %v3985, %v4050
        %v4059 = vadd.f32 %v3986, %v4051
        %v4060 = vadd.f32 %v3987, %v4052
        %4061 = vrot.lane.b32.xlu0 %v3501, 111
        %v4062 = vpop.permute.xlu0 %4061
        %4063 = vrot.lane.b32.xlu0 %v3503, 111
        %v4064 = vpop.permute.xlu0 %4063
        %4065 = vrot.lane.b32.xlu0 %v3505, 111
        %v4066 = vpop.permute.xlu0 %4065
        %4067 = vrot.lane.b32.xlu0 %v3507, 111
        %v4068 = vpop.permute.xlu0 %4067
        %4069 = vrot.lane.b32.xlu0 %v3502, 111
        %v4070 = vpop.permute.xlu0 %4069
        %4071 = vrot.lane.b32.xlu0 %v3504, 111
        %v4072 = vpop.permute.xlu0 %4071
        %4073 = vrot.lane.b32.xlu0 %v3506, 111
        %v4074 = vpop.permute.xlu0 %4073
        %4075 = vrot.lane.b32.xlu0 %v3508, 111
        %v4076 = vpop.permute.xlu0 %4075
        %v4077 = vsel %vm1072, %v4062, %v4070
        %v4078 = vsel %vm1072, %v4064, %v4072
        %v4079 = vsel %vm1072, %v4066, %v4074
        %v4080 = vsel %vm1072, %v4068, %v4076
        %v4081 = vsel %vm1072, %v4070, %v4062
        %v4082 = vsel %vm1072, %v4072, %v4064
        %v4083 = vsel %vm1072, %v4074, %v4066
        %v4084 = vsel %vm1072, %v4076, %v4068
        %v4085 = vmul.f32 %v4077, %v1087
        %v4086 = vmul.f32 %v4081, %v1091
        %v4087 = vmul.f32 %v4078, %v1087
        %v4088 = vmul.f32 %v4082, %v1091
        %v4089 = vmul.f32 %v4079, %v1087
        %v4090 = vmul.f32 %v4083, %v1091
        %v4091 = vmul.f32 %v4080, %v1087
        %v4092 = vmul.f32 %v4084, %v1091
        %s4093 = scalar_lea.vmem %s1, 1120
        %v4094 = vld [vmem:[%s4093] sm:$0xff]
        %v4095 = vld [vmem:[%s4093 + $0x8] sm:$0xff]
        %v4096 = vld [vmem:[%s4093 + $0x10] sm:$0xff]
        %v4097 = vld [vmem:[%s4093 + $0x18] sm:$0xff]
        %4099 = vset.pattern.permute.xlu0 0
        %4100 = vperm.xlu0 %4099, %v4094
        %v4101 = vpop.permute.xlu0 %4100
        %4104 = vset.pattern.permute.xlu0 0
        %4105 = vperm.xlu0 %4104, %v4095
        %v4106 = vpop.permute.xlu0 %4105
        %4109 = vset.pattern.permute.xlu0 0
        %4110 = vperm.xlu0 %4109, %v4096
        %v4111 = vpop.permute.xlu0 %4110
        %4114 = vset.pattern.permute.xlu0 0
        %4115 = vperm.xlu0 %4114, %v4097
        %v4116 = vpop.permute.xlu0 %4115
        %v4118 = vmul.f32 %v4085, %v4101
        %v4119 = vmul.f32 %v4086, %v4101
        %v4120 = vmul.f32 %v4087, %v4106
        %v4121 = vmul.f32 %v4088, %v4106
        %v4122 = vmul.f32 %v4089, %v4111
        %v4123 = vmul.f32 %v4090, %v4111
        %v4124 = vmul.f32 %v4091, %v4116
        %v4125 = vmul.f32 %v4092, %v4116
        %v4126 = vadd.f32 %v4053, %v4118
        %v4127 = vadd.f32 %v4054, %v4119
        %v4128 = vadd.f32 %v4055, %v4120
        %v4129 = vadd.f32 %v4056, %v4121
        %v4130 = vadd.f32 %v4057, %v4122
        %v4131 = vadd.f32 %v4058, %v4123
        %v4132 = vadd.f32 %v4059, %v4124
        %v4133 = vadd.f32 %v4060, %v4125
        %s4134 = scalar_lea.vmem %s1, 1600
        %v4135 = vld [vmem:[%s4134] sm:$0xff]
        %v4136 = vld [vmem:[%s4134 + $0x8] sm:$0xff]
        %v4137 = vld [vmem:[%s4134 + $0x10] sm:$0xff]
        %v4138 = vld [vmem:[%s4134 + $0x18] sm:$0xff]
        %4140 = vset.pattern.permute.xlu0 0
        %4141 = vperm.xlu0 %4140, %v4135
        %v4142 = vpop.permute.xlu0 %4141
        %4145 = vset.pattern.permute.xlu0 0
        %4146 = vperm.xlu0 %4145, %v4136
        %v4147 = vpop.permute.xlu0 %4146
        %4150 = vset.pattern.permute.xlu0 0
        %4151 = vperm.xlu0 %4150, %v4137
        %v4152 = vpop.permute.xlu0 %4151
        %4155 = vset.pattern.permute.xlu0 0
        %4156 = vperm.xlu0 %4155, %v4138
        %v4157 = vpop.permute.xlu0 %4156
        %v4159 = vadd.f32 %v4126, %v4142
        %v4160 = vadd.f32 %v4127, %v4142
        %v4161 = vadd.f32 %v4128, %v4147
        %v4162 = vadd.f32 %v4129, %v4147
        %v4163 = vadd.f32 %v4130, %v4152
        %v4164 = vadd.f32 %v4131, %v4152
        %v4165 = vadd.f32 %v4132, %v4157
        %v4166 = vadd.f32 %v4133, %v4157
        %4167 = vmatprep.subr.mxu0 0.0
        %4168 = vmatpush1.msra.mxu0 %v1191
        %4169 = vmatprep.subr.mxu0 0.0
        %4170 = vmatpush1.msra.mxu0 %v1190
        %4171 = vmatprep.subr.mxu0 0.0
        %4172 = vmatpush1.msra.mxu0 %v1189
        %4173 = vmatprep.subr.mxu0 0.0
        %4174 = vmatpush1.msra.mxu0 %v1188
        %4175 = vmatprep.subr.mxu0 0.0
        %4176 = vmatpush1.msra.mxu0 %v1187
        %4177 = vmatprep.subr.mxu0 0.0
        %4178 = vmatpush1.msra.mxu0 %v1186
        %4179 = vmatprep.subr.mxu0 0.0
        %4180 = vmatpush1.msra.mxu0 %v1185
        %4181 = vmatprep.subr.mxu0 0.0
        %4182 = vmatpush1.msra.mxu0 %v1184
        %4183 = vmatprep.subr.mxu0 0.0
        %4184 = vmatpush1.msra.mxu0 %v1183
        %4185 = vmatprep.subr.mxu0 0.0
        %4186 = vmatpush1.msra.mxu0 %v1182
        %4187 = vmatprep.subr.mxu0 0.0
        %4188 = vmatpush1.msra.mxu0 %v1181
        %4189 = vmatprep.subr.mxu0 0.0
        %4190 = vmatpush1.msra.mxu0 %v1180
        %4191 = vmatprep.subr.mxu0 0.0
        %4192 = vmatpush1.msra.mxu0 %v1179
        %4193 = vmatprep.subr.mxu0 0.0
        %4194 = vmatpush1.msra.mxu0 %v1178
        %4195 = vmatprep.subr.mxu0 0.0
        %4196 = vmatpush1.msra.mxu0 %v1177
        %4197 = vmatprep.subr.mxu0 0.0
        %4198 = vmatpush1.msra.mxu0 %v1176
        %4199 = vmatprep.subr.mxu0 0.0
        %4200 = vmatpush2.msra.mxu0 %v1207
        %4201 = vmatprep.subr.mxu0 0.0
        %4202 = vmatpush2.msra.mxu0 %v1206
        %4203 = vmatprep.subr.mxu0 0.0
        %4204 = vmatpush2.msra.mxu0 %v1205
        %4205 = vmatprep.subr.mxu0 0.0
        %4206 = vmatpush2.msra.mxu0 %v1204
        %4207 = vmatprep.subr.mxu0 0.0
        %4208 = vmatpush2.msra.mxu0 %v1203
        %4209 = vmatprep.subr.mxu0 0.0
        %4210 = vmatpush2.msra.mxu0 %v1202
        %4211 = vmatprep.subr.mxu0 0.0
        %4212 = vmatpush2.msra.mxu0 %v1201
        %4213 = vmatprep.subr.mxu0 0.0
        %4214 = vmatpush2.msra.mxu0 %v1200
        %4215 = vmatprep.subr.mxu0 0.0
        %4216 = vmatpush2.msra.mxu0 %v1199
        %4217 = vmatprep.subr.mxu0 0.0
        %4218 = vmatpush2.msra.mxu0 %v1198
        %4219 = vmatprep.subr.mxu0 0.0
        %4220 = vmatpush2.msra.mxu0 %v1197
        %4221 = vmatprep.subr.mxu0 0.0
        %4222 = vmatpush2.msra.mxu0 %v1196
        %4223 = vmatprep.subr.mxu0 0.0
        %4224 = vmatpush2.msra.mxu0 %v1195
        %4225 = vmatprep.subr.mxu0 0.0
        %4226 = vmatpush2.msra.mxu0 %v1194
        %4227 = vmatprep.subr.mxu0 0.0
        %4228 = vmatpush2.msra.mxu0 %v1193
        %4229 = vmatprep.subr.mxu0 0.0
        %4230 = vmatpush2.msra.mxu0 %v1192
        %4231 = vmatprep.mubr.f32.mxu0 %v3502
        %4232 = vmatmul.mubr.f32.gmra.mxu0 %v3501
        %v4233 = vpop.f32.mrf.mxu0
        %v4234 = vadd.f32 0.0, %v4233
        %v4235 = vpop.f32.mrf.mxu0
        %4236 = vmatprep.mubr.f32.mxu0 %v3504
        %4237 = vmatmul.mubr.f32.gmra.mxu0 %v3503
        %v4238 = vpop.f32.mrf.mxu0
        %v4239 = vadd.f32 0.0, %v4238
        %v4240 = vpop.f32.mrf.mxu0
        %4241 = vmatprep.mubr.f32.mxu0 %v3506
        %4242 = vmatmul.mubr.f32.gmra.mxu0 %v3505
        %v4243 = vpop.f32.mrf.mxu0
        %v4244 = vadd.f32 0.0, %v4243
        %v4245 = vpop.f32.mrf.mxu0
        %4246 = vmatprep.mubr.f32.mxu0 %v3508
        %4247 = vmatmul.mubr.f32.gmra.mxu0 %v3507
        %v4248 = vpop.f32.mrf.mxu0
        %v4249 = vadd.f32 0.0, %v4248
        %v4250 = vpop.f32.mrf.mxu0
        %4251 = vdwg.mxu0
        %v4253 = vsel %vm1297, %v4234, 0
        %v4256 = vsel %vm1297, %v4239, 0
        %v4259 = vsel %vm1297, %v4244, 0
        %v4262 = vsel %vm1297, %v4249, 0
        %4264 = vmatprep.subr.mxu0 0.0
        %4265 = vmatpush1.msra.mxu0 0.0
        %4266 = vmatprep.subr.mxu0 0.0
        %4267 = vmatpush1.msra.mxu0 0.0
        %4268 = vmatprep.subr.mxu0 0.0
        %4269 = vmatpush1.msra.mxu0 0.0
        %4270 = vmatprep.subr.mxu0 0.0
        %4271 = vmatpush1.msra.mxu0 0.0
        %4272 = vmatprep.subr.mxu0 0.0
        %4273 = vmatpush1.msra.mxu0 0.0
        %4274 = vmatprep.subr.mxu0 0.0
        %4275 = vmatpush1.msra.mxu0 0.0
        %4276 = vmatprep.subr.mxu0 0.0
        %4277 = vmatpush1.msra.mxu0 0.0
        %4278 = vmatprep.subr.mxu0 0.0
        %4279 = vmatpush1.msra.mxu0 0.0
        %4280 = vmatprep.subr.mxu0 0.0
        %4281 = vmatpush1.msra.mxu0 0.0
        %4282 = vmatprep.subr.mxu0 0.0
        %4283 = vmatpush1.msra.mxu0 0.0
        %4284 = vmatprep.subr.mxu0 0.0
        %4285 = vmatpush1.msra.mxu0 0.0
        %4286 = vmatprep.subr.mxu0 0.0
        %4287 = vmatpush1.msra.mxu0 0.0
        %4288 = vmatprep.subr.mxu0 0.0
        %4289 = vmatpush1.msra.mxu0 0.0
        %4290 = vmatprep.subr.mxu0 0.0
        %4291 = vmatpush1.msra.mxu0 0.0
        %4292 = vmatprep.subr.mxu0 %v1296
        %4293 = vmatpush1.msra.mxu0 %v1295
        %4294 = vmatprep.subr.mxu0 %v1294
        %4295 = vmatpush1.msra.mxu0 %v1293
        %4296 = vmatprep.subr.mxu0 0.0
        %4297 = vmatpush2.msra.mxu0 0.0
        %4298 = vmatprep.subr.mxu0 0.0
        %4299 = vmatpush2.msra.mxu0 0.0
        %4300 = vmatprep.subr.mxu0 0.0
        %4301 = vmatpush2.msra.mxu0 0.0
        %4302 = vmatprep.subr.mxu0 0.0
        %4303 = vmatpush2.msra.mxu0 0.0
        %4304 = vmatprep.subr.mxu0 0.0
        %4305 = vmatpush2.msra.mxu0 0.0
        %4306 = vmatprep.subr.mxu0 0.0
        %4307 = vmatpush2.msra.mxu0 0.0
        %4308 = vmatprep.subr.mxu0 0.0
        %4309 = vmatpush2.msra.mxu0 0.0
        %4310 = vmatprep.subr.mxu0 0.0
        %4311 = vmatpush2.msra.mxu0 0.0
        %4312 = vmatprep.subr.mxu0 0.0
        %4313 = vmatpush2.msra.mxu0 0.0
        %4314 = vmatprep.subr.mxu0 0.0
        %4315 = vmatpush2.msra.mxu0 0.0
        %4316 = vmatprep.subr.mxu0 0.0
        %4317 = vmatpush2.msra.mxu0 0.0
        %4318 = vmatprep.subr.mxu0 0.0
        %4319 = vmatpush2.msra.mxu0 0.0
        %4320 = vmatprep.subr.mxu0 0.0
        %4321 = vmatpush2.msra.mxu0 0.0
        %4322 = vmatprep.subr.mxu0 0.0
        %4323 = vmatpush2.msra.mxu0 0.0
        %4324 = vmatprep.subr.mxu0 0.0
        %4325 = vmatpush2.msra.mxu0 0.0
        %4326 = vmatprep.subr.mxu0 0.0
        %4327 = vmatpush2.msra.mxu0 0.0
        %4328 = vmatprep.mubr.f32.mxu0 0.0
        %4329 = vmatmul.mubr.f32.gmra.mxu0 %v4253
        %v4330 = vpop.f32.mrf.mxu0
        %v4331 = vadd.f32 0.0, %v4330
        %v4332 = vpop.f32.mrf.mxu0
        %v4333 = vadd.f32 0.0, %v4332
        %4334 = vmatprep.mubr.f32.mxu0 0.0
        %4335 = vmatmul.mubr.f32.gmra.mxu0 %v4256
        %v4336 = vpop.f32.mrf.mxu0
        %v4337 = vadd.f32 0.0, %v4336
        %v4338 = vpop.f32.mrf.mxu0
        %v4339 = vadd.f32 0.0, %v4338
        %4340 = vmatprep.mubr.f32.mxu0 0.0
        %4341 = vmatmul.mubr.f32.gmra.mxu0 %v4259
        %v4342 = vpop.f32.mrf.mxu0
        %v4343 = vadd.f32 0.0, %v4342
        %v4344 = vpop.f32.mrf.mxu0
        %v4345 = vadd.f32 0.0, %v4344
        %4346 = vmatprep.mubr.f32.mxu0 0.0
        %4347 = vmatmul.mubr.f32.gmra.mxu0 %v4262
        %v4348 = vpop.f32.mrf.mxu0
        %v4349 = vadd.f32 0.0, %v4348
        %v4350 = vpop.f32.mrf.mxu0
        %v4351 = vadd.f32 0.0, %v4350
        %4352 = vdwg.mxu0
        %v4353 = vadd.f32 %v3501, %v3594
        %v4354 = vadd.f32 %v3502, %v3590
        %v4355 = vadd.f32 %v3503, %v3595
        %v4356 = vadd.f32 %v3504, %v3591
        %v4357 = vadd.f32 %v3505, %v3596
        %v4358 = vadd.f32 %v3506, %v3592
        %v4359 = vadd.f32 %v3507, %v3597
        %v4360 = vadd.f32 %v3508, %v3593
        %4361 = vrot.lane.b32.xlu0 %v4353, 32
        %v4362 = vpop.permute.xlu0 %4361
        %4363 = vrot.lane.b32.xlu0 %v4355, 32
        %v4364 = vpop.permute.xlu0 %4363
        %4365 = vrot.lane.b32.xlu0 %v4357, 32
        %v4366 = vpop.permute.xlu0 %4365
        %4367 = vrot.lane.b32.xlu0 %v4359, 32
        %v4368 = vpop.permute.xlu0 %4367
        %4369 = vrot.lane.b32.xlu0 %v4354, 32
        %v4370 = vpop.permute.xlu0 %4369
        %4371 = vrot.lane.b32.xlu0 %v4356, 32
        %v4372 = vpop.permute.xlu0 %4371
        %4373 = vrot.lane.b32.xlu0 %v4358, 32
        %v4374 = vpop.permute.xlu0 %4373
        %4375 = vrot.lane.b32.xlu0 %v4360, 32
        %v4376 = vpop.permute.xlu0 %4375
        %v4377 = vsel %vm1423, %v4362, %v4370
        %v4378 = vsel %vm1423, %v4364, %v4372
        %v4379 = vsel %vm1423, %v4366, %v4374
        %v4380 = vsel %vm1423, %v4368, %v4376
        %v4381 = vsel %vm1423, %v4370, %v4362
        %v4382 = vsel %vm1423, %v4372, %v4364
        %v4383 = vsel %vm1423, %v4374, %v4366
        %v4384 = vsel %vm1423, %v4376, %v4368
        %v4385 = vadd.f32 %v4353, %v4381
        %v4386 = vadd.f32 %v4354, %v4377
        %v4387 = vadd.f32 %v4355, %v4382
        %v4388 = vadd.f32 %v4356, %v4378
        %v4389 = vadd.f32 %v4357, %v4383
        %v4390 = vadd.f32 %v4358, %v4379
        %v4391 = vadd.f32 %v4359, %v4384
        %v4392 = vadd.f32 %v4360, %v4380
        %4393 = vrot.lane.b32.xlu0 %v4385, 64
        %v4394 = vpop.permute.xlu0 %4393
        %4395 = vrot.lane.b32.xlu0 %v4387, 64
        %v4396 = vpop.permute.xlu0 %4395
        %4397 = vrot.lane.b32.xlu0 %v4389, 64
        %v4398 = vpop.permute.xlu0 %4397
        %4399 = vrot.lane.b32.xlu0 %v4391, 64
        %v4400 = vpop.permute.xlu0 %4399
        %4401 = vrot.lane.b32.xlu0 %v4386, 64
        %v4402 = vpop.permute.xlu0 %4401
        %4403 = vrot.lane.b32.xlu0 %v4388, 64
        %v4404 = vpop.permute.xlu0 %4403
        %4405 = vrot.lane.b32.xlu0 %v4390, 64
        %v4406 = vpop.permute.xlu0 %4405
        %4407 = vrot.lane.b32.xlu0 %v4392, 64
        %v4408 = vpop.permute.xlu0 %4407
        %v4409 = vsel %vm1456, %v4394, %v4402
        %v4410 = vsel %vm1456, %v4396, %v4404
        %v4411 = vsel %vm1456, %v4398, %v4406
        %v4412 = vsel %vm1456, %v4400, %v4408
        %v4413 = vsel %vm1456, %v4402, %v4394
        %v4414 = vsel %vm1456, %v4404, %v4396
        %v4415 = vsel %vm1456, %v4406, %v4398
        %v4416 = vsel %vm1456, %v4408, %v4400
        %v4417 = vadd.f32 %v4385, %v4413
        %v4418 = vadd.f32 %v4386, %v4409
        %v4419 = vadd.f32 %v4387, %v4414
        %v4420 = vadd.f32 %v4388, %v4410
        %v4421 = vadd.f32 %v4389, %v4415
        %v4422 = vadd.f32 %v4390, %v4411
        %v4423 = vadd.f32 %v4391, %v4416
        %v4424 = vadd.f32 %v4392, %v4412
        %v4425 = vadd.f32 %v4417, %v4418
        %v4426 = vadd.f32 %v4419, %v4420
        %v4427 = vadd.f32 %v4421, %v4422
        %v4428 = vadd.f32 %v4423, %v4424
        %v4429 = vmul.f32 %v4425, 0.0625
        %v4430 = vmul.f32 %v4426, 0.0625
        %v4431 = vmul.f32 %v4427, 0.0625
        %v4432 = vmul.f32 %v4428, 0.0625
        %4433 = vrot.lane.b32.xlu0 %v4429, 3
        %v4434 = vpop.permute.xlu0 %4433
        %4435 = vrot.lane.b32.xlu0 %v4430, 3
        %v4436 = vpop.permute.xlu0 %4435
        %4437 = vrot.lane.b32.xlu0 %v4431, 3
        %v4438 = vpop.permute.xlu0 %4437
        %4439 = vrot.lane.b32.xlu0 %v4432, 3
        %v4440 = vpop.permute.xlu0 %4439
        %v4441 = vadd.f32 %v4331, %v4434
        %v4442 = vadd.f32 %v4333, %v4434
        %v4443 = vadd.f32 %v4337, %v4436
        %v4444 = vadd.f32 %v4339, %v4436
        %v4445 = vadd.f32 %v4343, %v4438
        %v4446 = vadd.f32 %v4345, %v4438
        %v4447 = vadd.f32 %v4349, %v4440
        %v4448 = vadd.f32 %v4351, %v4440
        %v4449 = vmul.f32 %v4441, %v1502
        %v4450 = vmul.f32 %v4442, %v1506
        %v4451 = vmul.f32 %v4443, %v1502
        %v4452 = vmul.f32 %v4444, %v1506
        %v4453 = vmul.f32 %v4445, %v1502
        %v4454 = vmul.f32 %v4446, %v1506
        %v4455 = vmul.f32 %v4447, %v1502
        %v4456 = vmul.f32 %v4448, %v1506
        %s4457 = scalar_lea.vmem %s1, 1152
        %v4458 = vld [vmem:[%s4457] sm:$0xff]
        %v4459 = vld [vmem:[%s4457 + $0x8] sm:$0xff]
        %v4460 = vld [vmem:[%s4457 + $0x10] sm:$0xff]
        %v4461 = vld [vmem:[%s4457 + $0x18] sm:$0xff]
        %4463 = vset.pattern.permute.xlu0 0
        %4464 = vperm.xlu0 %4463, %v4458
        %v4465 = vpop.permute.xlu0 %4464
        %4468 = vset.pattern.permute.xlu0 0
        %4469 = vperm.xlu0 %4468, %v4459
        %v4470 = vpop.permute.xlu0 %4469
        %4473 = vset.pattern.permute.xlu0 0
        %4474 = vperm.xlu0 %4473, %v4460
        %v4475 = vpop.permute.xlu0 %4474
        %4478 = vset.pattern.permute.xlu0 0
        %4479 = vperm.xlu0 %4478, %v4461
        %v4480 = vpop.permute.xlu0 %4479
        %v4482 = vmul.f32 %v4449, %v4465
        %v4483 = vmul.f32 %v4450, %v4465
        %v4484 = vmul.f32 %v4451, %v4470
        %v4485 = vmul.f32 %v4452, %v4470
        %v4486 = vmul.f32 %v4453, %v4475
        %v4487 = vmul.f32 %v4454, %v4475
        %v4488 = vmul.f32 %v4455, %v4480
        %v4489 = vmul.f32 %v4456, %v4480
        %4490 = vrot.lane.b32.xlu0 %v4429, 2
        %v4491 = vpop.permute.xlu0 %4490
        %4492 = vrot.lane.b32.xlu0 %v4430, 2
        %v4493 = vpop.permute.xlu0 %4492
        %4494 = vrot.lane.b32.xlu0 %v4431, 2
        %v4495 = vpop.permute.xlu0 %4494
        %4496 = vrot.lane.b32.xlu0 %v4432, 2
        %v4497 = vpop.permute.xlu0 %4496
        %v4498 = vadd.f32 %v4331, %v4491
        %v4499 = vadd.f32 %v4333, %v4491
        %v4500 = vadd.f32 %v4337, %v4493
        %v4501 = vadd.f32 %v4339, %v4493
        %v4502 = vadd.f32 %v4343, %v4495
        %v4503 = vadd.f32 %v4345, %v4495
        %v4504 = vadd.f32 %v4349, %v4497
        %v4505 = vadd.f32 %v4351, %v4497
        %v4506 = vmul.f32 %v4498, %v1572
        %v4507 = vmul.f32 %v4499, %v1576
        %v4508 = vmul.f32 %v4500, %v1572
        %v4509 = vmul.f32 %v4501, %v1576
        %v4510 = vmul.f32 %v4502, %v1572
        %v4511 = vmul.f32 %v4503, %v1576
        %v4512 = vmul.f32 %v4504, %v1572
        %v4513 = vmul.f32 %v4505, %v1576
        %s4514 = scalar_lea.vmem %s1, 1184
        %v4515 = vld [vmem:[%s4514] sm:$0xff]
        %v4516 = vld [vmem:[%s4514 + $0x8] sm:$0xff]
        %v4517 = vld [vmem:[%s4514 + $0x10] sm:$0xff]
        %v4518 = vld [vmem:[%s4514 + $0x18] sm:$0xff]
        %4520 = vset.pattern.permute.xlu0 0
        %4521 = vperm.xlu0 %4520, %v4515
        %v4522 = vpop.permute.xlu0 %4521
        %4525 = vset.pattern.permute.xlu0 0
        %4526 = vperm.xlu0 %4525, %v4516
        %v4527 = vpop.permute.xlu0 %4526
        %4530 = vset.pattern.permute.xlu0 0
        %4531 = vperm.xlu0 %4530, %v4517
        %v4532 = vpop.permute.xlu0 %4531
        %4535 = vset.pattern.permute.xlu0 0
        %4536 = vperm.xlu0 %4535, %v4518
        %v4537 = vpop.permute.xlu0 %4536
        %v4539 = vmul.f32 %v4506, %v4522
        %v4540 = vmul.f32 %v4507, %v4522
        %v4541 = vmul.f32 %v4508, %v4527
        %v4542 = vmul.f32 %v4509, %v4527
        %v4543 = vmul.f32 %v4510, %v4532
        %v4544 = vmul.f32 %v4511, %v4532
        %v4545 = vmul.f32 %v4512, %v4537
        %v4546 = vmul.f32 %v4513, %v4537
        %v4547 = vadd.f32 %v4482, %v4539
        %v4548 = vadd.f32 %v4483, %v4540
        %v4549 = vadd.f32 %v4484, %v4541
        %v4550 = vadd.f32 %v4485, %v4542
        %v4551 = vadd.f32 %v4486, %v4543
        %v4552 = vadd.f32 %v4487, %v4544
        %v4553 = vadd.f32 %v4488, %v4545
        %v4554 = vadd.f32 %v4489, %v4546
        %4555 = vrot.lane.b32.xlu0 %v4429, 1
        %v4556 = vpop.permute.xlu0 %4555
        %4557 = vrot.lane.b32.xlu0 %v4430, 1
        %v4558 = vpop.permute.xlu0 %4557
        %4559 = vrot.lane.b32.xlu0 %v4431, 1
        %v4560 = vpop.permute.xlu0 %4559
        %4561 = vrot.lane.b32.xlu0 %v4432, 1
        %v4562 = vpop.permute.xlu0 %4561
        %v4563 = vadd.f32 %v4331, %v4556
        %v4564 = vadd.f32 %v4333, %v4556
        %v4565 = vadd.f32 %v4337, %v4558
        %v4566 = vadd.f32 %v4339, %v4558
        %v4567 = vadd.f32 %v4343, %v4560
        %v4568 = vadd.f32 %v4345, %v4560
        %v4569 = vadd.f32 %v4349, %v4562
        %v4570 = vadd.f32 %v4351, %v4562
        %v4571 = vmul.f32 %v4563, %v1650
        %v4572 = vmul.f32 %v4564, %v1654
        %v4573 = vmul.f32 %v4565, %v1650
        %v4574 = vmul.f32 %v4566, %v1654
        %v4575 = vmul.f32 %v4567, %v1650
        %v4576 = vmul.f32 %v4568, %v1654
        %v4577 = vmul.f32 %v4569, %v1650
        %v4578 = vmul.f32 %v4570, %v1654
        %s4579 = scalar_lea.vmem %s1, 1216
        %v4580 = vld [vmem:[%s4579] sm:$0xff]
        %v4581 = vld [vmem:[%s4579 + $0x8] sm:$0xff]
        %v4582 = vld [vmem:[%s4579 + $0x10] sm:$0xff]
        %v4583 = vld [vmem:[%s4579 + $0x18] sm:$0xff]
        %4585 = vset.pattern.permute.xlu0 0
        %4586 = vperm.xlu0 %4585, %v4580
        %v4587 = vpop.permute.xlu0 %4586
        %4590 = vset.pattern.permute.xlu0 0
        %4591 = vperm.xlu0 %4590, %v4581
        %v4592 = vpop.permute.xlu0 %4591
        %4595 = vset.pattern.permute.xlu0 0
        %4596 = vperm.xlu0 %4595, %v4582
        %v4597 = vpop.permute.xlu0 %4596
        %4600 = vset.pattern.permute.xlu0 0
        %4601 = vperm.xlu0 %4600, %v4583
        %v4602 = vpop.permute.xlu0 %4601
        %v4604 = vmul.f32 %v4571, %v4587
        %v4605 = vmul.f32 %v4572, %v4587
        %v4606 = vmul.f32 %v4573, %v4592
        %v4607 = vmul.f32 %v4574, %v4592
        %v4608 = vmul.f32 %v4575, %v4597
        %v4609 = vmul.f32 %v4576, %v4597
        %v4610 = vmul.f32 %v4577, %v4602
        %v4611 = vmul.f32 %v4578, %v4602
        %v4612 = vadd.f32 %v4547, %v4604
        %v4613 = vadd.f32 %v4548, %v4605
        %v4614 = vadd.f32 %v4549, %v4606
        %v4615 = vadd.f32 %v4550, %v4607
        %v4616 = vadd.f32 %v4551, %v4608
        %v4617 = vadd.f32 %v4552, %v4609
        %v4618 = vadd.f32 %v4553, %v4610
        %v4619 = vadd.f32 %v4554, %v4611
        %v4620 = vadd.f32 %v4331, %v4429
        %v4621 = vadd.f32 %v4333, %v4429
        %v4622 = vadd.f32 %v4337, %v4430
        %v4623 = vadd.f32 %v4339, %v4430
        %v4624 = vadd.f32 %v4343, %v4431
        %v4625 = vadd.f32 %v4345, %v4431
        %v4626 = vadd.f32 %v4349, %v4432
        %v4627 = vadd.f32 %v4351, %v4432
        %v4628 = vmul.f32 %v4620, %v1720
        %v4629 = vmul.f32 %v4621, %v1724
        %v4630 = vmul.f32 %v4622, %v1720
        %v4631 = vmul.f32 %v4623, %v1724
        %v4632 = vmul.f32 %v4624, %v1720
        %v4633 = vmul.f32 %v4625, %v1724
        %v4634 = vmul.f32 %v4626, %v1720
        %v4635 = vmul.f32 %v4627, %v1724
        %s4636 = scalar_lea.vmem %s1, 1248
        %v4637 = vld [vmem:[%s4636] sm:$0xff]
        %v4638 = vld [vmem:[%s4636 + $0x8] sm:$0xff]
        %v4639 = vld [vmem:[%s4636 + $0x10] sm:$0xff]
        %v4640 = vld [vmem:[%s4636 + $0x18] sm:$0xff]
        %4642 = vset.pattern.permute.xlu0 0
        %4643 = vperm.xlu0 %4642, %v4637
        %v4644 = vpop.permute.xlu0 %4643
        %4647 = vset.pattern.permute.xlu0 0
        %4648 = vperm.xlu0 %4647, %v4638
        %v4649 = vpop.permute.xlu0 %4648
        %4652 = vset.pattern.permute.xlu0 0
        %4653 = vperm.xlu0 %4652, %v4639
        %v4654 = vpop.permute.xlu0 %4653
        %4657 = vset.pattern.permute.xlu0 0
        %4658 = vperm.xlu0 %4657, %v4640
        %v4659 = vpop.permute.xlu0 %4658
        %v4661 = vmul.f32 %v4628, %v4644
        %v4662 = vmul.f32 %v4629, %v4644
        %v4663 = vmul.f32 %v4630, %v4649
        %v4664 = vmul.f32 %v4631, %v4649
        %v4665 = vmul.f32 %v4632, %v4654
        %v4666 = vmul.f32 %v4633, %v4654
        %v4667 = vmul.f32 %v4634, %v4659
        %v4668 = vmul.f32 %v4635, %v4659
        %v4669 = vadd.f32 %v4612, %v4661
        %v4670 = vadd.f32 %v4613, %v4662
        %v4671 = vadd.f32 %v4614, %v4663
        %v4672 = vadd.f32 %v4615, %v4664
        %v4673 = vadd.f32 %v4616, %v4665
        %v4674 = vadd.f32 %v4617, %v4666
        %v4675 = vadd.f32 %v4618, %v4667
        %v4676 = vadd.f32 %v4619, %v4668
        %4677 = vrot.lane.b32.xlu0 %v4429, 127
        %v4678 = vpop.permute.xlu0 %4677
        %4679 = vrot.lane.b32.xlu0 %v4430, 127
        %v4680 = vpop.permute.xlu0 %4679
        %4681 = vrot.lane.b32.xlu0 %v4431, 127
        %v4682 = vpop.permute.xlu0 %4681
        %4683 = vrot.lane.b32.xlu0 %v4432, 127
        %v4684 = vpop.permute.xlu0 %4683
        %v4685 = vadd.f32 %v4331, %v4678
        %v4686 = vadd.f32 %v4333, %v4678
        %v4687 = vadd.f32 %v4337, %v4680
        %v4688 = vadd.f32 %v4339, %v4680
        %v4689 = vadd.f32 %v4343, %v4682
        %v4690 = vadd.f32 %v4345, %v4682
        %v4691 = vadd.f32 %v4349, %v4684
        %v4692 = vadd.f32 %v4351, %v4684
        %v4693 = vmul.f32 %v4685, %v1798
        %v4694 = vmul.f32 %v4686, %v1802
        %v4695 = vmul.f32 %v4687, %v1798
        %v4696 = vmul.f32 %v4688, %v1802
        %v4697 = vmul.f32 %v4689, %v1798
        %v4698 = vmul.f32 %v4690, %v1802
        %v4699 = vmul.f32 %v4691, %v1798
        %v4700 = vmul.f32 %v4692, %v1802
        %s4701 = scalar_lea.vmem %s1, 1280
        %v4702 = vld [vmem:[%s4701] sm:$0xff]
        %v4703 = vld [vmem:[%s4701 + $0x8] sm:$0xff]
        %v4704 = vld [vmem:[%s4701 + $0x10] sm:$0xff]
        %v4705 = vld [vmem:[%s4701 + $0x18] sm:$0xff]
        %4707 = vset.pattern.permute.xlu0 0
        %4708 = vperm.xlu0 %4707, %v4702
        %v4709 = vpop.permute.xlu0 %4708
        %4712 = vset.pattern.permute.xlu0 0
        %4713 = vperm.xlu0 %4712, %v4703
        %v4714 = vpop.permute.xlu0 %4713
        %4717 = vset.pattern.permute.xlu0 0
        %4718 = vperm.xlu0 %4717, %v4704
        %v4719 = vpop.permute.xlu0 %4718
        %4722 = vset.pattern.permute.xlu0 0
        %4723 = vperm.xlu0 %4722, %v4705
        %v4724 = vpop.permute.xlu0 %4723
        %v4726 = vmul.f32 %v4693, %v4709
        %v4727 = vmul.f32 %v4694, %v4709
        %v4728 = vmul.f32 %v4695, %v4714
        %v4729 = vmul.f32 %v4696, %v4714
        %v4730 = vmul.f32 %v4697, %v4719
        %v4731 = vmul.f32 %v4698, %v4719
        %v4732 = vmul.f32 %v4699, %v4724
        %v4733 = vmul.f32 %v4700, %v4724
        %v4734 = vadd.f32 %v4669, %v4726
        %v4735 = vadd.f32 %v4670, %v4727
        %v4736 = vadd.f32 %v4671, %v4728
        %v4737 = vadd.f32 %v4672, %v4729
        %v4738 = vadd.f32 %v4673, %v4730
        %v4739 = vadd.f32 %v4674, %v4731
        %v4740 = vadd.f32 %v4675, %v4732
        %v4741 = vadd.f32 %v4676, %v4733
        %4742 = vrot.lane.b32.xlu0 %v4429, 126
        %v4743 = vpop.permute.xlu0 %4742
        %4744 = vrot.lane.b32.xlu0 %v4430, 126
        %v4745 = vpop.permute.xlu0 %4744
        %4746 = vrot.lane.b32.xlu0 %v4431, 126
        %v4747 = vpop.permute.xlu0 %4746
        %4748 = vrot.lane.b32.xlu0 %v4432, 126
        %v4749 = vpop.permute.xlu0 %4748
        %v4750 = vadd.f32 %v4331, %v4743
        %v4751 = vadd.f32 %v4333, %v4743
        %v4752 = vadd.f32 %v4337, %v4745
        %v4753 = vadd.f32 %v4339, %v4745
        %v4754 = vadd.f32 %v4343, %v4747
        %v4755 = vadd.f32 %v4345, %v4747
        %v4756 = vadd.f32 %v4349, %v4749
        %v4757 = vadd.f32 %v4351, %v4749
        %v4758 = vmul.f32 %v4750, %v1876
        %v4759 = vmul.f32 %v4751, %v1880
        %v4760 = vmul.f32 %v4752, %v1876
        %v4761 = vmul.f32 %v4753, %v1880
        %v4762 = vmul.f32 %v4754, %v1876
        %v4763 = vmul.f32 %v4755, %v1880
        %v4764 = vmul.f32 %v4756, %v1876
        %v4765 = vmul.f32 %v4757, %v1880
        %s4766 = scalar_lea.vmem %s1, 1312
        %v4767 = vld [vmem:[%s4766] sm:$0xff]
        %v4768 = vld [vmem:[%s4766 + $0x8] sm:$0xff]
        %v4769 = vld [vmem:[%s4766 + $0x10] sm:$0xff]
        %v4770 = vld [vmem:[%s4766 + $0x18] sm:$0xff]
        %4772 = vset.pattern.permute.xlu0 0
        %4773 = vperm.xlu0 %4772, %v4767
        %v4774 = vpop.permute.xlu0 %4773
        %4777 = vset.pattern.permute.xlu0 0
        %4778 = vperm.xlu0 %4777, %v4768
        %v4779 = vpop.permute.xlu0 %4778
        %4782 = vset.pattern.permute.xlu0 0
        %4783 = vperm.xlu0 %4782, %v4769
        %v4784 = vpop.permute.xlu0 %4783
        %4787 = vset.pattern.permute.xlu0 0
        %4788 = vperm.xlu0 %4787, %v4770
        %v4789 = vpop.permute.xlu0 %4788
        %v4791 = vmul.f32 %v4758, %v4774
        %v4792 = vmul.f32 %v4759, %v4774
        %v4793 = vmul.f32 %v4760, %v4779
        %v4794 = vmul.f32 %v4761, %v4779
        %v4795 = vmul.f32 %v4762, %v4784
        %v4796 = vmul.f32 %v4763, %v4784
        %v4797 = vmul.f32 %v4764, %v4789
        %v4798 = vmul.f32 %v4765, %v4789
        %v4799 = vadd.f32 %v4734, %v4791
        %v4800 = vadd.f32 %v4735, %v4792
        %v4801 = vadd.f32 %v4736, %v4793
        %v4802 = vadd.f32 %v4737, %v4794
        %v4803 = vadd.f32 %v4738, %v4795
        %v4804 = vadd.f32 %v4739, %v4796
        %v4805 = vadd.f32 %v4740, %v4797
        %v4806 = vadd.f32 %v4741, %v4798
        %4807 = vrot.lane.b32.xlu0 %v4429, 125
        %v4808 = vpop.permute.xlu0 %4807
        %4809 = vrot.lane.b32.xlu0 %v4430, 125
        %v4810 = vpop.permute.xlu0 %4809
        %4811 = vrot.lane.b32.xlu0 %v4431, 125
        %v4812 = vpop.permute.xlu0 %4811
        %4813 = vrot.lane.b32.xlu0 %v4432, 125
        %v4814 = vpop.permute.xlu0 %4813
        %v4815 = vadd.f32 %v4331, %v4808
        %v4816 = vadd.f32 %v4333, %v4808
        %v4817 = vadd.f32 %v4337, %v4810
        %v4818 = vadd.f32 %v4339, %v4810
        %v4819 = vadd.f32 %v4343, %v4812
        %v4820 = vadd.f32 %v4345, %v4812
        %v4821 = vadd.f32 %v4349, %v4814
        %v4822 = vadd.f32 %v4351, %v4814
        %v4823 = vmul.f32 %v4815, %v1954
        %v4824 = vmul.f32 %v4816, %v1958
        %v4825 = vmul.f32 %v4817, %v1954
        %v4826 = vmul.f32 %v4818, %v1958
        %v4827 = vmul.f32 %v4819, %v1954
        %v4828 = vmul.f32 %v4820, %v1958
        %v4829 = vmul.f32 %v4821, %v1954
        %v4830 = vmul.f32 %v4822, %v1958
        %s4831 = scalar_lea.vmem %s1, 1344
        %v4832 = vld [vmem:[%s4831] sm:$0xff]
        %v4833 = vld [vmem:[%s4831 + $0x8] sm:$0xff]
        %v4834 = vld [vmem:[%s4831 + $0x10] sm:$0xff]
        %v4835 = vld [vmem:[%s4831 + $0x18] sm:$0xff]
        %4837 = vset.pattern.permute.xlu0 0
        %4838 = vperm.xlu0 %4837, %v4832
        %v4839 = vpop.permute.xlu0 %4838
        %4842 = vset.pattern.permute.xlu0 0
        %4843 = vperm.xlu0 %4842, %v4833
        %v4844 = vpop.permute.xlu0 %4843
        %4847 = vset.pattern.permute.xlu0 0
        %4848 = vperm.xlu0 %4847, %v4834
        %v4849 = vpop.permute.xlu0 %4848
        %4852 = vset.pattern.permute.xlu0 0
        %4853 = vperm.xlu0 %4852, %v4835
        %v4854 = vpop.permute.xlu0 %4853
        %v4856 = vmul.f32 %v4823, %v4839
        %v4857 = vmul.f32 %v4824, %v4839
        %v4858 = vmul.f32 %v4825, %v4844
        %v4859 = vmul.f32 %v4826, %v4844
        %v4860 = vmul.f32 %v4827, %v4849
        %v4861 = vmul.f32 %v4828, %v4849
        %v4862 = vmul.f32 %v4829, %v4854
        %v4863 = vmul.f32 %v4830, %v4854
        %v4864 = vadd.f32 %v4799, %v4856
        %v4865 = vadd.f32 %v4800, %v4857
        %v4866 = vadd.f32 %v4801, %v4858
        %v4867 = vadd.f32 %v4802, %v4859
        %v4868 = vadd.f32 %v4803, %v4860
        %v4869 = vadd.f32 %v4804, %v4861
        %v4870 = vadd.f32 %v4805, %v4862
        %v4871 = vadd.f32 %v4806, %v4863
        %s4872 = scalar_lea.vmem %s1, 1632
        %v4873 = vld [vmem:[%s4872] sm:$0xff]
        %v4874 = vld [vmem:[%s4872 + $0x8] sm:$0xff]
        %v4875 = vld [vmem:[%s4872 + $0x10] sm:$0xff]
        %v4876 = vld [vmem:[%s4872 + $0x18] sm:$0xff]
        %4878 = vset.pattern.permute.xlu0 0
        %4879 = vperm.xlu0 %4878, %v4873
        %v4880 = vpop.permute.xlu0 %4879
        %4883 = vset.pattern.permute.xlu0 0
        %4884 = vperm.xlu0 %4883, %v4874
        %v4885 = vpop.permute.xlu0 %4884
        %4888 = vset.pattern.permute.xlu0 0
        %4889 = vperm.xlu0 %4888, %v4875
        %v4890 = vpop.permute.xlu0 %4889
        %4893 = vset.pattern.permute.xlu0 0
        %4894 = vperm.xlu0 %4893, %v4876
        %v4895 = vpop.permute.xlu0 %4894
        %v4897 = vadd.f32 %v4864, %v4880
        %v4898 = vadd.f32 %v4865, %v4880
        %v4899 = vadd.f32 %v4866, %v4885
        %v4900 = vadd.f32 %v4867, %v4885
        %v4901 = vadd.f32 %v4868, %v4890
        %v4902 = vadd.f32 %v4869, %v4890
        %v4903 = vadd.f32 %v4870, %v4895
        %v4904 = vadd.f32 %v4871, %v4895
        %v4905 = vmax.f32 %v4897, 0.0
        %v4906 = vmax.f32 %v4898, 0.0
        %v4907 = vmax.f32 %v4899, 0.0
        %v4908 = vmax.f32 %v4900, 0.0
        %v4909 = vmax.f32 %v4901, 0.0
        %v4910 = vmax.f32 %v4902, 0.0
        %v4911 = vmax.f32 %v4903, 0.0
        %v4912 = vmax.f32 %v4904, 0.0
        %4913 = vrot.lane.b32.xlu0 %v4905, 48
        %v4914 = vpop.permute.xlu0 %4913
        %4915 = vrot.lane.b32.xlu0 %v4907, 48
        %v4916 = vpop.permute.xlu0 %4915
        %4917 = vrot.lane.b32.xlu0 %v4909, 48
        %v4918 = vpop.permute.xlu0 %4917
        %4919 = vrot.lane.b32.xlu0 %v4911, 48
        %v4920 = vpop.permute.xlu0 %4919
        %4921 = vrot.lane.b32.xlu0 %v4906, 48
        %v4922 = vpop.permute.xlu0 %4921
        %4923 = vrot.lane.b32.xlu0 %v4908, 48
        %v4924 = vpop.permute.xlu0 %4923
        %4925 = vrot.lane.b32.xlu0 %v4910, 48
        %v4926 = vpop.permute.xlu0 %4925
        %4927 = vrot.lane.b32.xlu0 %v4912, 48
        %v4928 = vpop.permute.xlu0 %4927
        %v4929 = vsel %vm2067, %v4914, %v4922
        %v4930 = vsel %vm2067, %v4916, %v4924
        %v4931 = vsel %vm2067, %v4918, %v4926
        %v4932 = vsel %vm2067, %v4920, %v4928
        %v4933 = vsel %vm2067, %v4922, %v4914
        %v4934 = vsel %vm2067, %v4924, %v4916
        %v4935 = vsel %vm2067, %v4926, %v4918
        %v4936 = vsel %vm2067, %v4928, %v4920
        %v4937 = vmul.f32 %v4933, %v2081
        %v4938 = vmul.f32 %v4929, %v2085
        %v4939 = vmul.f32 %v4934, %v2081
        %v4940 = vmul.f32 %v4930, %v2085
        %v4941 = vmul.f32 %v4935, %v2081
        %v4942 = vmul.f32 %v4931, %v2085
        %v4943 = vmul.f32 %v4936, %v2081
        %v4944 = vmul.f32 %v4932, %v2085
        %s4945 = scalar_lea.vmem %s1, 1376
        %v4946 = vld [vmem:[%s4945] sm:$0xff]
        %v4947 = vld [vmem:[%s4945 + $0x8] sm:$0xff]
        %v4948 = vld [vmem:[%s4945 + $0x10] sm:$0xff]
        %v4949 = vld [vmem:[%s4945 + $0x18] sm:$0xff]
        %4951 = vset.pattern.permute.xlu0 0
        %4952 = vperm.xlu0 %4951, %v4946
        %v4953 = vpop.permute.xlu0 %4952
        %4956 = vset.pattern.permute.xlu0 0
        %4957 = vperm.xlu0 %4956, %v4947
        %v4958 = vpop.permute.xlu0 %4957
        %4961 = vset.pattern.permute.xlu0 0
        %4962 = vperm.xlu0 %4961, %v4948
        %v4963 = vpop.permute.xlu0 %4962
        %4966 = vset.pattern.permute.xlu0 0
        %4967 = vperm.xlu0 %4966, %v4949
        %v4968 = vpop.permute.xlu0 %4967
        %v4970 = vmul.f32 %v4937, %v4953
        %v4971 = vmul.f32 %v4938, %v4953
        %v4972 = vmul.f32 %v4939, %v4958
        %v4973 = vmul.f32 %v4940, %v4958
        %v4974 = vmul.f32 %v4941, %v4963
        %v4975 = vmul.f32 %v4942, %v4963
        %v4976 = vmul.f32 %v4943, %v4968
        %v4977 = vmul.f32 %v4944, %v4968
        %4978 = vrot.lane.b32.xlu0 %v4905, 32
        %v4979 = vpop.permute.xlu0 %4978
        %4980 = vrot.lane.b32.xlu0 %v4907, 32
        %v4981 = vpop.permute.xlu0 %4980
        %4982 = vrot.lane.b32.xlu0 %v4909, 32
        %v4983 = vpop.permute.xlu0 %4982
        %4984 = vrot.lane.b32.xlu0 %v4911, 32
        %v4985 = vpop.permute.xlu0 %4984
        %4986 = vrot.lane.b32.xlu0 %v4906, 32
        %v4987 = vpop.permute.xlu0 %4986
        %4988 = vrot.lane.b32.xlu0 %v4908, 32
        %v4989 = vpop.permute.xlu0 %4988
        %4990 = vrot.lane.b32.xlu0 %v4910, 32
        %v4991 = vpop.permute.xlu0 %4990
        %4992 = vrot.lane.b32.xlu0 %v4912, 32
        %v4993 = vpop.permute.xlu0 %4992
        %v4994 = vsel %vm1423, %v4979, %v4987
        %v4995 = vsel %vm1423, %v4981, %v4989
        %v4996 = vsel %vm1423, %v4983, %v4991
        %v4997 = vsel %vm1423, %v4985, %v4993
        %v4998 = vsel %vm1423, %v4987, %v4979
        %v4999 = vsel %vm1423, %v4989, %v4981
        %v5000 = vsel %vm1423, %v4991, %v4983
        %v5001 = vsel %vm1423, %v4993, %v4985
        %v5002 = vmul.f32 %v4998, %v2159
        %v5003 = vmul.f32 %v4994, %v2163
        %v5004 = vmul.f32 %v4999, %v2159
        %v5005 = vmul.f32 %v4995, %v2163
        %v5006 = vmul.f32 %v5000, %v2159
        %v5007 = vmul.f32 %v4996, %v2163
        %v5008 = vmul.f32 %v5001, %v2159
        %v5009 = vmul.f32 %v4997, %v2163
        %s5010 = scalar_lea.vmem %s1, 1408
        %v5011 = vld [vmem:[%s5010] sm:$0xff]
        %v5012 = vld [vmem:[%s5010 + $0x8] sm:$0xff]
        %v5013 = vld [vmem:[%s5010 + $0x10] sm:$0xff]
        %v5014 = vld [vmem:[%s5010 + $0x18] sm:$0xff]
        %5016 = vset.pattern.permute.xlu0 0
        %5017 = vperm.xlu0 %5016, %v5011
        %v5018 = vpop.permute.xlu0 %5017
        %5021 = vset.pattern.permute.xlu0 0
        %5022 = vperm.xlu0 %5021, %v5012
        %v5023 = vpop.permute.xlu0 %5022
        %5026 = vset.pattern.permute.xlu0 0
        %5027 = vperm.xlu0 %5026, %v5013
        %v5028 = vpop.permute.xlu0 %5027
        %5031 = vset.pattern.permute.xlu0 0
        %5032 = vperm.xlu0 %5031, %v5014
        %v5033 = vpop.permute.xlu0 %5032
        %v5035 = vmul.f32 %v5002, %v5018
        %v5036 = vmul.f32 %v5003, %v5018
        %v5037 = vmul.f32 %v5004, %v5023
        %v5038 = vmul.f32 %v5005, %v5023
        %v5039 = vmul.f32 %v5006, %v5028
        %v5040 = vmul.f32 %v5007, %v5028
        %v5041 = vmul.f32 %v5008, %v5033
        %v5042 = vmul.f32 %v5009, %v5033
        %v5043 = vadd.f32 %v4970, %v5035
        %v5044 = vadd.f32 %v4971, %v5036
        %v5045 = vadd.f32 %v4972, %v5037
        %v5046 = vadd.f32 %v4973, %v5038
        %v5047 = vadd.f32 %v4974, %v5039
        %v5048 = vadd.f32 %v4975, %v5040
        %v5049 = vadd.f32 %v4976, %v5041
        %v5050 = vadd.f32 %v4977, %v5042
        %5051 = vrot.lane.b32.xlu0 %v4905, 16
        %v5052 = vpop.permute.xlu0 %5051
        %5053 = vrot.lane.b32.xlu0 %v4907, 16
        %v5054 = vpop.permute.xlu0 %5053
        %5055 = vrot.lane.b32.xlu0 %v4909, 16
        %v5056 = vpop.permute.xlu0 %5055
        %5057 = vrot.lane.b32.xlu0 %v4911, 16
        %v5058 = vpop.permute.xlu0 %5057
        %5059 = vrot.lane.b32.xlu0 %v4906, 16
        %v5060 = vpop.permute.xlu0 %5059
        %5061 = vrot.lane.b32.xlu0 %v4908, 16
        %v5062 = vpop.permute.xlu0 %5061
        %5063 = vrot.lane.b32.xlu0 %v4910, 16
        %v5064 = vpop.permute.xlu0 %5063
        %5065 = vrot.lane.b32.xlu0 %v4912, 16
        %v5066 = vpop.permute.xlu0 %5065
        %v5067 = vsel %vm488, %v5052, %v5060
        %v5068 = vsel %vm488, %v5054, %v5062
        %v5069 = vsel %vm488, %v5056, %v5064
        %v5070 = vsel %vm488, %v5058, %v5066
        %v5071 = vsel %vm488, %v5060, %v5052
        %v5072 = vsel %vm488, %v5062, %v5054
        %v5073 = vsel %vm488, %v5064, %v5056
        %v5074 = vsel %vm488, %v5066, %v5058
        %v5075 = vmul.f32 %v5071, %v2245
        %v5076 = vmul.f32 %v5067, %v2249
        %v5077 = vmul.f32 %v5072, %v2245
        %v5078 = vmul.f32 %v5068, %v2249
        %v5079 = vmul.f32 %v5073, %v2245
        %v5080 = vmul.f32 %v5069, %v2249
        %v5081 = vmul.f32 %v5074, %v2245
        %v5082 = vmul.f32 %v5070, %v2249
        %s5083 = scalar_lea.vmem %s1, 1440
        %v5084 = vld [vmem:[%s5083] sm:$0xff]
        %v5085 = vld [vmem:[%s5083 + $0x8] sm:$0xff]
        %v5086 = vld [vmem:[%s5083 + $0x10] sm:$0xff]
        %v5087 = vld [vmem:[%s5083 + $0x18] sm:$0xff]
        %5089 = vset.pattern.permute.xlu0 0
        %5090 = vperm.xlu0 %5089, %v5084
        %v5091 = vpop.permute.xlu0 %5090
        %5094 = vset.pattern.permute.xlu0 0
        %5095 = vperm.xlu0 %5094, %v5085
        %v5096 = vpop.permute.xlu0 %5095
        %5099 = vset.pattern.permute.xlu0 0
        %5100 = vperm.xlu0 %5099, %v5086
        %v5101 = vpop.permute.xlu0 %5100
        %5104 = vset.pattern.permute.xlu0 0
        %5105 = vperm.xlu0 %5104, %v5087
        %v5106 = vpop.permute.xlu0 %5105
        %v5108 = vmul.f32 %v5075, %v5091
        %v5109 = vmul.f32 %v5076, %v5091
        %v5110 = vmul.f32 %v5077, %v5096
        %v5111 = vmul.f32 %v5078, %v5096
        %v5112 = vmul.f32 %v5079, %v5101
        %v5113 = vmul.f32 %v5080, %v5101
        %v5114 = vmul.f32 %v5081, %v5106
        %v5115 = vmul.f32 %v5082, %v5106
        %v5116 = vadd.f32 %v5043, %v5108
        %v5117 = vadd.f32 %v5044, %v5109
        %v5118 = vadd.f32 %v5045, %v5110
        %v5119 = vadd.f32 %v5046, %v5111
        %v5120 = vadd.f32 %v5047, %v5112
        %v5121 = vadd.f32 %v5048, %v5113
        %v5122 = vadd.f32 %v5049, %v5114
        %v5123 = vadd.f32 %v5050, %v5115
        %v5124 = vmul.f32 %v4905, %v2307
        %v5125 = vmul.f32 %v4906, %v2311
        %v5126 = vmul.f32 %v4907, %v2307
        %v5127 = vmul.f32 %v4908, %v2311
        %v5128 = vmul.f32 %v4909, %v2307
        %v5129 = vmul.f32 %v4910, %v2311
        %v5130 = vmul.f32 %v4911, %v2307
        %v5131 = vmul.f32 %v4912, %v2311
        %s5132 = scalar_lea.vmem %s1, 1472
        %v5133 = vld [vmem:[%s5132] sm:$0xff]
        %v5134 = vld [vmem:[%s5132 + $0x8] sm:$0xff]
        %v5135 = vld [vmem:[%s5132 + $0x10] sm:$0xff]
        %v5136 = vld [vmem:[%s5132 + $0x18] sm:$0xff]
        %5138 = vset.pattern.permute.xlu0 0
        %5139 = vperm.xlu0 %5138, %v5133
        %v5140 = vpop.permute.xlu0 %5139
        %5143 = vset.pattern.permute.xlu0 0
        %5144 = vperm.xlu0 %5143, %v5134
        %v5145 = vpop.permute.xlu0 %5144
        %5148 = vset.pattern.permute.xlu0 0
        %5149 = vperm.xlu0 %5148, %v5135
        %v5150 = vpop.permute.xlu0 %5149
        %5153 = vset.pattern.permute.xlu0 0
        %5154 = vperm.xlu0 %5153, %v5136
        %v5155 = vpop.permute.xlu0 %5154
        %v5157 = vmul.f32 %v5124, %v5140
        %v5158 = vmul.f32 %v5125, %v5140
        %v5159 = vmul.f32 %v5126, %v5145
        %v5160 = vmul.f32 %v5127, %v5145
        %v5161 = vmul.f32 %v5128, %v5150
        %v5162 = vmul.f32 %v5129, %v5150
        %v5163 = vmul.f32 %v5130, %v5155
        %v5164 = vmul.f32 %v5131, %v5155
        %v5165 = vadd.f32 %v5116, %v5157
        %v5166 = vadd.f32 %v5117, %v5158
        %v5167 = vadd.f32 %v5118, %v5159
        %v5168 = vadd.f32 %v5119, %v5160
        %v5169 = vadd.f32 %v5120, %v5161
        %v5170 = vadd.f32 %v5121, %v5162
        %v5171 = vadd.f32 %v5122, %v5163
        %v5172 = vadd.f32 %v5123, %v5164
        %5173 = vrot.lane.b32.xlu0 %v4905, 112
        %v5174 = vpop.permute.xlu0 %5173
        %5175 = vrot.lane.b32.xlu0 %v4907, 112
        %v5176 = vpop.permute.xlu0 %5175
        %5177 = vrot.lane.b32.xlu0 %v4909, 112
        %v5178 = vpop.permute.xlu0 %5177
        %5179 = vrot.lane.b32.xlu0 %v4911, 112
        %v5180 = vpop.permute.xlu0 %5179
        %5181 = vrot.lane.b32.xlu0 %v4906, 112
        %v5182 = vpop.permute.xlu0 %5181
        %5183 = vrot.lane.b32.xlu0 %v4908, 112
        %v5184 = vpop.permute.xlu0 %5183
        %5185 = vrot.lane.b32.xlu0 %v4910, 112
        %v5186 = vpop.permute.xlu0 %5185
        %5187 = vrot.lane.b32.xlu0 %v4912, 112
        %v5188 = vpop.permute.xlu0 %5187
        %v5189 = vsel %vm985, %v5174, %v5182
        %v5190 = vsel %vm985, %v5176, %v5184
        %v5191 = vsel %vm985, %v5178, %v5186
        %v5192 = vsel %vm985, %v5180, %v5188
        %v5193 = vsel %vm985, %v5182, %v5174
        %v5194 = vsel %vm985, %v5184, %v5176
        %v5195 = vsel %vm985, %v5186, %v5178
        %v5196 = vsel %vm985, %v5188, %v5180
        %v5197 = vmul.f32 %v5189, %v2393
        %v5198 = vmul.f32 %v5193, %v2397
        %v5199 = vmul.f32 %v5190, %v2393
        %v5200 = vmul.f32 %v5194, %v2397
        %v5201 = vmul.f32 %v5191, %v2393
        %v5202 = vmul.f32 %v5195, %v2397
        %v5203 = vmul.f32 %v5192, %v2393
        %v5204 = vmul.f32 %v5196, %v2397
        %s5205 = scalar_lea.vmem %s1, 1504
        %v5206 = vld [vmem:[%s5205] sm:$0xff]
        %v5207 = vld [vmem:[%s5205 + $0x8] sm:$0xff]
        %v5208 = vld [vmem:[%s5205 + $0x10] sm:$0xff]
        %v5209 = vld [vmem:[%s5205 + $0x18] sm:$0xff]
        %5211 = vset.pattern.permute.xlu0 0
        %5212 = vperm.xlu0 %5211, %v5206
        %v5213 = vpop.permute.xlu0 %5212
        %5216 = vset.pattern.permute.xlu0 0
        %5217 = vperm.xlu0 %5216, %v5207
        %v5218 = vpop.permute.xlu0 %5217
        %5221 = vset.pattern.permute.xlu0 0
        %5222 = vperm.xlu0 %5221, %v5208
        %v5223 = vpop.permute.xlu0 %5222
        %5226 = vset.pattern.permute.xlu0 0
        %5227 = vperm.xlu0 %5226, %v5209
        %v5228 = vpop.permute.xlu0 %5227
        %v5230 = vmul.f32 %v5197, %v5213
        %v5231 = vmul.f32 %v5198, %v5213
        %v5232 = vmul.f32 %v5199, %v5218
        %v5233 = vmul.f32 %v5200, %v5218
        %v5234 = vmul.f32 %v5201, %v5223
        %v5235 = vmul.f32 %v5202, %v5223
        %v5236 = vmul.f32 %v5203, %v5228
        %v5237 = vmul.f32 %v5204, %v5228
        %v5238 = vadd.f32 %v5165, %v5230
        %v5239 = vadd.f32 %v5166, %v5231
        %v5240 = vadd.f32 %v5167, %v5232
        %v5241 = vadd.f32 %v5168, %v5233
        %v5242 = vadd.f32 %v5169, %v5234
        %v5243 = vadd.f32 %v5170, %v5235
        %v5244 = vadd.f32 %v5171, %v5236
        %v5245 = vadd.f32 %v5172, %v5237
        %5246 = vrot.lane.b32.xlu0 %v4905, 96
        %v5247 = vpop.permute.xlu0 %5246
        %5248 = vrot.lane.b32.xlu0 %v4907, 96
        %v5249 = vpop.permute.xlu0 %5248
        %5250 = vrot.lane.b32.xlu0 %v4909, 96
        %v5251 = vpop.permute.xlu0 %5250
        %5252 = vrot.lane.b32.xlu0 %v4911, 96
        %v5253 = vpop.permute.xlu0 %5252
        %5254 = vrot.lane.b32.xlu0 %v4906, 96
        %v5255 = vpop.permute.xlu0 %5254
        %5256 = vrot.lane.b32.xlu0 %v4908, 96
        %v5257 = vpop.permute.xlu0 %5256
        %5258 = vrot.lane.b32.xlu0 %v4910, 96
        %v5259 = vpop.permute.xlu0 %5258
        %5260 = vrot.lane.b32.xlu0 %v4912, 96
        %v5261 = vpop.permute.xlu0 %5260
        %v5262 = vsel %vm2465, %v5247, %v5255
        %v5263 = vsel %vm2465, %v5249, %v5257
        %v5264 = vsel %vm2465, %v5251, %v5259
        %v5265 = vsel %vm2465, %v5253, %v5261
        %v5266 = vsel %vm2465, %v5255, %v5247
        %v5267 = vsel %vm2465, %v5257, %v5249
        %v5268 = vsel %vm2465, %v5259, %v5251
        %v5269 = vsel %vm2465, %v5261, %v5253
        %v5270 = vmul.f32 %v5262, %v2480
        %v5271 = vmul.f32 %v5266, %v2484
        %v5272 = vmul.f32 %v5263, %v2480
        %v5273 = vmul.f32 %v5267, %v2484
        %v5274 = vmul.f32 %v5264, %v2480
        %v5275 = vmul.f32 %v5268, %v2484
        %v5276 = vmul.f32 %v5265, %v2480
        %v5277 = vmul.f32 %v5269, %v2484
        %s5278 = scalar_lea.vmem %s1, 1536
        %v5279 = vld [vmem:[%s5278] sm:$0xff]
        %v5280 = vld [vmem:[%s5278 + $0x8] sm:$0xff]
        %v5281 = vld [vmem:[%s5278 + $0x10] sm:$0xff]
        %v5282 = vld [vmem:[%s5278 + $0x18] sm:$0xff]
        %5284 = vset.pattern.permute.xlu0 0
        %5285 = vperm.xlu0 %5284, %v5279
        %v5286 = vpop.permute.xlu0 %5285
        %5289 = vset.pattern.permute.xlu0 0
        %5290 = vperm.xlu0 %5289, %v5280
        %v5291 = vpop.permute.xlu0 %5290
        %5294 = vset.pattern.permute.xlu0 0
        %5295 = vperm.xlu0 %5294, %v5281
        %v5296 = vpop.permute.xlu0 %5295
        %5299 = vset.pattern.permute.xlu0 0
        %5300 = vperm.xlu0 %5299, %v5282
        %v5301 = vpop.permute.xlu0 %5300
        %v5303 = vmul.f32 %v5270, %v5286
        %v5304 = vmul.f32 %v5271, %v5286
        %v5305 = vmul.f32 %v5272, %v5291
        %v5306 = vmul.f32 %v5273, %v5291
        %v5307 = vmul.f32 %v5274, %v5296
        %v5308 = vmul.f32 %v5275, %v5296
        %v5309 = vmul.f32 %v5276, %v5301
        %v5310 = vmul.f32 %v5277, %v5301
        %v5311 = vadd.f32 %v5238, %v5303
        %v5312 = vadd.f32 %v5239, %v5304
        %v5313 = vadd.f32 %v5240, %v5305
        %v5314 = vadd.f32 %v5241, %v5306
        %v5315 = vadd.f32 %v5242, %v5307
        %v5316 = vadd.f32 %v5243, %v5308
        %v5317 = vadd.f32 %v5244, %v5309
        %v5318 = vadd.f32 %v5245, %v5310
        %5319 = vrot.lane.b32.xlu0 %v4905, 80
        %v5320 = vpop.permute.xlu0 %5319
        %5321 = vrot.lane.b32.xlu0 %v4907, 80
        %v5322 = vpop.permute.xlu0 %5321
        %5323 = vrot.lane.b32.xlu0 %v4909, 80
        %v5324 = vpop.permute.xlu0 %5323
        %5325 = vrot.lane.b32.xlu0 %v4911, 80
        %v5326 = vpop.permute.xlu0 %5325
        %5327 = vrot.lane.b32.xlu0 %v4906, 80
        %v5328 = vpop.permute.xlu0 %5327
        %5329 = vrot.lane.b32.xlu0 %v4908, 80
        %v5330 = vpop.permute.xlu0 %5329
        %5331 = vrot.lane.b32.xlu0 %v4910, 80
        %v5332 = vpop.permute.xlu0 %5331
        %5333 = vrot.lane.b32.xlu0 %v4912, 80
        %v5334 = vpop.permute.xlu0 %5333
        %v5335 = vsel %vm2552, %v5320, %v5328
        %v5336 = vsel %vm2552, %v5322, %v5330
        %v5337 = vsel %vm2552, %v5324, %v5332
        %v5338 = vsel %vm2552, %v5326, %v5334
        %v5339 = vsel %vm2552, %v5328, %v5320
        %v5340 = vsel %vm2552, %v5330, %v5322
        %v5341 = vsel %vm2552, %v5332, %v5324
        %v5342 = vsel %vm2552, %v5334, %v5326
        %v5343 = vmul.f32 %v5335, %v2567
        %v5344 = vmul.f32 %v5339, %v2571
        %v5345 = vmul.f32 %v5336, %v2567
        %v5346 = vmul.f32 %v5340, %v2571
        %v5347 = vmul.f32 %v5337, %v2567
        %v5348 = vmul.f32 %v5341, %v2571
        %v5349 = vmul.f32 %v5338, %v2567
        %v5350 = vmul.f32 %v5342, %v2571
        %s5351 = scalar_lea.vmem %s1, 1568
        %v5352 = vld [vmem:[%s5351] sm:$0xff]
        %v5353 = vld [vmem:[%s5351 + $0x8] sm:$0xff]
        %v5354 = vld [vmem:[%s5351 + $0x10] sm:$0xff]
        %v5355 = vld [vmem:[%s5351 + $0x18] sm:$0xff]
        %5357 = vset.pattern.permute.xlu0 0
        %5358 = vperm.xlu0 %5357, %v5352
        %v5359 = vpop.permute.xlu0 %5358
        %5362 = vset.pattern.permute.xlu0 0
        %5363 = vperm.xlu0 %5362, %v5353
        %v5364 = vpop.permute.xlu0 %5363
        %5367 = vset.pattern.permute.xlu0 0
        %5368 = vperm.xlu0 %5367, %v5354
        %v5369 = vpop.permute.xlu0 %5368
        %5372 = vset.pattern.permute.xlu0 0
        %5373 = vperm.xlu0 %5372, %v5355
        %v5374 = vpop.permute.xlu0 %5373
        %v5376 = vmul.f32 %v5343, %v5359
        %v5377 = vmul.f32 %v5344, %v5359
        %v5378 = vmul.f32 %v5345, %v5364
        %v5379 = vmul.f32 %v5346, %v5364
        %v5380 = vmul.f32 %v5347, %v5369
        %v5381 = vmul.f32 %v5348, %v5369
        %v5382 = vmul.f32 %v5349, %v5374
        %v5383 = vmul.f32 %v5350, %v5374
        %v5384 = vadd.f32 %v5311, %v5376
        %v5385 = vadd.f32 %v5312, %v5377
        %v5386 = vadd.f32 %v5313, %v5378
        %v5387 = vadd.f32 %v5314, %v5379
        %v5388 = vadd.f32 %v5315, %v5380
        %v5389 = vadd.f32 %v5316, %v5381
        %v5390 = vadd.f32 %v5317, %v5382
        %v5391 = vadd.f32 %v5318, %v5383
        %s5392 = scalar_lea.vmem %s1, 1664
        %v5393 = vld [vmem:[%s5392] sm:$0xff]
        %v5394 = vld [vmem:[%s5392 + $0x8] sm:$0xff]
        %v5395 = vld [vmem:[%s5392 + $0x10] sm:$0xff]
        %v5396 = vld [vmem:[%s5392 + $0x18] sm:$0xff]
        %5398 = vset.pattern.permute.xlu0 0
        %5399 = vperm.xlu0 %5398, %v5393
        %v5400 = vpop.permute.xlu0 %5399
        %5403 = vset.pattern.permute.xlu0 0
        %5404 = vperm.xlu0 %5403, %v5394
        %v5405 = vpop.permute.xlu0 %5404
        %5408 = vset.pattern.permute.xlu0 0
        %5409 = vperm.xlu0 %5408, %v5395
        %v5410 = vpop.permute.xlu0 %5409
        %5413 = vset.pattern.permute.xlu0 0
        %5414 = vperm.xlu0 %5413, %v5396
        %v5415 = vpop.permute.xlu0 %5414
        %v5417 = vadd.f32 %v5384, %v5400
        %v5418 = vadd.f32 %v5385, %v5400
        %v5419 = vadd.f32 %v5386, %v5405
        %v5420 = vadd.f32 %v5387, %v5405
        %v5421 = vadd.f32 %v5388, %v5410
        %v5422 = vadd.f32 %v5389, %v5410
        %v5423 = vadd.f32 %v5390, %v5415
        %v5424 = vadd.f32 %v5391, %v5415
        %v5425 = vsub.f32 0.0, %v5417
        %v5426 = vsub.f32 0.0, %v5418
        %v5427 = vsub.f32 0.0, %v5419
        %v5428 = vsub.f32 0.0, %v5420
        %v5429 = vsub.f32 0.0, %v5421
        %v5430 = vsub.f32 0.0, %v5422
        %v5431 = vsub.f32 0.0, %v5423
        %v5432 = vsub.f32 0.0, %v5424
        %v5433 = vmul.f32 %v5425, 1.442695
        %v5434 = vpow.pop %v5433
        %v5435 = vmul.f32 %v5426, 1.442695
        %v5436 = vpow.pop %v5435
        %v5437 = vmul.f32 %v5427, 1.442695
        %v5438 = vpow.pop %v5437
        %v5439 = vmul.f32 %v5428, 1.442695
        %v5440 = vpow.pop %v5439
        %v5441 = vmul.f32 %v5429, 1.442695
        %v5442 = vpow.pop %v5441
        %v5443 = vmul.f32 %v5430, 1.442695
        %v5444 = vpow.pop %v5443
        %v5445 = vmul.f32 %v5431, 1.442695
        %v5446 = vpow.pop %v5445
        %v5447 = vmul.f32 %v5432, 1.442695
        %v5448 = vpow.pop %v5447
        %v5449 = vadd.f32 %v5434, 1.0
        %v5450 = vadd.f32 %v5436, 1.0
        %v5451 = vadd.f32 %v5438, 1.0
        %v5452 = vadd.f32 %v5440, 1.0
        %v5453 = vadd.f32 %v5442, 1.0
        %v5454 = vadd.f32 %v5444, 1.0
        %v5455 = vadd.f32 %v5446, 1.0
        %v5456 = vadd.f32 %v5448, 1.0
        %v5457 = vrcp.pop %v5449
        %v5458 = vmul.f32 1.0, %v5457
        %v5459 = vrcp.pop %v5450
        %v5460 = vmul.f32 1.0, %v5459
        %v5461 = vrcp.pop %v5451
        %v5462 = vmul.f32 1.0, %v5461
        %v5463 = vrcp.pop %v5452
        %v5464 = vmul.f32 1.0, %v5463
        %v5465 = vrcp.pop %v5453
        %v5466 = vmul.f32 1.0, %v5465
        %v5467 = vrcp.pop %v5454
        %v5468 = vmul.f32 1.0, %v5467
        %v5469 = vrcp.pop %v5455
        %v5470 = vmul.f32 1.0, %v5469
        %v5471 = vrcp.pop %v5456
        %v5472 = vmul.f32 1.0, %v5471
        %v5473 = vmul.f32 %v5458, %v4159
        %v5474 = vmul.f32 %v5460, %v4160
        %v5475 = vmul.f32 %v5462, %v4161
        %v5476 = vmul.f32 %v5464, %v4162
        %v5477 = vmul.f32 %v5466, %v4163
        %v5478 = vmul.f32 %v5468, %v4164
        %v5479 = vmul.f32 %v5470, %v4165
        %v5480 = vmul.f32 %v5472, %v4166
        %s5481 = scalar_lea.vmem %s2, 64
        %v5482 = vld [vmem:[%s5481] sm:$0xff]
        %v5483 = vld [vmem:[%s5481 + $0x8] sm:$0xff]
        %v5484 = vld [vmem:[%s5481 + $0x10] sm:$0xff]
        %v5485 = vld [vmem:[%s5481 + $0x18] sm:$0xff]
        %v5486 = vld [vmem:[%s5481 + $0x20] sm:$0xff]
        %v5487 = vld [vmem:[%s5481 + $0x28] sm:$0xff]
        %v5488 = vld [vmem:[%s5481 + $0x30] sm:$0xff]
        %v5489 = vld [vmem:[%s5481 + $0x38] sm:$0xff]
        %s5490 = scalar_lea.vmem %s3, 64
        %v5491 = vld [vmem:[%s5490] sm:$0xff]
        %v5492 = vld [vmem:[%s5490 + $0x8] sm:$0xff]
        %v5493 = vld [vmem:[%s5490 + $0x10] sm:$0xff]
        %v5494 = vld [vmem:[%s5490 + $0x18] sm:$0xff]
        %v5495 = vld [vmem:[%s5490 + $0x20] sm:$0xff]
        %v5496 = vld [vmem:[%s5490 + $0x28] sm:$0xff]
        %v5497 = vld [vmem:[%s5490 + $0x30] sm:$0xff]
        %v5498 = vld [vmem:[%s5490 + $0x38] sm:$0xff]
        %5500 = vset.pattern.permute.xlu0 0
        %5501 = vperm.xlu0 %5500, %v5491
        %v5502 = vpop.permute.xlu0 %5501
        %5505 = vset.pattern.permute.xlu0 0
        %5506 = vperm.xlu0 %5505, %v5492
        %v5507 = vpop.permute.xlu0 %5506
        %5510 = vset.pattern.permute.xlu0 0
        %5511 = vperm.xlu0 %5510, %v5493
        %v5512 = vpop.permute.xlu0 %5511
        %5515 = vset.pattern.permute.xlu0 0
        %5516 = vperm.xlu0 %5515, %v5494
        %v5517 = vpop.permute.xlu0 %5516
        %5520 = vset.pattern.permute.xlu0 0
        %5521 = vperm.xlu0 %5520, %v5495
        %v5522 = vpop.permute.xlu0 %5521
        %5525 = vset.pattern.permute.xlu0 0
        %5526 = vperm.xlu0 %5525, %v5496
        %v5527 = vpop.permute.xlu0 %5526
        %5530 = vset.pattern.permute.xlu0 0
        %5531 = vperm.xlu0 %5530, %v5497
        %v5532 = vpop.permute.xlu0 %5531
        %5535 = vset.pattern.permute.xlu0 0
        %5536 = vperm.xlu0 %5535, %v5498
        %v5537 = vpop.permute.xlu0 %5536
        %v5540 = vsel %vm2768, %v5482, 0
        %v5543 = vsel %vm2768, %v5483, 0
        %v5546 = vsel %vm2768, %v5484, 0
        %v5549 = vsel %vm2768, %v5485, 0
        %v5552 = vsel %vm2768, %v5486, 0
        %v5555 = vsel %vm2768, %v5487, 0
        %v5558 = vsel %vm2768, %v5488, 0
        %v5561 = vsel %vm2768, %v5489, 0
        %5563 = vmatprep.subr.mxu0 0.0
        %5564 = vmatpush1.msra.mxu0 0.0
        %5565 = vmatprep.subr.mxu0 0.0
        %5566 = vmatpush1.msra.mxu0 0.0
        %5567 = vmatprep.subr.mxu0 0.0
        %5568 = vmatpush1.msra.mxu0 0.0
        %5569 = vmatprep.subr.mxu0 0.0
        %5570 = vmatpush1.msra.mxu0 0.0
        %5571 = vmatprep.subr.mxu0 0.0
        %5572 = vmatpush1.msra.mxu0 0.0
        %5573 = vmatprep.subr.mxu0 0.0
        %5574 = vmatpush1.msra.mxu0 0.0
        %5575 = vmatprep.subr.mxu0 0.0
        %5576 = vmatpush1.msra.mxu0 0.0
        %5577 = vmatprep.subr.mxu0 0.0
        %5578 = vmatpush1.msra.mxu0 0.0
        %5579 = vmatprep.subr.mxu0 0.0
        %5580 = vmatpush1.msra.mxu0 0.0
        %5581 = vmatprep.subr.mxu0 0.0
        %5582 = vmatpush1.msra.mxu0 0.0
        %5583 = vmatprep.subr.mxu0 0.0
        %5584 = vmatpush1.msra.mxu0 0.0
        %5585 = vmatprep.subr.mxu0 0.0
        %5586 = vmatpush1.msra.mxu0 0.0
        %5587 = vmatprep.subr.mxu0 %v5480
        %5588 = vmatpush1.msra.mxu0 %v5479
        %5589 = vmatprep.subr.mxu0 %v5478
        %5590 = vmatpush1.msra.mxu0 %v5477
        %5591 = vmatprep.subr.mxu0 %v5476
        %5592 = vmatpush1.msra.mxu0 %v5475
        %5593 = vmatprep.subr.mxu0 %v5474
        %5594 = vmatpush1.msra.mxu0 %v5473
        %5595 = vmatprep.subr.mxu0 0.0
        %5596 = vmatpush2.msra.mxu0 0.0
        %5597 = vmatprep.subr.mxu0 0.0
        %5598 = vmatpush2.msra.mxu0 0.0
        %5599 = vmatprep.subr.mxu0 0.0
        %5600 = vmatpush2.msra.mxu0 0.0
        %5601 = vmatprep.subr.mxu0 0.0
        %5602 = vmatpush2.msra.mxu0 0.0
        %5603 = vmatprep.subr.mxu0 0.0
        %5604 = vmatpush2.msra.mxu0 0.0
        %5605 = vmatprep.subr.mxu0 0.0
        %5606 = vmatpush2.msra.mxu0 0.0
        %5607 = vmatprep.subr.mxu0 0.0
        %5608 = vmatpush2.msra.mxu0 0.0
        %5609 = vmatprep.subr.mxu0 0.0
        %5610 = vmatpush2.msra.mxu0 0.0
        %5611 = vmatprep.subr.mxu0 0.0
        %5612 = vmatpush2.msra.mxu0 0.0
        %5613 = vmatprep.subr.mxu0 0.0
        %5614 = vmatpush2.msra.mxu0 0.0
        %5615 = vmatprep.subr.mxu0 0.0
        %5616 = vmatpush2.msra.mxu0 0.0
        %5617 = vmatprep.subr.mxu0 0.0
        %5618 = vmatpush2.msra.mxu0 0.0
        %5619 = vmatprep.subr.mxu0 0.0
        %5620 = vmatpush2.msra.mxu0 0.0
        %5621 = vmatprep.subr.mxu0 0.0
        %5622 = vmatpush2.msra.mxu0 0.0
        %5623 = vmatprep.subr.mxu0 0.0
        %5624 = vmatpush2.msra.mxu0 0.0
        %5625 = vmatprep.subr.mxu0 0.0
        %5626 = vmatpush2.msra.mxu0 0.0
        %5627 = vmatprep.mubr.f32.mxu0 0.0
        %5628 = vmatmul.mubr.f32.gmra.mxu0 %v5540
        %v5629 = vpop.f32.mrf.mxu0
        %v5630 = vadd.f32 %v5502, %v5629
        %v5631 = vpop.f32.mrf.mxu0
        %v5632 = vadd.f32 %v5502, %v5631
        %5633 = vmatprep.mubr.f32.mxu0 0.0
        %5634 = vmatmul.mubr.f32.gmra.mxu0 %v5543
        %v5635 = vpop.f32.mrf.mxu0
        %v5636 = vadd.f32 %v5507, %v5635
        %v5637 = vpop.f32.mrf.mxu0
        %v5638 = vadd.f32 %v5507, %v5637
        %5639 = vmatprep.mubr.f32.mxu0 0.0
        %5640 = vmatmul.mubr.f32.gmra.mxu0 %v5546
        %v5641 = vpop.f32.mrf.mxu0
        %v5642 = vadd.f32 %v5512, %v5641
        %v5643 = vpop.f32.mrf.mxu0
        %v5644 = vadd.f32 %v5512, %v5643
        %5645 = vmatprep.mubr.f32.mxu0 0.0
        %5646 = vmatmul.mubr.f32.gmra.mxu0 %v5549
        %v5647 = vpop.f32.mrf.mxu0
        %v5648 = vadd.f32 %v5517, %v5647
        %v5649 = vpop.f32.mrf.mxu0
        %v5650 = vadd.f32 %v5517, %v5649
        %5651 = vmatprep.mubr.f32.mxu0 0.0
        %5652 = vmatmul.mubr.f32.gmra.mxu0 %v5552
        %v5653 = vpop.f32.mrf.mxu0
        %v5654 = vadd.f32 %v5522, %v5653
        %v5655 = vpop.f32.mrf.mxu0
        %v5656 = vadd.f32 %v5522, %v5655
        %5657 = vmatprep.mubr.f32.mxu0 0.0
        %5658 = vmatmul.mubr.f32.gmra.mxu0 %v5555
        %v5659 = vpop.f32.mrf.mxu0
        %v5660 = vadd.f32 %v5527, %v5659
        %v5661 = vpop.f32.mrf.mxu0
        %v5662 = vadd.f32 %v5527, %v5661
        %5663 = vmatprep.mubr.f32.mxu0 0.0
        %5664 = vmatmul.mubr.f32.gmra.mxu0 %v5558
        %v5665 = vpop.f32.mrf.mxu0
        %v5666 = vadd.f32 %v5532, %v5665
        %v5667 = vpop.f32.mrf.mxu0
        %v5668 = vadd.f32 %v5532, %v5667
        %5669 = vmatprep.mubr.f32.mxu0 0.0
        %5670 = vmatmul.mubr.f32.gmra.mxu0 %v5561
        %v5671 = vpop.f32.mrf.mxu0
        %v5672 = vadd.f32 %v5537, %v5671
        %v5673 = vpop.f32.mrf.mxu0
        %v5674 = vadd.f32 %v5537, %v5673
        %5675 = vdwg.mxu0
        %v5676 = vmul.f32 %v5630, 0.5
        %v5677 = vmul.f32 %v5632, 0.5
        %v5678 = vmul.f32 %v5636, 0.5
        %v5679 = vmul.f32 %v5638, 0.5
        %v5680 = vmul.f32 %v5642, 0.5
        %v5681 = vmul.f32 %v5644, 0.5
        %v5682 = vmul.f32 %v5648, 0.5
        %v5683 = vmul.f32 %v5650, 0.5
        %v5684 = vmul.f32 %v5654, 0.5
        %v5685 = vmul.f32 %v5656, 0.5
        %v5686 = vmul.f32 %v5660, 0.5
        %v5687 = vmul.f32 %v5662, 0.5
        %v5688 = vmul.f32 %v5666, 0.5
        %v5689 = vmul.f32 %v5668, 0.5
        %v5690 = vmul.f32 %v5672, 0.5
        %v5691 = vmul.f32 %v5674, 0.5
        %v5692 = vmul.f32 %v5630, 0.70710677
        %v5693 = vmul.f32 %v5632, 0.70710677
        %v5694 = vmul.f32 %v5636, 0.70710677
        %v5695 = vmul.f32 %v5638, 0.70710677
        %v5696 = vmul.f32 %v5642, 0.70710677
        %v5697 = vmul.f32 %v5644, 0.70710677
        %v5698 = vmul.f32 %v5648, 0.70710677
        %v5699 = vmul.f32 %v5650, 0.70710677
        %v5700 = vmul.f32 %v5654, 0.70710677
        %v5701 = vmul.f32 %v5656, 0.70710677
        %v5702 = vmul.f32 %v5660, 0.70710677
        %v5703 = vmul.f32 %v5662, 0.70710677
        %v5704 = vmul.f32 %v5666, 0.70710677
        %v5705 = vmul.f32 %v5668, 0.70710677
        %v5706 = vmul.f32 %v5672, 0.70710677
        %v5707 = vmul.f32 %v5674, 0.70710677
        %vm5708 = vcmp.ge.f32.partialorder %v5692, 0.0
        %vm5709 = vcmp.ge.f32.partialorder %v5693, 0.0
        %vm5710 = vcmp.ge.f32.partialorder %v5694, 0.0
        %vm5711 = vcmp.ge.f32.partialorder %v5695, 0.0
        %vm5712 = vcmp.ge.f32.partialorder %v5696, 0.0
        %vm5713 = vcmp.ge.f32.partialorder %v5697, 0.0
        %vm5714 = vcmp.ge.f32.partialorder %v5698, 0.0
        %vm5715 = vcmp.ge.f32.partialorder %v5699, 0.0
        %vm5716 = vcmp.ge.f32.partialorder %v5700, 0.0
        %vm5717 = vcmp.ge.f32.partialorder %v5701, 0.0
        %vm5718 = vcmp.ge.f32.partialorder %v5702, 0.0
        %vm5719 = vcmp.ge.f32.partialorder %v5703, 0.0
        %vm5720 = vcmp.ge.f32.partialorder %v5704, 0.0
        %vm5721 = vcmp.ge.f32.partialorder %v5705, 0.0
        %vm5722 = vcmp.ge.f32.partialorder %v5706, 0.0
        %vm5723 = vcmp.ge.f32.partialorder %v5707, 0.0
        %v5724 = vsel %vm5708, 1.0, -1.0
        %v5725 = vsel %vm5709, 1.0, -1.0
        %v5726 = vsel %vm5710, 1.0, -1.0
        %v5727 = vsel %vm5711, 1.0, -1.0
        %v5728 = vsel %vm5712, 1.0, -1.0
        %v5729 = vsel %vm5713, 1.0, -1.0
        %v5730 = vsel %vm5714, 1.0, -1.0
        %v5731 = vsel %vm5715, 1.0, -1.0
        %v5732 = vsel %vm5716, 1.0, -1.0
        %v5733 = vsel %vm5717, 1.0, -1.0
        %v5734 = vsel %vm5718, 1.0, -1.0
        %v5735 = vsel %vm5719, 1.0, -1.0
        %v5736 = vsel %vm5720, 1.0, -1.0
        %v5737 = vsel %vm5721, 1.0, -1.0
        %v5738 = vsel %vm5722, 1.0, -1.0
        %v5739 = vsel %vm5723, 1.0, -1.0
        %v5740 = vand.u32 2147483647, %v5692
        %v5741 = vand.u32 2147483647, %v5693
        %v5742 = vand.u32 2147483647, %v5694
        %v5743 = vand.u32 2147483647, %v5695
        %v5744 = vand.u32 2147483647, %v5696
        %v5745 = vand.u32 2147483647, %v5697
        %v5746 = vand.u32 2147483647, %v5698
        %v5747 = vand.u32 2147483647, %v5699
        %v5748 = vand.u32 2147483647, %v5700
        %v5749 = vand.u32 2147483647, %v5701
        %v5750 = vand.u32 2147483647, %v5702
        %v5751 = vand.u32 2147483647, %v5703
        %v5752 = vand.u32 2147483647, %v5704
        %v5753 = vand.u32 2147483647, %v5705
        %v5754 = vand.u32 2147483647, %v5706
        %v5755 = vand.u32 2147483647, %v5707
        %v5756 = vmul.f32 %v5740, 0.3275911
        %v5757 = vmul.f32 %v5741, 0.3275911
        %v5758 = vmul.f32 %v5742, 0.3275911
        %v5759 = vmul.f32 %v5743, 0.3275911
        %v5760 = vmul.f32 %v5744, 0.3275911
        %v5761 = vmul.f32 %v5745, 0.3275911
        %v5762 = vmul.f32 %v5746, 0.3275911
        %v5763 = vmul.f32 %v5747, 0.3275911
        %v5764 = vmul.f32 %v5748, 0.3275911
        %v5765 = vmul.f32 %v5749, 0.3275911
        %v5766 = vmul.f32 %v5750, 0.3275911
        %v5767 = vmul.f32 %v5751, 0.3275911
        %v5768 = vmul.f32 %v5752, 0.3275911
        %v5769 = vmul.f32 %v5753, 0.3275911
        %v5770 = vmul.f32 %v5754, 0.3275911
        %v5771 = vmul.f32 %v5755, 0.3275911
        %v5772 = vadd.f32 %v5756, 1.0
        %v5773 = vadd.f32 %v5757, 1.0
        %v5774 = vadd.f32 %v5758, 1.0
        %v5775 = vadd.f32 %v5759, 1.0
        %v5776 = vadd.f32 %v5760, 1.0
        %v5777 = vadd.f32 %v5761, 1.0
        %v5778 = vadd.f32 %v5762, 1.0
        %v5779 = vadd.f32 %v5763, 1.0
        %v5780 = vadd.f32 %v5764, 1.0
        %v5781 = vadd.f32 %v5765, 1.0
        %v5782 = vadd.f32 %v5766, 1.0
        %v5783 = vadd.f32 %v5767, 1.0
        %v5784 = vadd.f32 %v5768, 1.0
        %v5785 = vadd.f32 %v5769, 1.0
        %v5786 = vadd.f32 %v5770, 1.0
        %v5787 = vadd.f32 %v5771, 1.0
        %v5788 = vrcp.pop %v5772
        %v5789 = vmul.f32 1.0, %v5788
        %v5790 = vrcp.pop %v5773
        %v5791 = vmul.f32 1.0, %v5790
        %v5792 = vrcp.pop %v5774
        %v5793 = vmul.f32 1.0, %v5792
        %v5794 = vrcp.pop %v5775
        %v5795 = vmul.f32 1.0, %v5794
        %v5796 = vrcp.pop %v5776
        %v5797 = vmul.f32 1.0, %v5796
        %v5798 = vrcp.pop %v5777
        %v5799 = vmul.f32 1.0, %v5798
        %v5800 = vrcp.pop %v5778
        %v5801 = vmul.f32 1.0, %v5800
        %v5802 = vrcp.pop %v5779
        %v5803 = vmul.f32 1.0, %v5802
        %v5804 = vrcp.pop %v5780
        %v5805 = vmul.f32 1.0, %v5804
        %v5806 = vrcp.pop %v5781
        %v5807 = vmul.f32 1.0, %v5806
        %v5808 = vrcp.pop %v5782
        %v5809 = vmul.f32 1.0, %v5808
        %v5810 = vrcp.pop %v5783
        %v5811 = vmul.f32 1.0, %v5810
        %v5812 = vrcp.pop %v5784
        %v5813 = vmul.f32 1.0, %v5812
        %v5814 = vrcp.pop %v5785
        %v5815 = vmul.f32 1.0, %v5814
        %v5816 = vrcp.pop %v5786
        %v5817 = vmul.f32 1.0, %v5816
        %v5818 = vrcp.pop %v5787
        %v5819 = vmul.f32 1.0, %v5818
        %v5820 = vmul.f32 %v5789, 1.0614054
        %v5821 = vmul.f32 %v5791, 1.0614054
        %v5822 = vmul.f32 %v5793, 1.0614054
        %v5823 = vmul.f32 %v5795, 1.0614054
        %v5824 = vmul.f32 %v5797, 1.0614054
        %v5825 = vmul.f32 %v5799, 1.0614054
        %v5826 = vmul.f32 %v5801, 1.0614054
        %v5827 = vmul.f32 %v5803, 1.0614054
        %v5828 = vmul.f32 %v5805, 1.0614054
        %v5829 = vmul.f32 %v5807, 1.0614054
        %v5830 = vmul.f32 %v5809, 1.0614054
        %v5831 = vmul.f32 %v5811, 1.0614054
        %v5832 = vmul.f32 %v5813, 1.0614054
        %v5833 = vmul.f32 %v5815, 1.0614054
        %v5834 = vmul.f32 %v5817, 1.0614054
        %v5835 = vmul.f32 %v5819, 1.0614054
        %v5836 = vadd.f32 %v5820, -1.4531521
        %v5837 = vadd.f32 %v5821, -1.4531521
        %v5838 = vadd.f32 %v5822, -1.4531521
        %v5839 = vadd.f32 %v5823, -1.4531521
        %v5840 = vadd.f32 %v5824, -1.4531521
        %v5841 = vadd.f32 %v5825, -1.4531521
        %v5842 = vadd.f32 %v5826, -1.4531521
        %v5843 = vadd.f32 %v5827, -1.4531521
        %v5844 = vadd.f32 %v5828, -1.4531521
        %v5845 = vadd.f32 %v5829, -1.4531521
        %v5846 = vadd.f32 %v5830, -1.4531521
        %v5847 = vadd.f32 %v5831, -1.4531521
        %v5848 = vadd.f32 %v5832, -1.4531521
        %v5849 = vadd.f32 %v5833, -1.4531521
        %v5850 = vadd.f32 %v5834, -1.4531521
        %v5851 = vadd.f32 %v5835, -1.4531521
        %v5852 = vmul.f32 %v5836, %v5789
        %v5853 = vmul.f32 %v5837, %v5791
        %v5854 = vmul.f32 %v5838, %v5793
        %v5855 = vmul.f32 %v5839, %v5795
        %v5856 = vmul.f32 %v5840, %v5797
        %v5857 = vmul.f32 %v5841, %v5799
        %v5858 = vmul.f32 %v5842, %v5801
        %v5859 = vmul.f32 %v5843, %v5803
        %v5860 = vmul.f32 %v5844, %v5805
        %v5861 = vmul.f32 %v5845, %v5807
        %v5862 = vmul.f32 %v5846, %v5809
        %v5863 = vmul.f32 %v5847, %v5811
        %v5864 = vmul.f32 %v5848, %v5813
        %v5865 = vmul.f32 %v5849, %v5815
        %v5866 = vmul.f32 %v5850, %v5817
        %v5867 = vmul.f32 %v5851, %v5819
        %v5868 = vadd.f32 %v5852, 1.4214138
        %v5869 = vadd.f32 %v5853, 1.4214138
        %v5870 = vadd.f32 %v5854, 1.4214138
        %v5871 = vadd.f32 %v5855, 1.4214138
        %v5872 = vadd.f32 %v5856, 1.4214138
        %v5873 = vadd.f32 %v5857, 1.4214138
        %v5874 = vadd.f32 %v5858, 1.4214138
        %v5875 = vadd.f32 %v5859, 1.4214138
        %v5876 = vadd.f32 %v5860, 1.4214138
        %v5877 = vadd.f32 %v5861, 1.4214138
        %v5878 = vadd.f32 %v5862, 1.4214138
        %v5879 = vadd.f32 %v5863, 1.4214138
        %v5880 = vadd.f32 %v5864, 1.4214138
        %v5881 = vadd.f32 %v5865, 1.4214138
        %v5882 = vadd.f32 %v5866, 1.4214138
        %v5883 = vadd.f32 %v5867, 1.4214138
        %v5884 = vmul.f32 %v5868, %v5789
        %v5885 = vmul.f32 %v5869, %v5791
        %v5886 = vmul.f32 %v5870, %v5793
        %v5887 = vmul.f32 %v5871, %v5795
        %v5888 = vmul.f32 %v5872, %v5797
        %v5889 = vmul.f32 %v5873, %v5799
        %v5890 = vmul.f32 %v5874, %v5801
        %v5891 = vmul.f32 %v5875, %v5803
        %v5892 = vmul.f32 %v5876, %v5805
        %v5893 = vmul.f32 %v5877, %v5807
        %v5894 = vmul.f32 %v5878, %v5809
        %v5895 = vmul.f32 %v5879, %v5811
        %v5896 = vmul.f32 %v5880, %v5813
        %v5897 = vmul.f32 %v5881, %v5815
        %v5898 = vmul.f32 %v5882, %v5817
        %v5899 = vmul.f32 %v5883, %v5819
        %v5900 = vadd.f32 %v5884, -0.28449672
        %v5901 = vadd.f32 %v5885, -0.28449672
        %v5902 = vadd.f32 %v5886, -0.28449672
        %v5903 = vadd.f32 %v5887, -0.28449672
        %v5904 = vadd.f32 %v5888, -0.28449672
        %v5905 = vadd.f32 %v5889, -0.28449672
        %v5906 = vadd.f32 %v5890, -0.28449672
        %v5907 = vadd.f32 %v5891, -0.28449672
        %v5908 = vadd.f32 %v5892, -0.28449672
        %v5909 = vadd.f32 %v5893, -0.28449672
        %v5910 = vadd.f32 %v5894, -0.28449672
        %v5911 = vadd.f32 %v5895, -0.28449672
        %v5912 = vadd.f32 %v5896, -0.28449672
        %v5913 = vadd.f32 %v5897, -0.28449672
        %v5914 = vadd.f32 %v5898, -0.28449672
        %v5915 = vadd.f32 %v5899, -0.28449672
        %v5916 = vmul.f32 %v5900, %v5789
        %v5917 = vmul.f32 %v5901, %v5791
        %v5918 = vmul.f32 %v5902, %v5793
        %v5919 = vmul.f32 %v5903, %v5795
        %v5920 = vmul.f32 %v5904, %v5797
        %v5921 = vmul.f32 %v5905, %v5799
        %v5922 = vmul.f32 %v5906, %v5801
        %v5923 = vmul.f32 %v5907, %v5803
        %v5924 = vmul.f32 %v5908, %v5805
        %v5925 = vmul.f32 %v5909, %v5807
        %v5926 = vmul.f32 %v5910, %v5809
        %v5927 = vmul.f32 %v5911, %v5811
        %v5928 = vmul.f32 %v5912, %v5813
        %v5929 = vmul.f32 %v5913, %v5815
        %v5930 = vmul.f32 %v5914, %v5817
        %v5931 = vmul.f32 %v5915, %v5819
        %v5932 = vadd.f32 %v5916, 0.2548296
        %v5933 = vadd.f32 %v5917, 0.2548296
        %v5934 = vadd.f32 %v5918, 0.2548296
        %v5935 = vadd.f32 %v5919, 0.2548296
        %v5936 = vadd.f32 %v5920, 0.2548296
        %v5937 = vadd.f32 %v5921, 0.2548296
        %v5938 = vadd.f32 %v5922, 0.2548296
        %v5939 = vadd.f32 %v5923, 0.2548296
        %v5940 = vadd.f32 %v5924, 0.2548296
        %v5941 = vadd.f32 %v5925, 0.2548296
        %v5942 = vadd.f32 %v5926, 0.2548296
        %v5943 = vadd.f32 %v5927, 0.2548296
        %v5944 = vadd.f32 %v5928, 0.2548296
        %v5945 = vadd.f32 %v5929, 0.2548296
        %v5946 = vadd.f32 %v5930, 0.2548296
        %v5947 = vadd.f32 %v5931, 0.2548296
        %v5948 = vmul.f32 %v5932, %v5789
        %v5949 = vmul.f32 %v5933, %v5791
        %v5950 = vmul.f32 %v5934, %v5793
        %v5951 = vmul.f32 %v5935, %v5795
        %v5952 = vmul.f32 %v5936, %v5797
        %v5953 = vmul.f32 %v5937, %v5799
        %v5954 = vmul.f32 %v5938, %v5801
        %v5955 = vmul.f32 %v5939, %v5803
        %v5956 = vmul.f32 %v5940, %v5805
        %v5957 = vmul.f32 %v5941, %v5807
        %v5958 = vmul.f32 %v5942, %v5809
        %v5959 = vmul.f32 %v5943, %v5811
        %v5960 = vmul.f32 %v5944, %v5813
        %v5961 = vmul.f32 %v5945, %v5815
        %v5962 = vmul.f32 %v5946, %v5817
        %v5963 = vmul.f32 %v5947, %v5819
        %v5964 = vsub.f32 0.0, %v5740
        %v5965 = vsub.f32 0.0, %v5741
        %v5966 = vsub.f32 0.0, %v5742
        %v5967 = vsub.f32 0.0, %v5743
        %v5968 = vsub.f32 0.0, %v5744
        %v5969 = vsub.f32 0.0, %v5745
        %v5970 = vsub.f32 0.0, %v5746
        %v5971 = vsub.f32 0.0, %v5747
        %v5972 = vsub.f32 0.0, %v5748
        %v5973 = vsub.f32 0.0, %v5749
        %v5974 = vsub.f32 0.0, %v5750
        %v5975 = vsub.f32 0.0, %v5751
        %v5976 = vsub.f32 0.0, %v5752
        %v5977 = vsub.f32 0.0, %v5753
        %v5978 = vsub.f32 0.0, %v5754
        %v5979 = vsub.f32 0.0, %v5755
        %v5980 = vmul.f32 %v5964, %v5740
        %v5981 = vmul.f32 %v5965, %v5741
        %v5982 = vmul.f32 %v5966, %v5742
        %v5983 = vmul.f32 %v5967, %v5743
        %v5984 = vmul.f32 %v5968, %v5744
        %v5985 = vmul.f32 %v5969, %v5745
        %v5986 = vmul.f32 %v5970, %v5746
        %v5987 = vmul.f32 %v5971, %v5747
        %v5988 = vmul.f32 %v5972, %v5748
        %v5989 = vmul.f32 %v5973, %v5749
        %v5990 = vmul.f32 %v5974, %v5750
        %v5991 = vmul.f32 %v5975, %v5751
        %v5992 = vmul.f32 %v5976, %v5752
        %v5993 = vmul.f32 %v5977, %v5753
        %v5994 = vmul.f32 %v5978, %v5754
        %v5995 = vmul.f32 %v5979, %v5755
        %v5996 = vmul.f32 %v5980, 1.442695
        %v5997 = vpow.pop %v5996
        %v5998 = vmul.f32 %v5981, 1.442695
        %v5999 = vpow.pop %v5998
        %v6000 = vmul.f32 %v5982, 1.442695
        %v6001 = vpow.pop %v6000
        %v6002 = vmul.f32 %v5983, 1.442695
        %v6003 = vpow.pop %v6002
        %v6004 = vmul.f32 %v5984, 1.442695
        %v6005 = vpow.pop %v6004
        %v6006 = vmul.f32 %v5985, 1.442695
        %v6007 = vpow.pop %v6006
        %v6008 = vmul.f32 %v5986, 1.442695
        %v6009 = vpow.pop %v6008
        %v6010 = vmul.f32 %v5987, 1.442695
        %v6011 = vpow.pop %v6010
        %v6012 = vmul.f32 %v5988, 1.442695
        %v6013 = vpow.pop %v6012
        %v6014 = vmul.f32 %v5989, 1.442695
        %v6015 = vpow.pop %v6014
        %v6016 = vmul.f32 %v5990, 1.442695
        %v6017 = vpow.pop %v6016
        %v6018 = vmul.f32 %v5991, 1.442695
        %v6019 = vpow.pop %v6018
        %v6020 = vmul.f32 %v5992, 1.442695
        %v6021 = vpow.pop %v6020
        %v6022 = vmul.f32 %v5993, 1.442695
        %v6023 = vpow.pop %v6022
        %v6024 = vmul.f32 %v5994, 1.442695
        %v6025 = vpow.pop %v6024
        %v6026 = vmul.f32 %v5995, 1.442695
        %v6027 = vpow.pop %v6026
        %v6028 = vmul.f32 %v5948, %v5997
        %v6029 = vmul.f32 %v5949, %v5999
        %v6030 = vmul.f32 %v5950, %v6001
        %v6031 = vmul.f32 %v5951, %v6003
        %v6032 = vmul.f32 %v5952, %v6005
        %v6033 = vmul.f32 %v5953, %v6007
        %v6034 = vmul.f32 %v5954, %v6009
        %v6035 = vmul.f32 %v5955, %v6011
        %v6036 = vmul.f32 %v5956, %v6013
        %v6037 = vmul.f32 %v5957, %v6015
        %v6038 = vmul.f32 %v5958, %v6017
        %v6039 = vmul.f32 %v5959, %v6019
        %v6040 = vmul.f32 %v5960, %v6021
        %v6041 = vmul.f32 %v5961, %v6023
        %v6042 = vmul.f32 %v5962, %v6025
        %v6043 = vmul.f32 %v5963, %v6027
        %v6044 = vsub.f32 1.0, %v6028
        %v6045 = vsub.f32 1.0, %v6029
        %v6046 = vsub.f32 1.0, %v6030
        %v6047 = vsub.f32 1.0, %v6031
        %v6048 = vsub.f32 1.0, %v6032
        %v6049 = vsub.f32 1.0, %v6033
        %v6050 = vsub.f32 1.0, %v6034
        %v6051 = vsub.f32 1.0, %v6035
        %v6052 = vsub.f32 1.0, %v6036
        %v6053 = vsub.f32 1.0, %v6037
        %v6054 = vsub.f32 1.0, %v6038
        %v6055 = vsub.f32 1.0, %v6039
        %v6056 = vsub.f32 1.0, %v6040
        %v6057 = vsub.f32 1.0, %v6041
        %v6058 = vsub.f32 1.0, %v6042
        %v6059 = vsub.f32 1.0, %v6043
        %v6060 = vmul.f32 %v5724, %v6044
        %v6061 = vmul.f32 %v5725, %v6045
        %v6062 = vmul.f32 %v5726, %v6046
        %v6063 = vmul.f32 %v5727, %v6047
        %v6064 = vmul.f32 %v5728, %v6048
        %v6065 = vmul.f32 %v5729, %v6049
        %v6066 = vmul.f32 %v5730, %v6050
        %v6067 = vmul.f32 %v5731, %v6051
        %v6068 = vmul.f32 %v5732, %v6052
        %v6069 = vmul.f32 %v5733, %v6053
        %v6070 = vmul.f32 %v5734, %v6054
        %v6071 = vmul.f32 %v5735, %v6055
        %v6072 = vmul.f32 %v5736, %v6056
        %v6073 = vmul.f32 %v5737, %v6057
        %v6074 = vmul.f32 %v5738, %v6058
        %v6075 = vmul.f32 %v5739, %v6059
        %v6076 = vadd.f32 %v6060, 1.0
        %v6077 = vadd.f32 %v6061, 1.0
        %v6078 = vadd.f32 %v6062, 1.0
        %v6079 = vadd.f32 %v6063, 1.0
        %v6080 = vadd.f32 %v6064, 1.0
        %v6081 = vadd.f32 %v6065, 1.0
        %v6082 = vadd.f32 %v6066, 1.0
        %v6083 = vadd.f32 %v6067, 1.0
        %v6084 = vadd.f32 %v6068, 1.0
        %v6085 = vadd.f32 %v6069, 1.0
        %v6086 = vadd.f32 %v6070, 1.0
        %v6087 = vadd.f32 %v6071, 1.0
        %v6088 = vadd.f32 %v6072, 1.0
        %v6089 = vadd.f32 %v6073, 1.0
        %v6090 = vadd.f32 %v6074, 1.0
        %v6091 = vadd.f32 %v6075, 1.0
        %v6092 = vmul.f32 %v5676, %v6076
        %v6093 = vmul.f32 %v5677, %v6077
        %v6094 = vmul.f32 %v5678, %v6078
        %v6095 = vmul.f32 %v5679, %v6079
        %v6096 = vmul.f32 %v5680, %v6080
        %v6097 = vmul.f32 %v5681, %v6081
        %v6098 = vmul.f32 %v5682, %v6082
        %v6099 = vmul.f32 %v5683, %v6083
        %v6100 = vmul.f32 %v5684, %v6084
        %v6101 = vmul.f32 %v5685, %v6085
        %v6102 = vmul.f32 %v5686, %v6086
        %v6103 = vmul.f32 %v5687, %v6087
        %v6104 = vmul.f32 %v5688, %v6088
        %v6105 = vmul.f32 %v5689, %v6089
        %v6106 = vmul.f32 %v5690, %v6090
        %v6107 = vmul.f32 %v5691, %v6091
        %s6108 = scalar_lea.vmem %s4, 32
        %v6109 = vld [vmem:[%s6108] sm:$0xff]
        %v6110 = vld [vmem:[%s6108 + $0x8] sm:$0xff]
        %v6111 = vld [vmem:[%s6108 + $0x10] sm:$0xff]
        %v6112 = vld [vmem:[%s6108 + $0x18] sm:$0xff]
        %s6113 = scalar_lea.vmem %s5, 32
        %v6114 = vld [vmem:[%s6113] sm:$0xff]
        %v6115 = vld [vmem:[%s6113 + $0x8] sm:$0xff]
        %v6116 = vld [vmem:[%s6113 + $0x10] sm:$0xff]
        %v6117 = vld [vmem:[%s6113 + $0x18] sm:$0xff]
        %6119 = vset.pattern.permute.xlu0 0
        %6120 = vperm.xlu0 %6119, %v6114
        %v6121 = vpop.permute.xlu0 %6120
        %6124 = vset.pattern.permute.xlu0 0
        %6125 = vperm.xlu0 %6124, %v6115
        %v6126 = vpop.permute.xlu0 %6125
        %6129 = vset.pattern.permute.xlu0 0
        %6130 = vperm.xlu0 %6129, %v6116
        %v6131 = vpop.permute.xlu0 %6130
        %6134 = vset.pattern.permute.xlu0 0
        %6135 = vperm.xlu0 %6134, %v6117
        %v6136 = vpop.permute.xlu0 %6135
        %v6139 = vsel %vm3366, %v6109, 0
        %v6142 = vsel %vm3366, %v6110, 0
        %v6145 = vsel %vm3366, %v6111, 0
        %v6148 = vsel %vm3366, %v6112, 0
        %6150 = vmatprep.subr.mxu0 0.0
        %6151 = vmatpush1.msra.mxu0 0.0
        %6152 = vmatprep.subr.mxu0 0.0
        %6153 = vmatpush1.msra.mxu0 0.0
        %6154 = vmatprep.subr.mxu0 0.0
        %6155 = vmatpush1.msra.mxu0 0.0
        %6156 = vmatprep.subr.mxu0 0.0
        %6157 = vmatpush1.msra.mxu0 0.0
        %6158 = vmatprep.subr.mxu0 0.0
        %6159 = vmatpush1.msra.mxu0 0.0
        %6160 = vmatprep.subr.mxu0 0.0
        %6161 = vmatpush1.msra.mxu0 0.0
        %6162 = vmatprep.subr.mxu0 0.0
        %6163 = vmatpush1.msra.mxu0 0.0
        %6164 = vmatprep.subr.mxu0 0.0
        %6165 = vmatpush1.msra.mxu0 0.0
        %6166 = vmatprep.subr.mxu0 %v6107
        %6167 = vmatpush1.msra.mxu0 %v6106
        %6168 = vmatprep.subr.mxu0 %v6105
        %6169 = vmatpush1.msra.mxu0 %v6104
        %6170 = vmatprep.subr.mxu0 %v6103
        %6171 = vmatpush1.msra.mxu0 %v6102
        %6172 = vmatprep.subr.mxu0 %v6101
        %6173 = vmatpush1.msra.mxu0 %v6100
        %6174 = vmatprep.subr.mxu0 %v6099
        %6175 = vmatpush1.msra.mxu0 %v6098
        %6176 = vmatprep.subr.mxu0 %v6097
        %6177 = vmatpush1.msra.mxu0 %v6096
        %6178 = vmatprep.subr.mxu0 %v6095
        %6179 = vmatpush1.msra.mxu0 %v6094
        %6180 = vmatprep.subr.mxu0 %v6093
        %6181 = vmatpush1.msra.mxu0 %v6092
        %6182 = vmatprep.subr.mxu0 0.0
        %6183 = vmatpush2.msra.mxu0 0.0
        %6184 = vmatprep.subr.mxu0 0.0
        %6185 = vmatpush2.msra.mxu0 0.0
        %6186 = vmatprep.subr.mxu0 0.0
        %6187 = vmatpush2.msra.mxu0 0.0
        %6188 = vmatprep.subr.mxu0 0.0
        %6189 = vmatpush2.msra.mxu0 0.0
        %6190 = vmatprep.subr.mxu0 0.0
        %6191 = vmatpush2.msra.mxu0 0.0
        %6192 = vmatprep.subr.mxu0 0.0
        %6193 = vmatpush2.msra.mxu0 0.0
        %6194 = vmatprep.subr.mxu0 0.0
        %6195 = vmatpush2.msra.mxu0 0.0
        %6196 = vmatprep.subr.mxu0 0.0
        %6197 = vmatpush2.msra.mxu0 0.0
        %6198 = vmatprep.subr.mxu0 0.0
        %6199 = vmatpush2.msra.mxu0 0.0
        %6200 = vmatprep.subr.mxu0 0.0
        %6201 = vmatpush2.msra.mxu0 0.0
        %6202 = vmatprep.subr.mxu0 0.0
        %6203 = vmatpush2.msra.mxu0 0.0
        %6204 = vmatprep.subr.mxu0 0.0
        %6205 = vmatpush2.msra.mxu0 0.0
        %6206 = vmatprep.subr.mxu0 0.0
        %6207 = vmatpush2.msra.mxu0 0.0
        %6208 = vmatprep.subr.mxu0 0.0
        %6209 = vmatpush2.msra.mxu0 0.0
        %6210 = vmatprep.subr.mxu0 0.0
        %6211 = vmatpush2.msra.mxu0 0.0
        %6212 = vmatprep.subr.mxu0 0.0
        %6213 = vmatpush2.msra.mxu0 0.0
        %6214 = vmatprep.mubr.f32.mxu0 0.0
        %6215 = vmatmul.mubr.f32.gmra.mxu0 %v6139
        %v6216 = vpop.f32.mrf.mxu0
        %v6217 = vadd.f32 %v6121, %v6216
        %v6218 = vpop.f32.mrf.mxu0
        %v6219 = vadd.f32 %v6121, %v6218
        %6220 = vmatprep.mubr.f32.mxu0 0.0
        %6221 = vmatmul.mubr.f32.gmra.mxu0 %v6142
        %v6222 = vpop.f32.mrf.mxu0
        %v6223 = vadd.f32 %v6126, %v6222
        %v6224 = vpop.f32.mrf.mxu0
        %v6225 = vadd.f32 %v6126, %v6224
        %6226 = vmatprep.mubr.f32.mxu0 0.0
        %6227 = vmatmul.mubr.f32.gmra.mxu0 %v6145
        %v6228 = vpop.f32.mrf.mxu0
        %v6229 = vadd.f32 %v6131, %v6228
        %v6230 = vpop.f32.mrf.mxu0
        %v6231 = vadd.f32 %v6131, %v6230
        %6232 = vmatprep.mubr.f32.mxu0 0.0
        %6233 = vmatmul.mubr.f32.gmra.mxu0 %v6148
        %v6234 = vpop.f32.mrf.mxu0
        %v6235 = vadd.f32 %v6136, %v6234
        %v6236 = vpop.f32.mrf.mxu0
        %v6237 = vadd.f32 %v6136, %v6236
        %6238 = vdwg.mxu0
        %s6239 = scalar_lea.vmem %s1, 1696
        %v6240 = vld [vmem:[%s6239] sm:$0xff]
        %v6241 = vld [vmem:[%s6239 + $0x8] sm:$0xff]
        %v6242 = vld [vmem:[%s6239 + $0x10] sm:$0xff]
        %v6243 = vld [vmem:[%s6239 + $0x18] sm:$0xff]
        %6245 = vset.pattern.permute.xlu0 0
        %6246 = vperm.xlu0 %6245, %v6240
        %v6247 = vpop.permute.xlu0 %6246
        %6250 = vset.pattern.permute.xlu0 0
        %6251 = vperm.xlu0 %6250, %v6241
        %v6252 = vpop.permute.xlu0 %6251
        %6255 = vset.pattern.permute.xlu0 0
        %6256 = vperm.xlu0 %6255, %v6242
        %v6257 = vpop.permute.xlu0 %6256
        %6260 = vset.pattern.permute.xlu0 0
        %6261 = vperm.xlu0 %6260, %v6243
        %v6262 = vpop.permute.xlu0 %6261
        %v6264 = vmul.f32 %v6217, %v6247
        %v6265 = vmul.f32 %v6219, %v6247
        %v6266 = vmul.f32 %v6223, %v6252
        %v6267 = vmul.f32 %v6225, %v6252
        %v6268 = vmul.f32 %v6229, %v6257
        %v6269 = vmul.f32 %v6231, %v6257
        %v6270 = vmul.f32 %v6235, %v6262
        %v6271 = vmul.f32 %v6237, %v6262
        %v6272 = vadd.f32 %v6264, %v3501
        %v6273 = vadd.f32 %v6265, %v3502
        %v6274 = vadd.f32 %v6266, %v3503
        %v6275 = vadd.f32 %v6267, %v3504
        %v6276 = vadd.f32 %v6268, %v3505
        %v6277 = vadd.f32 %v6269, %v3506
        %v6278 = vadd.f32 %v6270, %v3507
        %v6279 = vadd.f32 %v6271, %v3508
        %6280 = vst [vmem:[%s379] sm:$0xff] %v6272
        %6281 = vst [vmem:[%s379 + $0x8] sm:$0xff] %v6273
        %6282 = vst [vmem:[%s379 + $0x10] sm:$0xff] %v6274
        %6283 = vst [vmem:[%s379 + $0x18] sm:$0xff] %v6275
        %6284 = vst [vmem:[%s379 + $0x20] sm:$0xff] %v6276
        %6285 = vst [vmem:[%s379 + $0x28] sm:$0xff] %v6277
        %6286 = vst [vmem:[%s379 + $0x30] sm:$0xff] %v6278
        %6287 = vst [vmem:[%s379 + $0x38] sm:$0xff] %v6279
        %s6288 = sand.u32 %s269, 1
        %s6289 = scalar_lea.sflag [#allocation3], %s6288
        %s6290 = sand.u32 %s269, 1
        %s6291 = smul.addr %s6290, 64
        %s6292 = scalar_lea.vmem [#allocation2], %s6291
        // Predicated region
        $region65: #{tpu_custom_call.1} parent=63 // pred_check
          %p6293 = pneg %p279
        $region66: #{tpu_custom_call.1} parent=63 // pred_check_branch
          %6295 = sbr.rel (%p6293) target = $region68
        $region67: #{tpu_custom_call.1} parent=63 // pred_region
          %s6297 = ssub.s32 1024, 1024
          %6298 = vsyncadd %s6289, %s6297
          %s6299 = smul.addr %s25, 8
          %s6300 = smul.addr %s6299, 128
          %s6301 = scalar_lea.hbm %s11, %s6300
          %s6302 = sshll.u32 %s6292, 4
          %s6303 = int_to_ptr.vmem [resolvable:$true] %s6302
          %6308 = dma.vmem_to_hbm [thread:$0]  %s6303, 1024, %s6301, %s6289, 256, 256, 16
        $region68: #{tpu_custom_call.1} parent=63 // pred_fallthru
          _
      $region64: #{tpu_custom_call.1} parent=5 // pred_fallthru
        _
      %p6309 = scmp.le.s32.totalorder 2, %s20
      // Predicated region
      $region69: #{tpu_custom_call.1} parent=5 // pred_check
        %p6310 = pneg %p6309
      $region70: #{tpu_custom_call.1} parent=5 // pred_check_branch
        %6312 = sbr.rel (%p6310) target = $region72
      $region71: #{tpu_custom_call.1} parent=5 // pred_region
        %s6313 = ssub.s32 %s20, 2
        // Predicated region
        $region73: #{tpu_custom_call.1} parent=71 // pred_check
          %p6314 = pneg %p285
        $region74: #{tpu_custom_call.1} parent=71 // pred_check_branch
          %6316 = sbr.rel (%p6314) target = $region76
        $region75: #{tpu_custom_call.1} parent=71 // pred_region
          %s6317 = sand.u32 %s270, 1
          %s6318 = scalar_lea.sflag [#allocation3], %s6317
          %s6319 = sand.u32 %s270, 1
          %s6320 = smul.addr %s6319, 64
          %s6321 = scalar_lea.vmem [#allocation2], %s6320
          %6322 = dma.done %s6318, 1024
        $region76: #{tpu_custom_call.1} parent=71 // pred_fallthru
          _
      $region72: #{tpu_custom_call.1} parent=5 // pred_fallthru
        _
    $region6: #{tpu_custom_call.1} parent=1 // loop_footer
      %s24 = sadd.s32 1, %s20
    $region7: #{tpu_custom_call.1} parent=1 // loop_footer_branch
      %19 = sbr.rel target = $region3
    $region8: #{tpu_custom_call.1} parent=1 // loop_exit
      _
    %6323 = vsyncpa [#allocation3], 1
    %s6324 = scalar_lea.sflag [#allocation3], 1
    %6325 = vsyncpa %s6324, 1

</llo_original>
